<compile_context>
chip_gen: v6e
topology: v6e:2x2x1
jax: 0.10.0
libtpu: 0.0.40
codegen_flags: <defaults>
</compile_context>

<pallas_src>
import functools
import numpy as np
import jax
import jax.numpy as jnp
from jax.experimental import pallas as pl
from jax.experimental.pallas import tpu as pltpu

LEAKY_SLOPE = 0.01          # nn.LeakyReLU default
BN_EPS = 1e-5               # nn.BatchNorm2d default
MAX_TILE_ELEMS = 512        # max spatial lanes per grid step (multiple of 128)
VMEM_LIMIT = 32 * 1024 * 1024


# ----------------------------- Pallas kernels -------------------------------

def convt_poly_kernel(x_ref, scale_ref, shift_ref, w_ref, b_ref,
                      y_ref, stats_ref, taps_ref, halo_ref,
                      *, apply_prologue, win):
    """Polyphase ConvTranspose2d(k3,s2,p1,op1)+bias for one (image, row-tile).

    Fuses the previous layer's BN affine + LeakyReLU (prologue) and emits this
    layer's per-tile BatchNorm partial sums.  Row tiles are iterated
    bottom-to-top so the 1-row bottom halo is carried in `halo_ref`.

      x_ref     : (1, Cin, TS)      raw (pre-BN) activation tile, TS = TH*W
      scale_ref : (Cin, 1)          prologue BN scale (ignored if no prologue)
      shift_ref : (Cin, 1)          prologue BN shift
      w_ref     : (4*Cout, 4*Cin)   packed polyphase weight (bf16)
      b_ref     : (4*Cout, 1)       bias tiled over the 4 phases (f32)
      y_ref     : (1, 4*Cout, TS)   phase-planar raw output tile (bf16)
      stats_ref : (1, 1, Cout, 2)   per-tile [sum, sum_sq] partials (f32)
      taps_ref  : (4*Cin, TS)       bf16 VMEM scratch (tap matrix)
      halo_ref  : (Cin, W)          f32 VMEM scratch (carried bottom halo row)
    """
    cin = x_ref.shape[1]
    ts = x_ref.shape[2]
    cout = w_ref.shape[0] // 4
    t = pl.program_id(1)
    bf16 = jnp.bfloat16

    # ---- prologue: previous layer's BN affine + LeakyReLU (f32 math) -------
    x = x_ref[0].astype(jnp.float32)                         # (Cin, TS)
    if apply_prologue:
        z = x * scale_ref[...] + shift_ref[...]
        a = jnp.where(z >= 0, z, LEAKY_SLOPE * z)
    else:
        a = x

    # ---- in-kernel border mask (review #7): zero on last column of a row ---
    col = jax.lax.broadcasted_iota(jnp.int32, (1, ts), 1) % win
    not_last_col = (col != (win - 1)).astype(jnp.float32)    # (1, TS)

    # ---- bottom halo: first post-prologue row of the tile below ------------
    # (tiles iterate bottom-to-top; at t == 0 the tile below is the border).
    @pl.when(t == 0)
    def _():
        halo_ref[...] = jnp.zeros_like(halo_ref)
    halo = halo_ref[...]                                     # (Cin, W) f32

    # ---- build the 4 shifted taps directly in the VMEM scratch -------------
    # tap 0: x[m, n]
    taps_ref[0:cin, :] = a.astype(bf16)
    # tap 1: x[m, n+1]   (zero on the last column of every row)
    x01 = a[:, 1:] * not_last_col[:, :ts - 1]
    taps_ref[cin:2 * cin, 0:ts - 1] = x01.astype(bf16)
    taps_ref[cin:2 * cin, ts - 1:ts] = jnp.zeros((cin, 1), bf16)
    # tap 2: x[m+1, n]   (last tile row comes from the carried halo)
    if ts > win:
        taps_ref[2 * cin:3 * cin, 0:ts - win] = a[:, win:].astype(bf16)
    taps_ref[2 * cin:3 * cin, ts - win:ts] = halo.astype(bf16)
    # tap 3: x[m+1, n+1] = tap 2 shifted left by one column + column mask
    x10 = taps_ref[2 * cin:3 * cin, :]
    x11 = x10[:, 1:].astype(jnp.float32) * not_last_col[:, :ts - 1]
    taps_ref[3 * cin:4 * cin, 0:ts - 1] = x11.astype(bf16)
    taps_ref[3 * cin:4 * cin, ts - 1:ts] = jnp.zeros((cin, 1), bf16)

    # carry: this tile's first post-prologue row is the halo of the tile above
    halo_ref[...] = a[:, 0:win]

    # ---- one MXU GEMM over the packed K = 4*Cin taps ------------------------
    y4 = jnp.dot(w_ref[...], taps_ref[...],
                 preferred_element_type=jnp.float32) + b_ref[...]

    # ---- BatchNorm batch statistics on the f32 accumulator ------------------
    p0 = y4[0 * cout:1 * cout, :]
    p1 = y4[1 * cout:2 * cout, :]
    p2 = y4[2 * cout:3 * cout, :]
    p3 = y4[3 * cout:4 * cout, :]
    stats_ref[0, 0, :, 0:1] = jnp.sum(p0 + p1 + p2 + p3, axis=1, keepdims=True)
    stats_ref[0, 0, :, 1:2] = jnp.sum(p0 * p0 + p1 * p1 + p2 * p2 + p3 * p3,
                                      axis=1, keepdims=True)

    y_ref[0] = y4.astype(y_ref.dtype)


def conv3x3_tanh_kernel(x_ref, scale_ref, shift_ref, w_ref, b_ref, o_ref,
                        g_ref, *, win):
    """3x3 stride-1 pad-1 Conv2d + bias + tanh, with the preceding layer's
    BN affine + LeakyReLU fused into the prologue.  Instead of a 9x im2col,
    three GEMMs (one per kernel row, K = 3*Cin each) accumulate in f32; the
    per-row 3-tap group is staged in the (3*Cin, S) scratch `g_ref`."""
    cin = x_ref.shape[1]
    s = x_ref.shape[2]
    bf16 = jnp.bfloat16

    z = x_ref[0].astype(jnp.float32) * scale_ref[...] + shift_ref[...]
    a = jnp.where(z >= 0, z, LEAKY_SLOPE * z)                # (Cin, S) f32

    col = jax.lax.broadcasted_iota(jnp.int32, (1, s), 1) % win
    not_first = (col != 0).astype(jnp.float32)
    not_last = (col != (win - 1)).astype(jnp.float32)

    acc = None
    for kh in range(3):                       # statically unrolled over rows
        # centre tap: input row (y + kh - 1), zero rows at the image border
        if kh == 0:
            g_ref[cin:2 * cin, 0:win] = jnp.zeros((cin, win), bf16)
            g_ref[cin:2 * cin, win:s] = a[:, :s - win].astype(bf16)
        elif kh == 1:
            g_ref[cin:2 * cin, :] = a.astype(bf16)
        else:
            g_ref[cin:2 * cin, 0:s - win] = a[:, win:].astype(bf16)
            g_ref[cin:2 * cin, s - win:s] = jnp.zeros((cin, win), bf16)
        r = g_ref[cin:2 * cin, :].astype(jnp.float32)
        # left / right column taps with border masks
        g_ref[0:cin, 0:1] = jnp.zeros((cin, 1), bf16)
        g_ref[0:cin, 1:s] = (r[:, :s - 1] * not_first[:, 1:s]).astype(bf16)
        g_ref[2 * cin:3 * cin, 0:s - 1] = (
            r[:, 1:] * not_last[:, :s - 1]).astype(bf16)
        g_ref[2 * cin:3 * cin, s - 1:s] = jnp.zeros((cin, 1), bf16)

        part = jnp.dot(w_ref[:, kh * 3 * cin:(kh + 1) * 3 * cin], g_ref[...],
                       preferred_element_type=jnp.float32)
        acc = part if acc is None else acc + part

    o_ref[0] = jnp.tanh(acc + b_ref[...])


# ------------------------------- wrappers ------------------------------------

def _choose_row_tile(h, w, max_elems=MAX_TILE_ELEMS):
    """Largest row tile TH dividing H with TH*W a multiple of 128 and
    TH*W <= max_elems; falls back to the whole image when none exists."""
    cand = [th for th in range(1, h + 1)
            if h % th == 0 and (th * w) % 128 == 0 and th * w <= max_elems]
    return max(cand) if cand else h


def _conv_transpose_block(x_flat, w_poly, b4, scale, shift, hin, win,
                          *, apply_prologue):
    n, cin, s = x_flat.shape
    cout4 = w_poly.shape[0]
    cout = cout4 // 4
    th = _choose_row_tile(hin, win)
    ts = th * win
    nt = s // ts
    kern = functools.partial(convt_poly_kernel,
                             apply_prologue=apply_prologue, win=win)
    return pl.pallas_call(
        kern,
        out_shape=(
            jax.ShapeDtypeStruct((n, cout4, s), jnp.bfloat16),
            jax.ShapeDtypeStruct((n, nt, cout, 2), jnp.float32),
        ),
        grid=(n, nt),
        in_specs=[
            # row-tile axis is reversed so the bottom halo is carried forward
            pl.BlockSpec((1, cin, ts), lambda i, t: (i, 0, nt - 1 - t)),
            pl.BlockSpec((cin, 1), lambda i, t: (0, 0)),
            pl.BlockSpec((cin, 1), lambda i, t: (0, 0)),
            pl.BlockSpec((cout4, 4 * cin), lambda i, t: (0, 0)),
            pl.BlockSpec((cout4, 1), lambda i, t: (0, 0)),
        ],
        out_specs=(
            pl.BlockSpec((1, cout4, ts), lambda i, t: (i, 0, nt - 1 - t)),
            pl.BlockSpec((1, 1, cout, 2), lambda i, t: (i, nt - 1 - t, 0, 0)),
        ),
        scratch_shapes=[pltpu.VMEM((4 * cin, ts), jnp.bfloat16),
                        pltpu.VMEM((cin, win), jnp.float32)],
        compiler_params=pltpu.CompilerParams(
            dimension_semantics=("parallel", "arbitrary"),
            vmem_limit_bytes=VMEM_LIMIT),
    )(x_flat, scale, shift, w_poly, b4)


def _conv3x3_tanh(x_flat, w9, b, scale, shift, win):
    n, cin, s = x_flat.shape
    cout = w9.shape[0]
    kern = functools.partial(conv3x3_tanh_kernel, win=win)
    return pl.pallas_call(
        kern,
        out_shape=jax.ShapeDtypeStruct((n, cout, s), jnp.float32),
        grid=(n,),
        in_specs=[
            pl.BlockSpec((1, cin, s), lambda i: (i, 0, 0)),
            pl.BlockSpec((cin, 1), lambda i: (0, 0)),
            pl.BlockSpec((cin, 1), lambda i: (0, 0)),
            pl.BlockSpec((cout, 9 * cin), lambda i: (0, 0)),
            pl.BlockSpec((cout, 1), lambda i: (0, 0)),
        ],
        out_specs=pl.BlockSpec((1, cout, s), lambda i: (i, 0, 0)),
        scratch_shapes=[pltpu.VMEM((3 * cin, s), jnp.bfloat16)],
        compiler_params=pltpu.CompilerParams(
            dimension_semantics=("parallel",),
            vmem_limit_bytes=VMEM_LIMIT),
    )(x_flat, scale, shift, w9, b)


def _phase_interleave(y4, cout, hin, win):
    # (N, 4*Cout, Hin*Win) phase-planar -> (N, Cout, 2*Hin, 2*Win) NCHW.
    # TODO(synk): remaining per-layer XLA transpose (see header comment).
    n = y4.shape[0]
    y = y4.reshape(n, 2, 2, cout, hin, win)       # (n, ry, rx, c, m, w)
    y = jnp.transpose(y, (0, 3, 4, 1, 5, 2))      # (n, c, m, ry, w, rx)
    return y.reshape(n, cout, 2 * hin, 2 * win)


def _bn_affine(stats, gamma, beta, count):
    # stats: (N, n_tiles, Cout, 2) per-tile f32 partial [sum, sum_sq].
    s = jnp.sum(stats[..., 0], axis=(0, 1))
    q = jnp.sum(stats[..., 1], axis=(0, 1))
    mean = s / count
    # E[x^2]-E[x]^2 on f32 per-tile partials; clamp guards cancellation.
    var = jnp.maximum(q / count - mean * mean, 0.0)
    scale = gamma / jnp.sqrt(var + BN_EPS)
    shift = beta - mean * scale
    return (scale.reshape(-1, 1).astype(jnp.float32),
            shift.reshape(-1, 1).astype(jnp.float32))


def decoder_forward(params, x_nchw):
    n, c0, h, w = x_nchw.shape
    cur = x_nchw.astype(jnp.bfloat16).reshape(n, c0, h * w)   # bf16 input DMA
    scale = jnp.ones((c0, 1), jnp.float32)
    shift = jnp.zeros((c0, 1), jnp.float32)
    first = True
    for blk in params["ct_blocks"]:
        cout = blk["w_poly"].shape[0] // 4
        y4, stats = _conv_transpose_block(
            cur, blk["w_poly"], blk["b4"], scale, shift, h, w,
            apply_prologue=not first)
        y = _phase_interleave(y4, cout, h, w)            # (n, cout, 2h, 2w)
        h, w = 2 * h, 2 * w
        cur = y.reshape(n, cout, h * w)
        scale, shift = _bn_affine(stats, blk["gamma"], blk["beta"],
                                  float(n * h * w))
        first = False

    fl = params["final_conv"]
    cout = fl["w9"].shape[0]
    out = _conv3x3_tanh(cur, fl["w9"], fl["b"], scale, shift, w)
    return out.reshape(n, cout, h, w)


# ------------------------- deterministic parameters --------------------------

def orthogonal_np(rng, shape, gain):
    rows = shape[0]
    cols = int(np.prod(shape[1:]))
    nrows, ncols = max(rows, cols), min(rows, cols)
    a = rng.standard_normal((nrows, ncols))
    q, r = np.linalg.qr(a)
    q = q * np.sign(np.diag(r))
    if rows < cols:
        q = q.T
    return (gain * q[:rows, :cols]).reshape(shape).astype(np.float32)


def _pack_poly_weight(wt):
    # wt: torch ConvTranspose2d weight layout (Cin, Cout, 3, 3).
    # Rows of the packed weight are the 4 output phases (ee, eo, oe, oo),
    # columns are the 4 taps (x[m,n], x[m,n+1], x[m+1,n], x[m+1,n+1]).
    cin, cout = wt.shape[0], wt.shape[1]
    wp = np.zeros((4 * cout, 4 * cin), np.float32)
    taps = {(0, 0): (1, 1),
            (1, 0): (1, 2), (1, 1): (1, 0),
            (2, 0): (2, 1), (2, 2): (0, 1),
            (3, 0): (2, 2), (3, 1): (2, 0), (3, 2): (0, 2), (3, 3): (0, 0)}
    for (p, q), (kh, kw) in taps.items():
        wp[p * cout:(p + 1) * cout, q * cin:(q + 1) * cin] = wt[:, :, kh, kw].T
    return wp


def init_params(out_channels, hidden_dims, seed=0):
    rng = np.random.default_rng(seed)
    gain = 2 ** 0.5
    blocks = []
    chans = list(hidden_dims) + [hidden_dims[-1]]   # decoder blocks + final CT
    for i in range(len(chans) - 1):
        cin, cout = chans[i], chans[i + 1]
        wt = orthogonal_np(rng, (cin, cout, 3, 3), gain)
        b = np.zeros((cout,), np.float32)
        blocks.append(dict(
            w_poly=jnp.asarray(_pack_poly_weight(wt), dtype=jnp.bfloat16),
            b4=jnp.asarray(np.tile(b, 4).reshape(4 * cout, 1)),
            gamma=jnp.ones((cout,), jnp.float32),
            beta=jnp.zeros((cout,), jnp.float32)))
    c = hidden_dims[-1]
    wc = orthogonal_np(rng, (out_channels, c, 3, 3), gain)
    w9 = np.transpose(wc, (0, 2, 3, 1)).reshape(out_channels, 9 * c)
    final = dict(
        w9=jnp.asarray(w9, dtype=jnp.bfloat16),
        b=jnp.zeros((out_channels, 1), jnp.float32))
    return dict(ct_blocks=blocks, final_conv=final)


if __name__ == "__main__":
    out_channels = 3
    hidden_dims = [16, 8]
    N, H, W = 2, 16, 16

    params = init_params(out_channels, hidden_dims, seed=0)
    x = jax.random.normal(jax.random.PRNGKey(0),
                          (N, hidden_dims[0], H, W), dtype=jnp.float32)

    fwd = jax.jit(functools.partial(decoder_forward, params))
    y = fwd(x)
    jax.block_until_ready(y)

    # two stride-2 ConvTranspose layers -> 4x spatial upsample, NCHW output
    assert y.shape == (N, out_channels, 4 * H, 4 * W), y.shape
    assert bool(jnp.all(jnp.isfinite(y)))
    print("KERNEL_OK")
</pallas_src>

<mosaic_0001>
module attributes {stable_mosaic.version = 11 : i64} {
  func.func @convt_poly_kernel(%arg0: i32, %arg1: i32, %arg2: memref<1x16x256xbf16, #tpu.memory_space<vmem>>, %arg3: memref<16x1xf32, #tpu.memory_space<vmem>>, %arg4: memref<16x1xf32, #tpu.memory_space<vmem>>, %arg5: memref<32x64xbf16, #tpu.memory_space<vmem>>, %arg6: memref<32x1xf32, #tpu.memory_space<vmem>>, %arg7: memref<1x32x256xbf16, #tpu.memory_space<vmem>>, %arg8: memref<1x1x8x2xf32, #tpu.memory_space<vmem>>, %arg9: memref<64x256xbf16, #tpu.memory_space<vmem>>, %arg10: memref<16x16xf32, #tpu.memory_space<vmem>>) attributes {dimension_semantics = [#tpu.dimension_semantics<parallel>, #tpu.dimension_semantics<arbitrary>], iteration_bounds = array<i64: 2, 1>, scalar_prefetch = 0 : i64, scratch_operands = 2 : i64, tpu.core_type = #tpu.core_type<tc>, window_params = [{transform_indices = @transform_0, window_bounds = array<i64: 1, 16, 256>}, {pipeline_mode = #tpu.pipeline_mode<synchronous>, transform_indices = @transform_1, window_bounds = array<i64: 16, 1>}, {pipeline_mode = #tpu.pipeline_mode<synchronous>, transform_indices = @transform_2, window_bounds = array<i64: 16, 1>}, {pipeline_mode = #tpu.pipeline_mode<synchronous>, transform_indices = @transform_3, window_bounds = array<i64: 32, 64>}, {pipeline_mode = #tpu.pipeline_mode<synchronous>, transform_indices = @transform_4, window_bounds = array<i64: 32, 1>}, {transform_indices = @transform_5, window_bounds = array<i64: 1, 32, 256>}, {transform_indices = @transform_6, window_bounds = array<i64: 1, 1, 8, 2>}]} {
    %c0 = arith.constant 0 : index
    %c0_0 = arith.constant 0 : index
    %c0_1 = arith.constant 0 : index
    %0 = vector.load %arg2[%c0, %c0_0, %c0_1] : memref<1x16x256xbf16, #tpu.memory_space<vmem>>, vector<1x16x256xbf16>
    %1 = vector.shape_cast %0 : vector<1x16x256xbf16> to vector<16x256xbf16>
    %2 = arith.extf %1 : vector<16x256xbf16> to vector<16x256xf32>
    %3 = tpu.iota {dimensions = array<i32: 1>} : vector<1x256xi32>
    %c16_i32 = arith.constant 16 : i32
    %c0_i32 = arith.constant 0 : i32
    %4 = arith.cmpi eq, %c16_i32, %c0_i32 : i32
    %c1_i32 = arith.constant 1 : i32
    %5 = arith.select %4, %c1_i32, %c16_i32 : i32
    %6 = vector.broadcast %5 : i32 to vector<1x256xi32>
    %7 = arith.remsi %3, %6 : vector<1x256xi32>
    %c0_i32_2 = arith.constant 0 : i32
    %8 = vector.broadcast %c0_i32_2 : i32 to vector<1x256xi32>
    %9 = arith.cmpi ne, %7, %8 : vector<1x256xi32>
    %c0_i32_3 = arith.constant 0 : i32
    %10 = vector.broadcast %c0_i32_3 : i32 to vector<1x256xi32>
    %11 = arith.cmpi slt, %7, %10 : vector<1x256xi32>
    %c0_i32_4 = arith.constant 0 : i32
    %12 = arith.cmpi slt, %5, %c0_i32_4 : i32
    %13 = vector.broadcast %12 : i1 to vector<1x256xi1>
    %14 = vector.broadcast %13 : vector<1x256xi1> to vector<1x256xi1>
    %15 = arith.xori %11, %14 : vector<1x256xi1>
    %16 = arith.andi %15, %9 : vector<1x256xi1>
    %17 = vector.broadcast %5 : i32 to vector<1x256xi32>
    %18 = arith.addi %7, %17 : vector<1x256xi32>
    %19 = arith.select %16, %18, %7 : vector<1x256xi1>, vector<1x256xi32>
    %c15_i32 = arith.constant 15 : i32
    %20 = vector.broadcast %c15_i32 : i32 to vector<1x256xi32>
    %21 = arith.cmpi ne, %19, %20 : vector<1x256xi32>
    %22 = arith.extui %21 : vector<1x256xi1> to vector<1x256xi32>
    %23 = arith.sitofp %22 : vector<1x256xi32> to vector<1x256xf32>
    %c0_i32_5 = arith.constant 0 : i32
    %24 = arith.cmpi eq, %arg1, %c0_i32_5 : i32
    %25 = arith.extui %24 : i1 to i32
    %c0_i32_6 = arith.constant 0 : i32
    %26 = arith.cmpi ne, %25, %c0_i32_6 : i32
    scf.if %26 {
      %cst_42 = arith.constant 0.000000e+00 : f32
      %89 = vector.broadcast %cst_42 : f32 to vector<16x16xf32>
      %c0_43 = arith.constant 0 : index
      %c0_44 = arith.constant 0 : index
      %90 = vector.load %arg10[%c0_43, %c0_44] : memref<16x16xf32, #tpu.memory_space<vmem>>, vector<16x16xf32>
      tpu.vector_store %arg10[%c0_43, %c0_44], %89 {strides = array<i32>} : memref<16x16xf32, #tpu.memory_space<vmem>>, vector<16x16xf32>,
    } else {
    }
    %c0_7 = arith.constant 0 : index
    %c0_8 = arith.constant 0 : index
    %27 = vector.load %arg10[%c0_7, %c0_8] : memref<16x16xf32, #tpu.memory_space<vmem>>, vector<16x16xf32>
    %28 = arith.truncf %2 : vector<16x256xf32> to vector<16x256xbf16>
    %c0_9 = arith.constant 0 : index
    %c0_10 = arith.constant 0 : index
    %29 = vector.load %arg9[%c0_9, %c0_10] : memref<64x256xbf16, #tpu.memory_space<vmem>>, vector<16x256xbf16>
    tpu.vector_store %arg9[%c0_9, %c0_10], %28 {strides = array<i32>} : memref<64x256xbf16, #tpu.memory_space<vmem>>, vector<16x256xbf16>,
    %30 = vector.extract_strided_slice %2 {offsets = [0, 1], sizes = [16, 255], strides = [1, 1]} : vector<16x256xf32> to vector<16x255xf32>
    %31 = vector.extract_strided_slice %23 {offsets = [0, 0], sizes = [1, 255], strides = [1, 1]} : vector<1x256xf32> to vector<1x255xf32>
    %32 = vector.broadcast %31 : vector<1x255xf32> to vector<16x255xf32>
    %33 = arith.mulf %30, %32 : vector<16x255xf32>
    %34 = arith.truncf %33 : vector<16x255xf32> to vector<16x255xbf16>
    %c16 = arith.constant 16 : index
    %c0_11 = arith.constant 0 : index
    %35 = vector.load %arg9[%c16, %c0_11] : memref<64x256xbf16, #tpu.memory_space<vmem>>, vector<16x255xbf16>
    tpu.vector_store %arg9[%c16, %c0_11], %34 {strides = array<i32>} : memref<64x256xbf16, #tpu.memory_space<vmem>>, vector<16x255xbf16>,
    %cst = arith.constant 0.000000e+00 : bf16
    %36 = vector.broadcast %cst : bf16 to vector<16x1xbf16>
    %c16_12 = arith.constant 16 : index
    %c255 = arith.constant 255 : index
    %37 = vector.load %arg9[%c16_12, %c255] : memref<64x256xbf16, #tpu.memory_space<vmem>>, vector<16x1xbf16>
    tpu.vector_store %arg9[%c16_12, %c255], %36 {strides = array<i32>} : memref<64x256xbf16, #tpu.memory_space<vmem>>, vector<16x1xbf16>,
    %38 = vector.extract_strided_slice %2 {offsets = [0, 16], sizes = [16, 240], strides = [1, 1]} : vector<16x256xf32> to vector<16x240xf32>
    %39 = arith.truncf %38 : vector<16x240xf32> to vector<16x240xbf16>
    %c32 = arith.constant 32 : index
    %c0_13 = arith.constant 0 : index
    %40 = vector.load %arg9[%c32, %c0_13] : memref<64x256xbf16, #tpu.memory_space<vmem>>, vector<16x240xbf16>
    tpu.vector_store %arg9[%c32, %c0_13], %39 {strides = array<i32>} : memref<64x256xbf16, #tpu.memory_space<vmem>>, vector<16x240xbf16>,
    %41 = arith.truncf %27 : vector<16x16xf32> to vector<16x16xbf16>
    %c32_14 = arith.constant 32 : index
    %c240 = arith.constant 240 : index
    %42 = vector.load %arg9[%c32_14, %c240] : memref<64x256xbf16, #tpu.memory_space<vmem>>, vector<16x16xbf16>
    tpu.vector_store %arg9[%c32_14, %c240], %41 {strides = array<i32>} : memref<64x256xbf16, #tpu.memory_space<vmem>>, vector<16x16xbf16>,
    %c32_15 = arith.constant 32 : index
    %c0_16 = arith.constant 0 : index
    %43 = vector.load %arg9[%c32_15, %c0_16] : memref<64x256xbf16, #tpu.memory_space<vmem>>, vector<16x256xbf16>
    %44 = vector.extract_strided_slice %43 {offsets = [0, 1], sizes = [16, 255], strides = [1, 1]} : vector<16x256xbf16> to vector<16x255xbf16>
    %45 = arith.extf %44 : vector<16x255xbf16> to vector<16x255xf32>
    %46 = vector.extract_strided_slice %23 {offsets = [0, 0], sizes = [1, 255], strides = [1, 1]} : vector<1x256xf32> to vector<1x255xf32>
    %47 = vector.broadcast %46 : vector<1x255xf32> to vector<16x255xf32>
    %48 = arith.mulf %45, %47 : vector<16x255xf32>
    %49 = arith.truncf %48 : vector<16x255xf32> to vector<16x255xbf16>
    %c48 = arith.constant 48 : index
    %c0_17 = arith.constant 0 : index
    %50 = vector.load %arg9[%c48, %c0_17] : memref<64x256xbf16, #tpu.memory_space<vmem>>, vector<16x255xbf16>
    tpu.vector_store %arg9[%c48, %c0_17], %49 {strides = array<i32>} : memref<64x256xbf16, #tpu.memory_space<vmem>>, vector<16x255xbf16>,
    %cst_18 = arith.constant 0.000000e+00 : bf16
    %51 = vector.broadcast %cst_18 : bf16 to vector<16x1xbf16>
    %c48_19 = arith.constant 48 : index
    %c255_20 = arith.constant 255 : index
    %52 = vector.load %arg9[%c48_19, %c255_20] : memref<64x256xbf16, #tpu.memory_space<vmem>>, vector<16x1xbf16>
    tpu.vector_store %arg9[%c48_19, %c255_20], %51 {strides = array<i32>} : memref<64x256xbf16, #tpu.memory_space<vmem>>, vector<16x1xbf16>,
    %53 = vector.extract_strided_slice %2 {offsets = [0, 0], sizes = [16, 16], strides = [1, 1]} : vector<16x256xf32> to vector<16x16xf32>
    %c0_21 = arith.constant 0 : index
    %c0_22 = arith.constant 0 : index
    %54 = vector.load %arg10[%c0_21, %c0_22] : memref<16x16xf32, #tpu.memory_space<vmem>>, vector<16x16xf32>
    tpu.vector_store %arg10[%c0_21, %c0_22], %53 {strides = array<i32>} : memref<16x16xf32, #tpu.memory_space<vmem>>, vector<16x16xf32>,
    %c0_23 = arith.constant 0 : index
    %c0_24 = arith.constant 0 : index
    %55 = vector.load %arg5[%c0_23, %c0_24] : memref<32x64xbf16, #tpu.memory_space<vmem>>, vector<32x64xbf16>
    %c0_25 = arith.constant 0 : index
    %c0_26 = arith.constant 0 : index
    %56 = vector.load %arg9[%c0_25, %c0_26] : memref<64x256xbf16, #tpu.memory_space<vmem>>, vector<64x256xbf16>
    %cst_27 = arith.constant dense<0.000000e+00> : vector<32x256xf32>
    %57 = tpu.matmul %55, %56, %cst_27 {dimension_numbers = #tpu.dot_dimension_numbers<[1], [0], [0], [1], [0, 0, 1, 1], [], []>} : vector<32x64xbf16>, vector<64x256xbf16>, vector<32x256xf32> -> vector<32x256xf32>
    %c0_28 = arith.constant 0 : index
    %c0_29 = arith.constant 0 : index
    %58 = vector.load %arg6[%c0_28, %c0_29] : memref<32x1xf32, #tpu.memory_space<vmem>>, vector<32x1xf32>
    %59 = vector.broadcast %58 : vector<32x1xf32> to vector<32x256xf32>
    %60 = arith.addf %57, %59 : vector<32x256xf32>
    %61 = vector.extract_strided_slice %60 {offsets = [0, 0], sizes = [8, 256], strides = [1, 1]} : vector<32x256xf32> to vector<8x256xf32>
    %62 = vector.extract_strided_slice %60 {offsets = [8, 0], sizes = [8, 256], strides = [1, 1]} : vector<32x256xf32> to vector<8x256xf32>
    %63 = vector.extract_strided_slice %60 {offsets = [16, 0], sizes = [8, 256], strides = [1, 1]} : vector<32x256xf32> to vector<8x256xf32>
    %64 = vector.extract_strided_slice %60 {offsets = [24, 0], sizes = [8, 256], strides = [1, 1]} : vector<32x256xf32> to vector<8x256xf32>
    %65 = arith.addf %61, %62 : vector<8x256xf32>
    %66 = arith.addf %65, %63 : vector<8x256xf32>
    %67 = arith.addf %66, %64 : vector<8x256xf32>
    %cst_30 = arith.constant dense<0.000000e+00> : vector<8xf32>
    %68 = vector.multi_reduction <add>, %67, %cst_30 [1] : vector<8x256xf32> to vector<8xf32>
    %69 = vector.shape_cast %68 : vector<8xf32> to vector<8x1xf32>
    %c0_31 = arith.constant 0 : index
    %c0_32 = arith.constant 0 : index
    %c0_33 = arith.constant 0 : index
    %c0_34 = arith.constant 0 : index
    %70 = vector.load %arg8[%c0_31, %c0_32, %c0_33, %c0_34] : memref<1x1x8x2xf32, #tpu.memory_space<vmem>>, vector<1x1x8x1xf32>
    %71 = vector.shape_cast %70 : vector<1x1x8x1xf32> to vector<8x1xf32>
    %72 = vector.shape_cast %69 : vector<8x1xf32> to vector<1x1x8x1xf32>
    tpu.vector_store %arg8[%c0_31, %c0_32, %c0_33, %c0_34], %72 {strides = array<i32>} : memref<1x1x8x2xf32, #tpu.memory_space<vmem>>, vector<1x1x8x1xf32>,
    %73 = arith.mulf %61, %61 : vector<8x256xf32>
    %74 = arith.mulf %62, %62 : vector<8x256xf32>
    %75 = arith.addf %73, %74 : vector<8x256xf32>
    %76 = arith.mulf %63, %63 : vector<8x256xf32>
    %77 = arith.addf %75, %76 : vector<8x256xf32>
    %78 = arith.mulf %64, %64 : vector<8x256xf32>
    %79 = arith.addf %77, %78 : vector<8x256xf32>
    %cst_35 = arith.constant dense<0.000000e+00> : vector<8xf32>
    %80 = vector.multi_reduction <add>, %79, %cst_35 [1] : vector<8x256xf32> to vector<8xf32>
    %81 = vector.shape_cast %80 : vector<8xf32> to vector<8x1xf32>
    %c0_36 = arith.constant 0 : index
    %c0_37 = arith.constant 0 : index
    %c0_38 = arith.constant 0 : index
    %c1 = arith.constant 1 : index
    %82 = vector.load %arg8[%c0_36, %c0_37, %c0_38, %c1] : memref<1x1x8x2xf32, #tpu.memory_space<vmem>>, vector<1x1x8x1xf32>
    %83 = vector.shape_cast %82 : vector<1x1x8x1xf32> to vector<8x1xf32>
    %84 = vector.shape_cast %81 : vector<8x1xf32> to vector<1x1x8x1xf32>
    tpu.vector_store %arg8[%c0_36, %c0_37, %c0_38, %c1], %84 {strides = array<i32>} : memref<1x1x8x2xf32, #tpu.memory_space<vmem>>, vector<1x1x8x1xf32>,
    %85 = arith.truncf %60 : vector<32x256xf32> to vector<32x256xbf16>
    %c0_39 = arith.constant 0 : index
    %c0_40 = arith.constant 0 : index
    %c0_41 = arith.constant 0 : index
    %86 = vector.load %arg7[%c0_39, %c0_40, %c0_41] : memref<1x32x256xbf16, #tpu.memory_space<vmem>>, vector<1x32x256xbf16>
    %87 = vector.shape_cast %86 : vector<1x32x256xbf16> to vector<32x256xbf16>
    %88 = vector.shape_cast %85 : vector<32x256xbf16> to vector<1x32x256xbf16>
    tpu.vector_store %arg7[%c0_39, %c0_40, %c0_41], %88 {strides = array<i32>} : memref<1x32x256xbf16, #tpu.memory_space<vmem>>, vector<1x32x256xbf16>,
    return
  }
  func.func @transform_0(%arg0: i32, %arg1: i32) -> (i32, i32, i32) {
    %c0_i32 = arith.constant 0 : i32
    %0 = arith.subi %c0_i32, %arg1 : i32
    %c0_i32_0 = arith.constant 0 : i32
    %c0_i32_1 = arith.constant 0 : i32
    return %arg0, %c0_i32_0, %0 : i32, i32, i32
  }
  func.func @transform_1(%arg0: i32, %arg1: i32) -> (i32, i32) {
    %c0_i32 = arith.constant 0 : i32
    %c0_i32_0 = arith.constant 0 : i32
    %c0_i32_1 = arith.constant 0 : i32
    return %c0_i32, %c0_i32_0 : i32, i32
  }
  func.func @transform_2(%arg0: i32, %arg1: i32) -> (i32, i32) {
    %c0_i32 = arith.constant 0 : i32
    %c0_i32_0 = arith.constant 0 : i32
    %c0_i32_1 = arith.constant 0 : i32
    return %c0_i32, %c0_i32_0 : i32, i32
  }
  func.func @transform_3(%arg0: i32, %arg1: i32) -> (i32, i32) {
    %c0_i32 = arith.constant 0 : i32
    %c0_i32_0 = arith.constant 0 : i32
    %c0_i32_1 = arith.constant 0 : i32
    return %c0_i32, %c0_i32_0 : i32, i32
  }
  func.func @transform_4(%arg0: i32, %arg1: i32) -> (i32, i32) {
    %c0_i32 = arith.constant 0 : i32
    %c0_i32_0 = arith.constant 0 : i32
    %c0_i32_1 = arith.constant 0 : i32
    return %c0_i32, %c0_i32_0 : i32, i32
  }
  func.func @transform_5(%arg0: i32, %arg1: i32) -> (i32, i32, i32) {
    %c0_i32 = arith.constant 0 : i32
    %0 = arith.subi %c0_i32, %arg1 : i32
    %c0_i32_0 = arith.constant 0 : i32
    %c0_i32_1 = arith.constant 0 : i32
    return %arg0, %c0_i32_0, %0 : i32, i32, i32
  }
  func.func @transform_6(%arg0: i32, %arg1: i32) -> (i32, i32, i32, i32) {
    %c0_i32 = arith.constant 0 : i32
    %0 = arith.subi %c0_i32, %arg1 : i32
    %c0_i32_0 = arith.constant 0 : i32
    %c0_i32_1 = arith.constant 0 : i32
    %c0_i32_2 = arith.constant 0 : i32
    return %arg0, %0, %c0_i32_0, %c0_i32_1 : i32, i32, i32, i32
  }
}

module attributes {stable_mosaic.version = 11 : i64} {
  func.func @convt_poly_kernel(%arg0: i32, %arg1: i32, %arg2: memref<1x8x512xbf16, #tpu.memory_space<vmem>>, %arg3: memref<8x1xf32, #tpu.memory_space<vmem>>, %arg4: memref<8x1xf32, #tpu.memory_space<vmem>>, %arg5: memref<32x32xbf16, #tpu.memory_space<vmem>>, %arg6: memref<32x1xf32, #tpu.memory_space<vmem>>, %arg7: memref<1x32x512xbf16, #tpu.memory_space<vmem>>, %arg8: memref<1x1x8x2xf32, #tpu.memory_space<vmem>>, %arg9: memref<32x512xbf16, #tpu.memory_space<vmem>>, %arg10: memref<8x32xf32, #tpu.memory_space<vmem>>) attributes {dimension_semantics = [#tpu.dimension_semantics<parallel>, #tpu.dimension_semantics<arbitrary>], iteration_bounds = array<i64: 2, 2>, scalar_prefetch = 0 : i64, scratch_operands = 2 : i64, tpu.core_type = #tpu.core_type<tc>, window_params = [{transform_indices = @transform_0, window_bounds = array<i64: 1, 8, 512>}, {pipeline_mode = #tpu.pipeline_mode<synchronous>, transform_indices = @transform_1, window_bounds = array<i64: 8, 1>}, {pipeline_mode = #tpu.pipeline_mode<synchronous>, transform_indices = @transform_2, window_bounds = array<i64: 8, 1>}, {pipeline_mode = #tpu.pipeline_mode<synchronous>, transform_indices = @transform_3, window_bounds = array<i64: 32, 32>}, {pipeline_mode = #tpu.pipeline_mode<synchronous>, transform_indices = @transform_4, window_bounds = array<i64: 32, 1>}, {transform_indices = @transform_5, window_bounds = array<i64: 1, 32, 512>}, {transform_indices = @transform_6, window_bounds = array<i64: 1, 1, 8, 2>}]} {
    %c0 = arith.constant 0 : index
    %c0_0 = arith.constant 0 : index
    %c0_1 = arith.constant 0 : index
    %0 = vector.load %arg2[%c0, %c0_0, %c0_1] : memref<1x8x512xbf16, #tpu.memory_space<vmem>>, vector<1x8x512xbf16>
    %1 = vector.shape_cast %0 : vector<1x8x512xbf16> to vector<8x512xbf16>
    %2 = arith.extf %1 : vector<8x512xbf16> to vector<8x512xf32>
    %c0_2 = arith.constant 0 : index
    %c0_3 = arith.constant 0 : index
    %3 = vector.load %arg3[%c0_2, %c0_3] : memref<8x1xf32, #tpu.memory_space<vmem>>, vector<8x1xf32>
    %4 = vector.broadcast %3 : vector<8x1xf32> to vector<8x512xf32>
    %5 = arith.mulf %2, %4 : vector<8x512xf32>
    %c0_4 = arith.constant 0 : index
    %c0_5 = arith.constant 0 : index
    %6 = vector.load %arg4[%c0_4, %c0_5] : memref<8x1xf32, #tpu.memory_space<vmem>>, vector<8x1xf32>
    %7 = vector.broadcast %6 : vector<8x1xf32> to vector<8x512xf32>
    %8 = arith.addf %5, %7 : vector<8x512xf32>
    %cst = arith.constant 0.000000e+00 : f32
    %9 = vector.broadcast %cst : f32 to vector<8x512xf32>
    %10 = arith.cmpf oge, %8, %9 : vector<8x512xf32>
    %cst_6 = arith.constant 0.00999999977 : f32
    %11 = vector.broadcast %cst_6 : f32 to vector<8x512xf32>
    %12 = arith.mulf %11, %8 : vector<8x512xf32>
    %13 = arith.select %10, %8, %12 : vector<8x512xi1>, vector<8x512xf32>
    %14 = tpu.iota {dimensions = array<i32: 1>} : vector<1x512xi32>
    %c32_i32 = arith.constant 32 : i32
    %c0_i32 = arith.constant 0 : i32
    %15 = arith.cmpi eq, %c32_i32, %c0_i32 : i32
    %c1_i32 = arith.constant 1 : i32
    %16 = arith.select %15, %c1_i32, %c32_i32 : i32
    %17 = vector.broadcast %16 : i32 to vector<1x512xi32>
    %18 = arith.remsi %14, %17 : vector<1x512xi32>
    %c0_i32_7 = arith.constant 0 : i32
    %19 = vector.broadcast %c0_i32_7 : i32 to vector<1x512xi32>
    %20 = arith.cmpi ne, %18, %19 : vector<1x512xi32>
    %c0_i32_8 = arith.constant 0 : i32
    %21 = vector.broadcast %c0_i32_8 : i32 to vector<1x512xi32>
    %22 = arith.cmpi slt, %18, %21 : vector<1x512xi32>
    %c0_i32_9 = arith.constant 0 : i32
    %23 = arith.cmpi slt, %16, %c0_i32_9 : i32
    %24 = vector.broadcast %23 : i1 to vector<1x512xi1>
    %25 = vector.broadcast %24 : vector<1x512xi1> to vector<1x512xi1>
    %26 = arith.xori %22, %25 : vector<1x512xi1>
    %27 = arith.andi %26, %20 : vector<1x512xi1>
    %28 = vector.broadcast %16 : i32 to vector<1x512xi32>
    %29 = arith.addi %18, %28 : vector<1x512xi32>
    %30 = arith.select %27, %29, %18 : vector<1x512xi1>, vector<1x512xi32>
    %c31_i32 = arith.constant 31 : i32
    %31 = vector.broadcast %c31_i32 : i32 to vector<1x512xi32>
    %32 = arith.cmpi ne, %30, %31 : vector<1x512xi32>
    %33 = arith.extui %32 : vector<1x512xi1> to vector<1x512xi32>
    %34 = arith.sitofp %33 : vector<1x512xi32> to vector<1x512xf32>
    %c0_i32_10 = arith.constant 0 : i32
    %35 = arith.cmpi eq, %arg1, %c0_i32_10 : i32
    %36 = arith.extui %35 : i1 to i32
    %c0_i32_11 = arith.constant 0 : i32
    %37 = arith.cmpi ne, %36, %c0_i32_11 : i32
    scf.if %37 {
      %cst_48 = arith.constant 0.000000e+00 : f32
      %100 = vector.broadcast %cst_48 : f32 to vector<8x32xf32>
      %c0_49 = arith.constant 0 : index
      %c0_50 = arith.constant 0 : index
      %101 = vector.load %arg10[%c0_49, %c0_50] : memref<8x32xf32, #tpu.memory_space<vmem>>, vector<8x32xf32>
      tpu.vector_store %arg10[%c0_49, %c0_50], %100 {strides = array<i32>} : memref<8x32xf32, #tpu.memory_space<vmem>>, vector<8x32xf32>,
    } else {
    }
    %c0_12 = arith.constant 0 : index
    %c0_13 = arith.constant 0 : index
    %38 = vector.load %arg10[%c0_12, %c0_13] : memref<8x32xf32, #tpu.memory_space<vmem>>, vector<8x32xf32>
    %39 = arith.truncf %13 : vector<8x512xf32> to vector<8x512xbf16>
    %c0_14 = arith.constant 0 : index
    %c0_15 = arith.constant 0 : index
    %40 = vector.load %arg9[%c0_14, %c0_15] : memref<32x512xbf16, #tpu.memory_space<vmem>>, vector<8x512xbf16>
    tpu.vector_store %arg9[%c0_14, %c0_15], %39 {strides = array<i32>} : memref<32x512xbf16, #tpu.memory_space<vmem>>, vector<8x512xbf16>,
    %41 = vector.extract_strided_slice %13 {offsets = [0, 1], sizes = [8, 511], strides = [1, 1]} : vector<8x512xf32> to vector<8x511xf32>
    %42 = vector.extract_strided_slice %34 {offsets = [0, 0], sizes = [1, 511], strides = [1, 1]} : vector<1x512xf32> to vector<1x511xf32>
    %43 = vector.broadcast %42 : vector<1x511xf32> to vector<8x511xf32>
    %44 = arith.mulf %41, %43 : vector<8x511xf32>
    %45 = arith.truncf %44 : vector<8x511xf32> to vector<8x511xbf16>
    %c8 = arith.constant 8 : index
    %c0_16 = arith.constant 0 : index
    %46 = vector.load %arg9[%c8, %c0_16] : memref<32x512xbf16, #tpu.memory_space<vmem>>, vector<8x511xbf16>
    tpu.vector_store %arg9[%c8, %c0_16], %45 {strides = array<i32>} : memref<32x512xbf16, #tpu.memory_space<vmem>>, vector<8x511xbf16>,
    %cst_17 = arith.constant 0.000000e+00 : bf16
    %47 = vector.broadcast %cst_17 : bf16 to vector<8x1xbf16>
    %c8_18 = arith.constant 8 : index
    %c511 = arith.constant 511 : index
    %48 = vector.load %arg9[%c8_18, %c511] : memref<32x512xbf16, #tpu.memory_space<vmem>>, vector<8x1xbf16>
    tpu.vector_store %arg9[%c8_18, %c511], %47 {strides = array<i32>} : memref<32x512xbf16, #tpu.memory_space<vmem>>, vector<8x1xbf16>,
    %49 = vector.extract_strided_slice %13 {offsets = [0, 32], sizes = [8, 480], strides = [1, 1]} : vector<8x512xf32> to vector<8x480xf32>
    %50 = arith.truncf %49 : vector<8x480xf32> to vector<8x480xbf16>
    %c16 = arith.constant 16 : index
    %c0_19 = arith.constant 0 : index
    %51 = vector.load %arg9[%c16, %c0_19] : memref<32x512xbf16, #tpu.memory_space<vmem>>, vector<8x480xbf16>
    tpu.vector_store %arg9[%c16, %c0_19], %50 {strides = array<i32>} : memref<32x512xbf16, #tpu.memory_space<vmem>>, vector<8x480xbf16>,
    %52 = arith.truncf %38 : vector<8x32xf32> to vector<8x32xbf16>
    %c16_20 = arith.constant 16 : index
    %c480 = arith.constant 480 : index
    %53 = vector.load %arg9[%c16_20, %c480] : memref<32x512xbf16, #tpu.memory_space<vmem>>, vector<8x32xbf16>
    tpu.vector_store %arg9[%c16_20, %c480], %52 {strides = array<i32>} : memref<32x512xbf16, #tpu.memory_space<vmem>>, vector<8x32xbf16>,
    %c16_21 = arith.constant 16 : index
    %c0_22 = arith.constant 0 : index
    %54 = vector.load %arg9[%c16_21, %c0_22] : memref<32x512xbf16, #tpu.memory_space<vmem>>, vector<8x512xbf16>
    %55 = vector.extract_strided_slice %54 {offsets = [0, 1], sizes = [8, 511], strides = [1, 1]} : vector<8x512xbf16> to vector<8x511xbf16>
    %56 = arith.extf %55 : vector<8x511xbf16> to vector<8x511xf32>
    %57 = vector.extract_strided_slice %34 {offsets = [0, 0], sizes = [1, 511], strides = [1, 1]} : vector<1x512xf32> to vector<1x511xf32>
    %58 = vector.broadcast %57 : vector<1x511xf32> to vector<8x511xf32>
    %59 = arith.mulf %56, %58 : vector<8x511xf32>
    %60 = arith.truncf %59 : vector<8x511xf32> to vector<8x511xbf16>
    %c24 = arith.constant 24 : index
    %c0_23 = arith.constant 0 : index
    %61 = vector.load %arg9[%c24, %c0_23] : memref<32x512xbf16, #tpu.memory_space<vmem>>, vector<8x511xbf16>
    tpu.vector_store %arg9[%c24, %c0_23], %60 {strides = array<i32>} : memref<32x512xbf16, #tpu.memory_space<vmem>>, vector<8x511xbf16>,
    %cst_24 = arith.constant 0.000000e+00 : bf16
    %62 = vector.broadcast %cst_24 : bf16 to vector<8x1xbf16>
    %c24_25 = arith.constant 24 : index
    %c511_26 = arith.constant 511 : index
    %63 = vector.load %arg9[%c24_25, %c511_26] : memref<32x512xbf16, #tpu.memory_space<vmem>>, vector<8x1xbf16>
    tpu.vector_store %arg9[%c24_25, %c511_26], %62 {strides = array<i32>} : memref<32x512xbf16, #tpu.memory_space<vmem>>, vector<8x1xbf16>,
    %64 = vector.extract_strided_slice %13 {offsets = [0, 0], sizes = [8, 32], strides = [1, 1]} : vector<8x512xf32> to vector<8x32xf32>
    %c0_27 = arith.constant 0 : index
    %c0_28 = arith.constant 0 : index
    %65 = vector.load %arg10[%c0_27, %c0_28] : memref<8x32xf32, #tpu.memory_space<vmem>>, vector<8x32xf32>
    tpu.vector_store %arg10[%c0_27, %c0_28], %64 {strides = array<i32>} : memref<8x32xf32, #tpu.memory_space<vmem>>, vector<8x32xf32>,
    %c0_29 = arith.constant 0 : index
    %c0_30 = arith.constant 0 : index
    %66 = vector.load %arg5[%c0_29, %c0_30] : memref<32x32xbf16, #tpu.memory_space<vmem>>, vector<32x32xbf16>
    %c0_31 = arith.constant 0 : index
    %c0_32 = arith.constant 0 : index
    %67 = vector.load %arg9[%c0_31, %c0_32] : memref<32x512xbf16, #tpu.memory_space<vmem>>, vector<32x512xbf16>
    %cst_33 = arith.constant dense<0.000000e+00> : vector<32x512xf32>
    %68 = tpu.matmul %66, %67, %cst_33 {dimension_numbers = #tpu.dot_dimension_numbers<[1], [0], [0], [1], [0, 0, 1, 1], [], []>} : vector<32x32xbf16>, vector<32x512xbf16>, vector<32x512xf32> -> vector<32x512xf32>
    %c0_34 = arith.constant 0 : index
    %c0_35 = arith.constant 0 : index
    %69 = vector.load %arg6[%c0_34, %c0_35] : memref<32x1xf32, #tpu.memory_space<vmem>>, vector<32x1xf32>
    %70 = vector.broadcast %69 : vector<32x1xf32> to vector<32x512xf32>
    %71 = arith.addf %68, %70 : vector<32x512xf32>
    %72 = vector.extract_strided_slice %71 {offsets = [0, 0], sizes = [8, 512], strides = [1, 1]} : vector<32x512xf32> to vector<8x512xf32>
    %73 = vector.extract_strided_slice %71 {offsets = [8, 0], sizes = [8, 512], strides = [1, 1]} : vector<32x512xf32> to vector<8x512xf32>
    %74 = vector.extract_strided_slice %71 {offsets = [16, 0], sizes = [8, 512], strides = [1, 1]} : vector<32x512xf32> to vector<8x512xf32>
    %75 = vector.extract_strided_slice %71 {offsets = [24, 0], sizes = [8, 512], strides = [1, 1]} : vector<32x512xf32> to vector<8x512xf32>
    %76 = arith.addf %72, %73 : vector<8x512xf32>
    %77 = arith.addf %76, %74 : vector<8x512xf32>
    %78 = arith.addf %77, %75 : vector<8x512xf32>
    %cst_36 = arith.constant dense<0.000000e+00> : vector<8xf32>
    %79 = vector.multi_reduction <add>, %78, %cst_36 [1] : vector<8x512xf32> to vector<8xf32>
    %80 = vector.shape_cast %79 : vector<8xf32> to vector<8x1xf32>
    %c0_37 = arith.constant 0 : index
    %c0_38 = arith.constant 0 : index
    %c0_39 = arith.constant 0 : index
    %c0_40 = arith.constant 0 : index
    %81 = vector.load %arg8[%c0_37, %c0_38, %c0_39, %c0_40] : memref<1x1x8x2xf32, #tpu.memory_space<vmem>>, vector<1x1x8x1xf32>
    %82 = vector.shape_cast %81 : vector<1x1x8x1xf32> to vector<8x1xf32>
    %83 = vector.shape_cast %80 : vector<8x1xf32> to vector<1x1x8x1xf32>
    tpu.vector_store %arg8[%c0_37, %c0_38, %c0_39, %c0_40], %83 {strides = array<i32>} : memref<1x1x8x2xf32, #tpu.memory_space<vmem>>, vector<1x1x8x1xf32>,
    %84 = arith.mulf %72, %72 : vector<8x512xf32>
    %85 = arith.mulf %73, %73 : vector<8x512xf32>
    %86 = arith.addf %84, %85 : vector<8x512xf32>
    %87 = arith.mulf %74, %74 : vector<8x512xf32>
    %88 = arith.addf %86, %87 : vector<8x512xf32>
    %89 = arith.mulf %75, %75 : vector<8x512xf32>
    %90 = arith.addf %88, %89 : vector<8x512xf32>
    %cst_41 = arith.constant dense<0.000000e+00> : vector<8xf32>
    %91 = vector.multi_reduction <add>, %90, %cst_41 [1] : vector<8x512xf32> to vector<8xf32>
    %92 = vector.shape_cast %91 : vector<8xf32> to vector<8x1xf32>
    %c0_42 = arith.constant 0 : index
    %c0_43 = arith.constant 0 : index
    %c0_44 = arith.constant 0 : index
    %c1 = arith.constant 1 : index
    %93 = vector.load %arg8[%c0_42, %c0_43, %c0_44, %c1] : memref<1x1x8x2xf32, #tpu.memory_space<vmem>>, vector<1x1x8x1xf32>
    %94 = vector.shape_cast %93 : vector<1x1x8x1xf32> to vector<8x1xf32>
    %95 = vector.shape_cast %92 : vector<8x1xf32> to vector<1x1x8x1xf32>
    tpu.vector_store %arg8[%c0_42, %c0_43, %c0_44, %c1], %95 {strides = array<i32>} : memref<1x1x8x2xf32, #tpu.memory_space<vmem>>, vector<1x1x8x1xf32>,
    %96 = arith.truncf %71 : vector<32x512xf32> to vector<32x512xbf16>
    %c0_45 = arith.constant 0 : index
    %c0_46 = arith.constant 0 : index
    %c0_47 = arith.constant 0 : index
    %97 = vector.load %arg7[%c0_45, %c0_46, %c0_47] : memref<1x32x512xbf16, #tpu.memory_space<vmem>>, vector<1x32x512xbf16>
    %98 = vector.shape_cast %97 : vector<1x32x512xbf16> to vector<32x512xbf16>
    %99 = vector.shape_cast %96 : vector<32x512xbf16> to vector<1x32x512xbf16>
    tpu.vector_store %arg7[%c0_45, %c0_46, %c0_47], %99 {strides = array<i32>} : memref<1x32x512xbf16, #tpu.memory_space<vmem>>, vector<1x32x512xbf16>,
    return
  }
  func.func @transform_0(%arg0: i32, %arg1: i32) -> (i32, i32, i32) {
    %c1_i32 = arith.constant 1 : i32
    %0 = arith.subi %c1_i32, %arg1 : i32
    %c0_i32 = arith.constant 0 : i32
    %c0_i32_0 = arith.constant 0 : i32
    return %arg0, %c0_i32, %0 : i32, i32, i32
  }
  func.func @transform_1(%arg0: i32, %arg1: i32) -> (i32, i32) {
    %c0_i32 = arith.constant 0 : i32
    %c0_i32_0 = arith.constant 0 : i32
    %c0_i32_1 = arith.constant 0 : i32
    return %c0_i32, %c0_i32_0 : i32, i32
  }
  func.func @transform_2(%arg0: i32, %arg1: i32) -> (i32, i32) {
    %c0_i32 = arith.constant 0 : i32
    %c0_i32_0 = arith.constant 0 : i32
    %c0_i32_1 = arith.constant 0 : i32
    return %c0_i32, %c0_i32_0 : i32, i32
  }
  func.func @transform_3(%arg0: i32, %arg1: i32) -> (i32, i32) {
    %c0_i32 = arith.constant 0 : i32
    %c0_i32_0 = arith.constant 0 : i32
    %c0_i32_1 = arith.constant 0 : i32
    return %c0_i32, %c0_i32_0 : i32, i32
  }
  func.func @transform_4(%arg0: i32, %arg1: i32) -> (i32, i32) {
    %c0_i32 = arith.constant 0 : i32
    %c0_i32_0 = arith.constant 0 : i32
    %c0_i32_1 = arith.constant 0 : i32
    return %c0_i32, %c0_i32_0 : i32, i32
  }
  func.func @transform_5(%arg0: i32, %arg1: i32) -> (i32, i32, i32) {
    %c1_i32 = arith.constant 1 : i32
    %0 = arith.subi %c1_i32, %arg1 : i32
    %c0_i32 = arith.constant 0 : i32
    %c0_i32_0 = arith.constant 0 : i32
    return %arg0, %c0_i32, %0 : i32, i32, i32
  }
  func.func @transform_6(%arg0: i32, %arg1: i32) -> (i32, i32, i32, i32) {
    %c1_i32 = arith.constant 1 : i32
    %0 = arith.subi %c1_i32, %arg1 : i32
    %c0_i32 = arith.constant 0 : i32
    %c0_i32_0 = arith.constant 0 : i32
    %c0_i32_1 = arith.constant 0 : i32
    return %arg0, %0, %c0_i32, %c0_i32_0 : i32, i32, i32, i32
  }
}

module attributes {stable_mosaic.version = 11 : i64} {
  func.func @conv3x3_tanh_kernel(%arg0: i32, %arg1: memref<1x8x4096xbf16, #tpu.memory_space<vmem>>, %arg2: memref<8x1xf32, #tpu.memory_space<vmem>>, %arg3: memref<8x1xf32, #tpu.memory_space<vmem>>, %arg4: memref<3x72xbf16, #tpu.memory_space<vmem>>, %arg5: memref<3x1xf32, #tpu.memory_space<vmem>>, %arg6: memref<1x3x4096xf32, #tpu.memory_space<vmem>>, %arg7: memref<24x4096xbf16, #tpu.memory_space<vmem>>) attributes {dimension_semantics = [#tpu.dimension_semantics<parallel>], iteration_bounds = array<i64: 2>, scalar_prefetch = 0 : i64, scratch_operands = 1 : i64, tpu.core_type = #tpu.core_type<tc>, window_params = [{transform_indices = @transform_0, window_bounds = array<i64: 1, 8, 4096>}, {pipeline_mode = #tpu.pipeline_mode<synchronous>, transform_indices = @transform_1, window_bounds = array<i64: 8, 1>}, {pipeline_mode = #tpu.pipeline_mode<synchronous>, transform_indices = @transform_2, window_bounds = array<i64: 8, 1>}, {pipeline_mode = #tpu.pipeline_mode<synchronous>, transform_indices = @transform_3, window_bounds = array<i64: 3, 72>}, {pipeline_mode = #tpu.pipeline_mode<synchronous>, transform_indices = @transform_4, window_bounds = array<i64: 3, 1>}, {transform_indices = @transform_5, window_bounds = array<i64: 1, 3, 4096>}]} {
    %c0 = arith.constant 0 : index
    %c0_0 = arith.constant 0 : index
    %c0_1 = arith.constant 0 : index
    %0 = vector.load %arg1[%c0, %c0_0, %c0_1] : memref<1x8x4096xbf16, #tpu.memory_space<vmem>>, vector<1x8x4096xbf16>
    %1 = vector.shape_cast %0 : vector<1x8x4096xbf16> to vector<8x4096xbf16>
    %2 = arith.extf %1 : vector<8x4096xbf16> to vector<8x4096xf32>
    %c0_2 = arith.constant 0 : index
    %c0_3 = arith.constant 0 : index
    %3 = vector.load %arg2[%c0_2, %c0_3] : memref<8x1xf32, #tpu.memory_space<vmem>>, vector<8x1xf32>
    %4 = vector.broadcast %3 : vector<8x1xf32> to vector<8x4096xf32>
    %5 = arith.mulf %2, %4 : vector<8x4096xf32>
    %c0_4 = arith.constant 0 : index
    %c0_5 = arith.constant 0 : index
    %6 = vector.load %arg3[%c0_4, %c0_5] : memref<8x1xf32, #tpu.memory_space<vmem>>, vector<8x1xf32>
    %7 = vector.broadcast %6 : vector<8x1xf32> to vector<8x4096xf32>
    %8 = arith.addf %5, %7 : vector<8x4096xf32>
    %cst = arith.constant 0.000000e+00 : f32
    %9 = vector.broadcast %cst : f32 to vector<8x4096xf32>
    %10 = arith.cmpf oge, %8, %9 : vector<8x4096xf32>
    %cst_6 = arith.constant 0.00999999977 : f32
    %11 = vector.broadcast %cst_6 : f32 to vector<8x4096xf32>
    %12 = arith.mulf %11, %8 : vector<8x4096xf32>
    %13 = arith.select %10, %8, %12 : vector<8x4096xi1>, vector<8x4096xf32>
    %14 = tpu.iota {dimensions = array<i32: 1>} : vector<1x4096xi32>
    %c64_i32 = arith.constant 64 : i32
    %c0_i32 = arith.constant 0 : i32
    %15 = arith.cmpi eq, %c64_i32, %c0_i32 : i32
    %c1_i32 = arith.constant 1 : i32
    %16 = arith.select %15, %c1_i32, %c64_i32 : i32
    %17 = vector.broadcast %16 : i32 to vector<1x4096xi32>
    %18 = arith.remsi %14, %17 : vector<1x4096xi32>
    %c0_i32_7 = arith.constant 0 : i32
    %19 = vector.broadcast %c0_i32_7 : i32 to vector<1x4096xi32>
    %20 = arith.cmpi ne, %18, %19 : vector<1x4096xi32>
    %c0_i32_8 = arith.constant 0 : i32
    %21 = vector.broadcast %c0_i32_8 : i32 to vector<1x4096xi32>
    %22 = arith.cmpi slt, %18, %21 : vector<1x4096xi32>
    %c0_i32_9 = arith.constant 0 : i32
    %23 = arith.cmpi slt, %16, %c0_i32_9 : i32
    %24 = vector.broadcast %23 : i1 to vector<1x4096xi1>
    %25 = vector.broadcast %24 : vector<1x4096xi1> to vector<1x4096xi1>
    %26 = arith.xori %22, %25 : vector<1x4096xi1>
    %27 = arith.andi %26, %20 : vector<1x4096xi1>
    %28 = vector.broadcast %16 : i32 to vector<1x4096xi32>
    %29 = arith.addi %18, %28 : vector<1x4096xi32>
    %30 = arith.select %27, %29, %18 : vector<1x4096xi1>, vector<1x4096xi32>
    %c0_i32_10 = arith.constant 0 : i32
    %31 = vector.broadcast %c0_i32_10 : i32 to vector<1x4096xi32>
    %32 = arith.cmpi ne, %30, %31 : vector<1x4096xi32>
    %33 = arith.extui %32 : vector<1x4096xi1> to vector<1x4096xi32>
    %34 = arith.sitofp %33 : vector<1x4096xi32> to vector<1x4096xf32>
    %c63_i32 = arith.constant 63 : i32
    %35 = vector.broadcast %c63_i32 : i32 to vector<1x4096xi32>
    %36 = arith.cmpi ne, %30, %35 : vector<1x4096xi32>
    %37 = arith.extui %36 : vector<1x4096xi1> to vector<1x4096xi32>
    %38 = arith.sitofp %37 : vector<1x4096xi32> to vector<1x4096xf32>
    %cst_11 = arith.constant 0.000000e+00 : bf16
    %39 = vector.broadcast %cst_11 : bf16 to vector<8x64xbf16>
    %c8 = arith.constant 8 : index
    %c0_12 = arith.constant 0 : index
    %40 = vector.load %arg7[%c8, %c0_12] : memref<24x4096xbf16, #tpu.memory_space<vmem>>, vector<8x64xbf16>
    tpu.vector_store %arg7[%c8, %c0_12], %39 {strides = array<i32>} : memref<24x4096xbf16, #tpu.memory_space<vmem>>, vector<8x64xbf16>,
    %41 = vector.extract_strided_slice %13 {offsets = [0, 0], sizes = [8, 4032], strides = [1, 1]} : vector<8x4096xf32> to vector<8x4032xf32>
    %42 = arith.truncf %41 : vector<8x4032xf32> to vector<8x4032xbf16>
    %c8_13 = arith.constant 8 : index
    %c64 = arith.constant 64 : index
    %43 = vector.load %arg7[%c8_13, %c64] : memref<24x4096xbf16, #tpu.memory_space<vmem>>, vector<8x4032xbf16>
    tpu.vector_store %arg7[%c8_13, %c64], %42 {strides = array<i32>} : memref<24x4096xbf16, #tpu.memory_space<vmem>>, vector<8x4032xbf16>,
    %c8_14 = arith.constant 8 : index
    %c0_15 = arith.constant 0 : index
    %44 = vector.load %arg7[%c8_14, %c0_15] : memref<24x4096xbf16, #tpu.memory_space<vmem>>, vector<8x4096xbf16>
    %45 = arith.extf %44 : vector<8x4096xbf16> to vector<8x4096xf32>
    %cst_16 = arith.constant 0.000000e+00 : bf16
    %46 = vector.broadcast %cst_16 : bf16 to vector<8x1xbf16>
    %c0_17 = arith.constant 0 : index
    %c0_18 = arith.constant 0 : index
    %47 = vector.load %arg7[%c0_17, %c0_18] : memref<24x4096xbf16, #tpu.memory_space<vmem>>, vector<8x1xbf16>
    tpu.vector_store %arg7[%c0_17, %c0_18], %46 {strides = array<i32>} : memref<24x4096xbf16, #tpu.memory_space<vmem>>, vector<8x1xbf16>,
    %48 = vector.extract_strided_slice %45 {offsets = [0, 0], sizes = [8, 4095], strides = [1, 1]} : vector<8x4096xf32> to vector<8x4095xf32>
    %49 = vector.extract_strided_slice %34 {offsets = [0, 1], sizes = [1, 4095], strides = [1, 1]} : vector<1x4096xf32> to vector<1x4095xf32>
    %50 = vector.broadcast %49 : vector<1x4095xf32> to vector<8x4095xf32>
    %51 = arith.mulf %48, %50 : vector<8x4095xf32>
    %52 = arith.truncf %51 : vector<8x4095xf32> to vector<8x4095xbf16>
    %c0_19 = arith.constant 0 : index
    %c1 = arith.constant 1 : index
    %53 = vector.load %arg7[%c0_19, %c1] : memref<24x4096xbf16, #tpu.memory_space<vmem>>, vector<8x4095xbf16>
    tpu.vector_store %arg7[%c0_19, %c1], %52 {strides = array<i32>} : memref<24x4096xbf16, #tpu.memory_space<vmem>>, vector<8x4095xbf16>,
    %54 = vector.extract_strided_slice %45 {offsets = [0, 1], sizes = [8, 4095], strides = [1, 1]} : vector<8x4096xf32> to vector<8x4095xf32>
    %55 = vector.extract_strided_slice %38 {offsets = [0, 0], sizes = [1, 4095], strides = [1, 1]} : vector<1x4096xf32> to vector<1x4095xf32>
    %56 = vector.broadcast %55 : vector<1x4095xf32> to vector<8x4095xf32>
    %57 = arith.mulf %54, %56 : vector<8x4095xf32>
    %58 = arith.truncf %57 : vector<8x4095xf32> to vector<8x4095xbf16>
    %c16 = arith.constant 16 : index
    %c0_20 = arith.constant 0 : index
    %59 = vector.load %arg7[%c16, %c0_20] : memref<24x4096xbf16, #tpu.memory_space<vmem>>, vector<8x4095xbf16>
    tpu.vector_store %arg7[%c16, %c0_20], %58 {strides = array<i32>} : memref<24x4096xbf16, #tpu.memory_space<vmem>>, vector<8x4095xbf16>,
    %cst_21 = arith.constant 0.000000e+00 : bf16
    %60 = vector.broadcast %cst_21 : bf16 to vector<8x1xbf16>
    %c16_22 = arith.constant 16 : index
    %c4095 = arith.constant 4095 : index
    %61 = vector.load %arg7[%c16_22, %c4095] : memref<24x4096xbf16, #tpu.memory_space<vmem>>, vector<8x1xbf16>
    tpu.vector_store %arg7[%c16_22, %c4095], %60 {strides = array<i32>} : memref<24x4096xbf16, #tpu.memory_space<vmem>>, vector<8x1xbf16>,
    %c0_23 = arith.constant 0 : index
    %c0_24 = arith.constant 0 : index
    %62 = vector.load %arg4[%c0_23, %c0_24] : memref<3x72xbf16, #tpu.memory_space<vmem>>, vector<3x24xbf16>
    %c0_25 = arith.constant 0 : index
    %c0_26 = arith.constant 0 : index
    %63 = vector.load %arg7[%c0_25, %c0_26] : memref<24x4096xbf16, #tpu.memory_space<vmem>>, vector<24x4096xbf16>
    %cst_27 = arith.constant dense<0.000000e+00> : vector<3x4096xf32>
    %64 = tpu.matmul %62, %63, %cst_27 {dimension_numbers = #tpu.dot_dimension_numbers<[1], [0], [0], [1], [0, 0, 1, 1], [], []>} : vector<3x24xbf16>, vector<24x4096xbf16>, vector<3x4096xf32> -> vector<3x4096xf32>
    %65 = arith.truncf %13 : vector<8x4096xf32> to vector<8x4096xbf16>
    %c8_28 = arith.constant 8 : index
    %c0_29 = arith.constant 0 : index
    %66 = vector.load %arg7[%c8_28, %c0_29] : memref<24x4096xbf16, #tpu.memory_space<vmem>>, vector<8x4096xbf16>
    tpu.vector_store %arg7[%c8_28, %c0_29], %65 {strides = array<i32>} : memref<24x4096xbf16, #tpu.memory_space<vmem>>, vector<8x4096xbf16>,
    %c8_30 = arith.constant 8 : index
    %c0_31 = arith.constant 0 : index
    %67 = vector.load %arg7[%c8_30, %c0_31] : memref<24x4096xbf16, #tpu.memory_space<vmem>>, vector<8x4096xbf16>
    %68 = arith.extf %67 : vector<8x4096xbf16> to vector<8x4096xf32>
    %cst_32 = arith.constant 0.000000e+00 : bf16
    %69 = vector.broadcast %cst_32 : bf16 to vector<8x1xbf16>
    %c0_33 = arith.constant 0 : index
    %c0_34 = arith.constant 0 : index
    %70 = vector.load %arg7[%c0_33, %c0_34] : memref<24x4096xbf16, #tpu.memory_space<vmem>>, vector<8x1xbf16>
    tpu.vector_store %arg7[%c0_33, %c0_34], %69 {strides = array<i32>} : memref<24x4096xbf16, #tpu.memory_space<vmem>>, vector<8x1xbf16>,
    %71 = vector.extract_strided_slice %68 {offsets = [0, 0], sizes = [8, 4095], strides = [1, 1]} : vector<8x4096xf32> to vector<8x4095xf32>
    %72 = vector.extract_strided_slice %34 {offsets = [0, 1], sizes = [1, 4095], strides = [1, 1]} : vector<1x4096xf32> to vector<1x4095xf32>
    %73 = vector.broadcast %72 : vector<1x4095xf32> to vector<8x4095xf32>
    %74 = arith.mulf %71, %73 : vector<8x4095xf32>
    %75 = arith.truncf %74 : vector<8x4095xf32> to vector<8x4095xbf16>
    %c0_35 = arith.constant 0 : index
    %c1_36 = arith.constant 1 : index
    %76 = vector.load %arg7[%c0_35, %c1_36] : memref<24x4096xbf16, #tpu.memory_space<vmem>>, vector<8x4095xbf16>
    tpu.vector_store %arg7[%c0_35, %c1_36], %75 {strides = array<i32>} : memref<24x4096xbf16, #tpu.memory_space<vmem>>, vector<8x4095xbf16>,
    %77 = vector.extract_strided_slice %68 {offsets = [0, 1], sizes = [8, 4095], strides = [1, 1]} : vector<8x4096xf32> to vector<8x4095xf32>
    %78 = vector.extract_strided_slice %38 {offsets = [0, 0], sizes = [1, 4095], strides = [1, 1]} : vector<1x4096xf32> to vector<1x4095xf32>
    %79 = vector.broadcast %78 : vector<1x4095xf32> to vector<8x4095xf32>
    %80 = arith.mulf %77, %79 : vector<8x4095xf32>
    %81 = arith.truncf %80 : vector<8x4095xf32> to vector<8x4095xbf16>
    %c16_37 = arith.constant 16 : index
    %c0_38 = arith.constant 0 : index
    %82 = vector.load %arg7[%c16_37, %c0_38] : memref<24x4096xbf16, #tpu.memory_space<vmem>>, vector<8x4095xbf16>
    tpu.vector_store %arg7[%c16_37, %c0_38], %81 {strides = array<i32>} : memref<24x4096xbf16, #tpu.memory_space<vmem>>, vector<8x4095xbf16>,
    %cst_39 = arith.constant 0.000000e+00 : bf16
    %83 = vector.broadcast %cst_39 : bf16 to vector<8x1xbf16>
    %c16_40 = arith.constant 16 : index
    %c4095_41 = arith.constant 4095 : index
    %84 = vector.load %arg7[%c16_40, %c4095_41] : memref<24x4096xbf16, #tpu.memory_space<vmem>>, vector<8x1xbf16>
    tpu.vector_store %arg7[%c16_40, %c4095_41], %83 {strides = array<i32>} : memref<24x4096xbf16, #tpu.memory_space<vmem>>, vector<8x1xbf16>,
    %c0_42 = arith.constant 0 : index
    %c24 = arith.constant 24 : index
    %85 = vector.load %arg4[%c0_42, %c24] : memref<3x72xbf16, #tpu.memory_space<vmem>>, vector<3x24xbf16>
    %c0_43 = arith.constant 0 : index
    %c0_44 = arith.constant 0 : index
    %86 = vector.load %arg7[%c0_43, %c0_44] : memref<24x4096xbf16, #tpu.memory_space<vmem>>, vector<24x4096xbf16>
    %cst_45 = arith.constant dense<0.000000e+00> : vector<3x4096xf32>
    %87 = tpu.matmul %85, %86, %cst_45 {dimension_numbers = #tpu.dot_dimension_numbers<[1], [0], [0], [1], [0, 0, 1, 1], [], []>} : vector<3x24xbf16>, vector<24x4096xbf16>, vector<3x4096xf32> -> vector<3x4096xf32>
    %88 = arith.addf %64, %87 : vector<3x4096xf32>
    %89 = vector.extract_strided_slice %13 {offsets = [0, 64], sizes = [8, 4032], strides = [1, 1]} : vector<8x4096xf32> to vector<8x4032xf32>
    %90 = arith.truncf %89 : vector<8x4032xf32> to vector<8x4032xbf16>
    %c8_46 = arith.constant 8 : index
    %c0_47 = arith.constant 0 : index
    %91 = vector.load %arg7[%c8_46, %c0_47] : memref<24x4096xbf16, #tpu.memory_space<vmem>>, vector<8x4032xbf16>
    tpu.vector_store %arg7[%c8_46, %c0_47], %90 {strides = array<i32>} : memref<24x4096xbf16, #tpu.memory_space<vmem>>, vector<8x4032xbf16>,
    %cst_48 = arith.constant 0.000000e+00 : bf16
    %92 = vector.broadcast %cst_48 : bf16 to vector<8x64xbf16>
    %c8_49 = arith.constant 8 : index
    %c4032 = arith.constant 4032 : index
    %93 = vector.load %arg7[%c8_49, %c4032] : memref<24x4096xbf16, #tpu.memory_space<vmem>>, vector<8x64xbf16>
    tpu.vector_store %arg7[%c8_49, %c4032], %92 {strides = array<i32>} : memref<24x4096xbf16, #tpu.memory_space<vmem>>, vector<8x64xbf16>,
    %c8_50 = arith.constant 8 : index
    %c0_51 = arith.constant 0 : index
    %94 = vector.load %arg7[%c8_50, %c0_51] : memref<24x4096xbf16, #tpu.memory_space<vmem>>, vector<8x4096xbf16>
    %95 = arith.extf %94 : vector<8x4096xbf16> to vector<8x4096xf32>
    %cst_52 = arith.constant 0.000000e+00 : bf16
    %96 = vector.broadcast %cst_52 : bf16 to vector<8x1xbf16>
    %c0_53 = arith.constant 0 : index
    %c0_54 = arith.constant 0 : index
    %97 = vector.load %arg7[%c0_53, %c0_54] : memref<24x4096xbf16, #tpu.memory_space<vmem>>, vector<8x1xbf16>
    tpu.vector_store %arg7[%c0_53, %c0_54], %96 {strides = array<i32>} : memref<24x4096xbf16, #tpu.memory_space<vmem>>, vector<8x1xbf16>,
    %98 = vector.extract_strided_slice %95 {offsets = [0, 0], sizes = [8, 4095], strides = [1, 1]} : vector<8x4096xf32> to vector<8x4095xf32>
    %99 = vector.extract_strided_slice %34 {offsets = [0, 1], sizes = [1, 4095], strides = [1, 1]} : vector<1x4096xf32> to vector<1x4095xf32>
    %100 = vector.broadcast %99 : vector<1x4095xf32> to vector<8x4095xf32>
    %101 = arith.mulf %98, %100 : vector<8x4095xf32>
    %102 = arith.truncf %101 : vector<8x4095xf32> to vector<8x4095xbf16>
    %c0_55 = arith.constant 0 : index
    %c1_56 = arith.constant 1 : index
    %103 = vector.load %arg7[%c0_55, %c1_56] : memref<24x4096xbf16, #tpu.memory_space<vmem>>, vector<8x4095xbf16>
    tpu.vector_store %arg7[%c0_55, %c1_56], %102 {strides = array<i32>} : memref<24x4096xbf16, #tpu.memory_space<vmem>>, vector<8x4095xbf16>,
    %104 = vector.extract_strided_slice %95 {offsets = [0, 1], sizes = [8, 4095], strides = [1, 1]} : vector<8x4096xf32> to vector<8x4095xf32>
    %105 = vector.extract_strided_slice %38 {offsets = [0, 0], sizes = [1, 4095], strides = [1, 1]} : vector<1x4096xf32> to vector<1x4095xf32>
    %106 = vector.broadcast %105 : vector<1x4095xf32> to vector<8x4095xf32>
    %107 = arith.mulf %104, %106 : vector<8x4095xf32>
    %108 = arith.truncf %107 : vector<8x4095xf32> to vector<8x4095xbf16>
    %c16_57 = arith.constant 16 : index
    %c0_58 = arith.constant 0 : index
    %109 = vector.load %arg7[%c16_57, %c0_58] : memref<24x4096xbf16, #tpu.memory_space<vmem>>, vector<8x4095xbf16>
    tpu.vector_store %arg7[%c16_57, %c0_58], %108 {strides = array<i32>} : memref<24x4096xbf16, #tpu.memory_space<vmem>>, vector<8x4095xbf16>,
    %cst_59 = arith.constant 0.000000e+00 : bf16
    %110 = vector.broadcast %cst_59 : bf16 to vector<8x1xbf16>
    %c16_60 = arith.constant 16 : index
    %c4095_61 = arith.constant 4095 : index
    %111 = vector.load %arg7[%c16_60, %c4095_61] : memref<24x4096xbf16, #tpu.memory_space<vmem>>, vector<8x1xbf16>
    tpu.vector_store %arg7[%c16_60, %c4095_61], %110 {strides = array<i32>} : memref<24x4096xbf16, #tpu.memory_space<vmem>>, vector<8x1xbf16>,
    %c0_62 = arith.constant 0 : index
    %c48 = arith.constant 48 : index
    %112 = vector.load %arg4[%c0_62, %c48] : memref<3x72xbf16, #tpu.memory_space<vmem>>, vector<3x24xbf16>
    %c0_63 = arith.constant 0 : index
    %c0_64 = arith.constant 0 : index
    %113 = vector.load %arg7[%c0_63, %c0_64] : memref<24x4096xbf16, #tpu.memory_space<vmem>>, vector<24x4096xbf16>
    %cst_65 = arith.constant dense<0.000000e+00> : vector<3x4096xf32>
    %114 = tpu.matmul %112, %113, %cst_65 {dimension_numbers = #tpu.dot_dimension_numbers<[1], [0], [0], [1], [0, 0, 1, 1], [], []>} : vector<3x24xbf16>, vector<24x4096xbf16>, vector<3x4096xf32> -> vector<3x4096xf32>
    %115 = arith.addf %88, %114 : vector<3x4096xf32>
    %c0_66 = arith.constant 0 : index
    %c0_67 = arith.constant 0 : index
    %116 = vector.load %arg5[%c0_66, %c0_67] : memref<3x1xf32, #tpu.memory_space<vmem>>, vector<3x1xf32>
    %117 = vector.broadcast %116 : vector<3x1xf32> to vector<3x4096xf32>
    %118 = arith.addf %115, %117 : vector<3x4096xf32>
    %119 = math.tanh %118 : vector<3x4096xf32>
    %c0_68 = arith.constant 0 : index
    %c0_69 = arith.constant 0 : index
    %c0_70 = arith.constant 0 : index
    %120 = vector.load %arg6[%c0_68, %c0_69, %c0_70] : memref<1x3x4096xf32, #tpu.memory_space<vmem>>, vector<1x3x4096xf32>
    %121 = vector.shape_cast %120 : vector<1x3x4096xf32> to vector<3x4096xf32>
    %122 = vector.shape_cast %119 : vector<3x4096xf32> to vector<1x3x4096xf32>
    tpu.vector_store %arg6[%c0_68, %c0_69, %c0_70], %122 {strides = array<i32>} : memref<1x3x4096xf32, #tpu.memory_space<vmem>>, vector<1x3x4096xf32>,
    return
  }
  func.func @transform_0(%arg0: i32) -> (i32, i32, i32) {
    %c0_i32 = arith.constant 0 : i32
    %c0_i32_0 = arith.constant 0 : i32
    %c0_i32_1 = arith.constant 0 : i32
    return %arg0, %c0_i32, %c0_i32_0 : i32, i32, i32
  }
  func.func @transform_1(%arg0: i32) -> (i32, i32) {
    %c0_i32 = arith.constant 0 : i32
    %c0_i32_0 = arith.constant 0 : i32
    %c0_i32_1 = arith.constant 0 : i32
    return %c0_i32, %c0_i32_0 : i32, i32
  }
  func.func @transform_2(%arg0: i32) -> (i32, i32) {
    %c0_i32 = arith.constant 0 : i32
    %c0_i32_0 = arith.constant 0 : i32
    %c0_i32_1 = arith.constant 0 : i32
    return %c0_i32, %c0_i32_0 : i32, i32
  }
  func.func @transform_3(%arg0: i32) -> (i32, i32) {
    %c0_i32 = arith.constant 0 : i32
    %c0_i32_0 = arith.constant 0 : i32
    %c0_i32_1 = arith.constant 0 : i32
    return %c0_i32, %c0_i32_0 : i32, i32
  }
  func.func @transform_4(%arg0: i32) -> (i32, i32) {
    %c0_i32 = arith.constant 0 : i32
    %c0_i32_0 = arith.constant 0 : i32
    %c0_i32_1 = arith.constant 0 : i32
    return %c0_i32, %c0_i32_0 : i32, i32
  }
  func.func @transform_5(%arg0: i32) -> (i32, i32, i32) {
    %c0_i32 = arith.constant 0 : i32
    %c0_i32_0 = arith.constant 0 : i32
    %c0_i32_1 = arith.constant 0 : i32
    return %arg0, %c0_i32, %c0_i32_0 : i32, i32, i32
  }
}

</mosaic_0001>

<llo_original>
// kernel: decoder_forward.3
$region0: #{decoder_forward.3}
  #allocation0 [shape = 'u32[]', space=smem, size = 0x4, offset = 0x4, fixed_abs, tag = 'smem constant byte address 0x4 - core index']
  #allocation1 [shape = 'u32[144,128]{1,0:T(1,128)}', space=vmem, size = 0x12000, scoped, tag = 'internal scratch']
  #allocation2 [shape = 'bf16[64,256]{1,0:T(8,128)(2,1)}', space=vmem, size = 0x8000, scoped, tag = 'scratch operand']
  #allocation3 [shape = 'f32[16,16]{1,0:T(8,128)}', space=vmem, size = 0x2000, scoped, tag = 'scratch operand']
  %s0 = inlined_call_operand.vmem [shape: bf16[2,16,256], index: 0, kind: input, shape index: {}]
  %s1 = inlined_call_operand.vmem [shape: f32[16,1], index: 1, kind: input, shape index: {}]
  %s2 = inlined_call_operand.vmem [shape: f32[16,1], index: 2, kind: input, shape index: {}]
  %s3 = inlined_call_operand.hbm [shape: bf16[32,64], index: 3, kind: input, shape index: {}]
  %s4 = inlined_call_operand.vmem [shape: f32[32,1], index: 4, kind: input, shape index: {}]
  %s5 = inlined_call_operand.vmem [shape: bf16[2,32,256], index: 5, kind: output, shape index: {0}]
  %s6 = inlined_call_operand.vmem [shape: f32[2,1,8,2], index: 6, kind: output, shape index: {1}]
  %7 = xla_tuple %s5, %s6
  %s8 = sld [smem:[#allocation0]]
  $region69: #{decoder_forward.3} parent=0
    _
  %s10 = ssub.s32 1, %s8
  %s11 = scalar_select 0, %s10, %s8
  $region1: #{decoder_forward.3} parent=0
    #allocation4 [shape = 'u8[8192]{0}', space=vmem, size = 0x2000, scoped, tag = 'input window, operand 3, single buffered']
    #allocation5 [shape = 's32[2]{0}', space=sflag, size = 0x8, scoped, tag = 'scoped memory for decoder_forward.3']
    %12 = vsyncpa [#allocation5], 0
    loop: start=0, step=1, limit=4
    $region2: #{decoder_forward.3} parent=1 // loop_pre_header
      _
    $region3: #{decoder_forward.3} parent=1 // loop_header
      %s14 = sphi 0, %s18
      %p15 = scmp.ge.s32.totalorder %s14, 4
      %s21 = sphi 0, %s33
      %s22 = sphi 0, %s29
      %s23 = sphi 0, %s21
      %s24 = sphi 0, %s22
      %s25 = sphi 0, %s23
      %s26 = sphi 0, %s24
      %s40 = sphi 0, %s42
      %s43 = sphi 0, %s40
      %s44 = sphi 0, %s43
      %s60 = sphi 0, %s44
      %s64 = sphi 0, %s64
      %s66 = sphi 0, %s64
      %s67 = sphi 0, %s66
      %s81 = sphi 0, %s67
      %s85 = sphi 0, %s85
      %s87 = sphi 0, %s85
      %s88 = sphi 0, %s87
      %s102 = sphi 0, %s88
      %s106 = sphi 0, %s106
      %s108 = sphi 0, %s106
      %s109 = sphi 0, %s108
      %s123 = sphi 0, %s109
      %s127 = sphi 0, %s127
      %s129 = sphi 0, %s127
      %s130 = sphi 0, %s129
      %s144 = sphi 0, %s130
      %s154 = sphi 0, %s156
      %s157 = sphi 0, %s154
      %s158 = sphi 0, %s157
      %s174 = sphi 0, %s158
      %s184 = sphi 0, %s186
      %s187 = sphi 0, %s184
      %s188 = sphi 0, %s187
      %s204 = sphi 0, %s188
    $region4: #{decoder_forward.3} parent=1 // loop_header_branch
      %17 = sbr.rel (%p15) target = $region8
    $region5: #{decoder_forward.3} parent=1 // loop_body
      %s19 = ssub.s32 %s14, 1
      %s20 = ssub.s32 %s14, 2
      %s27 = sadd.s32 1, %s22
      %p28 = scmp.ge.s32.totalorder %s27, 1
      %s29 = scalar_select %p28, 0, %s27
      %s30 = sadd.s32 1, %s21
      %s31 = scalar_select %p28, %s30, %s21
      %p32 = scmp.ge.s32.totalorder %s31, 2
      %s33 = scalar_select %p32, 0, %s31
      %s34 = ssub.s32 0, %s22
      %s35 = ssub.s32 0, %s29
      %s36 = ssub.s32 %s21, %s33
      %s37 = ssub.s32 %s34, %s35
      %s38 = sor.u32 %s36, %s37
      %p39 = scmp.eq.s32.totalorder %s38, 0
      %s41 = sadd.s32 %s40, 1
      %s42 = scalar_select %p39, %s40, %s41
      %p45 = pneg %p39
      %p46 = scmp.eq.s32.totalorder %s14, 1
      %p47 = por %p45, %p46
      %p48 = scmp.ne.s32.totalorder %s40, %s43
      %p49 = scmp.eq.s32.totalorder %s14, 0
      %p50 = por %p48, %p49
      %p51 = scmp.ne.s32.totalorder %s40, %s43
      %p52 = scmp.eq.s32.totalorder %s19, 1
      %p53 = por %p51, %p52
      %p54 = scmp.ne.s32.totalorder %s43, %s44
      %p55 = scmp.eq.s32.totalorder %s19, 0
      %p56 = por %p54, %p55
      %p57 = scmp.ne.s32.totalorder %s43, %s44
      %p58 = scmp.eq.s32.totalorder %s20, 1
      %p59 = por %p57, %p58
      %p61 = scmp.ne.s32.totalorder %s44, %s60
      %p62 = scmp.eq.s32.totalorder %s20, 0
      %p63 = por %p61, %p62
      %s65 = sadd.s32 %s64, 1
      %p68 = scmp.eq.s32.totalorder %s14, 1
      %p69 = scmp.ne.s32.totalorder %s64, %s66
      %p70 = scmp.eq.s32.totalorder %s14, 0
      %p71 = por %p69, %p70
      %p72 = scmp.ne.s32.totalorder %s64, %s66
      %p73 = scmp.eq.s32.totalorder %s19, 1
      %p74 = por %p72, %p73
      %p75 = scmp.ne.s32.totalorder %s66, %s67
      %p76 = scmp.eq.s32.totalorder %s19, 0
      %p77 = por %p75, %p76
      %p78 = scmp.ne.s32.totalorder %s66, %s67
      %p79 = scmp.eq.s32.totalorder %s20, 1
      %p80 = por %p78, %p79
      %p82 = scmp.ne.s32.totalorder %s67, %s81
      %p83 = scmp.eq.s32.totalorder %s20, 0
      %p84 = por %p82, %p83
      %s86 = sadd.s32 %s85, 1
      %p89 = scmp.eq.s32.totalorder %s14, 1
      %p90 = scmp.ne.s32.totalorder %s85, %s87
      %p91 = scmp.eq.s32.totalorder %s14, 0
      %p92 = por %p90, %p91
      %p93 = scmp.ne.s32.totalorder %s85, %s87
      %p94 = scmp.eq.s32.totalorder %s19, 1
      %p95 = por %p93, %p94
      %p96 = scmp.ne.s32.totalorder %s87, %s88
      %p97 = scmp.eq.s32.totalorder %s19, 0
      %p98 = por %p96, %p97
      %p99 = scmp.ne.s32.totalorder %s87, %s88
      %p100 = scmp.eq.s32.totalorder %s20, 1
      %p101 = por %p99, %p100
      %p103 = scmp.ne.s32.totalorder %s88, %s102
      %p104 = scmp.eq.s32.totalorder %s20, 0
      %p105 = por %p103, %p104
      %s107 = sadd.s32 %s106, 1
      %p110 = scmp.eq.s32.totalorder %s14, 1
      %p111 = scmp.ne.s32.totalorder %s106, %s108
      %p112 = scmp.eq.s32.totalorder %s14, 0
      %p113 = por %p111, %p112
      %p114 = scmp.ne.s32.totalorder %s106, %s108
      %p115 = scmp.eq.s32.totalorder %s19, 1
      %p116 = por %p114, %p115
      %p117 = scmp.ne.s32.totalorder %s108, %s109
      %p118 = scmp.eq.s32.totalorder %s19, 0
      %p119 = por %p117, %p118
      %p120 = scmp.ne.s32.totalorder %s108, %s109
      %p121 = scmp.eq.s32.totalorder %s20, 1
      %p122 = por %p120, %p121
      %p124 = scmp.ne.s32.totalorder %s109, %s123
      %p125 = scmp.eq.s32.totalorder %s20, 0
      %p126 = por %p124, %p125
      %s128 = sadd.s32 %s127, 1
      %p131 = scmp.eq.s32.totalorder %s14, 1
      %p132 = scmp.ne.s32.totalorder %s127, %s129
      %p133 = scmp.eq.s32.totalorder %s14, 0
      %p134 = por %p132, %p133
      %p135 = scmp.ne.s32.totalorder %s127, %s129
      %p136 = scmp.eq.s32.totalorder %s19, 1
      %p137 = por %p135, %p136
      %p138 = scmp.ne.s32.totalorder %s129, %s130
      %p139 = scmp.eq.s32.totalorder %s19, 0
      %p140 = por %p138, %p139
      %p141 = scmp.ne.s32.totalorder %s129, %s130
      %p142 = scmp.eq.s32.totalorder %s20, 1
      %p143 = por %p141, %p142
      %p145 = scmp.ne.s32.totalorder %s130, %s144
      %p146 = scmp.eq.s32.totalorder %s20, 0
      %p147 = por %p145, %p146
      %s148 = ssub.s32 0, %s22
      %s149 = ssub.s32 0, %s29
      %s150 = ssub.s32 %s21, %s33
      %s151 = ssub.s32 %s148, %s149
      %s152 = sor.u32 %s150, %s151
      %p153 = scmp.eq.s32.totalorder %s152, 0
      %s155 = sadd.s32 %s154, 1
      %s156 = scalar_select %p153, %s154, %s155
      %p159 = pneg %p153
      %p160 = scmp.eq.s32.totalorder %s14, 1
      %p161 = por %p159, %p160
      %p162 = scmp.ne.s32.totalorder %s154, %s157
      %p163 = scmp.eq.s32.totalorder %s14, 0
      %p164 = por %p162, %p163
      %p165 = scmp.ne.s32.totalorder %s154, %s157
      %p166 = scmp.eq.s32.totalorder %s19, 1
      %p167 = por %p165, %p166
      %p168 = scmp.ne.s32.totalorder %s157, %s158
      %p169 = scmp.eq.s32.totalorder %s19, 0
      %p170 = por %p168, %p169
      %p171 = scmp.ne.s32.totalorder %s157, %s158
      %p172 = scmp.eq.s32.totalorder %s20, 1
      %p173 = por %p171, %p172
      %p175 = scmp.ne.s32.totalorder %s158, %s174
      %p176 = scmp.eq.s32.totalorder %s20, 0
      %p177 = por %p175, %p176
      %s178 = ssub.s32 0, %s22
      %s179 = ssub.s32 0, %s29
      %s180 = ssub.s32 %s21, %s33
      %s181 = ssub.s32 %s178, %s179
      %s182 = sor.u32 %s180, %s181
      %p183 = scmp.eq.s32.totalorder %s182, 0
      %s185 = sadd.s32 %s184, 1
      %s186 = scalar_select %p183, %s184, %s185
      %p189 = pneg %p183
      %p190 = scmp.eq.s32.totalorder %s14, 1
      %p191 = por %p189, %p190
      %p192 = scmp.ne.s32.totalorder %s184, %s187
      %p193 = scmp.eq.s32.totalorder %s14, 0
      %p194 = por %p192, %p193
      %p195 = scmp.ne.s32.totalorder %s184, %s187
      %p196 = scmp.eq.s32.totalorder %s19, 1
      %p197 = por %p195, %p196
      %p198 = scmp.ne.s32.totalorder %s187, %s188
      %p199 = scmp.eq.s32.totalorder %s19, 0
      %p200 = por %p198, %p199
      %p201 = scmp.ne.s32.totalorder %s187, %s188
      %p202 = scmp.eq.s32.totalorder %s20, 1
      %p203 = por %p201, %p202
      %p205 = scmp.ne.s32.totalorder %s188, %s204
      %p206 = scmp.eq.s32.totalorder %s20, 0
      %p207 = por %p205, %p206
      %p208 = scmp.le.s32.totalorder 1, %s14
      %p209 = scmp.lt.s32.totalorder %s14, 3
      %p210 = pnand %p208, %p209
      %p211 = pneg %p210
      // Predicated region
      $region9: #{decoder_forward.3} parent=5 // pred_check
        _
      $region10: #{decoder_forward.3} parent=5 // pred_check_branch
        %213 = sbr.rel (%p210) target = $region12
      $region11: #{decoder_forward.3} parent=5 // pred_region
        %s214 = ssub.s32 %s14, 1
        // Predicated region
        $region13: #{decoder_forward.3} parent=11 // pred_check
          %p215 = pneg %p77
        $region14: #{decoder_forward.3} parent=11 // pred_check_branch
          %217 = sbr.rel (%p215) target = $region16
        $region15: #{decoder_forward.3} parent=11 // pred_region
          _
        $region16: #{decoder_forward.3} parent=11 // pred_fallthru
          _
        // Predicated region
        $region17: #{decoder_forward.3} parent=11 // pred_check
          %p218 = pneg %p98
        $region18: #{decoder_forward.3} parent=11 // pred_check_branch
          %220 = sbr.rel (%p218) target = $region20
        $region19: #{decoder_forward.3} parent=11 // pred_region
          _
        $region20: #{decoder_forward.3} parent=11 // pred_fallthru
          _
        // Predicated region
        $region21: #{decoder_forward.3} parent=11 // pred_check
          %p221 = pneg %p119
        $region22: #{decoder_forward.3} parent=11 // pred_check_branch
          %223 = sbr.rel (%p221) target = $region24
        $region23: #{decoder_forward.3} parent=11 // pred_region
          %s225 = ssub.s32 256, 256
          %226 = vsyncadd [#allocation5], %s225
          %s227 = sshll.u32 [#allocation4], 4
          %s228 = int_to_ptr.vmem [resolvable:$true] %s227
          %233 = dma.hbm_to_vmem [thread:$0]  %s3, 256, %s228, [#allocation5], 64, 64, 4
        $region24: #{decoder_forward.3} parent=11 // pred_fallthru
          _
        // Predicated region
        $region25: #{decoder_forward.3} parent=11 // pred_check
          %p234 = pneg %p140
        $region26: #{decoder_forward.3} parent=11 // pred_check_branch
          %236 = sbr.rel (%p234) target = $region28
        $region27: #{decoder_forward.3} parent=11 // pred_region
          _
        $region28: #{decoder_forward.3} parent=11 // pred_fallthru
          _
      $region12: #{decoder_forward.3} parent=5 // pred_fallthru
        _
      %p237 = scmp.lt.s32.totalorder %s14, 2
      // Predicated region
      $region29: #{decoder_forward.3} parent=5 // pred_check
        %p238 = pneg %p237
      $region30: #{decoder_forward.3} parent=5 // pred_check_branch
        %240 = sbr.rel (%p238) target = $region32
      $region31: #{decoder_forward.3} parent=5 // pred_region
        // Predicated region
        $region33: #{decoder_forward.3} parent=31 // pred_check
          %p241 = pneg %p50
        $region34: #{decoder_forward.3} parent=31 // pred_check_branch
          %243 = sbr.rel (%p241) target = $region36
        $region35: #{decoder_forward.3} parent=31 // pred_region
          %s244 = ssub.s32 0, %s22
          %s245 = smul.u32 2, %s244
          %p246 = scmp.lt.s32.totalorder %s21, 1
          %s247 = scalar_select %p246, %s21, 1
          %p248 = scmp.lt.s32.totalorder %s245, 1
          %s249 = scalar_select %p248, %s245, 1
          %s250 = smul.addr %s247, 4
          %s251 = sadd.s32 %s249, %s250
          %s252 = smul.addr %s251, 4
          %s253 = scalar_lea.vmem %s0, %s252
          %s254 = ssub.s32 0, %s22
          %s255 = smul.u32 2, %s254
        $region36: #{decoder_forward.3} parent=31 // pred_fallthru
          _
      $region32: #{decoder_forward.3} parent=5 // pred_fallthru
        _
      %p256 = scmp.le.s32.totalorder 1, %s14
      %p257 = scmp.lt.s32.totalorder %s14, 3
      %p258 = pnand %p256, %p257
      %p259 = pneg %p258
      // Predicated region
      $region37: #{decoder_forward.3} parent=5 // pred_check
        _
      $region38: #{decoder_forward.3} parent=5 // pred_check_branch
        %261 = sbr.rel (%p258) target = $region40
      $region39: #{decoder_forward.3} parent=5 // pred_region
        %s262 = ssub.s32 %s14, 1
        // Predicated region
        $region41: #{decoder_forward.3} parent=39 // pred_check
          %p263 = pneg %p119
        $region42: #{decoder_forward.3} parent=39 // pred_check_branch
          %265 = sbr.rel (%p263) target = $region44
        $region43: #{decoder_forward.3} parent=39 // pred_region
          %266 = dma.done [#allocation5], 256
        $region44: #{decoder_forward.3} parent=39 // pred_fallthru
          _
        %s267 = ssub.s32 0, %s24
        %s268 = smul.u32 2, %s267
        %p269 = scmp.lt.s32.totalorder %s23, 1
        %s270 = scalar_select %p269, %s23, 1
        %p271 = scmp.lt.s32.totalorder %s268, 1
        %s272 = scalar_select %p271, %s268, 1
        %s273 = smul.addr %s270, 4
        %s274 = sadd.s32 %s272, %s273
        %s275 = smul.addr %s274, 4
        %s276 = scalar_lea.vmem %s0, %s275
        %p277 = pneg %p56
        %p278 = pneg %p53
        %p279 = pneg %p77
        %p280 = pneg %p74
        %p281 = pneg %p98
        %p282 = pneg %p95
        %p283 = pneg %p119
        %p284 = pneg %p116
        %p285 = pneg %p140
        %p286 = pneg %p137
        %p287 = pneg %p170
        %p288 = pneg %p167
        %s289 = ssub.s32 0, %s24
        %s290 = smul.u32 2, %s289
        %p291 = scmp.lt.s32.totalorder %s23, 1
        %s292 = scalar_select %p291, %s23, 1
        %p293 = scmp.lt.s32.totalorder %s290, 1
        %s294 = scalar_select %p293, %s290, 1
        %s295 = smul.addr %s292, 8
        %s296 = sadd.s32 %s294, %s295
        %s297 = smul.addr %s296, 4
        %s298 = scalar_lea.vmem %s5, %s297
        %p299 = pneg %p200
        %p300 = pneg %p197
        %s301 = ssub.s32 0, %s24
        %p302 = scmp.lt.s32.totalorder %s23, 1
        %s303 = scalar_select %p302, %s23, 1
        %p304 = scmp.lt.s32.totalorder %s301, 0
        %s305 = scalar_select %p304, %s301, 0
        %s306 = sadd.s32 %s305, %s303
        %s307 = smul.addr %s306, 8
        %s308 = scalar_lea.vmem %s6, %s307
        %s309 = ssub.s32 0, %s24
        %s310 = smul.u32 2, %s309
        %p311 = scmp.lt.s32.totalorder %s23, 1
        %s312 = scalar_select %p311, %s23, 1
        %p313 = scmp.lt.s32.totalorder %s310, 1
        %s314 = scalar_select %p313, %s310, 1
        %s315 = smul.addr %s312, 4
        %s316 = sadd.s32 %s314, %s315
        %s317 = smul.addr %s316, 4
        %s318 = scalar_lea.vmem %s0, %s317
        %s319 = ssub.s32 0, %s24
        %s320 = smul.u32 2, %s319
        %s321 = ssub.s32 0, %s24
        %s322 = smul.u32 2, %s321
        %p323 = scmp.lt.s32.totalorder %s23, 1
        %s324 = scalar_select %p323, %s23, 1
        %p325 = scmp.lt.s32.totalorder %s322, 1
        %s326 = scalar_select %p325, %s322, 1
        %s327 = smul.addr %s324, 8
        %s328 = sadd.s32 %s326, %s327
        %s329 = smul.addr %s328, 4
        %s330 = scalar_lea.vmem %s5, %s329
        %s331 = ssub.s32 0, %s24
        %s332 = smul.u32 2, %s331
        %s333 = ssub.s32 0, %s24
        %p334 = scmp.lt.s32.totalorder %s23, 1
        %s335 = scalar_select %p334, %s23, 1
        %p336 = scmp.lt.s32.totalorder %s333, 0
        %s337 = scalar_select %p336, %s333, 0
        %s338 = sadd.s32 %s337, %s335
        %s339 = smul.addr %s338, 8
        %s340 = scalar_lea.vmem %s6, %s339
        %s341 = ssub.s32 0, %s24
        %v343 = vld [vmem:[%s318] sm:$0xff]
        %v344 = vld [vmem:[%s318 + $0x8] sm:$0xff]
        %v345 = vunpack.c.l.bf16 %v343
        %v346 = vunpack.c.h.bf16 %v343
        %v347 = vunpack.c.l.bf16 %v344
        %v348 = vunpack.c.h.bf16 %v344
        %v349 = vlaneseq
        %v350 = vand.u32 %v349, 127
        %v351 = vadd.s32 %v350, 128
        %vm352 = vcmp.lt.s32.totalorder %v350, 0
        %v353 = vsub.s32 0, %v350
        %v354 = vsel %vm352, %v353, %v350
        %v355 = vshrl.u32 %v354, 4
        %v356 = vand.u32 %v354, 15
        %v357 = vsub.s32 0, %v356
        %v358 = vsel %vm352, %v357, %v356
        %vm359 = vcmp.lt.s32.totalorder %v351, 0
        %v360 = vsub.s32 0, %v351
        %v361 = vsel %vm359, %v360, %v351
        %v362 = vshrl.u32 %v361, 4
        %v363 = vand.u32 %v361, 15
        %v364 = vsub.s32 0, %v363
        %v365 = vsel %vm359, %v364, %v363
        %vm366 = vcmp.ne.s32.totalorder %v358, 0
        %vm367 = vcmp.ne.s32.totalorder %v365, 0
        %vm368 = vcmp.lt.s32.totalorder %v358, 0
        %vm369 = vcmp.lt.s32.totalorder %v365, 0
        %vm370 = vmand %vm368, %vm366
        %vm371 = vmand %vm369, %vm367
        %v372 = vadd.s32 %v358, 16
        %v373 = vadd.s32 %v365, 16
        %v374 = vsel %vm370, %v372, %v358
        %v375 = vsel %vm371, %v373, %v365
        %vm376 = vcmp.ne.s32.totalorder %v374, 15
        %vm377 = vcmp.ne.s32.totalorder %v375, 15
        %v378 = vsel %vm376, 1, 0
        %v379 = vsel %vm377, 1, 0
        %v380 = vcvt.s32.f32 %v378
        %v381 = vcvt.s32.f32 %v379
        %p382 = scmp.eq.s32.totalorder %s24, 0
        // Predicated region
        $region45: #{decoder_forward.3} parent=39 // pred_check
          %p383 = pneg %p382
        $region46: #{decoder_forward.3} parent=39 // pred_check_branch
          %385 = sbr.rel (%p383) target = $region48
        $region47: #{decoder_forward.3} parent=39 // pred_region
          %vm386 = vcmask 130048
          %387 = vst.msk [vmem:[#allocation3] sm:$0xff] %vm386, 0.0
          %388 = vst.msk [vmem:[#allocation3 + $0x8] sm:$0xff] %vm386, 0.0
        $region48: #{decoder_forward.3} parent=39 // pred_fallthru
          _
        %v389 = vld [vmem:[#allocation3] sm:$0xff]
        %v390 = vld [vmem:[#allocation3 + $0x8] sm:$0xff]
        %391 = vst [vmem:[#allocation2] sm:$0xff] %v343
        %392 = vst [vmem:[#allocation2 + $0x8] sm:$0xff] %v344
        %395 = vrot.lane.b32.xlu0 %v380, 1
        %v396 = vpop.permute.xlu0 %395
        %397 = vrot.lane.b32.xlu0 %v381, 1
        %v398 = vpop.permute.xlu0 %397
        %vm399 = vcmask 7168
        %v400 = vsel %vm399, %v396, %v398
        %v403 = vmul.f32 %v345, %v396
        %v404 = vmul.f32 %v346, %v400
        %v405 = vmul.f32 %v347, %v396
        %v406 = vmul.f32 %v348, %v400
        %v407 = vpack.c.bf16 %v405, %v403
        %v408 = vpack.c.bf16 %v406, %v404
        %v411 = vunpack.c.l.b16 %v407
        %v412 = vunpack.c.l.b16 %v408
        %v413 = vunpack.c.h.b16 %v407
        %v414 = vunpack.c.h.b16 %v408
        %v415 = vpack.c.b16 %v412, %v411
        %v416 = vpack.c.b16 %v414, %v413
        %417 = vrot.lane.b32.xlu0 %v415, 127
        %v418 = vpop.permute.xlu0 %417
        %419 = vrot.lane.b32.xlu0 %v416, 127
        %v420 = vpop.permute.xlu0 %419
        %v421 = vrot.slane %v418, 4
        %v422 = vrot.slane %v420, 4
        %vm423 = vcmask 1039360
        %v424 = vsel %vm423, %v418, %v421
        %v425 = vsel %vm423, %v420, %v422
        %vm428 = vcmask 1043456
        %vm429 = vcmask 1039364
        %vm430 = vmor %vm429, %vm428
        %431 = vst.msk [vmem:[#allocation2 + $0x10] sm:$0xff] %vm430, %v424
        %432 = vst.msk [vmem:[#allocation2 + $0x18] sm:$0xff] %vm430, %v425
        %vm433 = vcmask 1044472
        %434 = vst.msk [vmem:[#allocation2 + $0x14] sm:$0xf] %vm433, 0
        %435 = vst.msk [vmem:[#allocation2 + $0x1c] sm:$0xf] %vm433, 0
        %v436 = vpack.c.bf16 %v347, %v345
        %v437 = vpack.c.bf16 %v348, %v346
        %v440 = vunpack.c.l.b16 %v436
        %v441 = vunpack.c.l.b16 %v437
        %v442 = vunpack.c.h.b16 %v436
        %v443 = vunpack.c.h.b16 %v437
        %v444 = vpack.c.b16 %v441, %v440
        %v445 = vpack.c.b16 %v443, %v442
        %446 = vrot.lane.b32.xlu0 %v444, 112
        %v447 = vpop.permute.xlu0 %446
        %448 = vrot.lane.b32.xlu0 %v445, 112
        %v449 = vpop.permute.xlu0 %448
        %v450 = vrot.slane %v447, 4
        %v451 = vrot.slane %v449, 4
        %vm452 = vcmask 916480
        %v453 = vsel %vm452, %v447, %v450
        %v454 = vsel %vm452, %v449, %v451
        %vm457 = vcmask 916484
        %vm458 = vmor %vm457, %vm428
        %459 = vst.msk [vmem:[#allocation2 + $0x20] sm:$0xff] %vm458, %v453
        %460 = vst.msk [vmem:[#allocation2 + $0x28] sm:$0xff] %vm458, %v454
        %v461 = vpack.c.bf16 %v390, %v389
        %v463 = vunpack.c.l.b16 %v461
        %v464 = vunpack.c.h.b16 %v461
        %v465 = vpack.c.b16 %v463, %v463
        %v466 = vpack.c.b16 %v464, %v464
        %467 = vrot.lane.b32.xlu0 %v465, 112
        %v468 = vpop.permute.xlu0 %467
        %469 = vrot.lane.b32.xlu0 %v466, 112
        %v470 = vpop.permute.xlu0 %469
        %vm473 = vcmask 1044352
        %474 = vst.msk [vmem:[#allocation2 + $0x24] sm:$0xf] %vm473, %v468
        %475 = vst.msk [vmem:[#allocation2 + $0x2c] sm:$0xf] %vm473, %v470
        %v476 = vld [vmem:[#allocation2 + $0x20] sm:$0xff]
        %v477 = vld [vmem:[#allocation2 + $0x28] sm:$0xff]
        %v478 = vunpack.c.l.bf16 %v476
        %v479 = vunpack.c.h.bf16 %v476
        %v480 = vunpack.c.l.bf16 %v477
        %v481 = vunpack.c.h.bf16 %v477
        %v482 = vmul.f32 %v478, %v396
        %v483 = vmul.f32 %v479, %v400
        %v484 = vmul.f32 %v480, %v396
        %v485 = vmul.f32 %v481, %v400
        %v486 = vpack.c.bf16 %v484, %v482
        %v487 = vpack.c.bf16 %v485, %v483
        %v490 = vunpack.c.l.b16 %v486
        %v491 = vunpack.c.l.b16 %v487
        %v492 = vunpack.c.h.b16 %v486
        %v493 = vunpack.c.h.b16 %v487
        %v494 = vpack.c.b16 %v491, %v490
        %v495 = vpack.c.b16 %v493, %v492
        %496 = vrot.lane.b32.xlu0 %v494, 127
        %v497 = vpop.permute.xlu0 %496
        %498 = vrot.lane.b32.xlu0 %v495, 127
        %v499 = vpop.permute.xlu0 %498
        %v500 = vrot.slane %v497, 4
        %v501 = vrot.slane %v499, 4
        %v502 = vsel %vm423, %v497, %v500
        %v503 = vsel %vm423, %v499, %v501
        %506 = vst.msk [vmem:[#allocation2 + $0x30] sm:$0xff] %vm430, %v502
        %507 = vst.msk [vmem:[#allocation2 + $0x38] sm:$0xff] %vm430, %v503
        %508 = vst.msk [vmem:[#allocation2 + $0x34] sm:$0xf] %vm433, 0
        %509 = vst.msk [vmem:[#allocation2 + $0x3c] sm:$0xf] %vm433, 0
        %vm510 = vcmask 130048
        %511 = vst.msk [vmem:[#allocation3] sm:$0xff] %vm510, %v345
        %512 = vst.msk [vmem:[#allocation3 + $0x8] sm:$0xff] %vm510, %v347
        %v513 = vld [vmem:[#allocation4] sm:$0xf]
        %v514 = vld [vmem:[#allocation4 + $0x4] sm:$0xf]
        %v515 = vld [vmem:[#allocation4 + $0x8] sm:$0xf]
        %v516 = vld [vmem:[#allocation4 + $0xc] sm:$0xf]
        %v517 = vld [vmem:[#allocation2] sm:$0xff]
        %v518 = vld [vmem:[#allocation2 + $0x8] sm:$0xff]
        %v519 = vld [vmem:[#allocation2 + $0x10] sm:$0xff]
        %v520 = vld [vmem:[#allocation2 + $0x18] sm:$0xff]
        %v521 = vld [vmem:[#allocation2 + $0x20] sm:$0xff]
        %v522 = vld [vmem:[#allocation2 + $0x28] sm:$0xff]
        %v523 = vld [vmem:[#allocation2 + $0x30] sm:$0xff]
        %v524 = vld [vmem:[#allocation2 + $0x38] sm:$0xff]
        %v525 = vld [vmem:[%s4] sm:$0xff]
        %v526 = vld [vmem:[%s4 + $0x8] sm:$0xff]
        %v527 = vld [vmem:[%s4 + $0x10] sm:$0xff]
        %v528 = vld [vmem:[%s4 + $0x18] sm:$0xff]
        %530 = vset.pattern.permute.xlu0 0
        %531 = vperm.xlu0 %530, %v525
        %v532 = vpop.permute.xlu0 %531
        %535 = vset.pattern.permute.xlu0 0
        %536 = vperm.xlu0 %535, %v526
        %v537 = vpop.permute.xlu0 %536
        %540 = vset.pattern.permute.xlu0 0
        %541 = vperm.xlu0 %540, %v527
        %v542 = vpop.permute.xlu0 %541
        %545 = vset.pattern.permute.xlu0 0
        %546 = vperm.xlu0 %545, %v528
        %v547 = vpop.permute.xlu0 %546
        %v553 = vunpack.c.l.b16 %v513
        %v554 = vunpack.c.l.b16 %v514
        %v555 = vunpack.c.l.b16 %v515
        %v556 = vunpack.c.l.b16 %v516
        %v557 = vpack.c.b16 %v554, %v553
        %v558 = vpack.c.b16 %v556, %v555
        %v567 = vunpack.c.l.b16 %v517
        %v568 = vunpack.c.h.b16 %v517
        %v569 = vunpack.c.l.b16 %v518
        %v570 = vunpack.c.h.b16 %v518
        %v571 = vunpack.c.l.b16 %v519
        %v572 = vunpack.c.h.b16 %v519
        %v573 = vunpack.c.l.b16 %v520
        %v574 = vunpack.c.h.b16 %v520
        %v575 = vunpack.c.l.b16 %v521
        %v576 = vunpack.c.h.b16 %v521
        %v577 = vunpack.c.l.b16 %v522
        %v578 = vunpack.c.h.b16 %v522
        %v579 = vunpack.c.l.b16 %v523
        %v580 = vunpack.c.h.b16 %v523
        %v581 = vunpack.c.l.b16 %v524
        %v582 = vunpack.c.h.b16 %v524
        %v583 = vpack.c.b16 %v569, %v567
        %v584 = vpack.c.b16 %v570, %v568
        %v585 = vpack.c.b16 %v573, %v571
        %v586 = vpack.c.b16 %v574, %v572
        %v587 = vpack.c.b16 %v577, %v575
        %v588 = vpack.c.b16 %v578, %v576
        %v589 = vpack.c.b16 %v581, %v579
        %v590 = vpack.c.b16 %v582, %v580
        %vm599 = vcmask 523264
        %v601 = vsel %vm599, %v557, 0
        %v604 = vsel %vm599, %v558, 0
        %606 = vmatprep.subr.bf16.mxu0 0
        %607 = vmatpush1.bf16.msra.mxu0 0
        %608 = vmatprep.subr.bf16.mxu0 0
        %609 = vmatpush1.bf16.msra.mxu0 0
        %610 = vmatprep.subr.bf16.mxu0 0
        %611 = vmatpush1.bf16.msra.mxu0 0
        %612 = vmatprep.subr.bf16.mxu0 0
        %613 = vmatpush1.bf16.msra.mxu0 0
        %614 = vmatprep.subr.bf16.mxu0 %v590
        %615 = vmatpush1.bf16.msra.mxu0 %v589
        %616 = vmatprep.subr.bf16.mxu0 %v588
        %617 = vmatpush1.bf16.msra.mxu0 %v587
        %618 = vmatprep.subr.bf16.mxu0 %v586
        %619 = vmatpush1.bf16.msra.mxu0 %v585
        %620 = vmatprep.subr.bf16.mxu0 %v584
        %621 = vmatpush1.bf16.msra.mxu0 %v583
        %622 = vmatprep.subr.bf16.mxu0 0
        %623 = vmatpush2.bf16.msra.mxu0 0
        %624 = vmatprep.subr.bf16.mxu0 0
        %625 = vmatpush2.bf16.msra.mxu0 0
        %626 = vmatprep.subr.bf16.mxu0 0
        %627 = vmatpush2.bf16.msra.mxu0 0
        %628 = vmatprep.subr.bf16.mxu0 0
        %629 = vmatpush2.bf16.msra.mxu0 0
        %630 = vmatprep.subr.bf16.mxu0 0
        %631 = vmatpush2.bf16.msra.mxu0 0
        %632 = vmatprep.subr.bf16.mxu0 0
        %633 = vmatpush2.bf16.msra.mxu0 0
        %634 = vmatprep.subr.bf16.mxu0 0
        %635 = vmatpush2.bf16.msra.mxu0 0
        %636 = vmatprep.subr.bf16.mxu0 0
        %637 = vmatpush2.bf16.msra.mxu0 0
        %638 = vmatprep.mubr.bf16.mxu0 0
        %639 = vmatmul.mubr.bf16.gmra.mxu0 %v601
        %v640 = vpop.f32.mrf.mxu0
        %v641 = vadd.f32 %v532, %v640
        %v642 = vpop.f32.mrf.mxu0
        %v643 = vadd.f32 %v532, %v642
        %v644 = vpop.f32.mrf.mxu0
        %v645 = vadd.f32 %v537, %v644
        %v646 = vpop.f32.mrf.mxu0
        %v647 = vadd.f32 %v537, %v646
        %648 = vmatprep.mubr.bf16.mxu0 0
        %649 = vmatmul.mubr.bf16.gmra.mxu0 %v604
        %v650 = vpop.f32.mrf.mxu0
        %v651 = vadd.f32 %v542, %v650
        %v652 = vpop.f32.mrf.mxu0
        %v653 = vadd.f32 %v542, %v652
        %v654 = vpop.f32.mrf.mxu0
        %v655 = vadd.f32 %v547, %v654
        %v656 = vpop.f32.mrf.mxu0
        %v657 = vadd.f32 %v547, %v656
        %658 = vdwg.mxu0
        %v659 = vadd.f32 %v641, %v645
        %v660 = vadd.f32 %v643, %v647
        %v661 = vadd.f32 %v659, %v651
        %v662 = vadd.f32 %v660, %v653
        %v663 = vadd.f32 %v661, %v655
        %v664 = vadd.f32 %v662, %v657
        %v665 = vadd.f32 %v663, %v664
        %666 = vadd.xlane.f32.xlu0 %v665
        %v667 = vpop.xlane.xlu0 %666
        %668 = vst.msk [vmem:[%s340] sm:$0xff] %vm399, %v667
        %v669 = vmul.f32 %v641, %v641
        %v670 = vmul.f32 %v643, %v643
        %v671 = vmul.f32 %v645, %v645
        %v672 = vmul.f32 %v647, %v647
        %v673 = vadd.f32 %v669, %v671
        %v674 = vadd.f32 %v670, %v672
        %v675 = vmul.f32 %v651, %v651
        %v676 = vmul.f32 %v653, %v653
        %v677 = vadd.f32 %v673, %v675
        %v678 = vadd.f32 %v674, %v676
        %v679 = vmul.f32 %v655, %v655
        %v680 = vmul.f32 %v657, %v657
        %v681 = vadd.f32 %v677, %v679
        %v682 = vadd.f32 %v678, %v680
        %v683 = vadd.f32 %v681, %v682
        %684 = vadd.xlane.f32.xlu0 %v683
        %v685 = vpop.xlane.xlu0 %684
        %vm686 = vcmask 15368
        %687 = vst.msk [vmem:[%s340] sm:$0xff] %vm686, %v685
        %v688 = vpack.c.bf16 %v645, %v641
        %v689 = vpack.c.bf16 %v647, %v643
        %v690 = vpack.c.bf16 %v655, %v651
        %v691 = vpack.c.bf16 %v657, %v653
        %v696 = vunpack.c.l.b16 %v688
        %v697 = vunpack.c.l.b16 %v689
        %v698 = vunpack.c.h.b16 %v688
        %v699 = vunpack.c.h.b16 %v689
        %v700 = vunpack.c.l.b16 %v690
        %v701 = vunpack.c.l.b16 %v691
        %v702 = vunpack.c.h.b16 %v690
        %v703 = vunpack.c.h.b16 %v691
        %v704 = vpack.c.b16 %v697, %v696
        %v705 = vpack.c.b16 %v699, %v698
        %v706 = vpack.c.b16 %v701, %v700
        %v707 = vpack.c.b16 %v703, %v702
        %712 = vst [vmem:[%s330] sm:$0xff] %v704
        %713 = vst [vmem:[%s330 + $0x8] sm:$0xff] %v705
        %714 = vst [vmem:[%s330 + $0x10] sm:$0xff] %v706
        %715 = vst [vmem:[%s330 + $0x18] sm:$0xff] %v707
        %s716 = ssub.s32 0, %s24
        %s717 = smul.u32 2, %s716
        %p718 = scmp.lt.s32.totalorder %s23, 1
        %s719 = scalar_select %p718, %s23, 1
        %p720 = scmp.lt.s32.totalorder %s717, 1
        %s721 = scalar_select %p720, %s717, 1
        %s722 = smul.addr %s719, 8
        %s723 = sadd.s32 %s721, %s722
        %s724 = smul.addr %s723, 4
        %s725 = scalar_lea.vmem %s5, %s724
        %s726 = ssub.s32 0, %s24
        %p727 = scmp.lt.s32.totalorder %s23, 1
        %s728 = scalar_select %p727, %s23, 1
        %p729 = scmp.lt.s32.totalorder %s726, 0
        %s730 = scalar_select %p729, %s726, 0
        %s731 = sadd.s32 %s730, %s728
        %s732 = smul.addr %s731, 8
        %s733 = scalar_lea.vmem %s6, %s732
        // Predicated region
        $region49: #{decoder_forward.3} parent=39 // pred_check
          %p734 = pneg %p167
        $region50: #{decoder_forward.3} parent=39 // pred_check_branch
          %736 = sbr.rel (%p734) target = $region52
        $region51: #{decoder_forward.3} parent=39 // pred_region
          %s737 = ssub.s32 0, %s24
          %s738 = smul.u32 2, %s737
        $region52: #{decoder_forward.3} parent=39 // pred_fallthru
          _
        // Predicated region
        $region53: #{decoder_forward.3} parent=39 // pred_check
          %p739 = pneg %p197
        $region54: #{decoder_forward.3} parent=39 // pred_check_branch
          %741 = sbr.rel (%p739) target = $region56
        $region55: #{decoder_forward.3} parent=39 // pred_region
          %s742 = ssub.s32 0, %s24
        $region56: #{decoder_forward.3} parent=39 // pred_fallthru
          _
      $region40: #{decoder_forward.3} parent=5 // pred_fallthru
        _
      %p743 = scmp.le.s32.totalorder 2, %s14
      // Predicated region
      $region57: #{decoder_forward.3} parent=5 // pred_check
        %p744 = pneg %p743
      $region58: #{decoder_forward.3} parent=5 // pred_check_branch
        %746 = sbr.rel (%p744) target = $region60
      $region59: #{decoder_forward.3} parent=5 // pred_region
        %s747 = ssub.s32 %s14, 2
        // Predicated region
        $region61: #{decoder_forward.3} parent=59 // pred_check
          %p748 = pneg %p173
        $region62: #{decoder_forward.3} parent=59 // pred_check_branch
          %750 = sbr.rel (%p748) target = $region64
        $region63: #{decoder_forward.3} parent=59 // pred_region
          %s751 = ssub.s32 0, %s26
          %s752 = smul.u32 2, %s751
          %p753 = scmp.lt.s32.totalorder %s25, 1
          %s754 = scalar_select %p753, %s25, 1
          %p755 = scmp.lt.s32.totalorder %s752, 1
          %s756 = scalar_select %p755, %s752, 1
          %s757 = smul.addr %s754, 8
          %s758 = sadd.s32 %s756, %s757
          %s759 = smul.addr %s758, 4
          %s760 = scalar_lea.vmem %s5, %s759
        $region64: #{decoder_forward.3} parent=59 // pred_fallthru
          _
        // Predicated region
        $region65: #{decoder_forward.3} parent=59 // pred_check
          %p761 = pneg %p203
        $region66: #{decoder_forward.3} parent=59 // pred_check_branch
          %763 = sbr.rel (%p761) target = $region68
        $region67: #{decoder_forward.3} parent=59 // pred_region
          %s764 = ssub.s32 0, %s26
          %p765 = scmp.lt.s32.totalorder %s25, 1
          %s766 = scalar_select %p765, %s25, 1
          %p767 = scmp.lt.s32.totalorder %s764, 0
          %s768 = scalar_select %p767, %s764, 0
          %s769 = sadd.s32 %s768, %s766
          %s770 = smul.addr %s769, 8
          %s771 = scalar_lea.vmem %s6, %s770
        $region68: #{decoder_forward.3} parent=59 // pred_fallthru
          _
      $region60: #{decoder_forward.3} parent=5 // pred_fallthru
        _
    $region6: #{decoder_forward.3} parent=1 // loop_footer
      %s18 = sadd.s32 1, %s14
    $region7: #{decoder_forward.3} parent=1 // loop_footer_branch
      %13 = sbr.rel target = $region3
    $region8: #{decoder_forward.3} parent=1 // loop_exit
      _
    %772 = vsyncpa [#allocation5], 1
    %s773 = scalar_lea.sflag [#allocation5], 1
    %774 = vsyncpa %s773, 1

// kernel: decoder_forward.4
$region0: #{decoder_forward.4}
  #allocation0 [shape = 'u32[]', space=smem, size = 0x4, offset = 0x4, fixed_abs, tag = 'smem constant byte address 0x4 - core index']
  #allocation1 [shape = 'u32[144,128]{1,0:T(1,128)}', space=vmem, size = 0x12000, scoped, tag = 'internal scratch']
  #allocation2 [shape = 'bf16[32,512]{1,0:T(8,128)(2,1)}', space=vmem, size = 0x8000, scoped, tag = 'scratch operand']
  #allocation3 [shape = 'f32[8,32]{1,0:T(8,128)}', space=vmem, size = 0x1000, scoped, tag = 'scratch operand']
  %s0 = inlined_call_operand.vmem [shape: bf16[2,8,1024], index: 0, kind: input, shape index: {}]
  %s1 = inlined_call_operand.vmem [shape: f32[8,1], index: 1, kind: input, shape index: {}]
  %s2 = inlined_call_operand.vmem [shape: f32[8,1], index: 2, kind: input, shape index: {}]
  %s3 = inlined_call_operand.vmem [shape: bf16[32,32], index: 3, kind: input, shape index: {}]
  %s4 = inlined_call_operand.vmem [shape: f32[32,1], index: 4, kind: input, shape index: {}]
  %s5 = inlined_call_operand.vmem [shape: bf16[2,32,1024], index: 5, kind: output, shape index: {0}]
  %s6 = inlined_call_operand.vmem [shape: f32[2,2,8,2], index: 6, kind: output, shape index: {1}]
  %7 = xla_tuple %s5, %s6
  %s8 = sld [smem:[#allocation0]]
  $region84: #{decoder_forward.4} parent=0
    _
  %s10 = ssub.s32 1, %s8
  %s11 = scalar_select 0, %s10, %s8
  $region1: #{decoder_forward.4} parent=0
    #allocation4 [shape = 'u8[65536]{0}', space=vmem, size = 0x10000, scoped, tag = 'output window, operand 0']
    loop: start=0, step=1, limit=6
    $region2: #{decoder_forward.4} parent=1 // loop_pre_header
      _
    $region3: #{decoder_forward.4} parent=1 // loop_header
      %s13 = sphi 0, %s17
      %p14 = scmp.ge.s32.totalorder %s13, 6
      %s20 = sphi 0, %s32
      %s21 = sphi 0, %s28
      %s22 = sphi 0, %s20
      %s23 = sphi 0, %s21
      %s24 = sphi 0, %s22
      %s25 = sphi 0, %s23
      %s39 = sphi 0, %s41
      %s42 = sphi 0, %s39
      %s43 = sphi 0, %s42
      %s59 = sphi 0, %s43
      %s63 = sphi 0, %s63
      %s65 = sphi 0, %s63
      %s66 = sphi 0, %s65
      %s80 = sphi 0, %s66
      %s84 = sphi 0, %s84
      %s86 = sphi 0, %s84
      %s87 = sphi 0, %s86
      %s101 = sphi 0, %s87
      %s105 = sphi 0, %s105
      %s107 = sphi 0, %s105
      %s108 = sphi 0, %s107
      %s122 = sphi 0, %s108
      %s126 = sphi 0, %s126
      %s128 = sphi 0, %s126
      %s129 = sphi 0, %s128
      %s143 = sphi 0, %s129
      %s153 = sphi 0, %s155
      %s156 = sphi 0, %s153
      %s157 = sphi 0, %s156
      %s173 = sphi 0, %s157
      %s183 = sphi 0, %s185
      %s186 = sphi 0, %s183
      %s187 = sphi 0, %s186
      %s203 = sphi 0, %s187
    $region4: #{decoder_forward.4} parent=1 // loop_header_branch
      %16 = sbr.rel (%p14) target = $region8
    $region5: #{decoder_forward.4} parent=1 // loop_body
      %s18 = ssub.s32 %s13, 1
      %s19 = ssub.s32 %s13, 2
      %s26 = sadd.s32 1, %s21
      %p27 = scmp.ge.s32.totalorder %s26, 2
      %s28 = scalar_select %p27, 0, %s26
      %s29 = sadd.s32 1, %s20
      %s30 = scalar_select %p27, %s29, %s20
      %p31 = scmp.ge.s32.totalorder %s30, 2
      %s32 = scalar_select %p31, 0, %s30
      %s33 = ssub.s32 1, %s21
      %s34 = ssub.s32 1, %s28
      %s35 = ssub.s32 %s20, %s32
      %s36 = ssub.s32 %s33, %s34
      %s37 = sor.u32 %s35, %s36
      %p38 = scmp.eq.s32.totalorder %s37, 0
      %s40 = sadd.s32 %s39, 1
      %s41 = scalar_select %p38, %s39, %s40
      %p44 = pneg %p38
      %p45 = scmp.eq.s32.totalorder %s13, 3
      %p46 = por %p44, %p45
      %p47 = scmp.ne.s32.totalorder %s39, %s42
      %p48 = scmp.eq.s32.totalorder %s13, 0
      %p49 = por %p47, %p48
      %p50 = scmp.ne.s32.totalorder %s39, %s42
      %p51 = scmp.eq.s32.totalorder %s18, 3
      %p52 = por %p50, %p51
      %p53 = scmp.ne.s32.totalorder %s42, %s43
      %p54 = scmp.eq.s32.totalorder %s18, 0
      %p55 = por %p53, %p54
      %p56 = scmp.ne.s32.totalorder %s42, %s43
      %p57 = scmp.eq.s32.totalorder %s19, 3
      %p58 = por %p56, %p57
      %p60 = scmp.ne.s32.totalorder %s43, %s59
      %p61 = scmp.eq.s32.totalorder %s19, 0
      %p62 = por %p60, %p61
      %s64 = sadd.s32 %s63, 1
      %p67 = scmp.eq.s32.totalorder %s13, 3
      %p68 = scmp.ne.s32.totalorder %s63, %s65
      %p69 = scmp.eq.s32.totalorder %s13, 0
      %p70 = por %p68, %p69
      %p71 = scmp.ne.s32.totalorder %s63, %s65
      %p72 = scmp.eq.s32.totalorder %s18, 3
      %p73 = por %p71, %p72
      %p74 = scmp.ne.s32.totalorder %s65, %s66
      %p75 = scmp.eq.s32.totalorder %s18, 0
      %p76 = por %p74, %p75
      %p77 = scmp.ne.s32.totalorder %s65, %s66
      %p78 = scmp.eq.s32.totalorder %s19, 3
      %p79 = por %p77, %p78
      %p81 = scmp.ne.s32.totalorder %s66, %s80
      %p82 = scmp.eq.s32.totalorder %s19, 0
      %p83 = por %p81, %p82
      %s85 = sadd.s32 %s84, 1
      %p88 = scmp.eq.s32.totalorder %s13, 3
      %p89 = scmp.ne.s32.totalorder %s84, %s86
      %p90 = scmp.eq.s32.totalorder %s13, 0
      %p91 = por %p89, %p90
      %p92 = scmp.ne.s32.totalorder %s84, %s86
      %p93 = scmp.eq.s32.totalorder %s18, 3
      %p94 = por %p92, %p93
      %p95 = scmp.ne.s32.totalorder %s86, %s87
      %p96 = scmp.eq.s32.totalorder %s18, 0
      %p97 = por %p95, %p96
      %p98 = scmp.ne.s32.totalorder %s86, %s87
      %p99 = scmp.eq.s32.totalorder %s19, 3
      %p100 = por %p98, %p99
      %p102 = scmp.ne.s32.totalorder %s87, %s101
      %p103 = scmp.eq.s32.totalorder %s19, 0
      %p104 = por %p102, %p103
      %s106 = sadd.s32 %s105, 1
      %p109 = scmp.eq.s32.totalorder %s13, 3
      %p110 = scmp.ne.s32.totalorder %s105, %s107
      %p111 = scmp.eq.s32.totalorder %s13, 0
      %p112 = por %p110, %p111
      %p113 = scmp.ne.s32.totalorder %s105, %s107
      %p114 = scmp.eq.s32.totalorder %s18, 3
      %p115 = por %p113, %p114
      %p116 = scmp.ne.s32.totalorder %s107, %s108
      %p117 = scmp.eq.s32.totalorder %s18, 0
      %p118 = por %p116, %p117
      %p119 = scmp.ne.s32.totalorder %s107, %s108
      %p120 = scmp.eq.s32.totalorder %s19, 3
      %p121 = por %p119, %p120
      %p123 = scmp.ne.s32.totalorder %s108, %s122
      %p124 = scmp.eq.s32.totalorder %s19, 0
      %p125 = por %p123, %p124
      %s127 = sadd.s32 %s126, 1
      %p130 = scmp.eq.s32.totalorder %s13, 3
      %p131 = scmp.ne.s32.totalorder %s126, %s128
      %p132 = scmp.eq.s32.totalorder %s13, 0
      %p133 = por %p131, %p132
      %p134 = scmp.ne.s32.totalorder %s126, %s128
      %p135 = scmp.eq.s32.totalorder %s18, 3
      %p136 = por %p134, %p135
      %p137 = scmp.ne.s32.totalorder %s128, %s129
      %p138 = scmp.eq.s32.totalorder %s18, 0
      %p139 = por %p137, %p138
      %p140 = scmp.ne.s32.totalorder %s128, %s129
      %p141 = scmp.eq.s32.totalorder %s19, 3
      %p142 = por %p140, %p141
      %p144 = scmp.ne.s32.totalorder %s129, %s143
      %p145 = scmp.eq.s32.totalorder %s19, 0
      %p146 = por %p144, %p145
      %s147 = ssub.s32 1, %s21
      %s148 = ssub.s32 1, %s28
      %s149 = ssub.s32 %s20, %s32
      %s150 = ssub.s32 %s147, %s148
      %s151 = sor.u32 %s149, %s150
      %p152 = scmp.eq.s32.totalorder %s151, 0
      %s154 = sadd.s32 %s153, 1
      %s155 = scalar_select %p152, %s153, %s154
      %p158 = pneg %p152
      %p159 = scmp.eq.s32.totalorder %s13, 3
      %p160 = por %p158, %p159
      %p161 = scmp.ne.s32.totalorder %s153, %s156
      %p162 = scmp.eq.s32.totalorder %s13, 0
      %p163 = por %p161, %p162
      %p164 = scmp.ne.s32.totalorder %s153, %s156
      %p165 = scmp.eq.s32.totalorder %s18, 3
      %p166 = por %p164, %p165
      %p167 = scmp.ne.s32.totalorder %s156, %s157
      %p168 = scmp.eq.s32.totalorder %s18, 0
      %p169 = por %p167, %p168
      %p170 = scmp.ne.s32.totalorder %s156, %s157
      %p171 = scmp.eq.s32.totalorder %s19, 3
      %p172 = por %p170, %p171
      %p174 = scmp.ne.s32.totalorder %s157, %s173
      %p175 = scmp.eq.s32.totalorder %s19, 0
      %p176 = por %p174, %p175
      %s177 = ssub.s32 1, %s21
      %s178 = ssub.s32 1, %s28
      %s179 = ssub.s32 %s20, %s32
      %s180 = ssub.s32 %s177, %s178
      %s181 = sor.u32 %s179, %s180
      %p182 = scmp.eq.s32.totalorder %s181, 0
      %s184 = sadd.s32 %s183, 1
      %s185 = scalar_select %p182, %s183, %s184
      %p188 = pneg %p182
      %p189 = scmp.eq.s32.totalorder %s13, 3
      %p190 = por %p188, %p189
      %p191 = scmp.ne.s32.totalorder %s183, %s186
      %p192 = scmp.eq.s32.totalorder %s13, 0
      %p193 = por %p191, %p192
      %p194 = scmp.ne.s32.totalorder %s183, %s186
      %p195 = scmp.eq.s32.totalorder %s18, 3
      %p196 = por %p194, %p195
      %p197 = scmp.ne.s32.totalorder %s186, %s187
      %p198 = scmp.eq.s32.totalorder %s18, 0
      %p199 = por %p197, %p198
      %p200 = scmp.ne.s32.totalorder %s186, %s187
      %p201 = scmp.eq.s32.totalorder %s19, 3
      %p202 = por %p200, %p201
      %p204 = scmp.ne.s32.totalorder %s187, %s203
      %p205 = scmp.eq.s32.totalorder %s19, 0
      %p206 = por %p204, %p205
      %p207 = scmp.le.s32.totalorder 1, %s13
      %p208 = scmp.lt.s32.totalorder %s13, 5
      %p209 = pnand %p207, %p208
      %p210 = pneg %p209
      // Predicated region
      $region9: #{decoder_forward.4} parent=5 // pred_check
        _
      $region10: #{decoder_forward.4} parent=5 // pred_check_branch
        %212 = sbr.rel (%p209) target = $region12
      $region11: #{decoder_forward.4} parent=5 // pred_region
        %s213 = ssub.s32 %s13, 1
        // Predicated region
        $region13: #{decoder_forward.4} parent=11 // pred_check
          %p214 = pneg %p76
        $region14: #{decoder_forward.4} parent=11 // pred_check_branch
          %216 = sbr.rel (%p214) target = $region16
        $region15: #{decoder_forward.4} parent=11 // pred_region
          _
        $region16: #{decoder_forward.4} parent=11 // pred_fallthru
          _
        // Predicated region
        $region17: #{decoder_forward.4} parent=11 // pred_check
          %p217 = pneg %p97
        $region18: #{decoder_forward.4} parent=11 // pred_check_branch
          %219 = sbr.rel (%p217) target = $region20
        $region19: #{decoder_forward.4} parent=11 // pred_region
          _
        $region20: #{decoder_forward.4} parent=11 // pred_fallthru
          _
        // Predicated region
        $region21: #{decoder_forward.4} parent=11 // pred_check
          %p220 = pneg %p118
        $region22: #{decoder_forward.4} parent=11 // pred_check_branch
          %222 = sbr.rel (%p220) target = $region24
        $region23: #{decoder_forward.4} parent=11 // pred_region
          _
        $region24: #{decoder_forward.4} parent=11 // pred_fallthru
          _
        // Predicated region
        $region25: #{decoder_forward.4} parent=11 // pred_check
          %p223 = pneg %p139
        $region26: #{decoder_forward.4} parent=11 // pred_check_branch
          %225 = sbr.rel (%p223) target = $region28
        $region27: #{decoder_forward.4} parent=11 // pred_region
          _
        $region28: #{decoder_forward.4} parent=11 // pred_fallthru
          _
      $region12: #{decoder_forward.4} parent=5 // pred_fallthru
        _
      %p226 = scmp.lt.s32.totalorder %s13, 4
      // Predicated region
      $region29: #{decoder_forward.4} parent=5 // pred_check
        %p227 = pneg %p226
      $region30: #{decoder_forward.4} parent=5 // pred_check_branch
        %229 = sbr.rel (%p227) target = $region32
      $region31: #{decoder_forward.4} parent=5 // pred_region
        // Predicated region
        $region33: #{decoder_forward.4} parent=31 // pred_check
          %p230 = pneg %p49
        $region34: #{decoder_forward.4} parent=31 // pred_check_branch
          %232 = sbr.rel (%p230) target = $region36
        $region35: #{decoder_forward.4} parent=31 // pred_region
          %s233 = ssub.s32 1, %s21
          %s234 = smul.u32 4, %s233
          %p235 = scmp.lt.s32.totalorder %s20, 1
          %s236 = scalar_select %p235, %s20, 1
          %p237 = scmp.lt.s32.totalorder %s234, 7
          %s238 = scalar_select %p237, %s234, 7
          %s239 = smul.addr %s236, 8
          %s240 = sadd.s32 %s238, %s239
          %s241 = smul.addr %s240, 4
          %s242 = scalar_lea.vmem %s0, %s241
          %s243 = ssub.s32 1, %s21
          %s244 = smul.u32 4, %s243
        $region36: #{decoder_forward.4} parent=31 // pred_fallthru
          _
      $region32: #{decoder_forward.4} parent=5 // pred_fallthru
        _
      %p245 = scmp.le.s32.totalorder 1, %s13
      %p246 = scmp.lt.s32.totalorder %s13, 5
      %p247 = pnand %p245, %p246
      %p248 = pneg %p247
      // Predicated region
      $region37: #{decoder_forward.4} parent=5 // pred_check
        _
      $region38: #{decoder_forward.4} parent=5 // pred_check_branch
        %250 = sbr.rel (%p247) target = $region40
      $region39: #{decoder_forward.4} parent=5 // pred_region
        %s251 = ssub.s32 %s13, 1
        %s252 = ssub.s32 1, %s23
        %s253 = smul.u32 4, %s252
        %p254 = scmp.lt.s32.totalorder %s22, 1
        %s255 = scalar_select %p254, %s22, 1
        %p256 = scmp.lt.s32.totalorder %s253, 7
        %s257 = scalar_select %p256, %s253, 7
        %s258 = smul.addr %s255, 8
        %s259 = sadd.s32 %s257, %s258
        %s260 = smul.addr %s259, 4
        %s261 = scalar_lea.vmem %s0, %s260
        %p262 = pneg %p55
        %p263 = pneg %p52
        %p264 = pneg %p76
        %p265 = pneg %p73
        %p266 = pneg %p97
        %p267 = pneg %p94
        %p268 = pneg %p118
        %p269 = pneg %p115
        %p270 = pneg %p139
        %p271 = pneg %p136
        %p272 = pneg %p169
        %p273 = pneg %p166
        %s274 = sand.u32 %s156, 1
        %s275 = sand.u32 %s156, 1
        %s276 = smul.addr %s275, 64
        %s277 = scalar_lea.vmem [#allocation4], %s276
        %p278 = pneg %p199
        %p279 = pneg %p196
        %s280 = ssub.s32 1, %s23
        %p281 = scmp.lt.s32.totalorder %s22, 1
        %s282 = scalar_select %p281, %s22, 1
        %p283 = scmp.lt.s32.totalorder %s280, 1
        %s284 = scalar_select %p283, %s280, 1
        %s285 = smul.addr %s282, 2
        %s286 = sadd.s32 %s284, %s285
        %s287 = smul.addr %s286, 8
        %s288 = scalar_lea.vmem %s6, %s287
        %s289 = ssub.s32 1, %s23
        %s290 = smul.u32 4, %s289
        %p291 = scmp.lt.s32.totalorder %s22, 1
        %s292 = scalar_select %p291, %s22, 1
        %p293 = scmp.lt.s32.totalorder %s290, 7
        %s294 = scalar_select %p293, %s290, 7
        %s295 = smul.addr %s292, 8
        %s296 = sadd.s32 %s294, %s295
        %s297 = smul.addr %s296, 4
        %s298 = scalar_lea.vmem %s0, %s297
        %s299 = ssub.s32 1, %s23
        %s300 = smul.u32 4, %s299
        %s301 = ssub.s32 1, %s23
        %s302 = smul.u32 4, %s301
        %s303 = ssub.s32 1, %s23
        %p304 = scmp.lt.s32.totalorder %s22, 1
        %s305 = scalar_select %p304, %s22, 1
        %p306 = scmp.lt.s32.totalorder %s303, 1
        %s307 = scalar_select %p306, %s303, 1
        %s308 = smul.addr %s305, 2
        %s309 = sadd.s32 %s307, %s308
        %s310 = smul.addr %s309, 8
        %s311 = scalar_lea.vmem %s6, %s310
        %s312 = ssub.s32 1, %s23
        %v314 = vld [vmem:[%s298] sm:$0xff]
        %v315 = vld [vmem:[%s298 + $0x8] sm:$0xff]
        %v316 = vunpack.c.l.bf16 %v314
        %v317 = vunpack.c.h.bf16 %v314
        %v318 = vunpack.c.l.bf16 %v315
        %v319 = vunpack.c.h.bf16 %v315
        %v320 = vld [vmem:[%s1] sm:$0xff]
        %322 = vset.pattern.permute.xlu0 0
        %323 = vperm.xlu0 %322, %v320
        %v324 = vpop.permute.xlu0 %323
        %v326 = vmul.f32 %v316, %v324
        %v327 = vmul.f32 %v317, %v324
        %v328 = vmul.f32 %v318, %v324
        %v329 = vmul.f32 %v319, %v324
        %v330 = vld [vmem:[%s2] sm:$0xff]
        %332 = vset.pattern.permute.xlu0 0
        %333 = vperm.xlu0 %332, %v330
        %v334 = vpop.permute.xlu0 %333
        %v336 = vadd.f32 %v326, %v334
        %v337 = vadd.f32 %v327, %v334
        %v338 = vadd.f32 %v328, %v334
        %v339 = vadd.f32 %v329, %v334
        %vm340 = vcmp.ge.f32.partialorder %v336, 0.0
        %vm341 = vcmp.ge.f32.partialorder %v337, 0.0
        %vm342 = vcmp.ge.f32.partialorder %v338, 0.0
        %vm343 = vcmp.ge.f32.partialorder %v339, 0.0
        %v344 = vmul.f32 %v336, 0.01
        %v345 = vmul.f32 %v337, 0.01
        %v346 = vmul.f32 %v338, 0.01
        %v347 = vmul.f32 %v339, 0.01
        %v348 = vsel %vm340, %v336, %v344
        %v349 = vsel %vm341, %v337, %v345
        %v350 = vsel %vm342, %v338, %v346
        %v351 = vsel %vm343, %v339, %v347
        %v352 = vlaneseq
        %v353 = vand.u32 %v352, 127
        %v354 = vadd.s32 %v353, 128
        %v355 = vadd.s32 %v353, 256
        %v356 = vadd.s32 %v353, 384
        %vm357 = vcmp.lt.s32.totalorder %v353, 0
        %v358 = vsub.s32 0, %v353
        %v359 = vsel %vm357, %v358, %v353
        %v360 = vshrl.u32 %v359, 5
        %v361 = vand.u32 %v359, 31
        %v362 = vsub.s32 0, %v361
        %v363 = vsel %vm357, %v362, %v361
        %vm364 = vcmp.lt.s32.totalorder %v354, 0
        %v365 = vsub.s32 0, %v354
        %v366 = vsel %vm364, %v365, %v354
        %v367 = vshrl.u32 %v366, 5
        %v368 = vand.u32 %v366, 31
        %v369 = vsub.s32 0, %v368
        %v370 = vsel %vm364, %v369, %v368
        %vm371 = vcmp.lt.s32.totalorder %v355, 0
        %v372 = vsub.s32 0, %v355
        %v373 = vsel %vm371, %v372, %v355
        %v374 = vshrl.u32 %v373, 5
        %v375 = vand.u32 %v373, 31
        %v376 = vsub.s32 0, %v375
        %v377 = vsel %vm371, %v376, %v375
        %vm378 = vcmp.lt.s32.totalorder %v356, 0
        %v379 = vsub.s32 0, %v356
        %v380 = vsel %vm378, %v379, %v356
        %v381 = vshrl.u32 %v380, 5
        %v382 = vand.u32 %v380, 31
        %v383 = vsub.s32 0, %v382
        %v384 = vsel %vm378, %v383, %v382
        %vm385 = vcmp.ne.s32.totalorder %v363, 0
        %vm386 = vcmp.ne.s32.totalorder %v370, 0
        %vm387 = vcmp.ne.s32.totalorder %v377, 0
        %vm388 = vcmp.ne.s32.totalorder %v384, 0
        %vm389 = vcmp.lt.s32.totalorder %v363, 0
        %vm390 = vcmp.lt.s32.totalorder %v370, 0
        %vm391 = vcmp.lt.s32.totalorder %v377, 0
        %vm392 = vcmp.lt.s32.totalorder %v384, 0
        %vm393 = vmand %vm389, %vm385
        %vm394 = vmand %vm390, %vm386
        %vm395 = vmand %vm391, %vm387
        %vm396 = vmand %vm392, %vm388
        %v397 = vadd.s32 %v363, 32
        %v398 = vadd.s32 %v370, 32
        %v399 = vadd.s32 %v377, 32
        %v400 = vadd.s32 %v384, 32
        %v401 = vsel %vm393, %v397, %v363
        %v402 = vsel %vm394, %v398, %v370
        %v403 = vsel %vm395, %v399, %v377
        %v404 = vsel %vm396, %v400, %v384
        %vm405 = vcmp.ne.s32.totalorder %v401, 31
        %vm406 = vcmp.ne.s32.totalorder %v402, 31
        %vm407 = vcmp.ne.s32.totalorder %v403, 31
        %vm408 = vcmp.ne.s32.totalorder %v404, 31
        %v409 = vsel %vm405, 1, 0
        %v410 = vsel %vm406, 1, 0
        %v411 = vsel %vm407, 1, 0
        %v412 = vsel %vm408, 1, 0
        %v413 = vcvt.s32.f32 %v409
        %v414 = vcvt.s32.f32 %v410
        %v415 = vcvt.s32.f32 %v411
        %v416 = vcvt.s32.f32 %v412
        %p417 = scmp.eq.s32.totalorder %s23, 0
        // Predicated region
        $region41: #{decoder_forward.4} parent=39 // pred_check
          %p418 = pneg %p417
        $region42: #{decoder_forward.4} parent=39 // pred_check_branch
          %420 = sbr.rel (%p418) target = $region44
        $region43: #{decoder_forward.4} parent=39 // pred_region
          %vm421 = vcmask 261120
          %422 = vst.msk [vmem:[#allocation3] sm:$0xff] %vm421, 0.0
        $region44: #{decoder_forward.4} parent=39 // pred_fallthru
          _
        %v423 = vld [vmem:[#allocation3] sm:$0xff]
        %v424 = vpack.c.bf16 %v348, %v348
        %v425 = vpack.c.bf16 %v349, %v349
        %v426 = vpack.c.bf16 %v350, %v350
        %v427 = vpack.c.bf16 %v351, %v351
        %v432 = vunpack.c.l.b16 %v424
        %v433 = vunpack.c.l.b16 %v425
        %v434 = vunpack.c.l.b16 %v426
        %v435 = vunpack.c.l.b16 %v427
        %v436 = vpack.c.b16 %v433, %v432
        %v437 = vpack.c.b16 %v435, %v434
        %440 = vst [vmem:[#allocation2] sm:$0xff] %v436
        %441 = vst [vmem:[#allocation2 + $0x8] sm:$0xff] %v437
        %446 = vrot.lane.b32.xlu0 %v413, 1
        %v447 = vpop.permute.xlu0 %446
        %448 = vrot.lane.b32.xlu0 %v414, 1
        %v449 = vpop.permute.xlu0 %448
        %450 = vrot.lane.b32.xlu0 %v415, 1
        %v451 = vpop.permute.xlu0 %450
        %452 = vrot.lane.b32.xlu0 %v416, 1
        %v453 = vpop.permute.xlu0 %452
        %vm454 = vcmask 7168
        %v455 = vsel %vm454, %v447, %v449
        %v456 = vsel %vm454, %v449, %v451
        %v457 = vsel %vm454, %v451, %v453
        %v462 = vmul.f32 %v348, %v447
        %v463 = vmul.f32 %v349, %v455
        %v464 = vmul.f32 %v350, %v456
        %v465 = vmul.f32 %v351, %v457
        %v466 = vpack.c.bf16 %v462, %v462
        %v467 = vpack.c.bf16 %v463, %v463
        %v468 = vpack.c.bf16 %v464, %v464
        %v469 = vpack.c.bf16 %v465, %v465
        %v474 = vunpack.c.l.b16 %v466
        %v475 = vunpack.c.l.b16 %v467
        %v476 = vunpack.c.l.b16 %v468
        %v477 = vunpack.c.l.b16 %v469
        %v478 = vpack.c.b16 %v475, %v474
        %v479 = vpack.c.b16 %v477, %v476
        %480 = vrot.lane.b32.xlu0 %v478, 127
        %v481 = vpop.permute.xlu0 %480
        %482 = vrot.lane.b32.xlu0 %v479, 127
        %v483 = vpop.permute.xlu0 %482
        %v484 = vrot.slane %v481, 4
        %v485 = vrot.slane %v483, 4
        %vm486 = vcmask 1043456
        %v487 = vsel %vm486, %v484, %v485
        %vm488 = vcmask 1039360
        %v489 = vsel %vm488, %v481, %v487
        %v490 = vsel %vm488, %v483, %v485
        %493 = vst [vmem:[#allocation2 + $0x10] sm:$0xff] %v489
        %vm494 = vcmask 1043456
        %vm495 = vcmask 1039364
        %vm496 = vmor %vm495, %vm494
        %497 = vst.msk [vmem:[#allocation2 + $0x18] sm:$0xff] %vm496, %v490
        %vm498 = vcmask 1044472
        %499 = vst.msk [vmem:[#allocation2 + $0x1c] sm:$0xf] %vm498, 0
        %500 = vrot.lane.b32.xlu0 %v436, 96
        %v501 = vpop.permute.xlu0 %500
        %502 = vrot.lane.b32.xlu0 %v437, 96
        %v503 = vpop.permute.xlu0 %502
        %v504 = vrot.slane %v501, 4
        %v505 = vrot.slane %v503, 4
        %v506 = vsel %vm486, %v504, %v505
        %vm507 = vcmask 785408
        %v508 = vsel %vm507, %v501, %v506
        %v509 = vsel %vm507, %v503, %v505
        %512 = vst [vmem:[#allocation2 + $0x20] sm:$0xff] %v508
        %vm513 = vcmask 785412
        %vm514 = vmor %vm513, %vm494
        %515 = vst.msk [vmem:[#allocation2 + $0x28] sm:$0xff] %vm514, %v509
        %v516 = vpack.c.bf16 %v423, %v423
        %v518 = vunpack.c.l.b16 %v516
        %v519 = vpack.c.b16 %v518, %v518
        %520 = vrot.lane.b32.xlu0 %v519, 96
        %v521 = vpop.permute.xlu0 %520
        %vm523 = vcmask 1044224
        %524 = vst.msk [vmem:[#allocation2 + $0x2c] sm:$0xf] %vm523, %v521
        %v525 = vld [vmem:[#allocation2 + $0x20] sm:$0xff]
        %v526 = vld [vmem:[#allocation2 + $0x28] sm:$0xff]
        %v527 = vunpack.c.l.bf16 %v525
        %v528 = vunpack.c.h.bf16 %v525
        %v529 = vunpack.c.l.bf16 %v526
        %v530 = vunpack.c.h.bf16 %v526
        %v531 = vmul.f32 %v527, %v447
        %v532 = vmul.f32 %v528, %v455
        %v533 = vmul.f32 %v529, %v456
        %v534 = vmul.f32 %v530, %v457
        %v535 = vpack.c.bf16 %v531, %v531
        %v536 = vpack.c.bf16 %v532, %v532
        %v537 = vpack.c.bf16 %v533, %v533
        %v538 = vpack.c.bf16 %v534, %v534
        %v543 = vunpack.c.l.b16 %v535
        %v544 = vunpack.c.l.b16 %v536
        %v545 = vunpack.c.l.b16 %v537
        %v546 = vunpack.c.l.b16 %v538
        %v547 = vpack.c.b16 %v544, %v543
        %v548 = vpack.c.b16 %v546, %v545
        %549 = vrot.lane.b32.xlu0 %v547, 127
        %v550 = vpop.permute.xlu0 %549
        %551 = vrot.lane.b32.xlu0 %v548, 127
        %v552 = vpop.permute.xlu0 %551
        %v553 = vrot.slane %v550, 4
        %v554 = vrot.slane %v552, 4
        %v555 = vsel %vm486, %v553, %v554
        %v556 = vsel %vm488, %v550, %v555
        %v557 = vsel %vm488, %v552, %v554
        %560 = vst [vmem:[#allocation2 + $0x30] sm:$0xff] %v556
        %561 = vst.msk [vmem:[#allocation2 + $0x38] sm:$0xff] %vm496, %v557
        %562 = vst.msk [vmem:[#allocation2 + $0x3c] sm:$0xf] %vm498, 0
        %vm563 = vcmask 261120
        %564 = vst.msk [vmem:[#allocation3] sm:$0xff] %vm563, %v348
        %v565 = vld [vmem:[%s3] sm:$0xf]
        %v566 = vld [vmem:[%s3 + $0x4] sm:$0xf]
        %v567 = vld [vmem:[%s3 + $0x8] sm:$0xf]
        %v568 = vld [vmem:[%s3 + $0xc] sm:$0xf]
        %v569 = vld [vmem:[#allocation2] sm:$0xff]
        %v570 = vld [vmem:[#allocation2 + $0x8] sm:$0xff]
        %v571 = vld [vmem:[#allocation2 + $0x10] sm:$0xff]
        %v572 = vld [vmem:[#allocation2 + $0x18] sm:$0xff]
        %v573 = vld [vmem:[#allocation2 + $0x20] sm:$0xff]
        %v574 = vld [vmem:[#allocation2 + $0x28] sm:$0xff]
        %v575 = vld [vmem:[#allocation2 + $0x30] sm:$0xff]
        %v576 = vld [vmem:[#allocation2 + $0x38] sm:$0xff]
        %v577 = vld [vmem:[%s4] sm:$0xff]
        %v578 = vld [vmem:[%s4 + $0x8] sm:$0xff]
        %v579 = vld [vmem:[%s4 + $0x10] sm:$0xff]
        %v580 = vld [vmem:[%s4 + $0x18] sm:$0xff]
        %582 = vset.pattern.permute.xlu0 0
        %583 = vperm.xlu0 %582, %v577
        %v584 = vpop.permute.xlu0 %583
        %587 = vset.pattern.permute.xlu0 0
        %588 = vperm.xlu0 %587, %v578
        %v589 = vpop.permute.xlu0 %588
        %592 = vset.pattern.permute.xlu0 0
        %593 = vperm.xlu0 %592, %v579
        %v594 = vpop.permute.xlu0 %593
        %597 = vset.pattern.permute.xlu0 0
        %598 = vperm.xlu0 %597, %v580
        %v599 = vpop.permute.xlu0 %598
        %v605 = vunpack.c.l.b16 %v565
        %v606 = vunpack.c.l.b16 %v566
        %v607 = vunpack.c.l.b16 %v567
        %v608 = vunpack.c.l.b16 %v568
        %v609 = vpack.c.b16 %v606, %v605
        %v610 = vpack.c.b16 %v608, %v607
        %v619 = vunpack.c.l.b16 %v569
        %v620 = vunpack.c.h.b16 %v569
        %v621 = vunpack.c.l.b16 %v570
        %v622 = vunpack.c.h.b16 %v570
        %v623 = vunpack.c.l.b16 %v571
        %v624 = vunpack.c.h.b16 %v571
        %v625 = vunpack.c.l.b16 %v572
        %v626 = vunpack.c.h.b16 %v572
        %v627 = vunpack.c.l.b16 %v573
        %v628 = vunpack.c.h.b16 %v573
        %v629 = vunpack.c.l.b16 %v574
        %v630 = vunpack.c.h.b16 %v574
        %v631 = vunpack.c.l.b16 %v575
        %v632 = vunpack.c.h.b16 %v575
        %v633 = vunpack.c.l.b16 %v576
        %v634 = vunpack.c.h.b16 %v576
        %v635 = vpack.c.b16 %v623, %v619
        %v636 = vpack.c.b16 %v624, %v620
        %v637 = vpack.c.b16 %v625, %v621
        %v638 = vpack.c.b16 %v626, %v622
        %v639 = vpack.c.b16 %v631, %v627
        %v640 = vpack.c.b16 %v632, %v628
        %v641 = vpack.c.b16 %v633, %v629
        %v642 = vpack.c.b16 %v634, %v630
        %v652 = vsel %vm563, %v609, 0
        %v655 = vsel %vm563, %v610, 0
        %657 = vmatprep.subr.bf16.mxu0 0
        %658 = vmatpush1.bf16.msra.mxu0 0
        %659 = vmatprep.subr.bf16.mxu0 0
        %660 = vmatpush1.bf16.msra.mxu0 0
        %661 = vmatprep.subr.bf16.mxu0 0
        %662 = vmatpush1.bf16.msra.mxu0 0
        %663 = vmatprep.subr.bf16.mxu0 0
        %664 = vmatpush1.bf16.msra.mxu0 0
        %665 = vmatprep.subr.bf16.mxu0 0
        %666 = vmatpush1.bf16.msra.mxu0 0
        %667 = vmatprep.subr.bf16.mxu0 0
        %668 = vmatpush1.bf16.msra.mxu0 0
        %669 = vmatprep.subr.bf16.mxu0 %v640
        %670 = vmatpush1.bf16.msra.mxu0 %v639
        %671 = vmatprep.subr.bf16.mxu0 %v636
        %672 = vmatpush1.bf16.msra.mxu0 %v635
        %673 = vmatprep.subr.bf16.mxu0 0
        %674 = vmatpush2.bf16.msra.mxu0 0
        %675 = vmatprep.subr.bf16.mxu0 0
        %676 = vmatpush2.bf16.msra.mxu0 0
        %677 = vmatprep.subr.bf16.mxu0 0
        %678 = vmatpush2.bf16.msra.mxu0 0
        %679 = vmatprep.subr.bf16.mxu0 0
        %680 = vmatpush2.bf16.msra.mxu0 0
        %681 = vmatprep.subr.bf16.mxu0 0
        %682 = vmatpush2.bf16.msra.mxu0 0
        %683 = vmatprep.subr.bf16.mxu0 0
        %684 = vmatpush2.bf16.msra.mxu0 0
        %685 = vmatprep.subr.bf16.mxu0 0
        %686 = vmatpush2.bf16.msra.mxu0 0
        %687 = vmatprep.subr.bf16.mxu0 0
        %688 = vmatpush2.bf16.msra.mxu0 0
        %689 = vmatprep.mubr.bf16.mxu0 0
        %690 = vmatmul.mubr.bf16.gmra.mxu0 %v652
        %v691 = vpop.f32.mrf.mxu0
        %v692 = vadd.f32 %v584, %v691
        %v693 = vpop.f32.mrf.mxu0
        %v694 = vadd.f32 %v584, %v693
        %v695 = vpop.f32.mrf.mxu0
        %v696 = vadd.f32 %v589, %v695
        %v697 = vpop.f32.mrf.mxu0
        %v698 = vadd.f32 %v589, %v697
        %699 = vmatprep.mubr.bf16.mxu0 0
        %700 = vmatmul.mubr.bf16.gmra.mxu0 %v655
        %v701 = vpop.f32.mrf.mxu0
        %v702 = vadd.f32 %v594, %v701
        %v703 = vpop.f32.mrf.mxu0
        %v704 = vadd.f32 %v594, %v703
        %v705 = vpop.f32.mrf.mxu0
        %v706 = vadd.f32 %v599, %v705
        %v707 = vpop.f32.mrf.mxu0
        %v708 = vadd.f32 %v599, %v707
        %709 = vdwg.mxu0
        %710 = vmatprep.subr.bf16.mxu0 0
        %711 = vmatpush1.bf16.msra.mxu0 0
        %712 = vmatprep.subr.bf16.mxu0 0
        %713 = vmatpush1.bf16.msra.mxu0 0
        %714 = vmatprep.subr.bf16.mxu0 0
        %715 = vmatpush1.bf16.msra.mxu0 0
        %716 = vmatprep.subr.bf16.mxu0 0
        %717 = vmatpush1.bf16.msra.mxu0 0
        %718 = vmatprep.subr.bf16.mxu0 0
        %719 = vmatpush1.bf16.msra.mxu0 0
        %720 = vmatprep.subr.bf16.mxu0 0
        %721 = vmatpush1.bf16.msra.mxu0 0
        %722 = vmatprep.subr.bf16.mxu0 %v642
        %723 = vmatpush1.bf16.msra.mxu0 %v641
        %724 = vmatprep.subr.bf16.mxu0 %v638
        %725 = vmatpush1.bf16.msra.mxu0 %v637
        %726 = vmatprep.subr.bf16.mxu0 0
        %727 = vmatpush2.bf16.msra.mxu0 0
        %728 = vmatprep.subr.bf16.mxu0 0
        %729 = vmatpush2.bf16.msra.mxu0 0
        %730 = vmatprep.subr.bf16.mxu0 0
        %731 = vmatpush2.bf16.msra.mxu0 0
        %732 = vmatprep.subr.bf16.mxu0 0
        %733 = vmatpush2.bf16.msra.mxu0 0
        %734 = vmatprep.subr.bf16.mxu0 0
        %735 = vmatpush2.bf16.msra.mxu0 0
        %736 = vmatprep.subr.bf16.mxu0 0
        %737 = vmatpush2.bf16.msra.mxu0 0
        %738 = vmatprep.subr.bf16.mxu0 0
        %739 = vmatpush2.bf16.msra.mxu0 0
        %740 = vmatprep.subr.bf16.mxu0 0
        %741 = vmatpush2.bf16.msra.mxu0 0
        %742 = vmatprep.mubr.bf16.mxu0 0
        %743 = vmatmul.mubr.bf16.gmra.mxu0 %v652
        %v744 = vpop.f32.mrf.mxu0
        %v745 = vadd.f32 %v584, %v744
        %v746 = vpop.f32.mrf.mxu0
        %v747 = vadd.f32 %v584, %v746
        %v748 = vpop.f32.mrf.mxu0
        %v749 = vadd.f32 %v589, %v748
        %v750 = vpop.f32.mrf.mxu0
        %v751 = vadd.f32 %v589, %v750
        %752 = vmatprep.mubr.bf16.mxu0 0
        %753 = vmatmul.mubr.bf16.gmra.mxu0 %v655
        %v754 = vpop.f32.mrf.mxu0
        %v755 = vadd.f32 %v594, %v754
        %v756 = vpop.f32.mrf.mxu0
        %v757 = vadd.f32 %v594, %v756
        %v758 = vpop.f32.mrf.mxu0
        %v759 = vadd.f32 %v599, %v758
        %v760 = vpop.f32.mrf.mxu0
        %v761 = vadd.f32 %v599, %v760
        %762 = vdwg.mxu0
        %v763 = vadd.f32 %v692, %v696
        %v764 = vadd.f32 %v694, %v698
        %v765 = vadd.f32 %v745, %v749
        %v766 = vadd.f32 %v747, %v751
        %v767 = vadd.f32 %v763, %v702
        %v768 = vadd.f32 %v764, %v704
        %v769 = vadd.f32 %v765, %v755
        %v770 = vadd.f32 %v766, %v757
        %v771 = vadd.f32 %v767, %v706
        %v772 = vadd.f32 %v768, %v708
        %v773 = vadd.f32 %v769, %v759
        %v774 = vadd.f32 %v770, %v761
        %v775 = vadd.f32 %v771, %v772
        %v776 = vadd.f32 %v775, %v773
        %v777 = vadd.f32 %v776, %v774
        %778 = vadd.xlane.f32.xlu0 %v777
        %v779 = vpop.xlane.xlu0 %778
        %780 = vst.msk [vmem:[%s311] sm:$0xff] %vm454, %v779
        %v781 = vmul.f32 %v692, %v692
        %v782 = vmul.f32 %v694, %v694
        %v783 = vmul.f32 %v745, %v745
        %v784 = vmul.f32 %v747, %v747
        %v785 = vmul.f32 %v696, %v696
        %v786 = vmul.f32 %v698, %v698
        %v787 = vmul.f32 %v749, %v749
        %v788 = vmul.f32 %v751, %v751
        %v789 = vadd.f32 %v781, %v785
        %v790 = vadd.f32 %v782, %v786
        %v791 = vadd.f32 %v783, %v787
        %v792 = vadd.f32 %v784, %v788
        %v793 = vmul.f32 %v702, %v702
        %v794 = vmul.f32 %v704, %v704
        %v795 = vmul.f32 %v755, %v755
        %v796 = vmul.f32 %v757, %v757
        %v797 = vadd.f32 %v789, %v793
        %v798 = vadd.f32 %v790, %v794
        %v799 = vadd.f32 %v791, %v795
        %v800 = vadd.f32 %v792, %v796
        %v801 = vmul.f32 %v706, %v706
        %v802 = vmul.f32 %v708, %v708
        %v803 = vmul.f32 %v759, %v759
        %v804 = vmul.f32 %v761, %v761
        %v805 = vadd.f32 %v797, %v801
        %v806 = vadd.f32 %v798, %v802
        %v807 = vadd.f32 %v799, %v803
        %v808 = vadd.f32 %v800, %v804
        %v809 = vadd.f32 %v805, %v806
        %v810 = vadd.f32 %v809, %v807
        %v811 = vadd.f32 %v810, %v808
        %812 = vadd.xlane.f32.xlu0 %v811
        %v813 = vpop.xlane.xlu0 %812
        %vm814 = vcmask 15368
        %815 = vst.msk [vmem:[%s311] sm:$0xff] %vm814, %v813
        %v816 = vpack.c.bf16 %v696, %v692
        %v817 = vpack.c.bf16 %v698, %v694
        %v818 = vpack.c.bf16 %v749, %v745
        %v819 = vpack.c.bf16 %v751, %v747
        %v820 = vpack.c.bf16 %v706, %v702
        %v821 = vpack.c.bf16 %v708, %v704
        %v822 = vpack.c.bf16 %v759, %v755
        %v823 = vpack.c.bf16 %v761, %v757
        %v832 = vunpack.c.l.b16 %v816
        %v833 = vunpack.c.l.b16 %v817
        %v834 = vunpack.c.l.b16 %v818
        %v835 = vunpack.c.l.b16 %v819
        %v836 = vunpack.c.h.b16 %v816
        %v837 = vunpack.c.h.b16 %v817
        %v838 = vunpack.c.h.b16 %v818
        %v839 = vunpack.c.h.b16 %v819
        %v840 = vunpack.c.l.b16 %v820
        %v841 = vunpack.c.l.b16 %v821
        %v842 = vunpack.c.l.b16 %v822
        %v843 = vunpack.c.l.b16 %v823
        %v844 = vunpack.c.h.b16 %v820
        %v845 = vunpack.c.h.b16 %v821
        %v846 = vunpack.c.h.b16 %v822
        %v847 = vunpack.c.h.b16 %v823
        %v848 = vpack.c.b16 %v833, %v832
        %v849 = vpack.c.b16 %v835, %v834
        %v850 = vpack.c.b16 %v837, %v836
        %v851 = vpack.c.b16 %v839, %v838
        %v852 = vpack.c.b16 %v841, %v840
        %v853 = vpack.c.b16 %v843, %v842
        %v854 = vpack.c.b16 %v845, %v844
        %v855 = vpack.c.b16 %v847, %v846
        %864 = vst [vmem:[%s277] sm:$0xff] %v848
        %865 = vst [vmem:[%s277 + $0x8] sm:$0xff] %v849
        %866 = vst [vmem:[%s277 + $0x10] sm:$0xff] %v850
        %867 = vst [vmem:[%s277 + $0x18] sm:$0xff] %v851
        %868 = vst [vmem:[%s277 + $0x20] sm:$0xff] %v852
        %869 = vst [vmem:[%s277 + $0x28] sm:$0xff] %v853
        %870 = vst [vmem:[%s277 + $0x30] sm:$0xff] %v854
        %871 = vst [vmem:[%s277 + $0x38] sm:$0xff] %v855
        %s872 = sand.u32 %s156, 1
        %s873 = sand.u32 %s156, 1
        %s874 = smul.addr %s873, 64
        %s875 = scalar_lea.vmem [#allocation4], %s874
        %s876 = ssub.s32 1, %s23
        %p877 = scmp.lt.s32.totalorder %s22, 1
        %s878 = scalar_select %p877, %s22, 1
        %p879 = scmp.lt.s32.totalorder %s876, 1
        %s880 = scalar_select %p879, %s876, 1
        %s881 = smul.addr %s878, 2
        %s882 = sadd.s32 %s880, %s881
        %s883 = smul.addr %s882, 8
        %s884 = scalar_lea.vmem %s6, %s883
        // Predicated region
        $region45: #{decoder_forward.4} parent=39 // pred_check
          %p885 = pneg %p166
        $region46: #{decoder_forward.4} parent=39 // pred_check_branch
          %887 = sbr.rel (%p885) target = $region48
        $region47: #{decoder_forward.4} parent=39 // pred_region
          %s888 = ssub.s32 1, %s23
          %s889 = smul.u32 4, %s888
          %s890 = smul.addr %s22, 32
          %s891 = sadd.s32 %s889, %s890
          %s892 = smul.addr %s891, 4
          %s893 = scalar_lea.vmem %s5, %s892
          // Predicated region
          $region49: #{decoder_forward.4} parent=47 // pred_check
            _
          $region50: #{decoder_forward.4} parent=47 // pred_check_branch
            %895 = sbr.rel (0) target = $region52
          $region51: #{decoder_forward.4} parent=47 // pred_region
            // Predicated region
            $region53: #{decoder_forward.4} parent=51 // pred_check
              _
            $region54: #{decoder_forward.4} parent=51 // pred_check_branch
              %897 = sbr.rel (0) target = $region56
            $region55: #{decoder_forward.4} parent=51 // pred_region
              loop: start=0, step=1, limit=1
              $region57: #{decoder_forward.4} parent=55 // loop_pre_header
                _
              $region58: #{decoder_forward.4} parent=55 // loop_header
                %s899 = sphi 0, %s903
                %p900 = scmp.ge.s32.totalorder %s899, 1
                %s904 = sphi %s875, %s875
                %s905 = sphi %s893, %s893
              $region59: #{decoder_forward.4} parent=55 // loop_header_branch
                %902 = sbr.rel (%p900) target = $region63
              $region60: #{decoder_forward.4} parent=55 // loop_body
                %v906 = vld [vmem:[%s904] sm:$0xff]
                %907 = vst [vmem:[%s905] sm:$0xff] %v906
                %v908 = vld [vmem:[%s904 + $0x8] sm:$0xff]
                %909 = vst [vmem:[%s905 + $0x8] sm:$0xff] %v908
                %v910 = vld [vmem:[%s904 + $0x10] sm:$0xff]
                %911 = vst [vmem:[%s905 + $0x20] sm:$0xff] %v910
                %v912 = vld [vmem:[%s904 + $0x18] sm:$0xff]
                %913 = vst [vmem:[%s905 + $0x28] sm:$0xff] %v912
                %v914 = vld [vmem:[%s904 + $0x20] sm:$0xff]
                %915 = vst [vmem:[%s905 + $0x40] sm:$0xff] %v914
                %v916 = vld [vmem:[%s904 + $0x28] sm:$0xff]
                %917 = vst [vmem:[%s905 + $0x48] sm:$0xff] %v916
                %v918 = vld [vmem:[%s904 + $0x30] sm:$0xff]
                %919 = vst [vmem:[%s905 + $0x60] sm:$0xff] %v918
                %v920 = vld [vmem:[%s904 + $0x38] sm:$0xff]
                %921 = vst [vmem:[%s905 + $0x68] sm:$0xff] %v920
              $region61: #{decoder_forward.4} parent=55 // loop_footer
                %s903 = sadd.s32 1, %s899
              $region62: #{decoder_forward.4} parent=55 // loop_footer_branch
                %898 = sbr.rel target = $region58
              $region63: #{decoder_forward.4} parent=55 // loop_exit
                _
            $region56: #{decoder_forward.4} parent=51 // pred_fallthru
              _
            // Predicated region
            $region64: #{decoder_forward.4} parent=51 // pred_check
              _
            $region65: #{decoder_forward.4} parent=51 // pred_check_branch
              %923 = sbr.rel target = $region67
            $region66: #{decoder_forward.4} parent=51 // pred_region
              _
            $region67: #{decoder_forward.4} parent=51 // pred_fallthru
              _
          $region52: #{decoder_forward.4} parent=47 // pred_fallthru
            _
          %924 = vnop
        $region48: #{decoder_forward.4} parent=39 // pred_fallthru
          _
        // Predicated region
        $region68: #{decoder_forward.4} parent=39 // pred_check
          %p925 = pneg %p196
        $region69: #{decoder_forward.4} parent=39 // pred_check_branch
          %927 = sbr.rel (%p925) target = $region71
        $region70: #{decoder_forward.4} parent=39 // pred_region
          %s928 = ssub.s32 1, %s23
        $region71: #{decoder_forward.4} parent=39 // pred_fallthru
          _
      $region40: #{decoder_forward.4} parent=5 // pred_fallthru
        _
      %p929 = scmp.le.s32.totalorder 2, %s13
      // Predicated region
      $region72: #{decoder_forward.4} parent=5 // pred_check
        %p930 = pneg %p929
      $region73: #{decoder_forward.4} parent=5 // pred_check_branch
        %932 = sbr.rel (%p930) target = $region75
      $region74: #{decoder_forward.4} parent=5 // pred_region
        %s933 = ssub.s32 %s13, 2
        // Predicated region
        $region76: #{decoder_forward.4} parent=74 // pred_check
          %p934 = pneg %p172
        $region77: #{decoder_forward.4} parent=74 // pred_check_branch
          %936 = sbr.rel (%p934) target = $region79
        $region78: #{decoder_forward.4} parent=74 // pred_region
          %s937 = sand.u32 %s157, 1
          %s938 = sand.u32 %s157, 1
          %s939 = smul.addr %s938, 64
          %s940 = scalar_lea.vmem [#allocation4], %s939
        $region79: #{decoder_forward.4} parent=74 // pred_fallthru
          _
        // Predicated region
        $region80: #{decoder_forward.4} parent=74 // pred_check
          %p941 = pneg %p202
        $region81: #{decoder_forward.4} parent=74 // pred_check_branch
          %943 = sbr.rel (%p941) target = $region83
        $region82: #{decoder_forward.4} parent=74 // pred_region
          %s944 = ssub.s32 1, %s25
          %p945 = scmp.lt.s32.totalorder %s24, 1
          %s946 = scalar_select %p945, %s24, 1
          %p947 = scmp.lt.s32.totalorder %s944, 1
          %s948 = scalar_select %p947, %s944, 1
          %s949 = smul.addr %s946, 2
          %s950 = sadd.s32 %s948, %s949
          %s951 = smul.addr %s950, 8
          %s952 = scalar_lea.vmem %s6, %s951
        $region83: #{decoder_forward.4} parent=74 // pred_fallthru
          _
      $region75: #{decoder_forward.4} parent=5 // pred_fallthru
        _
    $region6: #{decoder_forward.4} parent=1 // loop_footer
      %s17 = sadd.s32 1, %s13
    $region7: #{decoder_forward.4} parent=1 // loop_footer_branch
      %12 = sbr.rel target = $region3
    $region8: #{decoder_forward.4} parent=1 // loop_exit
      _

// kernel: decoder_forward.5
$region0: #{decoder_forward.5}
  #allocation0 [shape = 'u32[]', space=smem, size = 0x4, offset = 0x4, fixed_abs, tag = 'smem constant byte address 0x4 - core index']
  #allocation1 [shape = 'u32[144,128]{1,0:T(1,128)}', space=vmem, size = 0x12000, scoped, tag = 'internal scratch']
  #allocation2 [shape = 'bf16[24,4096]{1,0:T(8,128)(2,1)}', space=vmem, size = 0x30000, scoped, tag = 'scratch operand']
  %s0 = inlined_call_operand.vmem [shape: bf16[2,8,4096], index: 0, kind: input, shape index: {}]
  %s1 = inlined_call_operand.vmem [shape: f32[8,1], index: 1, kind: input, shape index: {}]
  %s2 = inlined_call_operand.vmem [shape: f32[8,1], index: 2, kind: input, shape index: {}]
  %s3 = inlined_call_operand.vmem [shape: bf16[3,72], index: 3, kind: input, shape index: {}]
  %s4 = inlined_call_operand.vmem [shape: f32[3,1], index: 4, kind: input, shape index: {}]
  %s5 = inlined_call_operand.vmem [shape: f32[2,3,4096], index: 5, kind: output, shape index: {}]
  %s6 = sld [smem:[#allocation0]]
  $region53: #{decoder_forward.5} parent=0
    _
  %s8 = ssub.s32 1, %s6
  %s9 = scalar_select 0, %s8, %s6
  loop: start=0, step=1, limit=4
  $region2: #{decoder_forward.5} parent=0 // loop_pre_header
    _
  $region3: #{decoder_forward.5} parent=0 // loop_header
    %s11 = sphi 0, %s15
    %p12 = scmp.ge.s32.totalorder %s11, 4
    %s21 = sphi 0, %s23
    %s24 = sphi 0, %s21
    %s25 = sphi 0, %s24
    %s41 = sphi 0, %s25
    %s45 = sphi 0, %s45
    %s47 = sphi 0, %s45
    %s48 = sphi 0, %s47
    %s62 = sphi 0, %s48
    %s66 = sphi 0, %s66
    %s68 = sphi 0, %s66
    %s69 = sphi 0, %s68
    %s83 = sphi 0, %s69
    %s87 = sphi 0, %s87
    %s89 = sphi 0, %s87
    %s90 = sphi 0, %s89
    %s104 = sphi 0, %s90
    %s108 = sphi 0, %s108
    %s110 = sphi 0, %s108
    %s111 = sphi 0, %s110
    %s125 = sphi 0, %s111
    %s131 = sphi 0, %s133
    %s134 = sphi 0, %s131
    %s135 = sphi 0, %s134
    %s151 = sphi 0, %s135
  $region4: #{decoder_forward.5} parent=0 // loop_header_branch
    %14 = sbr.rel (%p12) target = $region8
  $region5: #{decoder_forward.5} parent=0 // loop_body
    %s16 = ssub.s32 %s11, 1
    %s17 = ssub.s32 %s11, 2
    %s18 = sadd.s32 %s11, 1
    %s19 = ssub.s32 %s11, %s18
    %p20 = scmp.eq.s32.totalorder %s19, 0
    %s22 = sadd.s32 %s21, 1
    %s23 = scalar_select %p20, %s21, %s22
    %p26 = pneg %p20
    %p27 = scmp.eq.s32.totalorder %s11, 1
    %p28 = por %p26, %p27
    %p29 = scmp.ne.s32.totalorder %s21, %s24
    %p30 = scmp.eq.s32.totalorder %s11, 0
    %p31 = por %p29, %p30
    %p32 = scmp.ne.s32.totalorder %s21, %s24
    %p33 = scmp.eq.s32.totalorder %s16, 1
    %p34 = por %p32, %p33
    %p35 = scmp.ne.s32.totalorder %s24, %s25
    %p36 = scmp.eq.s32.totalorder %s16, 0
    %p37 = por %p35, %p36
    %p38 = scmp.ne.s32.totalorder %s24, %s25
    %p39 = scmp.eq.s32.totalorder %s17, 1
    %p40 = por %p38, %p39
    %p42 = scmp.ne.s32.totalorder %s25, %s41
    %p43 = scmp.eq.s32.totalorder %s17, 0
    %p44 = por %p42, %p43
    %s46 = sadd.s32 %s45, 1
    %p49 = scmp.eq.s32.totalorder %s11, 1
    %p50 = scmp.ne.s32.totalorder %s45, %s47
    %p51 = scmp.eq.s32.totalorder %s11, 0
    %p52 = por %p50, %p51
    %p53 = scmp.ne.s32.totalorder %s45, %s47
    %p54 = scmp.eq.s32.totalorder %s16, 1
    %p55 = por %p53, %p54
    %p56 = scmp.ne.s32.totalorder %s47, %s48
    %p57 = scmp.eq.s32.totalorder %s16, 0
    %p58 = por %p56, %p57
    %p59 = scmp.ne.s32.totalorder %s47, %s48
    %p60 = scmp.eq.s32.totalorder %s17, 1
    %p61 = por %p59, %p60
    %p63 = scmp.ne.s32.totalorder %s48, %s62
    %p64 = scmp.eq.s32.totalorder %s17, 0
    %p65 = por %p63, %p64
    %s67 = sadd.s32 %s66, 1
    %p70 = scmp.eq.s32.totalorder %s11, 1
    %p71 = scmp.ne.s32.totalorder %s66, %s68
    %p72 = scmp.eq.s32.totalorder %s11, 0
    %p73 = por %p71, %p72
    %p74 = scmp.ne.s32.totalorder %s66, %s68
    %p75 = scmp.eq.s32.totalorder %s16, 1
    %p76 = por %p74, %p75
    %p77 = scmp.ne.s32.totalorder %s68, %s69
    %p78 = scmp.eq.s32.totalorder %s16, 0
    %p79 = por %p77, %p78
    %p80 = scmp.ne.s32.totalorder %s68, %s69
    %p81 = scmp.eq.s32.totalorder %s17, 1
    %p82 = por %p80, %p81
    %p84 = scmp.ne.s32.totalorder %s69, %s83
    %p85 = scmp.eq.s32.totalorder %s17, 0
    %p86 = por %p84, %p85
    %s88 = sadd.s32 %s87, 1
    %p91 = scmp.eq.s32.totalorder %s11, 1
    %p92 = scmp.ne.s32.totalorder %s87, %s89
    %p93 = scmp.eq.s32.totalorder %s11, 0
    %p94 = por %p92, %p93
    %p95 = scmp.ne.s32.totalorder %s87, %s89
    %p96 = scmp.eq.s32.totalorder %s16, 1
    %p97 = por %p95, %p96
    %p98 = scmp.ne.s32.totalorder %s89, %s90
    %p99 = scmp.eq.s32.totalorder %s16, 0
    %p100 = por %p98, %p99
    %p101 = scmp.ne.s32.totalorder %s89, %s90
    %p102 = scmp.eq.s32.totalorder %s17, 1
    %p103 = por %p101, %p102
    %p105 = scmp.ne.s32.totalorder %s90, %s104
    %p106 = scmp.eq.s32.totalorder %s17, 0
    %p107 = por %p105, %p106
    %s109 = sadd.s32 %s108, 1
    %p112 = scmp.eq.s32.totalorder %s11, 1
    %p113 = scmp.ne.s32.totalorder %s108, %s110
    %p114 = scmp.eq.s32.totalorder %s11, 0
    %p115 = por %p113, %p114
    %p116 = scmp.ne.s32.totalorder %s108, %s110
    %p117 = scmp.eq.s32.totalorder %s16, 1
    %p118 = por %p116, %p117
    %p119 = scmp.ne.s32.totalorder %s110, %s111
    %p120 = scmp.eq.s32.totalorder %s16, 0
    %p121 = por %p119, %p120
    %p122 = scmp.ne.s32.totalorder %s110, %s111
    %p123 = scmp.eq.s32.totalorder %s17, 1
    %p124 = por %p122, %p123
    %p126 = scmp.ne.s32.totalorder %s111, %s125
    %p127 = scmp.eq.s32.totalorder %s17, 0
    %p128 = por %p126, %p127
    %s129 = ssub.s32 %s11, %s18
    %p130 = scmp.eq.s32.totalorder %s129, 0
    %s132 = sadd.s32 %s131, 1
    %s133 = scalar_select %p130, %s131, %s132
    %p136 = pneg %p130
    %p137 = scmp.eq.s32.totalorder %s11, 1
    %p138 = por %p136, %p137
    %p139 = scmp.ne.s32.totalorder %s131, %s134
    %p140 = scmp.eq.s32.totalorder %s11, 0
    %p141 = por %p139, %p140
    %p142 = scmp.ne.s32.totalorder %s131, %s134
    %p143 = scmp.eq.s32.totalorder %s16, 1
    %p144 = por %p142, %p143
    %p145 = scmp.ne.s32.totalorder %s134, %s135
    %p146 = scmp.eq.s32.totalorder %s16, 0
    %p147 = por %p145, %p146
    %p148 = scmp.ne.s32.totalorder %s134, %s135
    %p149 = scmp.eq.s32.totalorder %s17, 1
    %p150 = por %p148, %p149
    %p152 = scmp.ne.s32.totalorder %s135, %s151
    %p153 = scmp.eq.s32.totalorder %s17, 0
    %p154 = por %p152, %p153
    %p155 = scmp.le.s32.totalorder 1, %s11
    %p156 = scmp.lt.s32.totalorder %s11, 3
    %p157 = pnand %p155, %p156
    %p158 = pneg %p157
    // Predicated region
    $region9: #{decoder_forward.5} parent=5 // pred_check
      _
    $region10: #{decoder_forward.5} parent=5 // pred_check_branch
      %160 = sbr.rel (%p157) target = $region12
    $region11: #{decoder_forward.5} parent=5 // pred_region
      %s161 = ssub.s32 %s11, 1
      // Predicated region
      $region13: #{decoder_forward.5} parent=11 // pred_check
        %p162 = pneg %p58
      $region14: #{decoder_forward.5} parent=11 // pred_check_branch
        %164 = sbr.rel (%p162) target = $region16
      $region15: #{decoder_forward.5} parent=11 // pred_region
        _
      $region16: #{decoder_forward.5} parent=11 // pred_fallthru
        _
      // Predicated region
      $region17: #{decoder_forward.5} parent=11 // pred_check
        %p165 = pneg %p79
      $region18: #{decoder_forward.5} parent=11 // pred_check_branch
        %167 = sbr.rel (%p165) target = $region20
      $region19: #{decoder_forward.5} parent=11 // pred_region
        _
      $region20: #{decoder_forward.5} parent=11 // pred_fallthru
        _
      // Predicated region
      $region21: #{decoder_forward.5} parent=11 // pred_check
        %p168 = pneg %p100
      $region22: #{decoder_forward.5} parent=11 // pred_check_branch
        %170 = sbr.rel (%p168) target = $region24
      $region23: #{decoder_forward.5} parent=11 // pred_region
        _
      $region24: #{decoder_forward.5} parent=11 // pred_fallthru
        _
      // Predicated region
      $region25: #{decoder_forward.5} parent=11 // pred_check
        %p171 = pneg %p121
      $region26: #{decoder_forward.5} parent=11 // pred_check_branch
        %173 = sbr.rel (%p171) target = $region28
      $region27: #{decoder_forward.5} parent=11 // pred_region
        _
      $region28: #{decoder_forward.5} parent=11 // pred_fallthru
        _
    $region12: #{decoder_forward.5} parent=5 // pred_fallthru
      _
    %p174 = scmp.lt.s32.totalorder %s11, 2
    // Predicated region
    $region29: #{decoder_forward.5} parent=5 // pred_check
      %p175 = pneg %p174
    $region30: #{decoder_forward.5} parent=5 // pred_check_branch
      %177 = sbr.rel (%p175) target = $region32
    $region31: #{decoder_forward.5} parent=5 // pred_region
      // Predicated region
      $region33: #{decoder_forward.5} parent=31 // pred_check
        %p178 = pneg %p31
      $region34: #{decoder_forward.5} parent=31 // pred_check_branch
        %180 = sbr.rel (%p178) target = $region36
      $region35: #{decoder_forward.5} parent=31 // pred_region
        %p181 = scmp.lt.s32.totalorder %s11, 1
        %s182 = scalar_select %p181, %s11, 1
        %s183 = smul.addr %s182, 32
        %s184 = smul.addr %s183, 4
        %s185 = scalar_lea.vmem %s0, %s184
      $region36: #{decoder_forward.5} parent=31 // pred_fallthru
        _
    $region32: #{decoder_forward.5} parent=5 // pred_fallthru
      _
    %p186 = scmp.le.s32.totalorder 1, %s11
    %p187 = scmp.lt.s32.totalorder %s11, 3
    %p188 = pnand %p186, %p187
    %p189 = pneg %p188
    // Predicated region
    $region37: #{decoder_forward.5} parent=5 // pred_check
      _
    $region38: #{decoder_forward.5} parent=5 // pred_check_branch
      %191 = sbr.rel (%p188) target = $region40
    $region39: #{decoder_forward.5} parent=5 // pred_region
      %s192 = ssub.s32 %s11, 1
      %p193 = scmp.lt.s32.totalorder %s16, 1
      %s194 = scalar_select %p193, %s16, 1
      %s195 = smul.addr %s194, 32
      %s196 = smul.addr %s195, 4
      %s197 = scalar_lea.vmem %s0, %s196
      %p198 = pneg %p37
      %p199 = pneg %p34
      %p200 = pneg %p58
      %p201 = pneg %p55
      %p202 = pneg %p79
      %p203 = pneg %p76
      %p204 = pneg %p100
      %p205 = pneg %p97
      %p206 = pneg %p121
      %p207 = pneg %p118
      %p208 = pneg %p147
      %p209 = pneg %p144
      %p210 = scmp.lt.s32.totalorder %s16, 1
      %s211 = scalar_select %p210, %s16, 1
      %s212 = smul.addr %s211, 32
      %s213 = smul.addr %s212, 4
      %s214 = scalar_lea.vmem %s5, %s213
      %p215 = scmp.lt.s32.totalorder %s16, 1
      %s216 = scalar_select %p215, %s16, 1
      %s217 = smul.addr %s216, 32
      %s218 = smul.addr %s217, 4
      %s219 = scalar_lea.vmem %s0, %s218
      %p220 = scmp.lt.s32.totalorder %s16, 1
      %s221 = scalar_select %p220, %s16, 1
      %s222 = smul.addr %s221, 32
      %s223 = smul.addr %s222, 4
      %s224 = scalar_lea.vmem %s5, %s223
      %v226 = vld [vmem:[%s219] sm:$0xff]
      %v227 = vld [vmem:[%s219 + $0x8] sm:$0xff]
      %v228 = vld [vmem:[%s219 + $0x10] sm:$0xff]
      %v229 = vld [vmem:[%s219 + $0x18] sm:$0xff]
      %v230 = vld [vmem:[%s219 + $0x20] sm:$0xff]
      %v231 = vld [vmem:[%s219 + $0x28] sm:$0xff]
      %v232 = vld [vmem:[%s219 + $0x30] sm:$0xff]
      %v233 = vld [vmem:[%s219 + $0x38] sm:$0xff]
      %v234 = vld [vmem:[%s219 + $0x40] sm:$0xff]
      %v235 = vld [vmem:[%s219 + $0x48] sm:$0xff]
      %v236 = vld [vmem:[%s219 + $0x50] sm:$0xff]
      %v237 = vld [vmem:[%s219 + $0x58] sm:$0xff]
      %v238 = vld [vmem:[%s219 + $0x60] sm:$0xff]
      %v239 = vld [vmem:[%s219 + $0x68] sm:$0xff]
      %v240 = vld [vmem:[%s219 + $0x70] sm:$0xff]
      %v241 = vld [vmem:[%s219 + $0x78] sm:$0xff]
      %v242 = vunpack.c.l.bf16 %v226
      %v243 = vunpack.c.h.bf16 %v226
      %v244 = vunpack.c.l.bf16 %v227
      %v245 = vunpack.c.h.bf16 %v227
      %v246 = vunpack.c.l.bf16 %v228
      %v247 = vunpack.c.h.bf16 %v228
      %v248 = vunpack.c.l.bf16 %v229
      %v249 = vunpack.c.h.bf16 %v229
      %v250 = vunpack.c.l.bf16 %v230
      %v251 = vunpack.c.h.bf16 %v230
      %v252 = vunpack.c.l.bf16 %v231
      %v253 = vunpack.c.h.bf16 %v231
      %v254 = vunpack.c.l.bf16 %v232
      %v255 = vunpack.c.h.bf16 %v232
      %v256 = vunpack.c.l.bf16 %v233
      %v257 = vunpack.c.h.bf16 %v233
      %v258 = vunpack.c.l.bf16 %v234
      %v259 = vunpack.c.h.bf16 %v234
      %v260 = vunpack.c.l.bf16 %v235
      %v261 = vunpack.c.h.bf16 %v235
      %v262 = vunpack.c.l.bf16 %v236
      %v263 = vunpack.c.h.bf16 %v236
      %v264 = vunpack.c.l.bf16 %v237
      %v265 = vunpack.c.h.bf16 %v237
      %v266 = vunpack.c.l.bf16 %v238
      %v267 = vunpack.c.h.bf16 %v238
      %v268 = vunpack.c.l.bf16 %v239
      %v269 = vunpack.c.h.bf16 %v239
      %v270 = vunpack.c.l.bf16 %v240
      %v271 = vunpack.c.h.bf16 %v240
      %v272 = vunpack.c.l.bf16 %v241
      %v273 = vunpack.c.h.bf16 %v241
      %v274 = vld [vmem:[%s1] sm:$0xff]
      %276 = vset.pattern.permute.xlu0 0
      %277 = vperm.xlu0 %276, %v274
      %v278 = vpop.permute.xlu0 %277
      %v280 = vmul.f32 %v242, %v278
      %v281 = vmul.f32 %v243, %v278
      %v282 = vmul.f32 %v244, %v278
      %v283 = vmul.f32 %v245, %v278
      %v284 = vmul.f32 %v246, %v278
      %v285 = vmul.f32 %v247, %v278
      %v286 = vmul.f32 %v248, %v278
      %v287 = vmul.f32 %v249, %v278
      %v288 = vmul.f32 %v250, %v278
      %v289 = vmul.f32 %v251, %v278
      %v290 = vmul.f32 %v252, %v278
      %v291 = vmul.f32 %v253, %v278
      %v292 = vmul.f32 %v254, %v278
      %v293 = vmul.f32 %v255, %v278
      %v294 = vmul.f32 %v256, %v278
      %v295 = vmul.f32 %v257, %v278
      %v296 = vmul.f32 %v258, %v278
      %v297 = vmul.f32 %v259, %v278
      %v298 = vmul.f32 %v260, %v278
      %v299 = vmul.f32 %v261, %v278
      %v300 = vmul.f32 %v262, %v278
      %v301 = vmul.f32 %v263, %v278
      %v302 = vmul.f32 %v264, %v278
      %v303 = vmul.f32 %v265, %v278
      %v304 = vmul.f32 %v266, %v278
      %v305 = vmul.f32 %v267, %v278
      %v306 = vmul.f32 %v268, %v278
      %v307 = vmul.f32 %v269, %v278
      %v308 = vmul.f32 %v270, %v278
      %v309 = vmul.f32 %v271, %v278
      %v310 = vmul.f32 %v272, %v278
      %v311 = vmul.f32 %v273, %v278
      %v312 = vld [vmem:[%s2] sm:$0xff]
      %314 = vset.pattern.permute.xlu0 0
      %315 = vperm.xlu0 %314, %v312
      %v316 = vpop.permute.xlu0 %315
      %v318 = vadd.f32 %v280, %v316
      %v319 = vadd.f32 %v281, %v316
      %v320 = vadd.f32 %v282, %v316
      %v321 = vadd.f32 %v283, %v316
      %v322 = vadd.f32 %v284, %v316
      %v323 = vadd.f32 %v285, %v316
      %v324 = vadd.f32 %v286, %v316
      %v325 = vadd.f32 %v287, %v316
      %v326 = vadd.f32 %v288, %v316
      %v327 = vadd.f32 %v289, %v316
      %v328 = vadd.f32 %v290, %v316
      %v329 = vadd.f32 %v291, %v316
      %v330 = vadd.f32 %v292, %v316
      %v331 = vadd.f32 %v293, %v316
      %v332 = vadd.f32 %v294, %v316
      %v333 = vadd.f32 %v295, %v316
      %v334 = vadd.f32 %v296, %v316
      %v335 = vadd.f32 %v297, %v316
      %v336 = vadd.f32 %v298, %v316
      %v337 = vadd.f32 %v299, %v316
      %v338 = vadd.f32 %v300, %v316
      %v339 = vadd.f32 %v301, %v316
      %v340 = vadd.f32 %v302, %v316
      %v341 = vadd.f32 %v303, %v316
      %v342 = vadd.f32 %v304, %v316
      %v343 = vadd.f32 %v305, %v316
      %v344 = vadd.f32 %v306, %v316
      %v345 = vadd.f32 %v307, %v316
      %v346 = vadd.f32 %v308, %v316
      %v347 = vadd.f32 %v309, %v316
      %v348 = vadd.f32 %v310, %v316
      %v349 = vadd.f32 %v311, %v316
      %vm350 = vcmp.ge.f32.partialorder %v318, 0.0
      %vm351 = vcmp.ge.f32.partialorder %v319, 0.0
      %vm352 = vcmp.ge.f32.partialorder %v320, 0.0
      %vm353 = vcmp.ge.f32.partialorder %v321, 0.0
      %vm354 = vcmp.ge.f32.partialorder %v322, 0.0
      %vm355 = vcmp.ge.f32.partialorder %v323, 0.0
      %vm356 = vcmp.ge.f32.partialorder %v324, 0.0
      %vm357 = vcmp.ge.f32.partialorder %v325, 0.0
      %vm358 = vcmp.ge.f32.partialorder %v326, 0.0
      %vm359 = vcmp.ge.f32.partialorder %v327, 0.0
      %vm360 = vcmp.ge.f32.partialorder %v328, 0.0
      %vm361 = vcmp.ge.f32.partialorder %v329, 0.0
      %vm362 = vcmp.ge.f32.partialorder %v330, 0.0
      %vm363 = vcmp.ge.f32.partialorder %v331, 0.0
      %vm364 = vcmp.ge.f32.partialorder %v332, 0.0
      %vm365 = vcmp.ge.f32.partialorder %v333, 0.0
      %vm366 = vcmp.ge.f32.partialorder %v334, 0.0
      %vm367 = vcmp.ge.f32.partialorder %v335, 0.0
      %vm368 = vcmp.ge.f32.partialorder %v336, 0.0
      %vm369 = vcmp.ge.f32.partialorder %v337, 0.0
      %vm370 = vcmp.ge.f32.partialorder %v338, 0.0
      %vm371 = vcmp.ge.f32.partialorder %v339, 0.0
      %vm372 = vcmp.ge.f32.partialorder %v340, 0.0
      %vm373 = vcmp.ge.f32.partialorder %v341, 0.0
      %vm374 = vcmp.ge.f32.partialorder %v342, 0.0
      %vm375 = vcmp.ge.f32.partialorder %v343, 0.0
      %vm376 = vcmp.ge.f32.partialorder %v344, 0.0
      %vm377 = vcmp.ge.f32.partialorder %v345, 0.0
      %vm378 = vcmp.ge.f32.partialorder %v346, 0.0
      %vm379 = vcmp.ge.f32.partialorder %v347, 0.0
      %vm380 = vcmp.ge.f32.partialorder %v348, 0.0
      %vm381 = vcmp.ge.f32.partialorder %v349, 0.0
      %v382 = vmul.f32 %v318, 0.01
      %v383 = vmul.f32 %v319, 0.01
      %v384 = vmul.f32 %v320, 0.01
      %v385 = vmul.f32 %v321, 0.01
      %v386 = vmul.f32 %v322, 0.01
      %v387 = vmul.f32 %v323, 0.01
      %v388 = vmul.f32 %v324, 0.01
      %v389 = vmul.f32 %v325, 0.01
      %v390 = vmul.f32 %v326, 0.01
      %v391 = vmul.f32 %v327, 0.01
      %v392 = vmul.f32 %v328, 0.01
      %v393 = vmul.f32 %v329, 0.01
      %v394 = vmul.f32 %v330, 0.01
      %v395 = vmul.f32 %v331, 0.01
      %v396 = vmul.f32 %v332, 0.01
      %v397 = vmul.f32 %v333, 0.01
      %v398 = vmul.f32 %v334, 0.01
      %v399 = vmul.f32 %v335, 0.01
      %v400 = vmul.f32 %v336, 0.01
      %v401 = vmul.f32 %v337, 0.01
      %v402 = vmul.f32 %v338, 0.01
      %v403 = vmul.f32 %v339, 0.01
      %v404 = vmul.f32 %v340, 0.01
      %v405 = vmul.f32 %v341, 0.01
      %v406 = vmul.f32 %v342, 0.01
      %v407 = vmul.f32 %v343, 0.01
      %v408 = vmul.f32 %v344, 0.01
      %v409 = vmul.f32 %v345, 0.01
      %v410 = vmul.f32 %v346, 0.01
      %v411 = vmul.f32 %v347, 0.01
      %v412 = vmul.f32 %v348, 0.01
      %v413 = vmul.f32 %v349, 0.01
      %v414 = vsel %vm350, %v318, %v382
      %v415 = vsel %vm351, %v319, %v383
      %v416 = vsel %vm352, %v320, %v384
      %v417 = vsel %vm353, %v321, %v385
      %v418 = vsel %vm354, %v322, %v386
      %v419 = vsel %vm355, %v323, %v387
      %v420 = vsel %vm356, %v324, %v388
      %v421 = vsel %vm357, %v325, %v389
      %v422 = vsel %vm358, %v326, %v390
      %v423 = vsel %vm359, %v327, %v391
      %v424 = vsel %vm360, %v328, %v392
      %v425 = vsel %vm361, %v329, %v393
      %v426 = vsel %vm362, %v330, %v394
      %v427 = vsel %vm363, %v331, %v395
      %v428 = vsel %vm364, %v332, %v396
      %v429 = vsel %vm365, %v333, %v397
      %v430 = vsel %vm366, %v334, %v398
      %v431 = vsel %vm367, %v335, %v399
      %v432 = vsel %vm368, %v336, %v400
      %v433 = vsel %vm369, %v337, %v401
      %v434 = vsel %vm370, %v338, %v402
      %v435 = vsel %vm371, %v339, %v403
      %v436 = vsel %vm372, %v340, %v404
      %v437 = vsel %vm373, %v341, %v405
      %v438 = vsel %vm374, %v342, %v406
      %v439 = vsel %vm375, %v343, %v407
      %v440 = vsel %vm376, %v344, %v408
      %v441 = vsel %vm377, %v345, %v409
      %v442 = vsel %vm378, %v346, %v410
      %v443 = vsel %vm379, %v347, %v411
      %v444 = vsel %vm380, %v348, %v412
      %v445 = vsel %vm381, %v349, %v413
      %v446 = vlaneseq
      %v447 = vand.u32 %v446, 127
      %v448 = vadd.s32 %v447, 128
      %v449 = vadd.s32 %v447, 256
      %v450 = vadd.s32 %v447, 384
      %v451 = vadd.s32 %v447, 512
      %v452 = vadd.s32 %v447, 640
      %v453 = vadd.s32 %v447, 768
      %v454 = vadd.s32 %v447, 896
      %v455 = vadd.s32 %v447, 1024
      %v456 = vadd.s32 %v447, 1152
      %v457 = vadd.s32 %v447, 1280
      %v458 = vadd.s32 %v447, 1408
      %v459 = vadd.s32 %v447, 1536
      %v460 = vadd.s32 %v447, 1664
      %v461 = vadd.s32 %v447, 1792
      %v462 = vadd.s32 %v447, 1920
      %v463 = vadd.s32 %v447, 2048
      %v464 = vadd.s32 %v447, 2176
      %v465 = vadd.s32 %v447, 2304
      %v466 = vadd.s32 %v447, 2432
      %v467 = vadd.s32 %v447, 2560
      %v468 = vadd.s32 %v447, 2688
      %v469 = vadd.s32 %v447, 2816
      %v470 = vadd.s32 %v447, 2944
      %v471 = vadd.s32 %v447, 3072
      %v472 = vadd.s32 %v447, 3200
      %v473 = vadd.s32 %v447, 3328
      %v474 = vadd.s32 %v447, 3456
      %v475 = vadd.s32 %v447, 3584
      %v476 = vadd.s32 %v447, 3712
      %v477 = vadd.s32 %v447, 3840
      %v478 = vadd.s32 %v447, 3968
      %vm479 = vcmp.lt.s32.totalorder %v447, 0
      %v480 = vsub.s32 0, %v447
      %v481 = vsel %vm479, %v480, %v447
      %v482 = vshrl.u32 %v481, 6
      %v483 = vand.u32 %v481, 63
      %v484 = vsub.s32 0, %v483
      %v485 = vsel %vm479, %v484, %v483
      %vm486 = vcmp.lt.s32.totalorder %v448, 0
      %v487 = vsub.s32 0, %v448
      %v488 = vsel %vm486, %v487, %v448
      %v489 = vshrl.u32 %v488, 6
      %v490 = vand.u32 %v488, 63
      %v491 = vsub.s32 0, %v490
      %v492 = vsel %vm486, %v491, %v490
      %vm493 = vcmp.lt.s32.totalorder %v449, 0
      %v494 = vsub.s32 0, %v449
      %v495 = vsel %vm493, %v494, %v449
      %v496 = vshrl.u32 %v495, 6
      %v497 = vand.u32 %v495, 63
      %v498 = vsub.s32 0, %v497
      %v499 = vsel %vm493, %v498, %v497
      %vm500 = vcmp.lt.s32.totalorder %v450, 0
      %v501 = vsub.s32 0, %v450
      %v502 = vsel %vm500, %v501, %v450
      %v503 = vshrl.u32 %v502, 6
      %v504 = vand.u32 %v502, 63
      %v505 = vsub.s32 0, %v504
      %v506 = vsel %vm500, %v505, %v504
      %vm507 = vcmp.lt.s32.totalorder %v451, 0
      %v508 = vsub.s32 0, %v451
      %v509 = vsel %vm507, %v508, %v451
      %v510 = vshrl.u32 %v509, 6
      %v511 = vand.u32 %v509, 63
      %v512 = vsub.s32 0, %v511
      %v513 = vsel %vm507, %v512, %v511
      %vm514 = vcmp.lt.s32.totalorder %v452, 0
      %v515 = vsub.s32 0, %v452
      %v516 = vsel %vm514, %v515, %v452
      %v517 = vshrl.u32 %v516, 6
      %v518 = vand.u32 %v516, 63
      %v519 = vsub.s32 0, %v518
      %v520 = vsel %vm514, %v519, %v518
      %vm521 = vcmp.lt.s32.totalorder %v453, 0
      %v522 = vsub.s32 0, %v453
      %v523 = vsel %vm521, %v522, %v453
      %v524 = vshrl.u32 %v523, 6
      %v525 = vand.u32 %v523, 63
      %v526 = vsub.s32 0, %v525
      %v527 = vsel %vm521, %v526, %v525
      %vm528 = vcmp.lt.s32.totalorder %v454, 0
      %v529 = vsub.s32 0, %v454
      %v530 = vsel %vm528, %v529, %v454
      %v531 = vshrl.u32 %v530, 6
      %v532 = vand.u32 %v530, 63
      %v533 = vsub.s32 0, %v532
      %v534 = vsel %vm528, %v533, %v532
      %vm535 = vcmp.lt.s32.totalorder %v455, 0
      %v536 = vsub.s32 0, %v455
      %v537 = vsel %vm535, %v536, %v455
      %v538 = vshrl.u32 %v537, 6
      %v539 = vand.u32 %v537, 63
      %v540 = vsub.s32 0, %v539
      %v541 = vsel %vm535, %v540, %v539
      %vm542 = vcmp.lt.s32.totalorder %v456, 0
      %v543 = vsub.s32 0, %v456
      %v544 = vsel %vm542, %v543, %v456
      %v545 = vshrl.u32 %v544, 6
      %v546 = vand.u32 %v544, 63
      %v547 = vsub.s32 0, %v546
      %v548 = vsel %vm542, %v547, %v546
      %vm549 = vcmp.lt.s32.totalorder %v457, 0
      %v550 = vsub.s32 0, %v457
      %v551 = vsel %vm549, %v550, %v457
      %v552 = vshrl.u32 %v551, 6
      %v553 = vand.u32 %v551, 63
      %v554 = vsub.s32 0, %v553
      %v555 = vsel %vm549, %v554, %v553
      %vm556 = vcmp.lt.s32.totalorder %v458, 0
      %v557 = vsub.s32 0, %v458
      %v558 = vsel %vm556, %v557, %v458
      %v559 = vshrl.u32 %v558, 6
      %v560 = vand.u32 %v558, 63
      %v561 = vsub.s32 0, %v560
      %v562 = vsel %vm556, %v561, %v560
      %vm563 = vcmp.lt.s32.totalorder %v459, 0
      %v564 = vsub.s32 0, %v459
      %v565 = vsel %vm563, %v564, %v459
      %v566 = vshrl.u32 %v565, 6
      %v567 = vand.u32 %v565, 63
      %v568 = vsub.s32 0, %v567
      %v569 = vsel %vm563, %v568, %v567
      %vm570 = vcmp.lt.s32.totalorder %v460, 0
      %v571 = vsub.s32 0, %v460
      %v572 = vsel %vm570, %v571, %v460
      %v573 = vshrl.u32 %v572, 6
      %v574 = vand.u32 %v572, 63
      %v575 = vsub.s32 0, %v574
      %v576 = vsel %vm570, %v575, %v574
      %vm577 = vcmp.lt.s32.totalorder %v461, 0
      %v578 = vsub.s32 0, %v461
      %v579 = vsel %vm577, %v578, %v461
      %v580 = vshrl.u32 %v579, 6
      %v581 = vand.u32 %v579, 63
      %v582 = vsub.s32 0, %v581
      %v583 = vsel %vm577, %v582, %v581
      %vm584 = vcmp.lt.s32.totalorder %v462, 0
      %v585 = vsub.s32 0, %v462
      %v586 = vsel %vm584, %v585, %v462
      %v587 = vshrl.u32 %v586, 6
      %v588 = vand.u32 %v586, 63
      %v589 = vsub.s32 0, %v588
      %v590 = vsel %vm584, %v589, %v588
      %vm591 = vcmp.lt.s32.totalorder %v463, 0
      %v592 = vsub.s32 0, %v463
      %v593 = vsel %vm591, %v592, %v463
      %v594 = vshrl.u32 %v593, 6
      %v595 = vand.u32 %v593, 63
      %v596 = vsub.s32 0, %v595
      %v597 = vsel %vm591, %v596, %v595
      %vm598 = vcmp.lt.s32.totalorder %v464, 0
      %v599 = vsub.s32 0, %v464
      %v600 = vsel %vm598, %v599, %v464
      %v601 = vshrl.u32 %v600, 6
      %v602 = vand.u32 %v600, 63
      %v603 = vsub.s32 0, %v602
      %v604 = vsel %vm598, %v603, %v602
      %vm605 = vcmp.lt.s32.totalorder %v465, 0
      %v606 = vsub.s32 0, %v465
      %v607 = vsel %vm605, %v606, %v465
      %v608 = vshrl.u32 %v607, 6
      %v609 = vand.u32 %v607, 63
      %v610 = vsub.s32 0, %v609
      %v611 = vsel %vm605, %v610, %v609
      %vm612 = vcmp.lt.s32.totalorder %v466, 0
      %v613 = vsub.s32 0, %v466
      %v614 = vsel %vm612, %v613, %v466
      %v615 = vshrl.u32 %v614, 6
      %v616 = vand.u32 %v614, 63
      %v617 = vsub.s32 0, %v616
      %v618 = vsel %vm612, %v617, %v616
      %vm619 = vcmp.lt.s32.totalorder %v467, 0
      %v620 = vsub.s32 0, %v467
      %v621 = vsel %vm619, %v620, %v467
      %v622 = vshrl.u32 %v621, 6
      %v623 = vand.u32 %v621, 63
      %v624 = vsub.s32 0, %v623
      %v625 = vsel %vm619, %v624, %v623
      %vm626 = vcmp.lt.s32.totalorder %v468, 0
      %v627 = vsub.s32 0, %v468
      %v628 = vsel %vm626, %v627, %v468
      %v629 = vshrl.u32 %v628, 6
      %v630 = vand.u32 %v628, 63
      %v631 = vsub.s32 0, %v630
      %v632 = vsel %vm626, %v631, %v630
      %vm633 = vcmp.lt.s32.totalorder %v469, 0
      %v634 = vsub.s32 0, %v469
      %v635 = vsel %vm633, %v634, %v469
      %v636 = vshrl.u32 %v635, 6
      %v637 = vand.u32 %v635, 63
      %v638 = vsub.s32 0, %v637
      %v639 = vsel %vm633, %v638, %v637
      %vm640 = vcmp.lt.s32.totalorder %v470, 0
      %v641 = vsub.s32 0, %v470
      %v642 = vsel %vm640, %v641, %v470
      %v643 = vshrl.u32 %v642, 6
      %v644 = vand.u32 %v642, 63
      %v645 = vsub.s32 0, %v644
      %v646 = vsel %vm640, %v645, %v644
      %vm647 = vcmp.lt.s32.totalorder %v471, 0
      %v648 = vsub.s32 0, %v471
      %v649 = vsel %vm647, %v648, %v471
      %v650 = vshrl.u32 %v649, 6
      %v651 = vand.u32 %v649, 63
      %v652 = vsub.s32 0, %v651
      %v653 = vsel %vm647, %v652, %v651
      %vm654 = vcmp.lt.s32.totalorder %v472, 0
      %v655 = vsub.s32 0, %v472
      %v656 = vsel %vm654, %v655, %v472
      %v657 = vshrl.u32 %v656, 6
      %v658 = vand.u32 %v656, 63
      %v659 = vsub.s32 0, %v658
      %v660 = vsel %vm654, %v659, %v658
      %vm661 = vcmp.lt.s32.totalorder %v473, 0
      %v662 = vsub.s32 0, %v473
      %v663 = vsel %vm661, %v662, %v473
      %v664 = vshrl.u32 %v663, 6
      %v665 = vand.u32 %v663, 63
      %v666 = vsub.s32 0, %v665
      %v667 = vsel %vm661, %v666, %v665
      %vm668 = vcmp.lt.s32.totalorder %v474, 0
      %v669 = vsub.s32 0, %v474
      %v670 = vsel %vm668, %v669, %v474
      %v671 = vshrl.u32 %v670, 6
      %v672 = vand.u32 %v670, 63
      %v673 = vsub.s32 0, %v672
      %v674 = vsel %vm668, %v673, %v672
      %vm675 = vcmp.lt.s32.totalorder %v475, 0
      %v676 = vsub.s32 0, %v475
      %v677 = vsel %vm675, %v676, %v475
      %v678 = vshrl.u32 %v677, 6
      %v679 = vand.u32 %v677, 63
      %v680 = vsub.s32 0, %v679
      %v681 = vsel %vm675, %v680, %v679
      %vm682 = vcmp.lt.s32.totalorder %v476, 0
      %v683 = vsub.s32 0, %v476
      %v684 = vsel %vm682, %v683, %v476
      %v685 = vshrl.u32 %v684, 6
      %v686 = vand.u32 %v684, 63
      %v687 = vsub.s32 0, %v686
      %v688 = vsel %vm682, %v687, %v686
      %vm689 = vcmp.lt.s32.totalorder %v477, 0
      %v690 = vsub.s32 0, %v477
      %v691 = vsel %vm689, %v690, %v477
      %v692 = vshrl.u32 %v691, 6
      %v693 = vand.u32 %v691, 63
      %v694 = vsub.s32 0, %v693
      %v695 = vsel %vm689, %v694, %v693
      %vm696 = vcmp.lt.s32.totalorder %v478, 0
      %v697 = vsub.s32 0, %v478
      %v698 = vsel %vm696, %v697, %v478
      %v699 = vshrl.u32 %v698, 6
      %v700 = vand.u32 %v698, 63
      %v701 = vsub.s32 0, %v700
      %v702 = vsel %vm696, %v701, %v700
      %vm703 = vcmp.ne.s32.totalorder %v485, 0
      %vm704 = vcmp.ne.s32.totalorder %v492, 0
      %vm705 = vcmp.ne.s32.totalorder %v499, 0
      %vm706 = vcmp.ne.s32.totalorder %v506, 0
      %vm707 = vcmp.ne.s32.totalorder %v513, 0
      %vm708 = vcmp.ne.s32.totalorder %v520, 0
      %vm709 = vcmp.ne.s32.totalorder %v527, 0
      %vm710 = vcmp.ne.s32.totalorder %v534, 0
      %vm711 = vcmp.ne.s32.totalorder %v541, 0
      %vm712 = vcmp.ne.s32.totalorder %v548, 0
      %vm713 = vcmp.ne.s32.totalorder %v555, 0
      %vm714 = vcmp.ne.s32.totalorder %v562, 0
      %vm715 = vcmp.ne.s32.totalorder %v569, 0
      %vm716 = vcmp.ne.s32.totalorder %v576, 0
      %vm717 = vcmp.ne.s32.totalorder %v583, 0
      %vm718 = vcmp.ne.s32.totalorder %v590, 0
      %vm719 = vcmp.ne.s32.totalorder %v597, 0
      %vm720 = vcmp.ne.s32.totalorder %v604, 0
      %vm721 = vcmp.ne.s32.totalorder %v611, 0
      %vm722 = vcmp.ne.s32.totalorder %v618, 0
      %vm723 = vcmp.ne.s32.totalorder %v625, 0
      %vm724 = vcmp.ne.s32.totalorder %v632, 0
      %vm725 = vcmp.ne.s32.totalorder %v639, 0
      %vm726 = vcmp.ne.s32.totalorder %v646, 0
      %vm727 = vcmp.ne.s32.totalorder %v653, 0
      %vm728 = vcmp.ne.s32.totalorder %v660, 0
      %vm729 = vcmp.ne.s32.totalorder %v667, 0
      %vm730 = vcmp.ne.s32.totalorder %v674, 0
      %vm731 = vcmp.ne.s32.totalorder %v681, 0
      %vm732 = vcmp.ne.s32.totalorder %v688, 0
      %vm733 = vcmp.ne.s32.totalorder %v695, 0
      %vm734 = vcmp.ne.s32.totalorder %v702, 0
      %vm735 = vcmp.lt.s32.totalorder %v485, 0
      %vm736 = vcmp.lt.s32.totalorder %v492, 0
      %vm737 = vcmp.lt.s32.totalorder %v499, 0
      %vm738 = vcmp.lt.s32.totalorder %v506, 0
      %vm739 = vcmp.lt.s32.totalorder %v513, 0
      %vm740 = vcmp.lt.s32.totalorder %v520, 0
      %vm741 = vcmp.lt.s32.totalorder %v527, 0
      %vm742 = vcmp.lt.s32.totalorder %v534, 0
      %vm743 = vcmp.lt.s32.totalorder %v541, 0
      %vm744 = vcmp.lt.s32.totalorder %v548, 0
      %vm745 = vcmp.lt.s32.totalorder %v555, 0
      %vm746 = vcmp.lt.s32.totalorder %v562, 0
      %vm747 = vcmp.lt.s32.totalorder %v569, 0
      %vm748 = vcmp.lt.s32.totalorder %v576, 0
      %vm749 = vcmp.lt.s32.totalorder %v583, 0
      %vm750 = vcmp.lt.s32.totalorder %v590, 0
      %vm751 = vcmp.lt.s32.totalorder %v597, 0
      %vm752 = vcmp.lt.s32.totalorder %v604, 0
      %vm753 = vcmp.lt.s32.totalorder %v611, 0
      %vm754 = vcmp.lt.s32.totalorder %v618, 0
      %vm755 = vcmp.lt.s32.totalorder %v625, 0
      %vm756 = vcmp.lt.s32.totalorder %v632, 0
      %vm757 = vcmp.lt.s32.totalorder %v639, 0
      %vm758 = vcmp.lt.s32.totalorder %v646, 0
      %vm759 = vcmp.lt.s32.totalorder %v653, 0
      %vm760 = vcmp.lt.s32.totalorder %v660, 0
      %vm761 = vcmp.lt.s32.totalorder %v667, 0
      %vm762 = vcmp.lt.s32.totalorder %v674, 0
      %vm763 = vcmp.lt.s32.totalorder %v681, 0
      %vm764 = vcmp.lt.s32.totalorder %v688, 0
      %vm765 = vcmp.lt.s32.totalorder %v695, 0
      %vm766 = vcmp.lt.s32.totalorder %v702, 0
      %vm767 = vmand %vm735, %vm703
      %vm768 = vmand %vm736, %vm704
      %vm769 = vmand %vm737, %vm705
      %vm770 = vmand %vm738, %vm706
      %vm771 = vmand %vm739, %vm707
      %vm772 = vmand %vm740, %vm708
      %vm773 = vmand %vm741, %vm709
      %vm774 = vmand %vm742, %vm710
      %vm775 = vmand %vm743, %vm711
      %vm776 = vmand %vm744, %vm712
      %vm777 = vmand %vm745, %vm713
      %vm778 = vmand %vm746, %vm714
      %vm779 = vmand %vm747, %vm715
      %vm780 = vmand %vm748, %vm716
      %vm781 = vmand %vm749, %vm717
      %vm782 = vmand %vm750, %vm718
      %vm783 = vmand %vm751, %vm719
      %vm784 = vmand %vm752, %vm720
      %vm785 = vmand %vm753, %vm721
      %vm786 = vmand %vm754, %vm722
      %vm787 = vmand %vm755, %vm723
      %vm788 = vmand %vm756, %vm724
      %vm789 = vmand %vm757, %vm725
      %vm790 = vmand %vm758, %vm726
      %vm791 = vmand %vm759, %vm727
      %vm792 = vmand %vm760, %vm728
      %vm793 = vmand %vm761, %vm729
      %vm794 = vmand %vm762, %vm730
      %vm795 = vmand %vm763, %vm731
      %vm796 = vmand %vm764, %vm732
      %vm797 = vmand %vm765, %vm733
      %vm798 = vmand %vm766, %vm734
      %v799 = vadd.s32 %v485, 64
      %v800 = vadd.s32 %v492, 64
      %v801 = vadd.s32 %v499, 64
      %v802 = vadd.s32 %v506, 64
      %v803 = vadd.s32 %v513, 64
      %v804 = vadd.s32 %v520, 64
      %v805 = vadd.s32 %v527, 64
      %v806 = vadd.s32 %v534, 64
      %v807 = vadd.s32 %v541, 64
      %v808 = vadd.s32 %v548, 64
      %v809 = vadd.s32 %v555, 64
      %v810 = vadd.s32 %v562, 64
      %v811 = vadd.s32 %v569, 64
      %v812 = vadd.s32 %v576, 64
      %v813 = vadd.s32 %v583, 64
      %v814 = vadd.s32 %v590, 64
      %v815 = vadd.s32 %v597, 64
      %v816 = vadd.s32 %v604, 64
      %v817 = vadd.s32 %v611, 64
      %v818 = vadd.s32 %v618, 64
      %v819 = vadd.s32 %v625, 64
      %v820 = vadd.s32 %v632, 64
      %v821 = vadd.s32 %v639, 64
      %v822 = vadd.s32 %v646, 64
      %v823 = vadd.s32 %v653, 64
      %v824 = vadd.s32 %v660, 64
      %v825 = vadd.s32 %v667, 64
      %v826 = vadd.s32 %v674, 64
      %v827 = vadd.s32 %v681, 64
      %v828 = vadd.s32 %v688, 64
      %v829 = vadd.s32 %v695, 64
      %v830 = vadd.s32 %v702, 64
      %v831 = vsel %vm767, %v799, %v485
      %v832 = vsel %vm768, %v800, %v492
      %v833 = vsel %vm769, %v801, %v499
      %v834 = vsel %vm770, %v802, %v506
      %v835 = vsel %vm771, %v803, %v513
      %v836 = vsel %vm772, %v804, %v520
      %v837 = vsel %vm773, %v805, %v527
      %v838 = vsel %vm774, %v806, %v534
      %v839 = vsel %vm775, %v807, %v541
      %v840 = vsel %vm776, %v808, %v548
      %v841 = vsel %vm777, %v809, %v555
      %v842 = vsel %vm778, %v810, %v562
      %v843 = vsel %vm779, %v811, %v569
      %v844 = vsel %vm780, %v812, %v576
      %v845 = vsel %vm781, %v813, %v583
      %v846 = vsel %vm782, %v814, %v590
      %v847 = vsel %vm783, %v815, %v597
      %v848 = vsel %vm784, %v816, %v604
      %v849 = vsel %vm785, %v817, %v611
      %v850 = vsel %vm786, %v818, %v618
      %v851 = vsel %vm787, %v819, %v625
      %v852 = vsel %vm788, %v820, %v632
      %v853 = vsel %vm789, %v821, %v639
      %v854 = vsel %vm790, %v822, %v646
      %v855 = vsel %vm791, %v823, %v653
      %v856 = vsel %vm792, %v824, %v660
      %v857 = vsel %vm793, %v825, %v667
      %v858 = vsel %vm794, %v826, %v674
      %v859 = vsel %vm795, %v827, %v681
      %v860 = vsel %vm796, %v828, %v688
      %v861 = vsel %vm797, %v829, %v695
      %v862 = vsel %vm798, %v830, %v702
      %vm863 = vcmp.ne.s32.totalorder %v831, 0
      %vm864 = vcmp.ne.s32.totalorder %v832, 0
      %vm865 = vcmp.ne.s32.totalorder %v833, 0
      %vm866 = vcmp.ne.s32.totalorder %v834, 0
      %vm867 = vcmp.ne.s32.totalorder %v835, 0
      %vm868 = vcmp.ne.s32.totalorder %v836, 0
      %vm869 = vcmp.ne.s32.totalorder %v837, 0
      %vm870 = vcmp.ne.s32.totalorder %v838, 0
      %vm871 = vcmp.ne.s32.totalorder %v839, 0
      %vm872 = vcmp.ne.s32.totalorder %v840, 0
      %vm873 = vcmp.ne.s32.totalorder %v841, 0
      %vm874 = vcmp.ne.s32.totalorder %v842, 0
      %vm875 = vcmp.ne.s32.totalorder %v843, 0
      %vm876 = vcmp.ne.s32.totalorder %v844, 0
      %vm877 = vcmp.ne.s32.totalorder %v845, 0
      %vm878 = vcmp.ne.s32.totalorder %v846, 0
      %vm879 = vcmp.ne.s32.totalorder %v847, 0
      %vm880 = vcmp.ne.s32.totalorder %v848, 0
      %vm881 = vcmp.ne.s32.totalorder %v849, 0
      %vm882 = vcmp.ne.s32.totalorder %v850, 0
      %vm883 = vcmp.ne.s32.totalorder %v851, 0
      %vm884 = vcmp.ne.s32.totalorder %v852, 0
      %vm885 = vcmp.ne.s32.totalorder %v853, 0
      %vm886 = vcmp.ne.s32.totalorder %v854, 0
      %vm887 = vcmp.ne.s32.totalorder %v855, 0
      %vm888 = vcmp.ne.s32.totalorder %v856, 0
      %vm889 = vcmp.ne.s32.totalorder %v857, 0
      %vm890 = vcmp.ne.s32.totalorder %v858, 0
      %vm891 = vcmp.ne.s32.totalorder %v859, 0
      %vm892 = vcmp.ne.s32.totalorder %v860, 0
      %vm893 = vcmp.ne.s32.totalorder %v861, 0
      %vm894 = vcmp.ne.s32.totalorder %v862, 0
      %v895 = vsel %vm863, 1, 0
      %v896 = vsel %vm864, 1, 0
      %v897 = vsel %vm865, 1, 0
      %v898 = vsel %vm866, 1, 0
      %v899 = vsel %vm867, 1, 0
      %v900 = vsel %vm868, 1, 0
      %v901 = vsel %vm869, 1, 0
      %v902 = vsel %vm870, 1, 0
      %v903 = vsel %vm871, 1, 0
      %v904 = vsel %vm872, 1, 0
      %v905 = vsel %vm873, 1, 0
      %v906 = vsel %vm874, 1, 0
      %v907 = vsel %vm875, 1, 0
      %v908 = vsel %vm876, 1, 0
      %v909 = vsel %vm877, 1, 0
      %v910 = vsel %vm878, 1, 0
      %v911 = vsel %vm879, 1, 0
      %v912 = vsel %vm880, 1, 0
      %v913 = vsel %vm881, 1, 0
      %v914 = vsel %vm882, 1, 0
      %v915 = vsel %vm883, 1, 0
      %v916 = vsel %vm884, 1, 0
      %v917 = vsel %vm885, 1, 0
      %v918 = vsel %vm886, 1, 0
      %v919 = vsel %vm887, 1, 0
      %v920 = vsel %vm888, 1, 0
      %v921 = vsel %vm889, 1, 0
      %v922 = vsel %vm890, 1, 0
      %v923 = vsel %vm891, 1, 0
      %v924 = vsel %vm892, 1, 0
      %v925 = vsel %vm893, 1, 0
      %v926 = vsel %vm894, 1, 0
      %v927 = vcvt.s32.f32 %v895
      %v928 = vcvt.s32.f32 %v896
      %v929 = vcvt.s32.f32 %v897
      %v930 = vcvt.s32.f32 %v898
      %v931 = vcvt.s32.f32 %v899
      %v932 = vcvt.s32.f32 %v900
      %v933 = vcvt.s32.f32 %v901
      %v934 = vcvt.s32.f32 %v902
      %v935 = vcvt.s32.f32 %v903
      %v936 = vcvt.s32.f32 %v904
      %v937 = vcvt.s32.f32 %v905
      %v938 = vcvt.s32.f32 %v906
      %v939 = vcvt.s32.f32 %v907
      %v940 = vcvt.s32.f32 %v908
      %v941 = vcvt.s32.f32 %v909
      %v942 = vcvt.s32.f32 %v910
      %v943 = vcvt.s32.f32 %v911
      %v944 = vcvt.s32.f32 %v912
      %v945 = vcvt.s32.f32 %v913
      %v946 = vcvt.s32.f32 %v914
      %v947 = vcvt.s32.f32 %v915
      %v948 = vcvt.s32.f32 %v916
      %v949 = vcvt.s32.f32 %v917
      %v950 = vcvt.s32.f32 %v918
      %v951 = vcvt.s32.f32 %v919
      %v952 = vcvt.s32.f32 %v920
      %v953 = vcvt.s32.f32 %v921
      %v954 = vcvt.s32.f32 %v922
      %v955 = vcvt.s32.f32 %v923
      %v956 = vcvt.s32.f32 %v924
      %v957 = vcvt.s32.f32 %v925
      %v958 = vcvt.s32.f32 %v926
      %vm959 = vcmp.ne.s32.totalorder %v831, 63
      %vm960 = vcmp.ne.s32.totalorder %v832, 63
      %vm961 = vcmp.ne.s32.totalorder %v833, 63
      %vm962 = vcmp.ne.s32.totalorder %v834, 63
      %vm963 = vcmp.ne.s32.totalorder %v835, 63
      %vm964 = vcmp.ne.s32.totalorder %v836, 63
      %vm965 = vcmp.ne.s32.totalorder %v837, 63
      %vm966 = vcmp.ne.s32.totalorder %v838, 63
      %vm967 = vcmp.ne.s32.totalorder %v839, 63
      %vm968 = vcmp.ne.s32.totalorder %v840, 63
      %vm969 = vcmp.ne.s32.totalorder %v841, 63
      %vm970 = vcmp.ne.s32.totalorder %v842, 63
      %vm971 = vcmp.ne.s32.totalorder %v843, 63
      %vm972 = vcmp.ne.s32.totalorder %v844, 63
      %vm973 = vcmp.ne.s32.totalorder %v845, 63
      %vm974 = vcmp.ne.s32.totalorder %v846, 63
      %vm975 = vcmp.ne.s32.totalorder %v847, 63
      %vm976 = vcmp.ne.s32.totalorder %v848, 63
      %vm977 = vcmp.ne.s32.totalorder %v849, 63
      %vm978 = vcmp.ne.s32.totalorder %v850, 63
      %vm979 = vcmp.ne.s32.totalorder %v851, 63
      %vm980 = vcmp.ne.s32.totalorder %v852, 63
      %vm981 = vcmp.ne.s32.totalorder %v853, 63
      %vm982 = vcmp.ne.s32.totalorder %v854, 63
      %vm983 = vcmp.ne.s32.totalorder %v855, 63
      %vm984 = vcmp.ne.s32.totalorder %v856, 63
      %vm985 = vcmp.ne.s32.totalorder %v857, 63
      %vm986 = vcmp.ne.s32.totalorder %v858, 63
      %vm987 = vcmp.ne.s32.totalorder %v859, 63
      %vm988 = vcmp.ne.s32.totalorder %v860, 63
      %vm989 = vcmp.ne.s32.totalorder %v861, 63
      %vm990 = vcmp.ne.s32.totalorder %v862, 63
      %v991 = vsel %vm959, 1, 0
      %v992 = vsel %vm960, 1, 0
      %v993 = vsel %vm961, 1, 0
      %v994 = vsel %vm962, 1, 0
      %v995 = vsel %vm963, 1, 0
      %v996 = vsel %vm964, 1, 0
      %v997 = vsel %vm965, 1, 0
      %v998 = vsel %vm966, 1, 0
      %v999 = vsel %vm967, 1, 0
      %v1000 = vsel %vm968, 1, 0
      %v1001 = vsel %vm969, 1, 0
      %v1002 = vsel %vm970, 1, 0
      %v1003 = vsel %vm971, 1, 0
      %v1004 = vsel %vm972, 1, 0
      %v1005 = vsel %vm973, 1, 0
      %v1006 = vsel %vm974, 1, 0
      %v1007 = vsel %vm975, 1, 0
      %v1008 = vsel %vm976, 1, 0
      %v1009 = vsel %vm977, 1, 0
      %v1010 = vsel %vm978, 1, 0
      %v1011 = vsel %vm979, 1, 0
      %v1012 = vsel %vm980, 1, 0
      %v1013 = vsel %vm981, 1, 0
      %v1014 = vsel %vm982, 1, 0
      %v1015 = vsel %vm983, 1, 0
      %v1016 = vsel %vm984, 1, 0
      %v1017 = vsel %vm985, 1, 0
      %v1018 = vsel %vm986, 1, 0
      %v1019 = vsel %vm987, 1, 0
      %v1020 = vsel %vm988, 1, 0
      %v1021 = vsel %vm989, 1, 0
      %v1022 = vsel %vm990, 1, 0
      %v1023 = vcvt.s32.f32 %v991
      %v1024 = vcvt.s32.f32 %v992
      %v1025 = vcvt.s32.f32 %v993
      %v1026 = vcvt.s32.f32 %v994
      %v1027 = vcvt.s32.f32 %v995
      %v1028 = vcvt.s32.f32 %v996
      %v1029 = vcvt.s32.f32 %v997
      %v1030 = vcvt.s32.f32 %v998
      %v1031 = vcvt.s32.f32 %v999
      %v1032 = vcvt.s32.f32 %v1000
      %v1033 = vcvt.s32.f32 %v1001
      %v1034 = vcvt.s32.f32 %v1002
      %v1035 = vcvt.s32.f32 %v1003
      %v1036 = vcvt.s32.f32 %v1004
      %v1037 = vcvt.s32.f32 %v1005
      %v1038 = vcvt.s32.f32 %v1006
      %v1039 = vcvt.s32.f32 %v1007
      %v1040 = vcvt.s32.f32 %v1008
      %v1041 = vcvt.s32.f32 %v1009
      %v1042 = vcvt.s32.f32 %v1010
      %v1043 = vcvt.s32.f32 %v1011
      %v1044 = vcvt.s32.f32 %v1012
      %v1045 = vcvt.s32.f32 %v1013
      %v1046 = vcvt.s32.f32 %v1014
      %v1047 = vcvt.s32.f32 %v1015
      %v1048 = vcvt.s32.f32 %v1016
      %v1049 = vcvt.s32.f32 %v1017
      %v1050 = vcvt.s32.f32 %v1018
      %v1051 = vcvt.s32.f32 %v1019
      %v1052 = vcvt.s32.f32 %v1020
      %v1053 = vcvt.s32.f32 %v1021
      %v1054 = vcvt.s32.f32 %v1022
      %vm1055 = vcmask 519168
      %1056 = vst.msk [vmem:[#allocation2 + $0x80] sm:$0xf] %vm1055, 0
      %v1057 = vpack.c.bf16 %v414, %v414
      %v1058 = vpack.c.bf16 %v415, %v415
      %v1059 = vpack.c.bf16 %v416, %v416
      %v1060 = vpack.c.bf16 %v417, %v417
      %v1061 = vpack.c.bf16 %v418, %v418
      %v1062 = vpack.c.bf16 %v419, %v419
      %v1063 = vpack.c.bf16 %v420, %v420
      %v1064 = vpack.c.bf16 %v421, %v421
      %v1065 = vpack.c.bf16 %v422, %v422
      %v1066 = vpack.c.bf16 %v423, %v423
      %v1067 = vpack.c.bf16 %v424, %v424
      %v1068 = vpack.c.bf16 %v425, %v425
      %v1069 = vpack.c.bf16 %v426, %v426
      %v1070 = vpack.c.bf16 %v427, %v427
      %v1071 = vpack.c.bf16 %v428, %v428
      %v1072 = vpack.c.bf16 %v429, %v429
      %v1073 = vpack.c.bf16 %v430, %v430
      %v1074 = vpack.c.bf16 %v431, %v431
      %v1075 = vpack.c.bf16 %v432, %v432
      %v1076 = vpack.c.bf16 %v433, %v433
      %v1077 = vpack.c.bf16 %v434, %v434
      %v1078 = vpack.c.bf16 %v435, %v435
      %v1079 = vpack.c.bf16 %v436, %v436
      %v1080 = vpack.c.bf16 %v437, %v437
      %v1081 = vpack.c.bf16 %v438, %v438
      %v1082 = vpack.c.bf16 %v439, %v439
      %v1083 = vpack.c.bf16 %v440, %v440
      %v1084 = vpack.c.bf16 %v441, %v441
      %v1085 = vpack.c.bf16 %v442, %v442
      %v1086 = vpack.c.bf16 %v443, %v443
      %v1087 = vpack.c.bf16 %v444, %v444
      %v1088 = vpack.c.bf16 %v445, %v445
      %v1121 = vunpack.c.l.b16 %v1057
      %v1122 = vunpack.c.l.b16 %v1058
      %v1123 = vunpack.c.l.b16 %v1059
      %v1124 = vunpack.c.l.b16 %v1060
      %v1125 = vunpack.c.l.b16 %v1061
      %v1126 = vunpack.c.l.b16 %v1062
      %v1127 = vunpack.c.l.b16 %v1063
      %v1128 = vunpack.c.l.b16 %v1064
      %v1129 = vunpack.c.l.b16 %v1065
      %v1130 = vunpack.c.l.b16 %v1066
      %v1131 = vunpack.c.l.b16 %v1067
      %v1132 = vunpack.c.l.b16 %v1068
      %v1133 = vunpack.c.l.b16 %v1069
      %v1134 = vunpack.c.l.b16 %v1070
      %v1135 = vunpack.c.l.b16 %v1071
      %v1136 = vunpack.c.l.b16 %v1072
      %v1137 = vunpack.c.l.b16 %v1073
      %v1138 = vunpack.c.l.b16 %v1074
      %v1139 = vunpack.c.l.b16 %v1075
      %v1140 = vunpack.c.l.b16 %v1076
      %v1141 = vunpack.c.l.b16 %v1077
      %v1142 = vunpack.c.l.b16 %v1078
      %v1143 = vunpack.c.l.b16 %v1079
      %v1144 = vunpack.c.l.b16 %v1080
      %v1145 = vunpack.c.l.b16 %v1081
      %v1146 = vunpack.c.l.b16 %v1082
      %v1147 = vunpack.c.l.b16 %v1083
      %v1148 = vunpack.c.l.b16 %v1084
      %v1149 = vunpack.c.l.b16 %v1085
      %v1150 = vunpack.c.l.b16 %v1086
      %v1151 = vunpack.c.l.b16 %v1087
      %v1152 = vunpack.c.l.b16 %v1088
      %v1153 = vpack.c.b16 %v1122, %v1121
      %v1154 = vpack.c.b16 %v1124, %v1123
      %v1155 = vpack.c.b16 %v1126, %v1125
      %v1156 = vpack.c.b16 %v1128, %v1127
      %v1157 = vpack.c.b16 %v1130, %v1129
      %v1158 = vpack.c.b16 %v1132, %v1131
      %v1159 = vpack.c.b16 %v1134, %v1133
      %v1160 = vpack.c.b16 %v1136, %v1135
      %v1161 = vpack.c.b16 %v1138, %v1137
      %v1162 = vpack.c.b16 %v1140, %v1139
      %v1163 = vpack.c.b16 %v1142, %v1141
      %v1164 = vpack.c.b16 %v1144, %v1143
      %v1165 = vpack.c.b16 %v1146, %v1145
      %v1166 = vpack.c.b16 %v1148, %v1147
      %v1167 = vpack.c.b16 %v1150, %v1149
      %v1168 = vpack.c.b16 %v1152, %v1151
      %1169 = vrot.lane.b32.xlu0 %v1153, 64
      %v1170 = vpop.permute.xlu0 %1169
      %1171 = vrot.lane.b32.xlu0 %v1154, 64
      %v1172 = vpop.permute.xlu0 %1171
      %1173 = vrot.lane.b32.xlu0 %v1155, 64
      %v1174 = vpop.permute.xlu0 %1173
      %1175 = vrot.lane.b32.xlu0 %v1156, 64
      %v1176 = vpop.permute.xlu0 %1175
      %1177 = vrot.lane.b32.xlu0 %v1157, 64
      %v1178 = vpop.permute.xlu0 %1177
      %1179 = vrot.lane.b32.xlu0 %v1158, 64
      %v1180 = vpop.permute.xlu0 %1179
      %1181 = vrot.lane.b32.xlu0 %v1159, 64
      %v1182 = vpop.permute.xlu0 %1181
      %1183 = vrot.lane.b32.xlu0 %v1160, 64
      %v1184 = vpop.permute.xlu0 %1183
      %1185 = vrot.lane.b32.xlu0 %v1161, 64
      %v1186 = vpop.permute.xlu0 %1185
      %1187 = vrot.lane.b32.xlu0 %v1162, 64
      %v1188 = vpop.permute.xlu0 %1187
      %1189 = vrot.lane.b32.xlu0 %v1163, 64
      %v1190 = vpop.permute.xlu0 %1189
      %1191 = vrot.lane.b32.xlu0 %v1164, 64
      %v1192 = vpop.permute.xlu0 %1191
      %1193 = vrot.lane.b32.xlu0 %v1165, 64
      %v1194 = vpop.permute.xlu0 %1193
      %1195 = vrot.lane.b32.xlu0 %v1166, 64
      %v1196 = vpop.permute.xlu0 %1195
      %1197 = vrot.lane.b32.xlu0 %v1167, 64
      %v1198 = vpop.permute.xlu0 %1197
      %1199 = vrot.lane.b32.xlu0 %v1168, 64
      %v1200 = vpop.permute.xlu0 %1199
      %v1201 = vrot.slane %v1170, 4
      %v1202 = vrot.slane %v1172, 4
      %v1203 = vrot.slane %v1174, 4
      %v1204 = vrot.slane %v1176, 4
      %v1205 = vrot.slane %v1178, 4
      %v1206 = vrot.slane %v1180, 4
      %v1207 = vrot.slane %v1182, 4
      %v1208 = vrot.slane %v1184, 4
      %v1209 = vrot.slane %v1186, 4
      %v1210 = vrot.slane %v1188, 4
      %v1211 = vrot.slane %v1190, 4
      %v1212 = vrot.slane %v1192, 4
      %v1213 = vrot.slane %v1194, 4
      %v1214 = vrot.slane %v1196, 4
      %v1215 = vrot.slane %v1198, 4
      %v1216 = vrot.slane %v1200, 4
      %vm1217 = vcmask 523264
      %v1218 = vsel %vm1217, %v1201, %v1170
      %vm1219 = vcmask 1043456
      %v1220 = vsel %vm1219, %v1201, %v1202
      %v1221 = vsel %vm1217, %v1220, %v1172
      %v1222 = vsel %vm1219, %v1202, %v1203
      %v1223 = vsel %vm1217, %v1222, %v1174
      %v1224 = vsel %vm1219, %v1203, %v1204
      %v1225 = vsel %vm1217, %v1224, %v1176
      %v1226 = vsel %vm1219, %v1204, %v1205
      %v1227 = vsel %vm1217, %v1226, %v1178
      %v1228 = vsel %vm1219, %v1205, %v1206
      %v1229 = vsel %vm1217, %v1228, %v1180
      %v1230 = vsel %vm1219, %v1206, %v1207
      %v1231 = vsel %vm1217, %v1230, %v1182
      %v1232 = vsel %vm1219, %v1207, %v1208
      %v1233 = vsel %vm1217, %v1232, %v1184
      %v1234 = vsel %vm1219, %v1208, %v1209
      %v1235 = vsel %vm1217, %v1234, %v1186
      %v1236 = vsel %vm1219, %v1209, %v1210
      %v1237 = vsel %vm1217, %v1236, %v1188
      %v1238 = vsel %vm1219, %v1210, %v1211
      %v1239 = vsel %vm1217, %v1238, %v1190
      %v1240 = vsel %vm1219, %v1211, %v1212
      %v1241 = vsel %vm1217, %v1240, %v1192
      %v1242 = vsel %vm1219, %v1212, %v1213
      %v1243 = vsel %vm1217, %v1242, %v1194
      %v1244 = vsel %vm1219, %v1213, %v1214
      %v1245 = vsel %vm1217, %v1244, %v1196
      %v1246 = vsel %vm1219, %v1214, %v1215
      %v1247 = vsel %vm1217, %v1246, %v1198
      %v1248 = vsel %vm1219, %v1215, %v1216
      %v1249 = vsel %vm1217, %v1248, %v1200
      %vm1266 = vcmask 1043968
      %vm1267 = vcmask 1047556
      %vm1268 = vmor %vm1267, %vm1266
      %1269 = vst.msk [vmem:[#allocation2 + $0x80] sm:$0xff] %vm1268, %v1218
      %1270 = vst [vmem:[#allocation2 + $0x88] sm:$0xff] %v1221
      %1271 = vst [vmem:[#allocation2 + $0x90] sm:$0xff] %v1223
      %1272 = vst [vmem:[#allocation2 + $0x98] sm:$0xff] %v1225
      %1273 = vst [vmem:[#allocation2 + $0xa0] sm:$0xff] %v1227
      %1274 = vst [vmem:[#allocation2 + $0xa8] sm:$0xff] %v1229
      %1275 = vst [vmem:[#allocation2 + $0xb0] sm:$0xff] %v1231
      %1276 = vst [vmem:[#allocation2 + $0xb8] sm:$0xff] %v1233
      %1277 = vst [vmem:[#allocation2 + $0xc0] sm:$0xff] %v1235
      %1278 = vst [vmem:[#allocation2 + $0xc8] sm:$0xff] %v1237
      %1279 = vst [vmem:[#allocation2 + $0xd0] sm:$0xff] %v1239
      %1280 = vst [vmem:[#allocation2 + $0xd8] sm:$0xff] %v1241
      %1281 = vst [vmem:[#allocation2 + $0xe0] sm:$0xff] %v1243
      %1282 = vst [vmem:[#allocation2 + $0xe8] sm:$0xff] %v1245
      %1283 = vst [vmem:[#allocation2 + $0xf0] sm:$0xff] %v1247
      %1284 = vst [vmem:[#allocation2 + $0xf8] sm:$0xff] %v1249
      %v1285 = vld [vmem:[#allocation2 + $0x80] sm:$0xff]
      %v1286 = vld [vmem:[#allocation2 + $0x88] sm:$0xff]
      %v1287 = vld [vmem:[#allocation2 + $0x90] sm:$0xff]
      %v1288 = vld [vmem:[#allocation2 + $0x98] sm:$0xff]
      %v1289 = vld [vmem:[#allocation2 + $0xa0] sm:$0xff]
      %v1290 = vld [vmem:[#allocation2 + $0xa8] sm:$0xff]
      %v1291 = vld [vmem:[#allocation2 + $0xb0] sm:$0xff]
      %v1292 = vld [vmem:[#allocation2 + $0xb8] sm:$0xff]
      %v1293 = vld [vmem:[#allocation2 + $0xc0] sm:$0xff]
      %v1294 = vld [vmem:[#allocation2 + $0xc8] sm:$0xff]
      %v1295 = vld [vmem:[#allocation2 + $0xd0] sm:$0xff]
      %v1296 = vld [vmem:[#allocation2 + $0xd8] sm:$0xff]
      %v1297 = vld [vmem:[#allocation2 + $0xe0] sm:$0xff]
      %v1298 = vld [vmem:[#allocation2 + $0xe8] sm:$0xff]
      %v1299 = vld [vmem:[#allocation2 + $0xf0] sm:$0xff]
      %v1300 = vld [vmem:[#allocation2 + $0xf8] sm:$0xff]
      %v1301 = vunpack.c.l.bf16 %v1285
      %v1302 = vunpack.c.h.bf16 %v1285
      %v1303 = vunpack.c.l.bf16 %v1286
      %v1304 = vunpack.c.h.bf16 %v1286
      %v1305 = vunpack.c.l.bf16 %v1287
      %v1306 = vunpack.c.h.bf16 %v1287
      %v1307 = vunpack.c.l.bf16 %v1288
      %v1308 = vunpack.c.h.bf16 %v1288
      %v1309 = vunpack.c.l.bf16 %v1289
      %v1310 = vunpack.c.h.bf16 %v1289
      %v1311 = vunpack.c.l.bf16 %v1290
      %v1312 = vunpack.c.h.bf16 %v1290
      %v1313 = vunpack.c.l.bf16 %v1291
      %v1314 = vunpack.c.h.bf16 %v1291
      %v1315 = vunpack.c.l.bf16 %v1292
      %v1316 = vunpack.c.h.bf16 %v1292
      %v1317 = vunpack.c.l.bf16 %v1293
      %v1318 = vunpack.c.h.bf16 %v1293
      %v1319 = vunpack.c.l.bf16 %v1294
      %v1320 = vunpack.c.h.bf16 %v1294
      %v1321 = vunpack.c.l.bf16 %v1295
      %v1322 = vunpack.c.h.bf16 %v1295
      %v1323 = vunpack.c.l.bf16 %v1296
      %v1324 = vunpack.c.h.bf16 %v1296
      %v1325 = vunpack.c.l.bf16 %v1297
      %v1326 = vunpack.c.h.bf16 %v1297
      %v1327 = vunpack.c.l.bf16 %v1298
      %v1328 = vunpack.c.h.bf16 %v1298
      %v1329 = vunpack.c.l.bf16 %v1299
      %v1330 = vunpack.c.h.bf16 %v1299
      %v1331 = vunpack.c.l.bf16 %v1300
      %v1332 = vunpack.c.h.bf16 %v1300
      %vm1333 = vcmask 3072
      %1334 = vst.msk [vmem:[#allocation2] sm:$0xf] %vm1333, 0
      %1367 = vrot.lane.b32.xlu0 %v927, 127
      %v1368 = vpop.permute.xlu0 %1367
      %1369 = vrot.lane.b32.xlu0 %v928, 127
      %v1370 = vpop.permute.xlu0 %1369
      %1371 = vrot.lane.b32.xlu0 %v929, 127
      %v1372 = vpop.permute.xlu0 %1371
      %1373 = vrot.lane.b32.xlu0 %v930, 127
      %v1374 = vpop.permute.xlu0 %1373
      %1375 = vrot.lane.b32.xlu0 %v931, 127
      %v1376 = vpop.permute.xlu0 %1375
      %1377 = vrot.lane.b32.xlu0 %v932, 127
      %v1378 = vpop.permute.xlu0 %1377
      %1379 = vrot.lane.b32.xlu0 %v933, 127
      %v1380 = vpop.permute.xlu0 %1379
      %1381 = vrot.lane.b32.xlu0 %v934, 127
      %v1382 = vpop.permute.xlu0 %1381
      %1383 = vrot.lane.b32.xlu0 %v935, 127
      %v1384 = vpop.permute.xlu0 %1383
      %1385 = vrot.lane.b32.xlu0 %v936, 127
      %v1386 = vpop.permute.xlu0 %1385
      %1387 = vrot.lane.b32.xlu0 %v937, 127
      %v1388 = vpop.permute.xlu0 %1387
      %1389 = vrot.lane.b32.xlu0 %v938, 127
      %v1390 = vpop.permute.xlu0 %1389
      %1391 = vrot.lane.b32.xlu0 %v939, 127
      %v1392 = vpop.permute.xlu0 %1391
      %1393 = vrot.lane.b32.xlu0 %v940, 127
      %v1394 = vpop.permute.xlu0 %1393
      %1395 = vrot.lane.b32.xlu0 %v941, 127
      %v1396 = vpop.permute.xlu0 %1395
      %1397 = vrot.lane.b32.xlu0 %v942, 127
      %v1398 = vpop.permute.xlu0 %1397
      %1399 = vrot.lane.b32.xlu0 %v943, 127
      %v1400 = vpop.permute.xlu0 %1399
      %1401 = vrot.lane.b32.xlu0 %v944, 127
      %v1402 = vpop.permute.xlu0 %1401
      %1403 = vrot.lane.b32.xlu0 %v945, 127
      %v1404 = vpop.permute.xlu0 %1403
      %1405 = vrot.lane.b32.xlu0 %v946, 127
      %v1406 = vpop.permute.xlu0 %1405
      %1407 = vrot.lane.b32.xlu0 %v947, 127
      %v1408 = vpop.permute.xlu0 %1407
      %1409 = vrot.lane.b32.xlu0 %v948, 127
      %v1410 = vpop.permute.xlu0 %1409
      %1411 = vrot.lane.b32.xlu0 %v949, 127
      %v1412 = vpop.permute.xlu0 %1411
      %1413 = vrot.lane.b32.xlu0 %v950, 127
      %v1414 = vpop.permute.xlu0 %1413
      %1415 = vrot.lane.b32.xlu0 %v951, 127
      %v1416 = vpop.permute.xlu0 %1415
      %1417 = vrot.lane.b32.xlu0 %v952, 127
      %v1418 = vpop.permute.xlu0 %1417
      %1419 = vrot.lane.b32.xlu0 %v953, 127
      %v1420 = vpop.permute.xlu0 %1419
      %1421 = vrot.lane.b32.xlu0 %v954, 127
      %v1422 = vpop.permute.xlu0 %1421
      %1423 = vrot.lane.b32.xlu0 %v955, 127
      %v1424 = vpop.permute.xlu0 %1423
      %1425 = vrot.lane.b32.xlu0 %v956, 127
      %v1426 = vpop.permute.xlu0 %1425
      %1427 = vrot.lane.b32.xlu0 %v957, 127
      %v1428 = vpop.permute.xlu0 %1427
      %1429 = vrot.lane.b32.xlu0 %v958, 127
      %v1430 = vpop.permute.xlu0 %1429
      %vm1431 = vcmask 1039360
      %v1432 = vsel %vm1431, %v1368, %v1370
      %v1433 = vsel %vm1431, %v1370, %v1372
      %v1434 = vsel %vm1431, %v1372, %v1374
      %v1435 = vsel %vm1431, %v1374, %v1376
      %v1436 = vsel %vm1431, %v1376, %v1378
      %v1437 = vsel %vm1431, %v1378, %v1380
      %v1438 = vsel %vm1431, %v1380, %v1382
      %v1439 = vsel %vm1431, %v1382, %v1384
      %v1440 = vsel %vm1431, %v1384, %v1386
      %v1441 = vsel %vm1431, %v1386, %v1388
      %v1442 = vsel %vm1431, %v1388, %v1390
      %v1443 = vsel %vm1431, %v1390, %v1392
      %v1444 = vsel %vm1431, %v1392, %v1394
      %v1445 = vsel %vm1431, %v1394, %v1396
      %v1446 = vsel %vm1431, %v1396, %v1398
      %v1447 = vsel %vm1431, %v1398, %v1400
      %v1448 = vsel %vm1431, %v1400, %v1402
      %v1449 = vsel %vm1431, %v1402, %v1404
      %v1450 = vsel %vm1431, %v1404, %v1406
      %v1451 = vsel %vm1431, %v1406, %v1408
      %v1452 = vsel %vm1431, %v1408, %v1410
      %v1453 = vsel %vm1431, %v1410, %v1412
      %v1454 = vsel %vm1431, %v1412, %v1414
      %v1455 = vsel %vm1431, %v1414, %v1416
      %v1456 = vsel %vm1431, %v1416, %v1418
      %v1457 = vsel %vm1431, %v1418, %v1420
      %v1458 = vsel %vm1431, %v1420, %v1422
      %v1459 = vsel %vm1431, %v1422, %v1424
      %v1460 = vsel %vm1431, %v1424, %v1426
      %v1461 = vsel %vm1431, %v1426, %v1428
      %v1462 = vsel %vm1431, %v1428, %v1430
      %v1495 = vmul.f32 %v1301, %v1432
      %v1496 = vmul.f32 %v1302, %v1433
      %v1497 = vmul.f32 %v1303, %v1434
      %v1498 = vmul.f32 %v1304, %v1435
      %v1499 = vmul.f32 %v1305, %v1436
      %v1500 = vmul.f32 %v1306, %v1437
      %v1501 = vmul.f32 %v1307, %v1438
      %v1502 = vmul.f32 %v1308, %v1439
      %v1503 = vmul.f32 %v1309, %v1440
      %v1504 = vmul.f32 %v1310, %v1441
      %v1505 = vmul.f32 %v1311, %v1442
      %v1506 = vmul.f32 %v1312, %v1443
      %v1507 = vmul.f32 %v1313, %v1444
      %v1508 = vmul.f32 %v1314, %v1445
      %v1509 = vmul.f32 %v1315, %v1446
      %v1510 = vmul.f32 %v1316, %v1447
      %v1511 = vmul.f32 %v1317, %v1448
      %v1512 = vmul.f32 %v1318, %v1449
      %v1513 = vmul.f32 %v1319, %v1450
      %v1514 = vmul.f32 %v1320, %v1451
      %v1515 = vmul.f32 %v1321, %v1452
      %v1516 = vmul.f32 %v1322, %v1453
      %v1517 = vmul.f32 %v1323, %v1454
      %v1518 = vmul.f32 %v1324, %v1455
      %v1519 = vmul.f32 %v1325, %v1456
      %v1520 = vmul.f32 %v1326, %v1457
      %v1521 = vmul.f32 %v1327, %v1458
      %v1522 = vmul.f32 %v1328, %v1459
      %v1523 = vmul.f32 %v1329, %v1460
      %v1524 = vmul.f32 %v1330, %v1461
      %v1525 = vmul.f32 %v1331, %v1462
      %v1526 = vmul.f32 %v1332, %v1430
      %v1527 = vpack.c.bf16 %v1495, %v1495
      %v1528 = vpack.c.bf16 %v1496, %v1496
      %v1529 = vpack.c.bf16 %v1497, %v1497
      %v1530 = vpack.c.bf16 %v1498, %v1498
      %v1531 = vpack.c.bf16 %v1499, %v1499
      %v1532 = vpack.c.bf16 %v1500, %v1500
      %v1533 = vpack.c.bf16 %v1501, %v1501
      %v1534 = vpack.c.bf16 %v1502, %v1502
      %v1535 = vpack.c.bf16 %v1503, %v1503
      %v1536 = vpack.c.bf16 %v1504, %v1504
      %v1537 = vpack.c.bf16 %v1505, %v1505
      %v1538 = vpack.c.bf16 %v1506, %v1506
      %v1539 = vpack.c.bf16 %v1507, %v1507
      %v1540 = vpack.c.bf16 %v1508, %v1508
      %v1541 = vpack.c.bf16 %v1509, %v1509
      %v1542 = vpack.c.bf16 %v1510, %v1510
      %v1543 = vpack.c.bf16 %v1511, %v1511
      %v1544 = vpack.c.bf16 %v1512, %v1512
      %v1545 = vpack.c.bf16 %v1513, %v1513
      %v1546 = vpack.c.bf16 %v1514, %v1514
      %v1547 = vpack.c.bf16 %v1515, %v1515
      %v1548 = vpack.c.bf16 %v1516, %v1516
      %v1549 = vpack.c.bf16 %v1517, %v1517
      %v1550 = vpack.c.bf16 %v1518, %v1518
      %v1551 = vpack.c.bf16 %v1519, %v1519
      %v1552 = vpack.c.bf16 %v1520, %v1520
      %v1553 = vpack.c.bf16 %v1521, %v1521
      %v1554 = vpack.c.bf16 %v1522, %v1522
      %v1555 = vpack.c.bf16 %v1523, %v1523
      %v1556 = vpack.c.bf16 %v1524, %v1524
      %v1557 = vpack.c.bf16 %v1525, %v1525
      %v1558 = vpack.c.bf16 %v1526, %v1526
      %v1591 = vunpack.c.l.b16 %v1527
      %v1592 = vunpack.c.l.b16 %v1528
      %v1593 = vunpack.c.l.b16 %v1529
      %v1594 = vunpack.c.l.b16 %v1530
      %v1595 = vunpack.c.l.b16 %v1531
      %v1596 = vunpack.c.l.b16 %v1532
      %v1597 = vunpack.c.l.b16 %v1533
      %v1598 = vunpack.c.l.b16 %v1534
      %v1599 = vunpack.c.l.b16 %v1535
      %v1600 = vunpack.c.l.b16 %v1536
      %v1601 = vunpack.c.l.b16 %v1537
      %v1602 = vunpack.c.l.b16 %v1538
      %v1603 = vunpack.c.l.b16 %v1539
      %v1604 = vunpack.c.l.b16 %v1540
      %v1605 = vunpack.c.l.b16 %v1541
      %v1606 = vunpack.c.l.b16 %v1542
      %v1607 = vunpack.c.l.b16 %v1543
      %v1608 = vunpack.c.l.b16 %v1544
      %v1609 = vunpack.c.l.b16 %v1545
      %v1610 = vunpack.c.l.b16 %v1546
      %v1611 = vunpack.c.l.b16 %v1547
      %v1612 = vunpack.c.l.b16 %v1548
      %v1613 = vunpack.c.l.b16 %v1549
      %v1614 = vunpack.c.l.b16 %v1550
      %v1615 = vunpack.c.l.b16 %v1551
      %v1616 = vunpack.c.l.b16 %v1552
      %v1617 = vunpack.c.l.b16 %v1553
      %v1618 = vunpack.c.l.b16 %v1554
      %v1619 = vunpack.c.l.b16 %v1555
      %v1620 = vunpack.c.l.b16 %v1556
      %v1621 = vunpack.c.l.b16 %v1557
      %v1622 = vunpack.c.l.b16 %v1558
      %v1623 = vpack.c.b16 %v1592, %v1591
      %v1624 = vpack.c.b16 %v1594, %v1593
      %v1625 = vpack.c.b16 %v1596, %v1595
      %v1626 = vpack.c.b16 %v1598, %v1597
      %v1627 = vpack.c.b16 %v1600, %v1599
      %v1628 = vpack.c.b16 %v1602, %v1601
      %v1629 = vpack.c.b16 %v1604, %v1603
      %v1630 = vpack.c.b16 %v1606, %v1605
      %v1631 = vpack.c.b16 %v1608, %v1607
      %v1632 = vpack.c.b16 %v1610, %v1609
      %v1633 = vpack.c.b16 %v1612, %v1611
      %v1634 = vpack.c.b16 %v1614, %v1613
      %v1635 = vpack.c.b16 %v1616, %v1615
      %v1636 = vpack.c.b16 %v1618, %v1617
      %v1637 = vpack.c.b16 %v1620, %v1619
      %v1638 = vpack.c.b16 %v1622, %v1621
      %1639 = vrot.lane.b32.xlu0 %v1623, 1
      %v1640 = vpop.permute.xlu0 %1639
      %1641 = vrot.lane.b32.xlu0 %v1624, 1
      %v1642 = vpop.permute.xlu0 %1641
      %1643 = vrot.lane.b32.xlu0 %v1625, 1
      %v1644 = vpop.permute.xlu0 %1643
      %1645 = vrot.lane.b32.xlu0 %v1626, 1
      %v1646 = vpop.permute.xlu0 %1645
      %1647 = vrot.lane.b32.xlu0 %v1627, 1
      %v1648 = vpop.permute.xlu0 %1647
      %1649 = vrot.lane.b32.xlu0 %v1628, 1
      %v1650 = vpop.permute.xlu0 %1649
      %1651 = vrot.lane.b32.xlu0 %v1629, 1
      %v1652 = vpop.permute.xlu0 %1651
      %1653 = vrot.lane.b32.xlu0 %v1630, 1
      %v1654 = vpop.permute.xlu0 %1653
      %1655 = vrot.lane.b32.xlu0 %v1631, 1
      %v1656 = vpop.permute.xlu0 %1655
      %1657 = vrot.lane.b32.xlu0 %v1632, 1
      %v1658 = vpop.permute.xlu0 %1657
      %1659 = vrot.lane.b32.xlu0 %v1633, 1
      %v1660 = vpop.permute.xlu0 %1659
      %1661 = vrot.lane.b32.xlu0 %v1634, 1
      %v1662 = vpop.permute.xlu0 %1661
      %1663 = vrot.lane.b32.xlu0 %v1635, 1
      %v1664 = vpop.permute.xlu0 %1663
      %1665 = vrot.lane.b32.xlu0 %v1636, 1
      %v1666 = vpop.permute.xlu0 %1665
      %1667 = vrot.lane.b32.xlu0 %v1637, 1
      %v1668 = vpop.permute.xlu0 %1667
      %1669 = vrot.lane.b32.xlu0 %v1638, 1
      %v1670 = vpop.permute.xlu0 %1669
      %v1671 = vrot.slane %v1640, 4
      %v1672 = vrot.slane %v1642, 4
      %v1673 = vrot.slane %v1644, 4
      %v1674 = vrot.slane %v1646, 4
      %v1675 = vrot.slane %v1648, 4
      %v1676 = vrot.slane %v1650, 4
      %v1677 = vrot.slane %v1652, 4
      %v1678 = vrot.slane %v1654, 4
      %v1679 = vrot.slane %v1656, 4
      %v1680 = vrot.slane %v1658, 4
      %v1681 = vrot.slane %v1660, 4
      %v1682 = vrot.slane %v1662, 4
      %v1683 = vrot.slane %v1664, 4
      %v1684 = vrot.slane %v1666, 4
      %v1685 = vrot.slane %v1668, 4
      %v1686 = vrot.slane %v1670, 4
      %vm1687 = vcmask 7168
      %v1688 = vsel %vm1687, %v1671, %v1640
      %v1689 = vsel %vm1219, %v1671, %v1672
      %v1690 = vsel %vm1687, %v1689, %v1642
      %v1691 = vsel %vm1219, %v1672, %v1673
      %v1692 = vsel %vm1687, %v1691, %v1644
      %v1693 = vsel %vm1219, %v1673, %v1674
      %v1694 = vsel %vm1687, %v1693, %v1646
      %v1695 = vsel %vm1219, %v1674, %v1675
      %v1696 = vsel %vm1687, %v1695, %v1648
      %v1697 = vsel %vm1219, %v1675, %v1676
      %v1698 = vsel %vm1687, %v1697, %v1650
      %v1699 = vsel %vm1219, %v1676, %v1677
      %v1700 = vsel %vm1687, %v1699, %v1652
      %v1701 = vsel %vm1219, %v1677, %v1678
      %v1702 = vsel %vm1687, %v1701, %v1654
      %v1703 = vsel %vm1219, %v1678, %v1679
      %v1704 = vsel %vm1687, %v1703, %v1656
      %v1705 = vsel %vm1219, %v1679, %v1680
      %v1706 = vsel %vm1687, %v1705, %v1658
      %v1707 = vsel %vm1219, %v1680, %v1681
      %v1708 = vsel %vm1687, %v1707, %v1660
      %v1709 = vsel %vm1219, %v1681, %v1682
      %v1710 = vsel %vm1687, %v1709, %v1662
      %v1711 = vsel %vm1219, %v1682, %v1683
      %v1712 = vsel %vm1687, %v1711, %v1664
      %v1713 = vsel %vm1219, %v1683, %v1684
      %v1714 = vsel %vm1687, %v1713, %v1666
      %v1715 = vsel %vm1219, %v1684, %v1685
      %v1716 = vsel %vm1687, %v1715, %v1668
      %v1717 = vsel %vm1219, %v1685, %v1686
      %v1718 = vsel %vm1687, %v1717, %v1670
      %vm1735 = vcmask 1043464
      %vm1736 = vmor %vm1267, %vm1735
      %1737 = vst.msk [vmem:[#allocation2] sm:$0xff] %vm1736, %v1688
      %1738 = vst [vmem:[#allocation2 + $0x8] sm:$0xff] %v1690
      %1739 = vst [vmem:[#allocation2 + $0x10] sm:$0xff] %v1692
      %1740 = vst [vmem:[#allocation2 + $0x18] sm:$0xff] %v1694
      %1741 = vst [vmem:[#allocation2 + $0x20] sm:$0xff] %v1696
      %1742 = vst [vmem:[#allocation2 + $0x28] sm:$0xff] %v1698
      %1743 = vst [vmem:[#allocation2 + $0x30] sm:$0xff] %v1700
      %1744 = vst [vmem:[#allocation2 + $0x38] sm:$0xff] %v1702
      %1745 = vst [vmem:[#allocation2 + $0x40] sm:$0xff] %v1704
      %1746 = vst [vmem:[#allocation2 + $0x48] sm:$0xff] %v1706
      %1747 = vst [vmem:[#allocation2 + $0x50] sm:$0xff] %v1708
      %1748 = vst [vmem:[#allocation2 + $0x58] sm:$0xff] %v1710
      %1749 = vst [vmem:[#allocation2 + $0x60] sm:$0xff] %v1712
      %1750 = vst [vmem:[#allocation2 + $0x68] sm:$0xff] %v1714
      %1751 = vst [vmem:[#allocation2 + $0x70] sm:$0xff] %v1716
      %1752 = vst [vmem:[#allocation2 + $0x78] sm:$0xff] %v1718
      %1785 = vrot.lane.b32.xlu0 %v1023, 1
      %v1786 = vpop.permute.xlu0 %1785
      %1787 = vrot.lane.b32.xlu0 %v1024, 1
      %v1788 = vpop.permute.xlu0 %1787
      %1789 = vrot.lane.b32.xlu0 %v1025, 1
      %v1790 = vpop.permute.xlu0 %1789
      %1791 = vrot.lane.b32.xlu0 %v1026, 1
      %v1792 = vpop.permute.xlu0 %1791
      %1793 = vrot.lane.b32.xlu0 %v1027, 1
      %v1794 = vpop.permute.xlu0 %1793
      %1795 = vrot.lane.b32.xlu0 %v1028, 1
      %v1796 = vpop.permute.xlu0 %1795
      %1797 = vrot.lane.b32.xlu0 %v1029, 1
      %v1798 = vpop.permute.xlu0 %1797
      %1799 = vrot.lane.b32.xlu0 %v1030, 1
      %v1800 = vpop.permute.xlu0 %1799
      %1801 = vrot.lane.b32.xlu0 %v1031, 1
      %v1802 = vpop.permute.xlu0 %1801
      %1803 = vrot.lane.b32.xlu0 %v1032, 1
      %v1804 = vpop.permute.xlu0 %1803
      %1805 = vrot.lane.b32.xlu0 %v1033, 1
      %v1806 = vpop.permute.xlu0 %1805
      %1807 = vrot.lane.b32.xlu0 %v1034, 1
      %v1808 = vpop.permute.xlu0 %1807
      %1809 = vrot.lane.b32.xlu0 %v1035, 1
      %v1810 = vpop.permute.xlu0 %1809
      %1811 = vrot.lane.b32.xlu0 %v1036, 1
      %v1812 = vpop.permute.xlu0 %1811
      %1813 = vrot.lane.b32.xlu0 %v1037, 1
      %v1814 = vpop.permute.xlu0 %1813
      %1815 = vrot.lane.b32.xlu0 %v1038, 1
      %v1816 = vpop.permute.xlu0 %1815
      %1817 = vrot.lane.b32.xlu0 %v1039, 1
      %v1818 = vpop.permute.xlu0 %1817
      %1819 = vrot.lane.b32.xlu0 %v1040, 1
      %v1820 = vpop.permute.xlu0 %1819
      %1821 = vrot.lane.b32.xlu0 %v1041, 1
      %v1822 = vpop.permute.xlu0 %1821
      %1823 = vrot.lane.b32.xlu0 %v1042, 1
      %v1824 = vpop.permute.xlu0 %1823
      %1825 = vrot.lane.b32.xlu0 %v1043, 1
      %v1826 = vpop.permute.xlu0 %1825
      %1827 = vrot.lane.b32.xlu0 %v1044, 1
      %v1828 = vpop.permute.xlu0 %1827
      %1829 = vrot.lane.b32.xlu0 %v1045, 1
      %v1830 = vpop.permute.xlu0 %1829
      %1831 = vrot.lane.b32.xlu0 %v1046, 1
      %v1832 = vpop.permute.xlu0 %1831
      %1833 = vrot.lane.b32.xlu0 %v1047, 1
      %v1834 = vpop.permute.xlu0 %1833
      %1835 = vrot.lane.b32.xlu0 %v1048, 1
      %v1836 = vpop.permute.xlu0 %1835
      %1837 = vrot.lane.b32.xlu0 %v1049, 1
      %v1838 = vpop.permute.xlu0 %1837
      %1839 = vrot.lane.b32.xlu0 %v1050, 1
      %v1840 = vpop.permute.xlu0 %1839
      %1841 = vrot.lane.b32.xlu0 %v1051, 1
      %v1842 = vpop.permute.xlu0 %1841
      %1843 = vrot.lane.b32.xlu0 %v1052, 1
      %v1844 = vpop.permute.xlu0 %1843
      %1845 = vrot.lane.b32.xlu0 %v1053, 1
      %v1846 = vpop.permute.xlu0 %1845
      %1847 = vrot.lane.b32.xlu0 %v1054, 1
      %v1848 = vpop.permute.xlu0 %1847
      %vm1849 = vcmask 7168
      %v1850 = vsel %vm1849, %v1786, %v1788
      %v1851 = vsel %vm1849, %v1788, %v1790
      %v1852 = vsel %vm1849, %v1790, %v1792
      %v1853 = vsel %vm1849, %v1792, %v1794
      %v1854 = vsel %vm1849, %v1794, %v1796
      %v1855 = vsel %vm1849, %v1796, %v1798
      %v1856 = vsel %vm1849, %v1798, %v1800
      %v1857 = vsel %vm1849, %v1800, %v1802
      %v1858 = vsel %vm1849, %v1802, %v1804
      %v1859 = vsel %vm1849, %v1804, %v1806
      %v1860 = vsel %vm1849, %v1806, %v1808
      %v1861 = vsel %vm1849, %v1808, %v1810
      %v1862 = vsel %vm1849, %v1810, %v1812
      %v1863 = vsel %vm1849, %v1812, %v1814
      %v1864 = vsel %vm1849, %v1814, %v1816
      %v1865 = vsel %vm1849, %v1816, %v1818
      %v1866 = vsel %vm1849, %v1818, %v1820
      %v1867 = vsel %vm1849, %v1820, %v1822
      %v1868 = vsel %vm1849, %v1822, %v1824
      %v1869 = vsel %vm1849, %v1824, %v1826
      %v1870 = vsel %vm1849, %v1826, %v1828
      %v1871 = vsel %vm1849, %v1828, %v1830
      %v1872 = vsel %vm1849, %v1830, %v1832
      %v1873 = vsel %vm1849, %v1832, %v1834
      %v1874 = vsel %vm1849, %v1834, %v1836
      %v1875 = vsel %vm1849, %v1836, %v1838
      %v1876 = vsel %vm1849, %v1838, %v1840
      %v1877 = vsel %vm1849, %v1840, %v1842
      %v1878 = vsel %vm1849, %v1842, %v1844
      %v1879 = vsel %vm1849, %v1844, %v1846
      %v1880 = vsel %vm1849, %v1846, %v1848
      %v1913 = vmul.f32 %v1301, %v1786
      %v1914 = vmul.f32 %v1302, %v1850
      %v1915 = vmul.f32 %v1303, %v1851
      %v1916 = vmul.f32 %v1304, %v1852
      %v1917 = vmul.f32 %v1305, %v1853
      %v1918 = vmul.f32 %v1306, %v1854
      %v1919 = vmul.f32 %v1307, %v1855
      %v1920 = vmul.f32 %v1308, %v1856
      %v1921 = vmul.f32 %v1309, %v1857
      %v1922 = vmul.f32 %v1310, %v1858
      %v1923 = vmul.f32 %v1311, %v1859
      %v1924 = vmul.f32 %v1312, %v1860
      %v1925 = vmul.f32 %v1313, %v1861
      %v1926 = vmul.f32 %v1314, %v1862
      %v1927 = vmul.f32 %v1315, %v1863
      %v1928 = vmul.f32 %v1316, %v1864
      %v1929 = vmul.f32 %v1317, %v1865
      %v1930 = vmul.f32 %v1318, %v1866
      %v1931 = vmul.f32 %v1319, %v1867
      %v1932 = vmul.f32 %v1320, %v1868
      %v1933 = vmul.f32 %v1321, %v1869
      %v1934 = vmul.f32 %v1322, %v1870
      %v1935 = vmul.f32 %v1323, %v1871
      %v1936 = vmul.f32 %v1324, %v1872
      %v1937 = vmul.f32 %v1325, %v1873
      %v1938 = vmul.f32 %v1326, %v1874
      %v1939 = vmul.f32 %v1327, %v1875
      %v1940 = vmul.f32 %v1328, %v1876
      %v1941 = vmul.f32 %v1329, %v1877
      %v1942 = vmul.f32 %v1330, %v1878
      %v1943 = vmul.f32 %v1331, %v1879
      %v1944 = vmul.f32 %v1332, %v1880
      %v1945 = vpack.c.bf16 %v1913, %v1913
      %v1946 = vpack.c.bf16 %v1914, %v1914
      %v1947 = vpack.c.bf16 %v1915, %v1915
      %v1948 = vpack.c.bf16 %v1916, %v1916
      %v1949 = vpack.c.bf16 %v1917, %v1917
      %v1950 = vpack.c.bf16 %v1918, %v1918
      %v1951 = vpack.c.bf16 %v1919, %v1919
      %v1952 = vpack.c.bf16 %v1920, %v1920
      %v1953 = vpack.c.bf16 %v1921, %v1921
      %v1954 = vpack.c.bf16 %v1922, %v1922
      %v1955 = vpack.c.bf16 %v1923, %v1923
      %v1956 = vpack.c.bf16 %v1924, %v1924
      %v1957 = vpack.c.bf16 %v1925, %v1925
      %v1958 = vpack.c.bf16 %v1926, %v1926
      %v1959 = vpack.c.bf16 %v1927, %v1927
      %v1960 = vpack.c.bf16 %v1928, %v1928
      %v1961 = vpack.c.bf16 %v1929, %v1929
      %v1962 = vpack.c.bf16 %v1930, %v1930
      %v1963 = vpack.c.bf16 %v1931, %v1931
      %v1964 = vpack.c.bf16 %v1932, %v1932
      %v1965 = vpack.c.bf16 %v1933, %v1933
      %v1966 = vpack.c.bf16 %v1934, %v1934
      %v1967 = vpack.c.bf16 %v1935, %v1935
      %v1968 = vpack.c.bf16 %v1936, %v1936
      %v1969 = vpack.c.bf16 %v1937, %v1937
      %v1970 = vpack.c.bf16 %v1938, %v1938
      %v1971 = vpack.c.bf16 %v1939, %v1939
      %v1972 = vpack.c.bf16 %v1940, %v1940
      %v1973 = vpack.c.bf16 %v1941, %v1941
      %v1974 = vpack.c.bf16 %v1942, %v1942
      %v1975 = vpack.c.bf16 %v1943, %v1943
      %v1976 = vpack.c.bf16 %v1944, %v1944
      %v2009 = vunpack.c.l.b16 %v1945
      %v2010 = vunpack.c.l.b16 %v1946
      %v2011 = vunpack.c.l.b16 %v1947
      %v2012 = vunpack.c.l.b16 %v1948
      %v2013 = vunpack.c.l.b16 %v1949
      %v2014 = vunpack.c.l.b16 %v1950
      %v2015 = vunpack.c.l.b16 %v1951
      %v2016 = vunpack.c.l.b16 %v1952
      %v2017 = vunpack.c.l.b16 %v1953
      %v2018 = vunpack.c.l.b16 %v1954
      %v2019 = vunpack.c.l.b16 %v1955
      %v2020 = vunpack.c.l.b16 %v1956
      %v2021 = vunpack.c.l.b16 %v1957
      %v2022 = vunpack.c.l.b16 %v1958
      %v2023 = vunpack.c.l.b16 %v1959
      %v2024 = vunpack.c.l.b16 %v1960
      %v2025 = vunpack.c.l.b16 %v1961
      %v2026 = vunpack.c.l.b16 %v1962
      %v2027 = vunpack.c.l.b16 %v1963
      %v2028 = vunpack.c.l.b16 %v1964
      %v2029 = vunpack.c.l.b16 %v1965
      %v2030 = vunpack.c.l.b16 %v1966
      %v2031 = vunpack.c.l.b16 %v1967
      %v2032 = vunpack.c.l.b16 %v1968
      %v2033 = vunpack.c.l.b16 %v1969
      %v2034 = vunpack.c.l.b16 %v1970
      %v2035 = vunpack.c.l.b16 %v1971
      %v2036 = vunpack.c.l.b16 %v1972
      %v2037 = vunpack.c.l.b16 %v1973
      %v2038 = vunpack.c.l.b16 %v1974
      %v2039 = vunpack.c.l.b16 %v1975
      %v2040 = vunpack.c.l.b16 %v1976
      %v2041 = vpack.c.b16 %v2010, %v2009
      %v2042 = vpack.c.b16 %v2012, %v2011
      %v2043 = vpack.c.b16 %v2014, %v2013
      %v2044 = vpack.c.b16 %v2016, %v2015
      %v2045 = vpack.c.b16 %v2018, %v2017
      %v2046 = vpack.c.b16 %v2020, %v2019
      %v2047 = vpack.c.b16 %v2022, %v2021
      %v2048 = vpack.c.b16 %v2024, %v2023
      %v2049 = vpack.c.b16 %v2026, %v2025
      %v2050 = vpack.c.b16 %v2028, %v2027
      %v2051 = vpack.c.b16 %v2030, %v2029
      %v2052 = vpack.c.b16 %v2032, %v2031
      %v2053 = vpack.c.b16 %v2034, %v2033
      %v2054 = vpack.c.b16 %v2036, %v2035
      %v2055 = vpack.c.b16 %v2038, %v2037
      %v2056 = vpack.c.b16 %v2040, %v2039
      %2057 = vrot.lane.b32.xlu0 %v2041, 127
      %v2058 = vpop.permute.xlu0 %2057
      %2059 = vrot.lane.b32.xlu0 %v2042, 127
      %v2060 = vpop.permute.xlu0 %2059
      %2061 = vrot.lane.b32.xlu0 %v2043, 127
      %v2062 = vpop.permute.xlu0 %2061
      %2063 = vrot.lane.b32.xlu0 %v2044, 127
      %v2064 = vpop.permute.xlu0 %2063
      %2065 = vrot.lane.b32.xlu0 %v2045, 127
      %v2066 = vpop.permute.xlu0 %2065
      %2067 = vrot.lane.b32.xlu0 %v2046, 127
      %v2068 = vpop.permute.xlu0 %2067
      %2069 = vrot.lane.b32.xlu0 %v2047, 127
      %v2070 = vpop.permute.xlu0 %2069
      %2071 = vrot.lane.b32.xlu0 %v2048, 127
      %v2072 = vpop.permute.xlu0 %2071
      %2073 = vrot.lane.b32.xlu0 %v2049, 127
      %v2074 = vpop.permute.xlu0 %2073
      %2075 = vrot.lane.b32.xlu0 %v2050, 127
      %v2076 = vpop.permute.xlu0 %2075
      %2077 = vrot.lane.b32.xlu0 %v2051, 127
      %v2078 = vpop.permute.xlu0 %2077
      %2079 = vrot.lane.b32.xlu0 %v2052, 127
      %v2080 = vpop.permute.xlu0 %2079
      %2081 = vrot.lane.b32.xlu0 %v2053, 127
      %v2082 = vpop.permute.xlu0 %2081
      %2083 = vrot.lane.b32.xlu0 %v2054, 127
      %v2084 = vpop.permute.xlu0 %2083
      %2085 = vrot.lane.b32.xlu0 %v2055, 127
      %v2086 = vpop.permute.xlu0 %2085
      %2087 = vrot.lane.b32.xlu0 %v2056, 127
      %v2088 = vpop.permute.xlu0 %2087
      %v2089 = vrot.slane %v2058, 4
      %v2090 = vrot.slane %v2060, 4
      %v2091 = vrot.slane %v2062, 4
      %v2092 = vrot.slane %v2064, 4
      %v2093 = vrot.slane %v2066, 4
      %v2094 = vrot.slane %v2068, 4
      %v2095 = vrot.slane %v2070, 4
      %v2096 = vrot.slane %v2072, 4
      %v2097 = vrot.slane %v2074, 4
      %v2098 = vrot.slane %v2076, 4
      %v2099 = vrot.slane %v2078, 4
      %v2100 = vrot.slane %v2080, 4
      %v2101 = vrot.slane %v2082, 4
      %v2102 = vrot.slane %v2084, 4
      %v2103 = vrot.slane %v2086, 4
      %v2104 = vrot.slane %v2088, 4
      %v2105 = vsel %vm1219, %v2089, %v2090
      %vm2106 = vcmask 1039360
      %v2107 = vsel %vm2106, %v2058, %v2105
      %v2108 = vsel %vm1219, %v2090, %v2091
      %v2109 = vsel %vm2106, %v2060, %v2108
      %v2110 = vsel %vm1219, %v2091, %v2092
      %v2111 = vsel %vm2106, %v2062, %v2110
      %v2112 = vsel %vm1219, %v2092, %v2093
      %v2113 = vsel %vm2106, %v2064, %v2112
      %v2114 = vsel %vm1219, %v2093, %v2094
      %v2115 = vsel %vm2106, %v2066, %v2114
      %v2116 = vsel %vm1219, %v2094, %v2095
      %v2117 = vsel %vm2106, %v2068, %v2116
      %v2118 = vsel %vm1219, %v2095, %v2096
      %v2119 = vsel %vm2106, %v2070, %v2118
      %v2120 = vsel %vm1219, %v2096, %v2097
      %v2121 = vsel %vm2106, %v2072, %v2120
      %v2122 = vsel %vm1219, %v2097, %v2098
      %v2123 = vsel %vm2106, %v2074, %v2122
      %v2124 = vsel %vm1219, %v2098, %v2099
      %v2125 = vsel %vm2106, %v2076, %v2124
      %v2126 = vsel %vm1219, %v2099, %v2100
      %v2127 = vsel %vm2106, %v2078, %v2126
      %v2128 = vsel %vm1219, %v2100, %v2101
      %v2129 = vsel %vm2106, %v2080, %v2128
      %v2130 = vsel %vm1219, %v2101, %v2102
      %v2131 = vsel %vm2106, %v2082, %v2130
      %v2132 = vsel %vm1219, %v2102, %v2103
      %v2133 = vsel %vm2106, %v2084, %v2132
      %v2134 = vsel %vm1219, %v2103, %v2104
      %v2135 = vsel %vm2106, %v2086, %v2134
      %v2136 = vsel %vm2106, %v2088, %v2104
      %2153 = vst [vmem:[#allocation2 + $0x100] sm:$0xff] %v2107
      %2154 = vst [vmem:[#allocation2 + $0x108] sm:$0xff] %v2109
      %2155 = vst [vmem:[#allocation2 + $0x110] sm:$0xff] %v2111
      %2156 = vst [vmem:[#allocation2 + $0x118] sm:$0xff] %v2113
      %2157 = vst [vmem:[#allocation2 + $0x120] sm:$0xff] %v2115
      %2158 = vst [vmem:[#allocation2 + $0x128] sm:$0xff] %v2117
      %2159 = vst [vmem:[#allocation2 + $0x130] sm:$0xff] %v2119
      %2160 = vst [vmem:[#allocation2 + $0x138] sm:$0xff] %v2121
      %2161 = vst [vmem:[#allocation2 + $0x140] sm:$0xff] %v2123
      %2162 = vst [vmem:[#allocation2 + $0x148] sm:$0xff] %v2125
      %2163 = vst [vmem:[#allocation2 + $0x150] sm:$0xff] %v2127
      %2164 = vst [vmem:[#allocation2 + $0x158] sm:$0xff] %v2129
      %2165 = vst [vmem:[#allocation2 + $0x160] sm:$0xff] %v2131
      %2166 = vst [vmem:[#allocation2 + $0x168] sm:$0xff] %v2133
      %2167 = vst [vmem:[#allocation2 + $0x170] sm:$0xff] %v2135
      %vm2168 = vcmask 1043456
      %vm2169 = vcmask 1039364
      %vm2170 = vmor %vm2169, %vm2168
      %2171 = vst.msk [vmem:[#allocation2 + $0x178] sm:$0xff] %vm2170, %v2136
      %vm2172 = vcmask 1044472
      %2173 = vst.msk [vmem:[#allocation2 + $0x17c] sm:$0xf] %vm2172, 0
      %v2174 = vld [vmem:[%s3] sm:$0x3]
      %v2175 = vld [vmem:[#allocation2] sm:$0xff]
      %v2176 = vld [vmem:[#allocation2 + $0x8] sm:$0xff]
      %v2177 = vld [vmem:[#allocation2 + $0x10] sm:$0xff]
      %v2178 = vld [vmem:[#allocation2 + $0x18] sm:$0xff]
      %v2179 = vld [vmem:[#allocation2 + $0x20] sm:$0xff]
      %v2180 = vld [vmem:[#allocation2 + $0x28] sm:$0xff]
      %v2181 = vld [vmem:[#allocation2 + $0x30] sm:$0xff]
      %v2182 = vld [vmem:[#allocation2 + $0x38] sm:$0xff]
      %v2183 = vld [vmem:[#allocation2 + $0x40] sm:$0xff]
      %v2184 = vld [vmem:[#allocation2 + $0x48] sm:$0xff]
      %v2185 = vld [vmem:[#allocation2 + $0x50] sm:$0xff]
      %v2186 = vld [vmem:[#allocation2 + $0x58] sm:$0xff]
      %v2187 = vld [vmem:[#allocation2 + $0x60] sm:$0xff]
      %v2188 = vld [vmem:[#allocation2 + $0x68] sm:$0xff]
      %v2189 = vld [vmem:[#allocation2 + $0x70] sm:$0xff]
      %v2190 = vld [vmem:[#allocation2 + $0x78] sm:$0xff]
      %v2191 = vld [vmem:[#allocation2 + $0x80] sm:$0xff]
      %v2192 = vld [vmem:[#allocation2 + $0x88] sm:$0xff]
      %v2193 = vld [vmem:[#allocation2 + $0x90] sm:$0xff]
      %v2194 = vld [vmem:[#allocation2 + $0x98] sm:$0xff]
      %v2195 = vld [vmem:[#allocation2 + $0xa0] sm:$0xff]
      %v2196 = vld [vmem:[#allocation2 + $0xa8] sm:$0xff]
      %v2197 = vld [vmem:[#allocation2 + $0xb0] sm:$0xff]
      %v2198 = vld [vmem:[#allocation2 + $0xb8] sm:$0xff]
      %v2199 = vld [vmem:[#allocation2 + $0xc0] sm:$0xff]
      %v2200 = vld [vmem:[#allocation2 + $0xc8] sm:$0xff]
      %v2201 = vld [vmem:[#allocation2 + $0xd0] sm:$0xff]
      %v2202 = vld [vmem:[#allocation2 + $0xd8] sm:$0xff]
      %v2203 = vld [vmem:[#allocation2 + $0xe0] sm:$0xff]
      %v2204 = vld [vmem:[#allocation2 + $0xe8] sm:$0xff]
      %v2205 = vld [vmem:[#allocation2 + $0xf0] sm:$0xff]
      %v2206 = vld [vmem:[#allocation2 + $0xf8] sm:$0xff]
      %v2207 = vld [vmem:[#allocation2 + $0x100] sm:$0xff]
      %v2208 = vld [vmem:[#allocation2 + $0x108] sm:$0xff]
      %v2209 = vld [vmem:[#allocation2 + $0x110] sm:$0xff]
      %v2210 = vld [vmem:[#allocation2 + $0x118] sm:$0xff]
      %v2211 = vld [vmem:[#allocation2 + $0x120] sm:$0xff]
      %v2212 = vld [vmem:[#allocation2 + $0x128] sm:$0xff]
      %v2213 = vld [vmem:[#allocation2 + $0x130] sm:$0xff]
      %v2214 = vld [vmem:[#allocation2 + $0x138] sm:$0xff]
      %v2215 = vld [vmem:[#allocation2 + $0x140] sm:$0xff]
      %v2216 = vld [vmem:[#allocation2 + $0x148] sm:$0xff]
      %v2217 = vld [vmem:[#allocation2 + $0x150] sm:$0xff]
      %v2218 = vld [vmem:[#allocation2 + $0x158] sm:$0xff]
      %v2219 = vld [vmem:[#allocation2 + $0x160] sm:$0xff]
      %v2220 = vld [vmem:[#allocation2 + $0x168] sm:$0xff]
      %v2221 = vld [vmem:[#allocation2 + $0x170] sm:$0xff]
      %v2222 = vld [vmem:[#allocation2 + $0x178] sm:$0xff]
      %2239 = vst [vmem:[#allocation2 + $0x80] sm:$0xff] %v1153
      %2240 = vst [vmem:[#allocation2 + $0x88] sm:$0xff] %v1154
      %2241 = vst [vmem:[#allocation2 + $0x90] sm:$0xff] %v1155
      %2242 = vst [vmem:[#allocation2 + $0x98] sm:$0xff] %v1156
      %2243 = vst [vmem:[#allocation2 + $0xa0] sm:$0xff] %v1157
      %2244 = vst [vmem:[#allocation2 + $0xa8] sm:$0xff] %v1158
      %2245 = vst [vmem:[#allocation2 + $0xb0] sm:$0xff] %v1159
      %2246 = vst [vmem:[#allocation2 + $0xb8] sm:$0xff] %v1160
      %2247 = vst [vmem:[#allocation2 + $0xc0] sm:$0xff] %v1161
      %2248 = vst [vmem:[#allocation2 + $0xc8] sm:$0xff] %v1162
      %2249 = vst [vmem:[#allocation2 + $0xd0] sm:$0xff] %v1163
      %2250 = vst [vmem:[#allocation2 + $0xd8] sm:$0xff] %v1164
      %2251 = vst [vmem:[#allocation2 + $0xe0] sm:$0xff] %v1165
      %2252 = vst [vmem:[#allocation2 + $0xe8] sm:$0xff] %v1166
      %2253 = vst [vmem:[#allocation2 + $0xf0] sm:$0xff] %v1167
      %2254 = vst [vmem:[#allocation2 + $0xf8] sm:$0xff] %v1168
      %v2255 = vld [vmem:[#allocation2 + $0x80] sm:$0xff]
      %v2256 = vld [vmem:[#allocation2 + $0x88] sm:$0xff]
      %v2257 = vld [vmem:[#allocation2 + $0x90] sm:$0xff]
      %v2258 = vld [vmem:[#allocation2 + $0x98] sm:$0xff]
      %v2259 = vld [vmem:[#allocation2 + $0xa0] sm:$0xff]
      %v2260 = vld [vmem:[#allocation2 + $0xa8] sm:$0xff]
      %v2261 = vld [vmem:[#allocation2 + $0xb0] sm:$0xff]
      %v2262 = vld [vmem:[#allocation2 + $0xb8] sm:$0xff]
      %v2263 = vld [vmem:[#allocation2 + $0xc0] sm:$0xff]
      %v2264 = vld [vmem:[#allocation2 + $0xc8] sm:$0xff]
      %v2265 = vld [vmem:[#allocation2 + $0xd0] sm:$0xff]
      %v2266 = vld [vmem:[#allocation2 + $0xd8] sm:$0xff]
      %v2267 = vld [vmem:[#allocation2 + $0xe0] sm:$0xff]
      %v2268 = vld [vmem:[#allocation2 + $0xe8] sm:$0xff]
      %v2269 = vld [vmem:[#allocation2 + $0xf0] sm:$0xff]
      %v2270 = vld [vmem:[#allocation2 + $0xf8] sm:$0xff]
      %v2271 = vunpack.c.l.bf16 %v2255
      %v2272 = vunpack.c.h.bf16 %v2255
      %v2273 = vunpack.c.l.bf16 %v2256
      %v2274 = vunpack.c.h.bf16 %v2256
      %v2275 = vunpack.c.l.bf16 %v2257
      %v2276 = vunpack.c.h.bf16 %v2257
      %v2277 = vunpack.c.l.bf16 %v2258
      %v2278 = vunpack.c.h.bf16 %v2258
      %v2279 = vunpack.c.l.bf16 %v2259
      %v2280 = vunpack.c.h.bf16 %v2259
      %v2281 = vunpack.c.l.bf16 %v2260
      %v2282 = vunpack.c.h.bf16 %v2260
      %v2283 = vunpack.c.l.bf16 %v2261
      %v2284 = vunpack.c.h.bf16 %v2261
      %v2285 = vunpack.c.l.bf16 %v2262
      %v2286 = vunpack.c.h.bf16 %v2262
      %v2287 = vunpack.c.l.bf16 %v2263
      %v2288 = vunpack.c.h.bf16 %v2263
      %v2289 = vunpack.c.l.bf16 %v2264
      %v2290 = vunpack.c.h.bf16 %v2264
      %v2291 = vunpack.c.l.bf16 %v2265
      %v2292 = vunpack.c.h.bf16 %v2265
      %v2293 = vunpack.c.l.bf16 %v2266
      %v2294 = vunpack.c.h.bf16 %v2266
      %v2295 = vunpack.c.l.bf16 %v2267
      %v2296 = vunpack.c.h.bf16 %v2267
      %v2297 = vunpack.c.l.bf16 %v2268
      %v2298 = vunpack.c.h.bf16 %v2268
      %v2299 = vunpack.c.l.bf16 %v2269
      %v2300 = vunpack.c.h.bf16 %v2269
      %v2301 = vunpack.c.l.bf16 %v2270
      %v2302 = vunpack.c.h.bf16 %v2270
      %2303 = vst.msk [vmem:[#allocation2] sm:$0xf] %vm1333, 0
      %v2304 = vmul.f32 %v2271, %v1432
      %v2305 = vmul.f32 %v2272, %v1433
      %v2306 = vmul.f32 %v2273, %v1434
      %v2307 = vmul.f32 %v2274, %v1435
      %v2308 = vmul.f32 %v2275, %v1436
      %v2309 = vmul.f32 %v2276, %v1437
      %v2310 = vmul.f32 %v2277, %v1438
      %v2311 = vmul.f32 %v2278, %v1439
      %v2312 = vmul.f32 %v2279, %v1440
      %v2313 = vmul.f32 %v2280, %v1441
      %v2314 = vmul.f32 %v2281, %v1442
      %v2315 = vmul.f32 %v2282, %v1443
      %v2316 = vmul.f32 %v2283, %v1444
      %v2317 = vmul.f32 %v2284, %v1445
      %v2318 = vmul.f32 %v2285, %v1446
      %v2319 = vmul.f32 %v2286, %v1447
      %v2320 = vmul.f32 %v2287, %v1448
      %v2321 = vmul.f32 %v2288, %v1449
      %v2322 = vmul.f32 %v2289, %v1450
      %v2323 = vmul.f32 %v2290, %v1451
      %v2324 = vmul.f32 %v2291, %v1452
      %v2325 = vmul.f32 %v2292, %v1453
      %v2326 = vmul.f32 %v2293, %v1454
      %v2327 = vmul.f32 %v2294, %v1455
      %v2328 = vmul.f32 %v2295, %v1456
      %v2329 = vmul.f32 %v2296, %v1457
      %v2330 = vmul.f32 %v2297, %v1458
      %v2331 = vmul.f32 %v2298, %v1459
      %v2332 = vmul.f32 %v2299, %v1460
      %v2333 = vmul.f32 %v2300, %v1461
      %v2334 = vmul.f32 %v2301, %v1462
      %v2335 = vmul.f32 %v2302, %v1430
      %v2336 = vpack.c.bf16 %v2304, %v2304
      %v2337 = vpack.c.bf16 %v2305, %v2305
      %v2338 = vpack.c.bf16 %v2306, %v2306
      %v2339 = vpack.c.bf16 %v2307, %v2307
      %v2340 = vpack.c.bf16 %v2308, %v2308
      %v2341 = vpack.c.bf16 %v2309, %v2309
      %v2342 = vpack.c.bf16 %v2310, %v2310
      %v2343 = vpack.c.bf16 %v2311, %v2311
      %v2344 = vpack.c.bf16 %v2312, %v2312
      %v2345 = vpack.c.bf16 %v2313, %v2313
      %v2346 = vpack.c.bf16 %v2314, %v2314
      %v2347 = vpack.c.bf16 %v2315, %v2315
      %v2348 = vpack.c.bf16 %v2316, %v2316
      %v2349 = vpack.c.bf16 %v2317, %v2317
      %v2350 = vpack.c.bf16 %v2318, %v2318
      %v2351 = vpack.c.bf16 %v2319, %v2319
      %v2352 = vpack.c.bf16 %v2320, %v2320
      %v2353 = vpack.c.bf16 %v2321, %v2321
      %v2354 = vpack.c.bf16 %v2322, %v2322
      %v2355 = vpack.c.bf16 %v2323, %v2323
      %v2356 = vpack.c.bf16 %v2324, %v2324
      %v2357 = vpack.c.bf16 %v2325, %v2325
      %v2358 = vpack.c.bf16 %v2326, %v2326
      %v2359 = vpack.c.bf16 %v2327, %v2327
      %v2360 = vpack.c.bf16 %v2328, %v2328
      %v2361 = vpack.c.bf16 %v2329, %v2329
      %v2362 = vpack.c.bf16 %v2330, %v2330
      %v2363 = vpack.c.bf16 %v2331, %v2331
      %v2364 = vpack.c.bf16 %v2332, %v2332
      %v2365 = vpack.c.bf16 %v2333, %v2333
      %v2366 = vpack.c.bf16 %v2334, %v2334
      %v2367 = vpack.c.bf16 %v2335, %v2335
      %v2400 = vunpack.c.l.b16 %v2336
      %v2401 = vunpack.c.l.b16 %v2337
      %v2402 = vunpack.c.l.b16 %v2338
      %v2403 = vunpack.c.l.b16 %v2339
      %v2404 = vunpack.c.l.b16 %v2340
      %v2405 = vunpack.c.l.b16 %v2341
      %v2406 = vunpack.c.l.b16 %v2342
      %v2407 = vunpack.c.l.b16 %v2343
      %v2408 = vunpack.c.l.b16 %v2344
      %v2409 = vunpack.c.l.b16 %v2345
      %v2410 = vunpack.c.l.b16 %v2346
      %v2411 = vunpack.c.l.b16 %v2347
      %v2412 = vunpack.c.l.b16 %v2348
      %v2413 = vunpack.c.l.b16 %v2349
      %v2414 = vunpack.c.l.b16 %v2350
      %v2415 = vunpack.c.l.b16 %v2351
      %v2416 = vunpack.c.l.b16 %v2352
      %v2417 = vunpack.c.l.b16 %v2353
      %v2418 = vunpack.c.l.b16 %v2354
      %v2419 = vunpack.c.l.b16 %v2355
      %v2420 = vunpack.c.l.b16 %v2356
      %v2421 = vunpack.c.l.b16 %v2357
      %v2422 = vunpack.c.l.b16 %v2358
      %v2423 = vunpack.c.l.b16 %v2359
      %v2424 = vunpack.c.l.b16 %v2360
      %v2425 = vunpack.c.l.b16 %v2361
      %v2426 = vunpack.c.l.b16 %v2362
      %v2427 = vunpack.c.l.b16 %v2363
      %v2428 = vunpack.c.l.b16 %v2364
      %v2429 = vunpack.c.l.b16 %v2365
      %v2430 = vunpack.c.l.b16 %v2366
      %v2431 = vunpack.c.l.b16 %v2367
      %v2432 = vpack.c.b16 %v2401, %v2400
      %v2433 = vpack.c.b16 %v2403, %v2402
      %v2434 = vpack.c.b16 %v2405, %v2404
      %v2435 = vpack.c.b16 %v2407, %v2406
      %v2436 = vpack.c.b16 %v2409, %v2408
      %v2437 = vpack.c.b16 %v2411, %v2410
      %v2438 = vpack.c.b16 %v2413, %v2412
      %v2439 = vpack.c.b16 %v2415, %v2414
      %v2440 = vpack.c.b16 %v2417, %v2416
      %v2441 = vpack.c.b16 %v2419, %v2418
      %v2442 = vpack.c.b16 %v2421, %v2420
      %v2443 = vpack.c.b16 %v2423, %v2422
      %v2444 = vpack.c.b16 %v2425, %v2424
      %v2445 = vpack.c.b16 %v2427, %v2426
      %v2446 = vpack.c.b16 %v2429, %v2428
      %v2447 = vpack.c.b16 %v2431, %v2430
      %2448 = vrot.lane.b32.xlu0 %v2432, 1
      %v2449 = vpop.permute.xlu0 %2448
      %2450 = vrot.lane.b32.xlu0 %v2433, 1
      %v2451 = vpop.permute.xlu0 %2450
      %2452 = vrot.lane.b32.xlu0 %v2434, 1
      %v2453 = vpop.permute.xlu0 %2452
      %2454 = vrot.lane.b32.xlu0 %v2435, 1
      %v2455 = vpop.permute.xlu0 %2454
      %2456 = vrot.lane.b32.xlu0 %v2436, 1
      %v2457 = vpop.permute.xlu0 %2456
      %2458 = vrot.lane.b32.xlu0 %v2437, 1
      %v2459 = vpop.permute.xlu0 %2458
      %2460 = vrot.lane.b32.xlu0 %v2438, 1
      %v2461 = vpop.permute.xlu0 %2460
      %2462 = vrot.lane.b32.xlu0 %v2439, 1
      %v2463 = vpop.permute.xlu0 %2462
      %2464 = vrot.lane.b32.xlu0 %v2440, 1
      %v2465 = vpop.permute.xlu0 %2464
      %2466 = vrot.lane.b32.xlu0 %v2441, 1
      %v2467 = vpop.permute.xlu0 %2466
      %2468 = vrot.lane.b32.xlu0 %v2442, 1
      %v2469 = vpop.permute.xlu0 %2468
      %2470 = vrot.lane.b32.xlu0 %v2443, 1
      %v2471 = vpop.permute.xlu0 %2470
      %2472 = vrot.lane.b32.xlu0 %v2444, 1
      %v2473 = vpop.permute.xlu0 %2472
      %2474 = vrot.lane.b32.xlu0 %v2445, 1
      %v2475 = vpop.permute.xlu0 %2474
      %2476 = vrot.lane.b32.xlu0 %v2446, 1
      %v2477 = vpop.permute.xlu0 %2476
      %2478 = vrot.lane.b32.xlu0 %v2447, 1
      %v2479 = vpop.permute.xlu0 %2478
      %v2480 = vrot.slane %v2449, 4
      %v2481 = vrot.slane %v2451, 4
      %v2482 = vrot.slane %v2453, 4
      %v2483 = vrot.slane %v2455, 4
      %v2484 = vrot.slane %v2457, 4
      %v2485 = vrot.slane %v2459, 4
      %v2486 = vrot.slane %v2461, 4
      %v2487 = vrot.slane %v2463, 4
      %v2488 = vrot.slane %v2465, 4
      %v2489 = vrot.slane %v2467, 4
      %v2490 = vrot.slane %v2469, 4
      %v2491 = vrot.slane %v2471, 4
      %v2492 = vrot.slane %v2473, 4
      %v2493 = vrot.slane %v2475, 4
      %v2494 = vrot.slane %v2477, 4
      %v2495 = vrot.slane %v2479, 4
      %v2496 = vsel %vm1687, %v2480, %v2449
      %v2497 = vsel %vm1219, %v2480, %v2481
      %v2498 = vsel %vm1687, %v2497, %v2451
      %v2499 = vsel %vm1219, %v2481, %v2482
      %v2500 = vsel %vm1687, %v2499, %v2453
      %v2501 = vsel %vm1219, %v2482, %v2483
      %v2502 = vsel %vm1687, %v2501, %v2455
      %v2503 = vsel %vm1219, %v2483, %v2484
      %v2504 = vsel %vm1687, %v2503, %v2457
      %v2505 = vsel %vm1219, %v2484, %v2485
      %v2506 = vsel %vm1687, %v2505, %v2459
      %v2507 = vsel %vm1219, %v2485, %v2486
      %v2508 = vsel %vm1687, %v2507, %v2461
      %v2509 = vsel %vm1219, %v2486, %v2487
      %v2510 = vsel %vm1687, %v2509, %v2463
      %v2511 = vsel %vm1219, %v2487, %v2488
      %v2512 = vsel %vm1687, %v2511, %v2465
      %v2513 = vsel %vm1219, %v2488, %v2489
      %v2514 = vsel %vm1687, %v2513, %v2467
      %v2515 = vsel %vm1219, %v2489, %v2490
      %v2516 = vsel %vm1687, %v2515, %v2469
      %v2517 = vsel %vm1219, %v2490, %v2491
      %v2518 = vsel %vm1687, %v2517, %v2471
      %v2519 = vsel %vm1219, %v2491, %v2492
      %v2520 = vsel %vm1687, %v2519, %v2473
      %v2521 = vsel %vm1219, %v2492, %v2493
      %v2522 = vsel %vm1687, %v2521, %v2475
      %v2523 = vsel %vm1219, %v2493, %v2494
      %v2524 = vsel %vm1687, %v2523, %v2477
      %v2525 = vsel %vm1219, %v2494, %v2495
      %v2526 = vsel %vm1687, %v2525, %v2479
      %2543 = vst.msk [vmem:[#allocation2] sm:$0xff] %vm1736, %v2496
      %2544 = vst [vmem:[#allocation2 + $0x8] sm:$0xff] %v2498
      %2545 = vst [vmem:[#allocation2 + $0x10] sm:$0xff] %v2500
      %2546 = vst [vmem:[#allocation2 + $0x18] sm:$0xff] %v2502
      %2547 = vst [vmem:[#allocation2 + $0x20] sm:$0xff] %v2504
      %2548 = vst [vmem:[#allocation2 + $0x28] sm:$0xff] %v2506
      %2549 = vst [vmem:[#allocation2 + $0x30] sm:$0xff] %v2508
      %2550 = vst [vmem:[#allocation2 + $0x38] sm:$0xff] %v2510
      %2551 = vst [vmem:[#allocation2 + $0x40] sm:$0xff] %v2512
      %2552 = vst [vmem:[#allocation2 + $0x48] sm:$0xff] %v2514
      %2553 = vst [vmem:[#allocation2 + $0x50] sm:$0xff] %v2516
      %2554 = vst [vmem:[#allocation2 + $0x58] sm:$0xff] %v2518
      %2555 = vst [vmem:[#allocation2 + $0x60] sm:$0xff] %v2520
      %2556 = vst [vmem:[#allocation2 + $0x68] sm:$0xff] %v2522
      %2557 = vst [vmem:[#allocation2 + $0x70] sm:$0xff] %v2524
      %2558 = vst [vmem:[#allocation2 + $0x78] sm:$0xff] %v2526
      %v2559 = vmul.f32 %v2271, %v1786
      %v2560 = vmul.f32 %v2272, %v1850
      %v2561 = vmul.f32 %v2273, %v1851
      %v2562 = vmul.f32 %v2274, %v1852
      %v2563 = vmul.f32 %v2275, %v1853
      %v2564 = vmul.f32 %v2276, %v1854
      %v2565 = vmul.f32 %v2277, %v1855
      %v2566 = vmul.f32 %v2278, %v1856
      %v2567 = vmul.f32 %v2279, %v1857
      %v2568 = vmul.f32 %v2280, %v1858
      %v2569 = vmul.f32 %v2281, %v1859
      %v2570 = vmul.f32 %v2282, %v1860
      %v2571 = vmul.f32 %v2283, %v1861
      %v2572 = vmul.f32 %v2284, %v1862
      %v2573 = vmul.f32 %v2285, %v1863
      %v2574 = vmul.f32 %v2286, %v1864
      %v2575 = vmul.f32 %v2287, %v1865
      %v2576 = vmul.f32 %v2288, %v1866
      %v2577 = vmul.f32 %v2289, %v1867
      %v2578 = vmul.f32 %v2290, %v1868
      %v2579 = vmul.f32 %v2291, %v1869
      %v2580 = vmul.f32 %v2292, %v1870
      %v2581 = vmul.f32 %v2293, %v1871
      %v2582 = vmul.f32 %v2294, %v1872
      %v2583 = vmul.f32 %v2295, %v1873
      %v2584 = vmul.f32 %v2296, %v1874
      %v2585 = vmul.f32 %v2297, %v1875
      %v2586 = vmul.f32 %v2298, %v1876
      %v2587 = vmul.f32 %v2299, %v1877
      %v2588 = vmul.f32 %v2300, %v1878
      %v2589 = vmul.f32 %v2301, %v1879
      %v2590 = vmul.f32 %v2302, %v1880
      %v2591 = vpack.c.bf16 %v2559, %v2559
      %v2592 = vpack.c.bf16 %v2560, %v2560
      %v2593 = vpack.c.bf16 %v2561, %v2561
      %v2594 = vpack.c.bf16 %v2562, %v2562
      %v2595 = vpack.c.bf16 %v2563, %v2563
      %v2596 = vpack.c.bf16 %v2564, %v2564
      %v2597 = vpack.c.bf16 %v2565, %v2565
      %v2598 = vpack.c.bf16 %v2566, %v2566
      %v2599 = vpack.c.bf16 %v2567, %v2567
      %v2600 = vpack.c.bf16 %v2568, %v2568
      %v2601 = vpack.c.bf16 %v2569, %v2569
      %v2602 = vpack.c.bf16 %v2570, %v2570
      %v2603 = vpack.c.bf16 %v2571, %v2571
      %v2604 = vpack.c.bf16 %v2572, %v2572
      %v2605 = vpack.c.bf16 %v2573, %v2573
      %v2606 = vpack.c.bf16 %v2574, %v2574
      %v2607 = vpack.c.bf16 %v2575, %v2575
      %v2608 = vpack.c.bf16 %v2576, %v2576
      %v2609 = vpack.c.bf16 %v2577, %v2577
      %v2610 = vpack.c.bf16 %v2578, %v2578
      %v2611 = vpack.c.bf16 %v2579, %v2579
      %v2612 = vpack.c.bf16 %v2580, %v2580
      %v2613 = vpack.c.bf16 %v2581, %v2581
      %v2614 = vpack.c.bf16 %v2582, %v2582
      %v2615 = vpack.c.bf16 %v2583, %v2583
      %v2616 = vpack.c.bf16 %v2584, %v2584
      %v2617 = vpack.c.bf16 %v2585, %v2585
      %v2618 = vpack.c.bf16 %v2586, %v2586
      %v2619 = vpack.c.bf16 %v2587, %v2587
      %v2620 = vpack.c.bf16 %v2588, %v2588
      %v2621 = vpack.c.bf16 %v2589, %v2589
      %v2622 = vpack.c.bf16 %v2590, %v2590
      %v2655 = vunpack.c.l.b16 %v2591
      %v2656 = vunpack.c.l.b16 %v2592
      %v2657 = vunpack.c.l.b16 %v2593
      %v2658 = vunpack.c.l.b16 %v2594
      %v2659 = vunpack.c.l.b16 %v2595
      %v2660 = vunpack.c.l.b16 %v2596
      %v2661 = vunpack.c.l.b16 %v2597
      %v2662 = vunpack.c.l.b16 %v2598
      %v2663 = vunpack.c.l.b16 %v2599
      %v2664 = vunpack.c.l.b16 %v2600
      %v2665 = vunpack.c.l.b16 %v2601
      %v2666 = vunpack.c.l.b16 %v2602
      %v2667 = vunpack.c.l.b16 %v2603
      %v2668 = vunpack.c.l.b16 %v2604
      %v2669 = vunpack.c.l.b16 %v2605
      %v2670 = vunpack.c.l.b16 %v2606
      %v2671 = vunpack.c.l.b16 %v2607
      %v2672 = vunpack.c.l.b16 %v2608
      %v2673 = vunpack.c.l.b16 %v2609
      %v2674 = vunpack.c.l.b16 %v2610
      %v2675 = vunpack.c.l.b16 %v2611
      %v2676 = vunpack.c.l.b16 %v2612
      %v2677 = vunpack.c.l.b16 %v2613
      %v2678 = vunpack.c.l.b16 %v2614
      %v2679 = vunpack.c.l.b16 %v2615
      %v2680 = vunpack.c.l.b16 %v2616
      %v2681 = vunpack.c.l.b16 %v2617
      %v2682 = vunpack.c.l.b16 %v2618
      %v2683 = vunpack.c.l.b16 %v2619
      %v2684 = vunpack.c.l.b16 %v2620
      %v2685 = vunpack.c.l.b16 %v2621
      %v2686 = vunpack.c.l.b16 %v2622
      %v2687 = vpack.c.b16 %v2656, %v2655
      %v2688 = vpack.c.b16 %v2658, %v2657
      %v2689 = vpack.c.b16 %v2660, %v2659
      %v2690 = vpack.c.b16 %v2662, %v2661
      %v2691 = vpack.c.b16 %v2664, %v2663
      %v2692 = vpack.c.b16 %v2666, %v2665
      %v2693 = vpack.c.b16 %v2668, %v2667
      %v2694 = vpack.c.b16 %v2670, %v2669
      %v2695 = vpack.c.b16 %v2672, %v2671
      %v2696 = vpack.c.b16 %v2674, %v2673
      %v2697 = vpack.c.b16 %v2676, %v2675
      %v2698 = vpack.c.b16 %v2678, %v2677
      %v2699 = vpack.c.b16 %v2680, %v2679
      %v2700 = vpack.c.b16 %v2682, %v2681
      %v2701 = vpack.c.b16 %v2684, %v2683
      %v2702 = vpack.c.b16 %v2686, %v2685
      %2703 = vrot.lane.b32.xlu0 %v2687, 127
      %v2704 = vpop.permute.xlu0 %2703
      %2705 = vrot.lane.b32.xlu0 %v2688, 127
      %v2706 = vpop.permute.xlu0 %2705
      %2707 = vrot.lane.b32.xlu0 %v2689, 127
      %v2708 = vpop.permute.xlu0 %2707
      %2709 = vrot.lane.b32.xlu0 %v2690, 127
      %v2710 = vpop.permute.xlu0 %2709
      %2711 = vrot.lane.b32.xlu0 %v2691, 127
      %v2712 = vpop.permute.xlu0 %2711
      %2713 = vrot.lane.b32.xlu0 %v2692, 127
      %v2714 = vpop.permute.xlu0 %2713
      %2715 = vrot.lane.b32.xlu0 %v2693, 127
      %v2716 = vpop.permute.xlu0 %2715
      %2717 = vrot.lane.b32.xlu0 %v2694, 127
      %v2718 = vpop.permute.xlu0 %2717
      %2719 = vrot.lane.b32.xlu0 %v2695, 127
      %v2720 = vpop.permute.xlu0 %2719
      %2721 = vrot.lane.b32.xlu0 %v2696, 127
      %v2722 = vpop.permute.xlu0 %2721
      %2723 = vrot.lane.b32.xlu0 %v2697, 127
      %v2724 = vpop.permute.xlu0 %2723
      %2725 = vrot.lane.b32.xlu0 %v2698, 127
      %v2726 = vpop.permute.xlu0 %2725
      %2727 = vrot.lane.b32.xlu0 %v2699, 127
      %v2728 = vpop.permute.xlu0 %2727
      %2729 = vrot.lane.b32.xlu0 %v2700, 127
      %v2730 = vpop.permute.xlu0 %2729
      %2731 = vrot.lane.b32.xlu0 %v2701, 127
      %v2732 = vpop.permute.xlu0 %2731
      %2733 = vrot.lane.b32.xlu0 %v2702, 127
      %v2734 = vpop.permute.xlu0 %2733
      %v2735 = vrot.slane %v2704, 4
      %v2736 = vrot.slane %v2706, 4
      %v2737 = vrot.slane %v2708, 4
      %v2738 = vrot.slane %v2710, 4
      %v2739 = vrot.slane %v2712, 4
      %v2740 = vrot.slane %v2714, 4
      %v2741 = vrot.slane %v2716, 4
      %v2742 = vrot.slane %v2718, 4
      %v2743 = vrot.slane %v2720, 4
      %v2744 = vrot.slane %v2722, 4
      %v2745 = vrot.slane %v2724, 4
      %v2746 = vrot.slane %v2726, 4
      %v2747 = vrot.slane %v2728, 4
      %v2748 = vrot.slane %v2730, 4
      %v2749 = vrot.slane %v2732, 4
      %v2750 = vrot.slane %v2734, 4
      %v2751 = vsel %vm1219, %v2735, %v2736
      %v2752 = vsel %vm2106, %v2704, %v2751
      %v2753 = vsel %vm1219, %v2736, %v2737
      %v2754 = vsel %vm2106, %v2706, %v2753
      %v2755 = vsel %vm1219, %v2737, %v2738
      %v2756 = vsel %vm2106, %v2708, %v2755
      %v2757 = vsel %vm1219, %v2738, %v2739
      %v2758 = vsel %vm2106, %v2710, %v2757
      %v2759 = vsel %vm1219, %v2739, %v2740
      %v2760 = vsel %vm2106, %v2712, %v2759
      %v2761 = vsel %vm1219, %v2740, %v2741
      %v2762 = vsel %vm2106, %v2714, %v2761
      %v2763 = vsel %vm1219, %v2741, %v2742
      %v2764 = vsel %vm2106, %v2716, %v2763
      %v2765 = vsel %vm1219, %v2742, %v2743
      %v2766 = vsel %vm2106, %v2718, %v2765
      %v2767 = vsel %vm1219, %v2743, %v2744
      %v2768 = vsel %vm2106, %v2720, %v2767
      %v2769 = vsel %vm1219, %v2744, %v2745
      %v2770 = vsel %vm2106, %v2722, %v2769
      %v2771 = vsel %vm1219, %v2745, %v2746
      %v2772 = vsel %vm2106, %v2724, %v2771
      %v2773 = vsel %vm1219, %v2746, %v2747
      %v2774 = vsel %vm2106, %v2726, %v2773
      %v2775 = vsel %vm1219, %v2747, %v2748
      %v2776 = vsel %vm2106, %v2728, %v2775
      %v2777 = vsel %vm1219, %v2748, %v2749
      %v2778 = vsel %vm2106, %v2730, %v2777
      %v2779 = vsel %vm1219, %v2749, %v2750
      %v2780 = vsel %vm2106, %v2732, %v2779
      %v2781 = vsel %vm2106, %v2734, %v2750
      %2798 = vst [vmem:[#allocation2 + $0x100] sm:$0xff] %v2752
      %2799 = vst [vmem:[#allocation2 + $0x108] sm:$0xff] %v2754
      %2800 = vst [vmem:[#allocation2 + $0x110] sm:$0xff] %v2756
      %2801 = vst [vmem:[#allocation2 + $0x118] sm:$0xff] %v2758
      %2802 = vst [vmem:[#allocation2 + $0x120] sm:$0xff] %v2760
      %2803 = vst [vmem:[#allocation2 + $0x128] sm:$0xff] %v2762
      %2804 = vst [vmem:[#allocation2 + $0x130] sm:$0xff] %v2764
      %2805 = vst [vmem:[#allocation2 + $0x138] sm:$0xff] %v2766
      %2806 = vst [vmem:[#allocation2 + $0x140] sm:$0xff] %v2768
      %2807 = vst [vmem:[#allocation2 + $0x148] sm:$0xff] %v2770
      %2808 = vst [vmem:[#allocation2 + $0x150] sm:$0xff] %v2772
      %2809 = vst [vmem:[#allocation2 + $0x158] sm:$0xff] %v2774
      %2810 = vst [vmem:[#allocation2 + $0x160] sm:$0xff] %v2776
      %2811 = vst [vmem:[#allocation2 + $0x168] sm:$0xff] %v2778
      %2812 = vst [vmem:[#allocation2 + $0x170] sm:$0xff] %v2780
      %2813 = vst.msk [vmem:[#allocation2 + $0x178] sm:$0xff] %vm2170, %v2781
      %2814 = vst.msk [vmem:[#allocation2 + $0x17c] sm:$0xf] %vm2172, 0
      %v2815 = vld [vmem:[%s3] sm:$0x3]
      %v2816 = vld [vmem:[#allocation2] sm:$0xff]
      %v2817 = vld [vmem:[#allocation2 + $0x8] sm:$0xff]
      %v2818 = vld [vmem:[#allocation2 + $0x10] sm:$0xff]
      %v2819 = vld [vmem:[#allocation2 + $0x18] sm:$0xff]
      %v2820 = vld [vmem:[#allocation2 + $0x20] sm:$0xff]
      %v2821 = vld [vmem:[#allocation2 + $0x28] sm:$0xff]
      %v2822 = vld [vmem:[#allocation2 + $0x30] sm:$0xff]
      %v2823 = vld [vmem:[#allocation2 + $0x38] sm:$0xff]
      %v2824 = vld [vmem:[#allocation2 + $0x40] sm:$0xff]
      %v2825 = vld [vmem:[#allocation2 + $0x48] sm:$0xff]
      %v2826 = vld [vmem:[#allocation2 + $0x50] sm:$0xff]
      %v2827 = vld [vmem:[#allocation2 + $0x58] sm:$0xff]
      %v2828 = vld [vmem:[#allocation2 + $0x60] sm:$0xff]
      %v2829 = vld [vmem:[#allocation2 + $0x68] sm:$0xff]
      %v2830 = vld [vmem:[#allocation2 + $0x70] sm:$0xff]
      %v2831 = vld [vmem:[#allocation2 + $0x78] sm:$0xff]
      %v2832 = vld [vmem:[#allocation2 + $0x80] sm:$0xff]
      %v2833 = vld [vmem:[#allocation2 + $0x88] sm:$0xff]
      %v2834 = vld [vmem:[#allocation2 + $0x90] sm:$0xff]
      %v2835 = vld [vmem:[#allocation2 + $0x98] sm:$0xff]
      %v2836 = vld [vmem:[#allocation2 + $0xa0] sm:$0xff]
      %v2837 = vld [vmem:[#allocation2 + $0xa8] sm:$0xff]
      %v2838 = vld [vmem:[#allocation2 + $0xb0] sm:$0xff]
      %v2839 = vld [vmem:[#allocation2 + $0xb8] sm:$0xff]
      %v2840 = vld [vmem:[#allocation2 + $0xc0] sm:$0xff]
      %v2841 = vld [vmem:[#allocation2 + $0xc8] sm:$0xff]
      %v2842 = vld [vmem:[#allocation2 + $0xd0] sm:$0xff]
      %v2843 = vld [vmem:[#allocation2 + $0xd8] sm:$0xff]
      %v2844 = vld [vmem:[#allocation2 + $0xe0] sm:$0xff]
      %v2845 = vld [vmem:[#allocation2 + $0xe8] sm:$0xff]
      %v2846 = vld [vmem:[#allocation2 + $0xf0] sm:$0xff]
      %v2847 = vld [vmem:[#allocation2 + $0xf8] sm:$0xff]
      %v2848 = vld [vmem:[#allocation2 + $0x100] sm:$0xff]
      %v2849 = vld [vmem:[#allocation2 + $0x108] sm:$0xff]
      %v2850 = vld [vmem:[#allocation2 + $0x110] sm:$0xff]
      %v2851 = vld [vmem:[#allocation2 + $0x118] sm:$0xff]
      %v2852 = vld [vmem:[#allocation2 + $0x120] sm:$0xff]
      %v2853 = vld [vmem:[#allocation2 + $0x128] sm:$0xff]
      %v2854 = vld [vmem:[#allocation2 + $0x130] sm:$0xff]
      %v2855 = vld [vmem:[#allocation2 + $0x138] sm:$0xff]
      %v2856 = vld [vmem:[#allocation2 + $0x140] sm:$0xff]
      %v2857 = vld [vmem:[#allocation2 + $0x148] sm:$0xff]
      %v2858 = vld [vmem:[#allocation2 + $0x150] sm:$0xff]
      %v2859 = vld [vmem:[#allocation2 + $0x158] sm:$0xff]
      %v2860 = vld [vmem:[#allocation2 + $0x160] sm:$0xff]
      %v2861 = vld [vmem:[#allocation2 + $0x168] sm:$0xff]
      %v2862 = vld [vmem:[#allocation2 + $0x170] sm:$0xff]
      %v2863 = vld [vmem:[#allocation2 + $0x178] sm:$0xff]
      %v2866 = vunpack.c.l.s4 1983009808
      %v2867 = vunpack.c.0.s8 %v2866
      %v2868 = vlaneseq
      %v2869 = vshrl.u32 %v2868, 7
      %v2870 = vsub.s32 %v2867, %v2869
      %v2871 = vrot.slane %v2815, %v2870
      %2872 = vrot.lane.b32.xlu0 %v2871, 104
      %v2873 = vpop.permute.xlu0 %2872
      %v2922 = vunpack.c.l.b16 %v2816
      %v2923 = vunpack.c.h.b16 %v2816
      %v2924 = vunpack.c.l.b16 %v2817
      %v2925 = vunpack.c.h.b16 %v2817
      %v2926 = vunpack.c.l.b16 %v2818
      %v2927 = vunpack.c.h.b16 %v2818
      %v2928 = vunpack.c.l.b16 %v2819
      %v2929 = vunpack.c.h.b16 %v2819
      %v2930 = vunpack.c.l.b16 %v2820
      %v2931 = vunpack.c.h.b16 %v2820
      %v2932 = vunpack.c.l.b16 %v2821
      %v2933 = vunpack.c.h.b16 %v2821
      %v2934 = vunpack.c.l.b16 %v2822
      %v2935 = vunpack.c.h.b16 %v2822
      %v2936 = vunpack.c.l.b16 %v2823
      %v2937 = vunpack.c.h.b16 %v2823
      %v2938 = vunpack.c.l.b16 %v2824
      %v2939 = vunpack.c.h.b16 %v2824
      %v2940 = vunpack.c.l.b16 %v2825
      %v2941 = vunpack.c.h.b16 %v2825
      %v2942 = vunpack.c.l.b16 %v2826
      %v2943 = vunpack.c.h.b16 %v2826
      %v2944 = vunpack.c.l.b16 %v2827
      %v2945 = vunpack.c.h.b16 %v2827
      %v2946 = vunpack.c.l.b16 %v2828
      %v2947 = vunpack.c.h.b16 %v2828
      %v2948 = vunpack.c.l.b16 %v2829
      %v2949 = vunpack.c.h.b16 %v2829
      %v2950 = vunpack.c.l.b16 %v2830
      %v2951 = vunpack.c.h.b16 %v2830
      %v2952 = vunpack.c.l.b16 %v2831
      %v2953 = vunpack.c.h.b16 %v2831
      %v2954 = vunpack.c.l.b16 %v2832
      %v2955 = vunpack.c.h.b16 %v2832
      %v2956 = vunpack.c.l.b16 %v2833
      %v2957 = vunpack.c.h.b16 %v2833
      %v2958 = vunpack.c.l.b16 %v2834
      %v2959 = vunpack.c.h.b16 %v2834
      %v2960 = vunpack.c.l.b16 %v2835
      %v2961 = vunpack.c.h.b16 %v2835
      %v2962 = vunpack.c.l.b16 %v2836
      %v2963 = vunpack.c.h.b16 %v2836
      %v2964 = vunpack.c.l.b16 %v2837
      %v2965 = vunpack.c.h.b16 %v2837
      %v2966 = vunpack.c.l.b16 %v2838
      %v2967 = vunpack.c.h.b16 %v2838
      %v2968 = vunpack.c.l.b16 %v2839
      %v2969 = vunpack.c.h.b16 %v2839
      %v2970 = vunpack.c.l.b16 %v2840
      %v2971 = vunpack.c.h.b16 %v2840
      %v2972 = vunpack.c.l.b16 %v2841
      %v2973 = vunpack.c.h.b16 %v2841
      %v2974 = vunpack.c.l.b16 %v2842
      %v2975 = vunpack.c.h.b16 %v2842
      %v2976 = vunpack.c.l.b16 %v2843
      %v2977 = vunpack.c.h.b16 %v2843
      %v2978 = vunpack.c.l.b16 %v2844
      %v2979 = vunpack.c.h.b16 %v2844
      %v2980 = vunpack.c.l.b16 %v2845
      %v2981 = vunpack.c.h.b16 %v2845
      %v2982 = vunpack.c.l.b16 %v2846
      %v2983 = vunpack.c.h.b16 %v2846
      %v2984 = vunpack.c.l.b16 %v2847
      %v2985 = vunpack.c.h.b16 %v2847
      %v2986 = vunpack.c.l.b16 %v2848
      %v2987 = vunpack.c.h.b16 %v2848
      %v2988 = vunpack.c.l.b16 %v2849
      %v2989 = vunpack.c.h.b16 %v2849
      %v2990 = vunpack.c.l.b16 %v2850
      %v2991 = vunpack.c.h.b16 %v2850
      %v2992 = vunpack.c.l.b16 %v2851
      %v2993 = vunpack.c.h.b16 %v2851
      %v2994 = vunpack.c.l.b16 %v2852
      %v2995 = vunpack.c.h.b16 %v2852
      %v2996 = vunpack.c.l.b16 %v2853
      %v2997 = vunpack.c.h.b16 %v2853
      %v2998 = vunpack.c.l.b16 %v2854
      %v2999 = vunpack.c.h.b16 %v2854
      %v3000 = vunpack.c.l.b16 %v2855
      %v3001 = vunpack.c.h.b16 %v2855
      %v3002 = vunpack.c.l.b16 %v2856
      %v3003 = vunpack.c.h.b16 %v2856
      %v3004 = vunpack.c.l.b16 %v2857
      %v3005 = vunpack.c.h.b16 %v2857
      %v3006 = vunpack.c.l.b16 %v2858
      %v3007 = vunpack.c.h.b16 %v2858
      %v3008 = vunpack.c.l.b16 %v2859
      %v3009 = vunpack.c.h.b16 %v2859
      %v3010 = vunpack.c.l.b16 %v2860
      %v3011 = vunpack.c.h.b16 %v2860
      %v3012 = vunpack.c.l.b16 %v2861
      %v3013 = vunpack.c.h.b16 %v2861
      %v3014 = vunpack.c.l.b16 %v2862
      %v3015 = vunpack.c.h.b16 %v2862
      %v3016 = vunpack.c.l.b16 %v2863
      %v3017 = vunpack.c.h.b16 %v2863
      %v3018 = vpack.c.b16 %v2954, %v2922
      %v3019 = vpack.c.b16 %v2955, %v2923
      %v3020 = vpack.c.b16 %v2956, %v2924
      %v3021 = vpack.c.b16 %v2957, %v2925
      %v3022 = vpack.c.b16 %v2958, %v2926
      %v3023 = vpack.c.b16 %v2959, %v2927
      %v3024 = vpack.c.b16 %v2960, %v2928
      %v3025 = vpack.c.b16 %v2961, %v2929
      %v3026 = vpack.c.b16 %v2962, %v2930
      %v3027 = vpack.c.b16 %v2963, %v2931
      %v3028 = vpack.c.b16 %v2964, %v2932
      %v3029 = vpack.c.b16 %v2965, %v2933
      %v3030 = vpack.c.b16 %v2966, %v2934
      %v3031 = vpack.c.b16 %v2967, %v2935
      %v3032 = vpack.c.b16 %v2968, %v2936
      %v3033 = vpack.c.b16 %v2969, %v2937
      %v3034 = vpack.c.b16 %v2970, %v2938
      %v3035 = vpack.c.b16 %v2971, %v2939
      %v3036 = vpack.c.b16 %v2972, %v2940
      %v3037 = vpack.c.b16 %v2973, %v2941
      %v3038 = vpack.c.b16 %v2974, %v2942
      %v3039 = vpack.c.b16 %v2975, %v2943
      %v3040 = vpack.c.b16 %v2976, %v2944
      %v3041 = vpack.c.b16 %v2977, %v2945
      %v3042 = vpack.c.b16 %v2978, %v2946
      %v3043 = vpack.c.b16 %v2979, %v2947
      %v3044 = vpack.c.b16 %v2980, %v2948
      %v3045 = vpack.c.b16 %v2981, %v2949
      %v3046 = vpack.c.b16 %v2982, %v2950
      %v3047 = vpack.c.b16 %v2983, %v2951
      %v3048 = vpack.c.b16 %v2984, %v2952
      %v3049 = vpack.c.b16 %v2985, %v2953
      %v3050 = vpack.c.b16 %v2986, %v2986
      %v3051 = vpack.c.b16 %v2987, %v2987
      %v3052 = vpack.c.b16 %v2988, %v2988
      %v3053 = vpack.c.b16 %v2989, %v2989
      %v3054 = vpack.c.b16 %v2990, %v2990
      %v3055 = vpack.c.b16 %v2991, %v2991
      %v3056 = vpack.c.b16 %v2992, %v2992
      %v3057 = vpack.c.b16 %v2993, %v2993
      %v3058 = vpack.c.b16 %v2994, %v2994
      %v3059 = vpack.c.b16 %v2995, %v2995
      %v3060 = vpack.c.b16 %v2996, %v2996
      %v3061 = vpack.c.b16 %v2997, %v2997
      %v3062 = vpack.c.b16 %v2998, %v2998
      %v3063 = vpack.c.b16 %v2999, %v2999
      %v3064 = vpack.c.b16 %v3000, %v3000
      %v3065 = vpack.c.b16 %v3001, %v3001
      %v3066 = vpack.c.b16 %v3002, %v3002
      %v3067 = vpack.c.b16 %v3003, %v3003
      %v3068 = vpack.c.b16 %v3004, %v3004
      %v3069 = vpack.c.b16 %v3005, %v3005
      %v3070 = vpack.c.b16 %v3006, %v3006
      %v3071 = vpack.c.b16 %v3007, %v3007
      %v3072 = vpack.c.b16 %v3008, %v3008
      %v3073 = vpack.c.b16 %v3009, %v3009
      %v3074 = vpack.c.b16 %v3010, %v3010
      %v3075 = vpack.c.b16 %v3011, %v3011
      %v3076 = vpack.c.b16 %v3012, %v3012
      %v3077 = vpack.c.b16 %v3013, %v3013
      %v3078 = vpack.c.b16 %v3014, %v3014
      %v3079 = vpack.c.b16 %v3015, %v3015
      %v3080 = vpack.c.b16 %v3016, %v3016
      %v3081 = vpack.c.b16 %v3017, %v3017
      %vm3114 = vcmask 195584
      %v3116 = vsel %vm3114, %v2873, 0
      %v3119 = vsel %vm2168, %v3050, 0
      %v3122 = vsel %vm2168, %v3051, 0
      %v3125 = vsel %vm2168, %v3052, 0
      %v3128 = vsel %vm2168, %v3053, 0
      %v3131 = vsel %vm2168, %v3054, 0
      %v3134 = vsel %vm2168, %v3055, 0
      %v3137 = vsel %vm2168, %v3056, 0
      %v3140 = vsel %vm2168, %v3057, 0
      %v3143 = vsel %vm2168, %v3058, 0
      %v3146 = vsel %vm2168, %v3059, 0
      %v3149 = vsel %vm2168, %v3060, 0
      %v3152 = vsel %vm2168, %v3061, 0
      %v3155 = vsel %vm2168, %v3062, 0
      %v3158 = vsel %vm2168, %v3063, 0
      %v3161 = vsel %vm2168, %v3064, 0
      %v3164 = vsel %vm2168, %v3065, 0
      %v3167 = vsel %vm2168, %v3066, 0
      %v3170 = vsel %vm2168, %v3067, 0
      %v3173 = vsel %vm2168, %v3068, 0
      %v3176 = vsel %vm2168, %v3069, 0
      %v3179 = vsel %vm2168, %v3070, 0
      %v3182 = vsel %vm2168, %v3071, 0
      %v3185 = vsel %vm2168, %v3072, 0
      %v3188 = vsel %vm2168, %v3073, 0
      %v3191 = vsel %vm2168, %v3074, 0
      %v3194 = vsel %vm2168, %v3075, 0
      %v3197 = vsel %vm2168, %v3076, 0
      %v3200 = vsel %vm2168, %v3077, 0
      %v3203 = vsel %vm2168, %v3078, 0
      %v3206 = vsel %vm2168, %v3079, 0
      %v3209 = vsel %vm2168, %v3080, 0
      %v3212 = vsel %vm2168, %v3081, 0
      %3214 = vmatprep.subr.bf16.mxu0 0
      %3215 = vmatpush1.bf16.msra.mxu0 0
      %3216 = vmatprep.subr.bf16.mxu0 0
      %3217 = vmatpush1.bf16.msra.mxu0 0
      %3218 = vmatprep.subr.bf16.mxu0 0
      %3219 = vmatpush1.bf16.msra.mxu0 0
      %3220 = vmatprep.subr.bf16.mxu0 0
      %3221 = vmatpush1.bf16.msra.mxu0 0
      %3222 = vmatprep.subr.bf16.mxu0 0
      %3223 = vmatpush1.bf16.msra.mxu0 0
      %3224 = vmatprep.subr.bf16.mxu0 0
      %3225 = vmatpush1.bf16.msra.mxu0 0
      %3226 = vmatprep.subr.bf16.mxu0 %v3122
      %3227 = vmatpush1.bf16.msra.mxu0 %v3119
      %3228 = vmatprep.subr.bf16.mxu0 %v3019
      %3229 = vmatpush1.bf16.msra.mxu0 %v3018
      %3230 = vmatprep.subr.bf16.mxu0 0
      %3231 = vmatpush2.bf16.msra.mxu0 0
      %3232 = vmatprep.subr.bf16.mxu0 0
      %3233 = vmatpush2.bf16.msra.mxu0 0
      %3234 = vmatprep.subr.bf16.mxu0 0
      %3235 = vmatpush2.bf16.msra.mxu0 0
      %3236 = vmatprep.subr.bf16.mxu0 0
      %3237 = vmatpush2.bf16.msra.mxu0 0
      %3238 = vmatprep.subr.bf16.mxu0 0
      %3239 = vmatpush2.bf16.msra.mxu0 0
      %3240 = vmatprep.subr.bf16.mxu0 0
      %3241 = vmatpush2.bf16.msra.mxu0 0
      %3242 = vmatprep.subr.bf16.mxu0 0
      %3243 = vmatpush2.bf16.msra.mxu0 0
      %3244 = vmatprep.subr.bf16.mxu0 0
      %3245 = vmatpush2.bf16.msra.mxu0 0
      %3246 = vmatprep.mubr.bf16.mxu0 0
      %3247 = vmatmul.mubr.bf16.gmra.mxu0 %v3116
      %v3248 = vpop.f32.mrf.mxu0
      %v3249 = vadd.f32 0.0, %v3248
      %v3250 = vpop.f32.mrf.mxu0
      %v3251 = vadd.f32 0.0, %v3250
      %v3252 = vpop.f32.mrf.mxu0
      %v3253 = vpop.f32.mrf.mxu0
      %3254 = vdwg.mxu0
      %3255 = vmatprep.subr.bf16.mxu0 0
      %3256 = vmatpush1.bf16.msra.mxu0 0
      %3257 = vmatprep.subr.bf16.mxu0 0
      %3258 = vmatpush1.bf16.msra.mxu0 0
      %3259 = vmatprep.subr.bf16.mxu0 0
      %3260 = vmatpush1.bf16.msra.mxu0 0
      %3261 = vmatprep.subr.bf16.mxu0 0
      %3262 = vmatpush1.bf16.msra.mxu0 0
      %3263 = vmatprep.subr.bf16.mxu0 0
      %3264 = vmatpush1.bf16.msra.mxu0 0
      %3265 = vmatprep.subr.bf16.mxu0 0
      %3266 = vmatpush1.bf16.msra.mxu0 0
      %3267 = vmatprep.subr.bf16.mxu0 %v3128
      %3268 = vmatpush1.bf16.msra.mxu0 %v3125
      %3269 = vmatprep.subr.bf16.mxu0 %v3021
      %3270 = vmatpush1.bf16.msra.mxu0 %v3020
      %3271 = vmatprep.subr.bf16.mxu0 0
      %3272 = vmatpush2.bf16.msra.mxu0 0
      %3273 = vmatprep.subr.bf16.mxu0 0
      %3274 = vmatpush2.bf16.msra.mxu0 0
      %3275 = vmatprep.subr.bf16.mxu0 0
      %3276 = vmatpush2.bf16.msra.mxu0 0
      %3277 = vmatprep.subr.bf16.mxu0 0
      %3278 = vmatpush2.bf16.msra.mxu0 0
      %3279 = vmatprep.subr.bf16.mxu0 0
      %3280 = vmatpush2.bf16.msra.mxu0 0
      %3281 = vmatprep.subr.bf16.mxu0 0
      %3282 = vmatpush2.bf16.msra.mxu0 0
      %3283 = vmatprep.subr.bf16.mxu0 0
      %3284 = vmatpush2.bf16.msra.mxu0 0
      %3285 = vmatprep.subr.bf16.mxu0 0
      %3286 = vmatpush2.bf16.msra.mxu0 0
      %3287 = vmatprep.mubr.bf16.mxu0 0
      %3288 = vmatmul.mubr.bf16.gmra.mxu0 %v3116
      %v3289 = vpop.f32.mrf.mxu0
      %v3290 = vadd.f32 0.0, %v3289
      %v3291 = vpop.f32.mrf.mxu0
      %v3292 = vadd.f32 0.0, %v3291
      %v3293 = vpop.f32.mrf.mxu0
      %v3294 = vpop.f32.mrf.mxu0
      %3295 = vdwg.mxu0
      %3296 = vmatprep.subr.bf16.mxu0 0
      %3297 = vmatpush1.bf16.msra.mxu0 0
      %3298 = vmatprep.subr.bf16.mxu0 0
      %3299 = vmatpush1.bf16.msra.mxu0 0
      %3300 = vmatprep.subr.bf16.mxu0 0
      %3301 = vmatpush1.bf16.msra.mxu0 0
      %3302 = vmatprep.subr.bf16.mxu0 0
      %3303 = vmatpush1.bf16.msra.mxu0 0
      %3304 = vmatprep.subr.bf16.mxu0 0
      %3305 = vmatpush1.bf16.msra.mxu0 0
      %3306 = vmatprep.subr.bf16.mxu0 0
      %3307 = vmatpush1.bf16.msra.mxu0 0
      %3308 = vmatprep.subr.bf16.mxu0 %v3134
      %3309 = vmatpush1.bf16.msra.mxu0 %v3131
      %3310 = vmatprep.subr.bf16.mxu0 %v3023
      %3311 = vmatpush1.bf16.msra.mxu0 %v3022
      %3312 = vmatprep.subr.bf16.mxu0 0
      %3313 = vmatpush2.bf16.msra.mxu0 0
      %3314 = vmatprep.subr.bf16.mxu0 0
      %3315 = vmatpush2.bf16.msra.mxu0 0
      %3316 = vmatprep.subr.bf16.mxu0 0
      %3317 = vmatpush2.bf16.msra.mxu0 0
      %3318 = vmatprep.subr.bf16.mxu0 0
      %3319 = vmatpush2.bf16.msra.mxu0 0
      %3320 = vmatprep.subr.bf16.mxu0 0
      %3321 = vmatpush2.bf16.msra.mxu0 0
      %3322 = vmatprep.subr.bf16.mxu0 0
      %3323 = vmatpush2.bf16.msra.mxu0 0
      %3324 = vmatprep.subr.bf16.mxu0 0
      %3325 = vmatpush2.bf16.msra.mxu0 0
      %3326 = vmatprep.subr.bf16.mxu0 0
      %3327 = vmatpush2.bf16.msra.mxu0 0
      %3328 = vmatprep.mubr.bf16.mxu0 0
      %3329 = vmatmul.mubr.bf16.gmra.mxu0 %v3116
      %v3330 = vpop.f32.mrf.mxu0
      %v3331 = vadd.f32 0.0, %v3330
      %v3332 = vpop.f32.mrf.mxu0
      %v3333 = vadd.f32 0.0, %v3332
      %v3334 = vpop.f32.mrf.mxu0
      %v3335 = vpop.f32.mrf.mxu0
      %3336 = vdwg.mxu0
      %3337 = vmatprep.subr.bf16.mxu0 0
      %3338 = vmatpush1.bf16.msra.mxu0 0
      %3339 = vmatprep.subr.bf16.mxu0 0
      %3340 = vmatpush1.bf16.msra.mxu0 0
      %3341 = vmatprep.subr.bf16.mxu0 0
      %3342 = vmatpush1.bf16.msra.mxu0 0
      %3343 = vmatprep.subr.bf16.mxu0 0
      %3344 = vmatpush1.bf16.msra.mxu0 0
      %3345 = vmatprep.subr.bf16.mxu0 0
      %3346 = vmatpush1.bf16.msra.mxu0 0
      %3347 = vmatprep.subr.bf16.mxu0 0
      %3348 = vmatpush1.bf16.msra.mxu0 0
      %3349 = vmatprep.subr.bf16.mxu0 %v3140
      %3350 = vmatpush1.bf16.msra.mxu0 %v3137
      %3351 = vmatprep.subr.bf16.mxu0 %v3025
      %3352 = vmatpush1.bf16.msra.mxu0 %v3024
      %3353 = vmatprep.subr.bf16.mxu0 0
      %3354 = vmatpush2.bf16.msra.mxu0 0
      %3355 = vmatprep.subr.bf16.mxu0 0
      %3356 = vmatpush2.bf16.msra.mxu0 0
      %3357 = vmatprep.subr.bf16.mxu0 0
      %3358 = vmatpush2.bf16.msra.mxu0 0
      %3359 = vmatprep.subr.bf16.mxu0 0
      %3360 = vmatpush2.bf16.msra.mxu0 0
      %3361 = vmatprep.subr.bf16.mxu0 0
      %3362 = vmatpush2.bf16.msra.mxu0 0
      %3363 = vmatprep.subr.bf16.mxu0 0
      %3364 = vmatpush2.bf16.msra.mxu0 0
      %3365 = vmatprep.subr.bf16.mxu0 0
      %3366 = vmatpush2.bf16.msra.mxu0 0
      %3367 = vmatprep.subr.bf16.mxu0 0
      %3368 = vmatpush2.bf16.msra.mxu0 0
      %3369 = vmatprep.mubr.bf16.mxu0 0
      %3370 = vmatmul.mubr.bf16.gmra.mxu0 %v3116
      %v3371 = vpop.f32.mrf.mxu0
      %v3372 = vadd.f32 0.0, %v3371
      %v3373 = vpop.f32.mrf.mxu0
      %v3374 = vadd.f32 0.0, %v3373
      %v3375 = vpop.f32.mrf.mxu0
      %v3376 = vpop.f32.mrf.mxu0
      %3377 = vdwg.mxu0
      %3378 = vmatprep.subr.bf16.mxu0 0
      %3379 = vmatpush1.bf16.msra.mxu0 0
      %3380 = vmatprep.subr.bf16.mxu0 0
      %3381 = vmatpush1.bf16.msra.mxu0 0
      %3382 = vmatprep.subr.bf16.mxu0 0
      %3383 = vmatpush1.bf16.msra.mxu0 0
      %3384 = vmatprep.subr.bf16.mxu0 0
      %3385 = vmatpush1.bf16.msra.mxu0 0
      %3386 = vmatprep.subr.bf16.mxu0 0
      %3387 = vmatpush1.bf16.msra.mxu0 0
      %3388 = vmatprep.subr.bf16.mxu0 0
      %3389 = vmatpush1.bf16.msra.mxu0 0
      %3390 = vmatprep.subr.bf16.mxu0 %v3146
      %3391 = vmatpush1.bf16.msra.mxu0 %v3143
      %3392 = vmatprep.subr.bf16.mxu0 %v3027
      %3393 = vmatpush1.bf16.msra.mxu0 %v3026
      %3394 = vmatprep.subr.bf16.mxu0 0
      %3395 = vmatpush2.bf16.msra.mxu0 0
      %3396 = vmatprep.subr.bf16.mxu0 0
      %3397 = vmatpush2.bf16.msra.mxu0 0
      %3398 = vmatprep.subr.bf16.mxu0 0
      %3399 = vmatpush2.bf16.msra.mxu0 0
      %3400 = vmatprep.subr.bf16.mxu0 0
      %3401 = vmatpush2.bf16.msra.mxu0 0
      %3402 = vmatprep.subr.bf16.mxu0 0
      %3403 = vmatpush2.bf16.msra.mxu0 0
      %3404 = vmatprep.subr.bf16.mxu0 0
      %3405 = vmatpush2.bf16.msra.mxu0 0
      %3406 = vmatprep.subr.bf16.mxu0 0
      %3407 = vmatpush2.bf16.msra.mxu0 0
      %3408 = vmatprep.subr.bf16.mxu0 0
      %3409 = vmatpush2.bf16.msra.mxu0 0
      %3410 = vmatprep.mubr.bf16.mxu0 0
      %3411 = vmatmul.mubr.bf16.gmra.mxu0 %v3116
      %v3412 = vpop.f32.mrf.mxu0
      %v3413 = vadd.f32 0.0, %v3412
      %v3414 = vpop.f32.mrf.mxu0
      %v3415 = vadd.f32 0.0, %v3414
      %v3416 = vpop.f32.mrf.mxu0
      %v3417 = vpop.f32.mrf.mxu0
      %3418 = vdwg.mxu0
      %3419 = vmatprep.subr.bf16.mxu0 0
      %3420 = vmatpush1.bf16.msra.mxu0 0
      %3421 = vmatprep.subr.bf16.mxu0 0
      %3422 = vmatpush1.bf16.msra.mxu0 0
      %3423 = vmatprep.subr.bf16.mxu0 0
      %3424 = vmatpush1.bf16.msra.mxu0 0
      %3425 = vmatprep.subr.bf16.mxu0 0
      %3426 = vmatpush1.bf16.msra.mxu0 0
      %3427 = vmatprep.subr.bf16.mxu0 0
      %3428 = vmatpush1.bf16.msra.mxu0 0
      %3429 = vmatprep.subr.bf16.mxu0 0
      %3430 = vmatpush1.bf16.msra.mxu0 0
      %3431 = vmatprep.subr.bf16.mxu0 %v3152
      %3432 = vmatpush1.bf16.msra.mxu0 %v3149
      %3433 = vmatprep.subr.bf16.mxu0 %v3029
      %3434 = vmatpush1.bf16.msra.mxu0 %v3028
      %3435 = vmatprep.subr.bf16.mxu0 0
      %3436 = vmatpush2.bf16.msra.mxu0 0
      %3437 = vmatprep.subr.bf16.mxu0 0
      %3438 = vmatpush2.bf16.msra.mxu0 0
      %3439 = vmatprep.subr.bf16.mxu0 0
      %3440 = vmatpush2.bf16.msra.mxu0 0
      %3441 = vmatprep.subr.bf16.mxu0 0
      %3442 = vmatpush2.bf16.msra.mxu0 0
      %3443 = vmatprep.subr.bf16.mxu0 0
      %3444 = vmatpush2.bf16.msra.mxu0 0
      %3445 = vmatprep.subr.bf16.mxu0 0
      %3446 = vmatpush2.bf16.msra.mxu0 0
      %3447 = vmatprep.subr.bf16.mxu0 0
      %3448 = vmatpush2.bf16.msra.mxu0 0
      %3449 = vmatprep.subr.bf16.mxu0 0
      %3450 = vmatpush2.bf16.msra.mxu0 0
      %3451 = vmatprep.mubr.bf16.mxu0 0
      %3452 = vmatmul.mubr.bf16.gmra.mxu0 %v3116
      %v3453 = vpop.f32.mrf.mxu0
      %v3454 = vadd.f32 0.0, %v3453
      %v3455 = vpop.f32.mrf.mxu0
      %v3456 = vadd.f32 0.0, %v3455
      %v3457 = vpop.f32.mrf.mxu0
      %v3458 = vpop.f32.mrf.mxu0
      %3459 = vdwg.mxu0
      %3460 = vmatprep.subr.bf16.mxu0 0
      %3461 = vmatpush1.bf16.msra.mxu0 0
      %3462 = vmatprep.subr.bf16.mxu0 0
      %3463 = vmatpush1.bf16.msra.mxu0 0
      %3464 = vmatprep.subr.bf16.mxu0 0
      %3465 = vmatpush1.bf16.msra.mxu0 0
      %3466 = vmatprep.subr.bf16.mxu0 0
      %3467 = vmatpush1.bf16.msra.mxu0 0
      %3468 = vmatprep.subr.bf16.mxu0 0
      %3469 = vmatpush1.bf16.msra.mxu0 0
      %3470 = vmatprep.subr.bf16.mxu0 0
      %3471 = vmatpush1.bf16.msra.mxu0 0
      %3472 = vmatprep.subr.bf16.mxu0 %v3158
      %3473 = vmatpush1.bf16.msra.mxu0 %v3155
      %3474 = vmatprep.subr.bf16.mxu0 %v3031
      %3475 = vmatpush1.bf16.msra.mxu0 %v3030
      %3476 = vmatprep.subr.bf16.mxu0 0
      %3477 = vmatpush2.bf16.msra.mxu0 0
      %3478 = vmatprep.subr.bf16.mxu0 0
      %3479 = vmatpush2.bf16.msra.mxu0 0
      %3480 = vmatprep.subr.bf16.mxu0 0
      %3481 = vmatpush2.bf16.msra.mxu0 0
      %3482 = vmatprep.subr.bf16.mxu0 0
      %3483 = vmatpush2.bf16.msra.mxu0 0
      %3484 = vmatprep.subr.bf16.mxu0 0
      %3485 = vmatpush2.bf16.msra.mxu0 0
      %3486 = vmatprep.subr.bf16.mxu0 0
      %3487 = vmatpush2.bf16.msra.mxu0 0
      %3488 = vmatprep.subr.bf16.mxu0 0
      %3489 = vmatpush2.bf16.msra.mxu0 0
      %3490 = vmatprep.subr.bf16.mxu0 0
      %3491 = vmatpush2.bf16.msra.mxu0 0
      %3492 = vmatprep.mubr.bf16.mxu0 0
      %3493 = vmatmul.mubr.bf16.gmra.mxu0 %v3116
      %v3494 = vpop.f32.mrf.mxu0
      %v3495 = vadd.f32 0.0, %v3494
      %v3496 = vpop.f32.mrf.mxu0
      %v3497 = vadd.f32 0.0, %v3496
      %v3498 = vpop.f32.mrf.mxu0
      %v3499 = vpop.f32.mrf.mxu0
      %3500 = vdwg.mxu0
      %3501 = vmatprep.subr.bf16.mxu0 0
      %3502 = vmatpush1.bf16.msra.mxu0 0
      %3503 = vmatprep.subr.bf16.mxu0 0
      %3504 = vmatpush1.bf16.msra.mxu0 0
      %3505 = vmatprep.subr.bf16.mxu0 0
      %3506 = vmatpush1.bf16.msra.mxu0 0
      %3507 = vmatprep.subr.bf16.mxu0 0
      %3508 = vmatpush1.bf16.msra.mxu0 0
      %3509 = vmatprep.subr.bf16.mxu0 0
      %3510 = vmatpush1.bf16.msra.mxu0 0
      %3511 = vmatprep.subr.bf16.mxu0 0
      %3512 = vmatpush1.bf16.msra.mxu0 0
      %3513 = vmatprep.subr.bf16.mxu0 %v3164
      %3514 = vmatpush1.bf16.msra.mxu0 %v3161
      %3515 = vmatprep.subr.bf16.mxu0 %v3033
      %3516 = vmatpush1.bf16.msra.mxu0 %v3032
      %3517 = vmatprep.subr.bf16.mxu0 0
      %3518 = vmatpush2.bf16.msra.mxu0 0
      %3519 = vmatprep.subr.bf16.mxu0 0
      %3520 = vmatpush2.bf16.msra.mxu0 0
      %3521 = vmatprep.subr.bf16.mxu0 0
      %3522 = vmatpush2.bf16.msra.mxu0 0
      %3523 = vmatprep.subr.bf16.mxu0 0
      %3524 = vmatpush2.bf16.msra.mxu0 0
      %3525 = vmatprep.subr.bf16.mxu0 0
      %3526 = vmatpush2.bf16.msra.mxu0 0
      %3527 = vmatprep.subr.bf16.mxu0 0
      %3528 = vmatpush2.bf16.msra.mxu0 0
      %3529 = vmatprep.subr.bf16.mxu0 0
      %3530 = vmatpush2.bf16.msra.mxu0 0
      %3531 = vmatprep.subr.bf16.mxu0 0
      %3532 = vmatpush2.bf16.msra.mxu0 0
      %3533 = vmatprep.mubr.bf16.mxu0 0
      %3534 = vmatmul.mubr.bf16.gmra.mxu0 %v3116
      %v3535 = vpop.f32.mrf.mxu0
      %v3536 = vadd.f32 0.0, %v3535
      %v3537 = vpop.f32.mrf.mxu0
      %v3538 = vadd.f32 0.0, %v3537
      %v3539 = vpop.f32.mrf.mxu0
      %v3540 = vpop.f32.mrf.mxu0
      %3541 = vdwg.mxu0
      %3542 = vmatprep.subr.bf16.mxu0 0
      %3543 = vmatpush1.bf16.msra.mxu0 0
      %3544 = vmatprep.subr.bf16.mxu0 0
      %3545 = vmatpush1.bf16.msra.mxu0 0
      %3546 = vmatprep.subr.bf16.mxu0 0
      %3547 = vmatpush1.bf16.msra.mxu0 0
      %3548 = vmatprep.subr.bf16.mxu0 0
      %3549 = vmatpush1.bf16.msra.mxu0 0
      %3550 = vmatprep.subr.bf16.mxu0 0
      %3551 = vmatpush1.bf16.msra.mxu0 0
      %3552 = vmatprep.subr.bf16.mxu0 0
      %3553 = vmatpush1.bf16.msra.mxu0 0
      %3554 = vmatprep.subr.bf16.mxu0 %v3170
      %3555 = vmatpush1.bf16.msra.mxu0 %v3167
      %3556 = vmatprep.subr.bf16.mxu0 %v3035
      %3557 = vmatpush1.bf16.msra.mxu0 %v3034
      %3558 = vmatprep.subr.bf16.mxu0 0
      %3559 = vmatpush2.bf16.msra.mxu0 0
      %3560 = vmatprep.subr.bf16.mxu0 0
      %3561 = vmatpush2.bf16.msra.mxu0 0
      %3562 = vmatprep.subr.bf16.mxu0 0
      %3563 = vmatpush2.bf16.msra.mxu0 0
      %3564 = vmatprep.subr.bf16.mxu0 0
      %3565 = vmatpush2.bf16.msra.mxu0 0
      %3566 = vmatprep.subr.bf16.mxu0 0
      %3567 = vmatpush2.bf16.msra.mxu0 0
      %3568 = vmatprep.subr.bf16.mxu0 0
      %3569 = vmatpush2.bf16.msra.mxu0 0
      %3570 = vmatprep.subr.bf16.mxu0 0
      %3571 = vmatpush2.bf16.msra.mxu0 0
      %3572 = vmatprep.subr.bf16.mxu0 0
      %3573 = vmatpush2.bf16.msra.mxu0 0
      %3574 = vmatprep.mubr.bf16.mxu0 0
      %3575 = vmatmul.mubr.bf16.gmra.mxu0 %v3116
      %v3576 = vpop.f32.mrf.mxu0
      %v3577 = vadd.f32 0.0, %v3576
      %v3578 = vpop.f32.mrf.mxu0
      %v3579 = vadd.f32 0.0, %v3578
      %v3580 = vpop.f32.mrf.mxu0
      %v3581 = vpop.f32.mrf.mxu0
      %3582 = vdwg.mxu0
      %3583 = vmatprep.subr.bf16.mxu0 0
      %3584 = vmatpush1.bf16.msra.mxu0 0
      %3585 = vmatprep.subr.bf16.mxu0 0
      %3586 = vmatpush1.bf16.msra.mxu0 0
      %3587 = vmatprep.subr.bf16.mxu0 0
      %3588 = vmatpush1.bf16.msra.mxu0 0
      %3589 = vmatprep.subr.bf16.mxu0 0
      %3590 = vmatpush1.bf16.msra.mxu0 0
      %3591 = vmatprep.subr.bf16.mxu0 0
      %3592 = vmatpush1.bf16.msra.mxu0 0
      %3593 = vmatprep.subr.bf16.mxu0 0
      %3594 = vmatpush1.bf16.msra.mxu0 0
      %3595 = vmatprep.subr.bf16.mxu0 %v3176
      %3596 = vmatpush1.bf16.msra.mxu0 %v3173
      %3597 = vmatprep.subr.bf16.mxu0 %v3037
      %3598 = vmatpush1.bf16.msra.mxu0 %v3036
      %3599 = vmatprep.subr.bf16.mxu0 0
      %3600 = vmatpush2.bf16.msra.mxu0 0
      %3601 = vmatprep.subr.bf16.mxu0 0
      %3602 = vmatpush2.bf16.msra.mxu0 0
      %3603 = vmatprep.subr.bf16.mxu0 0
      %3604 = vmatpush2.bf16.msra.mxu0 0
      %3605 = vmatprep.subr.bf16.mxu0 0
      %3606 = vmatpush2.bf16.msra.mxu0 0
      %3607 = vmatprep.subr.bf16.mxu0 0
      %3608 = vmatpush2.bf16.msra.mxu0 0
      %3609 = vmatprep.subr.bf16.mxu0 0
      %3610 = vmatpush2.bf16.msra.mxu0 0
      %3611 = vmatprep.subr.bf16.mxu0 0
      %3612 = vmatpush2.bf16.msra.mxu0 0
      %3613 = vmatprep.subr.bf16.mxu0 0
      %3614 = vmatpush2.bf16.msra.mxu0 0
      %3615 = vmatprep.mubr.bf16.mxu0 0
      %3616 = vmatmul.mubr.bf16.gmra.mxu0 %v3116
      %v3617 = vpop.f32.mrf.mxu0
      %v3618 = vadd.f32 0.0, %v3617
      %v3619 = vpop.f32.mrf.mxu0
      %v3620 = vadd.f32 0.0, %v3619
      %v3621 = vpop.f32.mrf.mxu0
      %v3622 = vpop.f32.mrf.mxu0
      %3623 = vdwg.mxu0
      %3624 = vmatprep.subr.bf16.mxu0 0
      %3625 = vmatpush1.bf16.msra.mxu0 0
      %3626 = vmatprep.subr.bf16.mxu0 0
      %3627 = vmatpush1.bf16.msra.mxu0 0
      %3628 = vmatprep.subr.bf16.mxu0 0
      %3629 = vmatpush1.bf16.msra.mxu0 0
      %3630 = vmatprep.subr.bf16.mxu0 0
      %3631 = vmatpush1.bf16.msra.mxu0 0
      %3632 = vmatprep.subr.bf16.mxu0 0
      %3633 = vmatpush1.bf16.msra.mxu0 0
      %3634 = vmatprep.subr.bf16.mxu0 0
      %3635 = vmatpush1.bf16.msra.mxu0 0
      %3636 = vmatprep.subr.bf16.mxu0 %v3182
      %3637 = vmatpush1.bf16.msra.mxu0 %v3179
      %3638 = vmatprep.subr.bf16.mxu0 %v3039
      %3639 = vmatpush1.bf16.msra.mxu0 %v3038
      %3640 = vmatprep.subr.bf16.mxu0 0
      %3641 = vmatpush2.bf16.msra.mxu0 0
      %3642 = vmatprep.subr.bf16.mxu0 0
      %3643 = vmatpush2.bf16.msra.mxu0 0
      %3644 = vmatprep.subr.bf16.mxu0 0
      %3645 = vmatpush2.bf16.msra.mxu0 0
      %3646 = vmatprep.subr.bf16.mxu0 0
      %3647 = vmatpush2.bf16.msra.mxu0 0
      %3648 = vmatprep.subr.bf16.mxu0 0
      %3649 = vmatpush2.bf16.msra.mxu0 0
      %3650 = vmatprep.subr.bf16.mxu0 0
      %3651 = vmatpush2.bf16.msra.mxu0 0
      %3652 = vmatprep.subr.bf16.mxu0 0
      %3653 = vmatpush2.bf16.msra.mxu0 0
      %3654 = vmatprep.subr.bf16.mxu0 0
      %3655 = vmatpush2.bf16.msra.mxu0 0
      %3656 = vmatprep.mubr.bf16.mxu0 0
      %3657 = vmatmul.mubr.bf16.gmra.mxu0 %v3116
      %v3658 = vpop.f32.mrf.mxu0
      %v3659 = vadd.f32 0.0, %v3658
      %v3660 = vpop.f32.mrf.mxu0
      %v3661 = vadd.f32 0.0, %v3660
      %v3662 = vpop.f32.mrf.mxu0
      %v3663 = vpop.f32.mrf.mxu0
      %3664 = vdwg.mxu0
      %3665 = vmatprep.subr.bf16.mxu0 0
      %3666 = vmatpush1.bf16.msra.mxu0 0
      %3667 = vmatprep.subr.bf16.mxu0 0
      %3668 = vmatpush1.bf16.msra.mxu0 0
      %3669 = vmatprep.subr.bf16.mxu0 0
      %3670 = vmatpush1.bf16.msra.mxu0 0
      %3671 = vmatprep.subr.bf16.mxu0 0
      %3672 = vmatpush1.bf16.msra.mxu0 0
      %3673 = vmatprep.subr.bf16.mxu0 0
      %3674 = vmatpush1.bf16.msra.mxu0 0
      %3675 = vmatprep.subr.bf16.mxu0 0
      %3676 = vmatpush1.bf16.msra.mxu0 0
      %3677 = vmatprep.subr.bf16.mxu0 %v3188
      %3678 = vmatpush1.bf16.msra.mxu0 %v3185
      %3679 = vmatprep.subr.bf16.mxu0 %v3041
      %3680 = vmatpush1.bf16.msra.mxu0 %v3040
      %3681 = vmatprep.subr.bf16.mxu0 0
      %3682 = vmatpush2.bf16.msra.mxu0 0
      %3683 = vmatprep.subr.bf16.mxu0 0
      %3684 = vmatpush2.bf16.msra.mxu0 0
      %3685 = vmatprep.subr.bf16.mxu0 0
      %3686 = vmatpush2.bf16.msra.mxu0 0
      %3687 = vmatprep.subr.bf16.mxu0 0
      %3688 = vmatpush2.bf16.msra.mxu0 0
      %3689 = vmatprep.subr.bf16.mxu0 0
      %3690 = vmatpush2.bf16.msra.mxu0 0
      %3691 = vmatprep.subr.bf16.mxu0 0
      %3692 = vmatpush2.bf16.msra.mxu0 0
      %3693 = vmatprep.subr.bf16.mxu0 0
      %3694 = vmatpush2.bf16.msra.mxu0 0
      %3695 = vmatprep.subr.bf16.mxu0 0
      %3696 = vmatpush2.bf16.msra.mxu0 0
      %3697 = vmatprep.mubr.bf16.mxu0 0
      %3698 = vmatmul.mubr.bf16.gmra.mxu0 %v3116
      %v3699 = vpop.f32.mrf.mxu0
      %v3700 = vadd.f32 0.0, %v3699
      %v3701 = vpop.f32.mrf.mxu0
      %v3702 = vadd.f32 0.0, %v3701
      %v3703 = vpop.f32.mrf.mxu0
      %v3704 = vpop.f32.mrf.mxu0
      %3705 = vdwg.mxu0
      %3706 = vmatprep.subr.bf16.mxu0 0
      %3707 = vmatpush1.bf16.msra.mxu0 0
      %3708 = vmatprep.subr.bf16.mxu0 0
      %3709 = vmatpush1.bf16.msra.mxu0 0
      %3710 = vmatprep.subr.bf16.mxu0 0
      %3711 = vmatpush1.bf16.msra.mxu0 0
      %3712 = vmatprep.subr.bf16.mxu0 0
      %3713 = vmatpush1.bf16.msra.mxu0 0
      %3714 = vmatprep.subr.bf16.mxu0 0
      %3715 = vmatpush1.bf16.msra.mxu0 0
      %3716 = vmatprep.subr.bf16.mxu0 0
      %3717 = vmatpush1.bf16.msra.mxu0 0
      %3718 = vmatprep.subr.bf16.mxu0 %v3194
      %3719 = vmatpush1.bf16.msra.mxu0 %v3191
      %3720 = vmatprep.subr.bf16.mxu0 %v3043
      %3721 = vmatpush1.bf16.msra.mxu0 %v3042
      %3722 = vmatprep.subr.bf16.mxu0 0
      %3723 = vmatpush2.bf16.msra.mxu0 0
      %3724 = vmatprep.subr.bf16.mxu0 0
      %3725 = vmatpush2.bf16.msra.mxu0 0
      %3726 = vmatprep.subr.bf16.mxu0 0
      %3727 = vmatpush2.bf16.msra.mxu0 0
      %3728 = vmatprep.subr.bf16.mxu0 0
      %3729 = vmatpush2.bf16.msra.mxu0 0
      %3730 = vmatprep.subr.bf16.mxu0 0
      %3731 = vmatpush2.bf16.msra.mxu0 0
      %3732 = vmatprep.subr.bf16.mxu0 0
      %3733 = vmatpush2.bf16.msra.mxu0 0
      %3734 = vmatprep.subr.bf16.mxu0 0
      %3735 = vmatpush2.bf16.msra.mxu0 0
      %3736 = vmatprep.subr.bf16.mxu0 0
      %3737 = vmatpush2.bf16.msra.mxu0 0
      %3738 = vmatprep.mubr.bf16.mxu0 0
      %3739 = vmatmul.mubr.bf16.gmra.mxu0 %v3116
      %v3740 = vpop.f32.mrf.mxu0
      %v3741 = vadd.f32 0.0, %v3740
      %v3742 = vpop.f32.mrf.mxu0
      %v3743 = vadd.f32 0.0, %v3742
      %v3744 = vpop.f32.mrf.mxu0
      %v3745 = vpop.f32.mrf.mxu0
      %3746 = vdwg.mxu0
      %3747 = vmatprep.subr.bf16.mxu0 0
      %3748 = vmatpush1.bf16.msra.mxu0 0
      %3749 = vmatprep.subr.bf16.mxu0 0
      %3750 = vmatpush1.bf16.msra.mxu0 0
      %3751 = vmatprep.subr.bf16.mxu0 0
      %3752 = vmatpush1.bf16.msra.mxu0 0
      %3753 = vmatprep.subr.bf16.mxu0 0
      %3754 = vmatpush1.bf16.msra.mxu0 0
      %3755 = vmatprep.subr.bf16.mxu0 0
      %3756 = vmatpush1.bf16.msra.mxu0 0
      %3757 = vmatprep.subr.bf16.mxu0 0
      %3758 = vmatpush1.bf16.msra.mxu0 0
      %3759 = vmatprep.subr.bf16.mxu0 %v3200
      %3760 = vmatpush1.bf16.msra.mxu0 %v3197
      %3761 = vmatprep.subr.bf16.mxu0 %v3045
      %3762 = vmatpush1.bf16.msra.mxu0 %v3044
      %3763 = vmatprep.subr.bf16.mxu0 0
      %3764 = vmatpush2.bf16.msra.mxu0 0
      %3765 = vmatprep.subr.bf16.mxu0 0
      %3766 = vmatpush2.bf16.msra.mxu0 0
      %3767 = vmatprep.subr.bf16.mxu0 0
      %3768 = vmatpush2.bf16.msra.mxu0 0
      %3769 = vmatprep.subr.bf16.mxu0 0
      %3770 = vmatpush2.bf16.msra.mxu0 0
      %3771 = vmatprep.subr.bf16.mxu0 0
      %3772 = vmatpush2.bf16.msra.mxu0 0
      %3773 = vmatprep.subr.bf16.mxu0 0
      %3774 = vmatpush2.bf16.msra.mxu0 0
      %3775 = vmatprep.subr.bf16.mxu0 0
      %3776 = vmatpush2.bf16.msra.mxu0 0
      %3777 = vmatprep.subr.bf16.mxu0 0
      %3778 = vmatpush2.bf16.msra.mxu0 0
      %3779 = vmatprep.mubr.bf16.mxu0 0
      %3780 = vmatmul.mubr.bf16.gmra.mxu0 %v3116
      %v3781 = vpop.f32.mrf.mxu0
      %v3782 = vadd.f32 0.0, %v3781
      %v3783 = vpop.f32.mrf.mxu0
      %v3784 = vadd.f32 0.0, %v3783
      %v3785 = vpop.f32.mrf.mxu0
      %v3786 = vpop.f32.mrf.mxu0
      %3787 = vdwg.mxu0
      %3788 = vmatprep.subr.bf16.mxu0 0
      %3789 = vmatpush1.bf16.msra.mxu0 0
      %3790 = vmatprep.subr.bf16.mxu0 0
      %3791 = vmatpush1.bf16.msra.mxu0 0
      %3792 = vmatprep.subr.bf16.mxu0 0
      %3793 = vmatpush1.bf16.msra.mxu0 0
      %3794 = vmatprep.subr.bf16.mxu0 0
      %3795 = vmatpush1.bf16.msra.mxu0 0
      %3796 = vmatprep.subr.bf16.mxu0 0
      %3797 = vmatpush1.bf16.msra.mxu0 0
      %3798 = vmatprep.subr.bf16.mxu0 0
      %3799 = vmatpush1.bf16.msra.mxu0 0
      %3800 = vmatprep.subr.bf16.mxu0 %v3206
      %3801 = vmatpush1.bf16.msra.mxu0 %v3203
      %3802 = vmatprep.subr.bf16.mxu0 %v3047
      %3803 = vmatpush1.bf16.msra.mxu0 %v3046
      %3804 = vmatprep.subr.bf16.mxu0 0
      %3805 = vmatpush2.bf16.msra.mxu0 0
      %3806 = vmatprep.subr.bf16.mxu0 0
      %3807 = vmatpush2.bf16.msra.mxu0 0
      %3808 = vmatprep.subr.bf16.mxu0 0
      %3809 = vmatpush2.bf16.msra.mxu0 0
      %3810 = vmatprep.subr.bf16.mxu0 0
      %3811 = vmatpush2.bf16.msra.mxu0 0
      %3812 = vmatprep.subr.bf16.mxu0 0
      %3813 = vmatpush2.bf16.msra.mxu0 0
      %3814 = vmatprep.subr.bf16.mxu0 0
      %3815 = vmatpush2.bf16.msra.mxu0 0
      %3816 = vmatprep.subr.bf16.mxu0 0
      %3817 = vmatpush2.bf16.msra.mxu0 0
      %3818 = vmatprep.subr.bf16.mxu0 0
      %3819 = vmatpush2.bf16.msra.mxu0 0
      %3820 = vmatprep.mubr.bf16.mxu0 0
      %3821 = vmatmul.mubr.bf16.gmra.mxu0 %v3116
      %v3822 = vpop.f32.mrf.mxu0
      %v3823 = vadd.f32 0.0, %v3822
      %v3824 = vpop.f32.mrf.mxu0
      %v3825 = vadd.f32 0.0, %v3824
      %v3826 = vpop.f32.mrf.mxu0
      %v3827 = vpop.f32.mrf.mxu0
      %3828 = vdwg.mxu0
      %3829 = vmatprep.subr.bf16.mxu0 0
      %3830 = vmatpush1.bf16.msra.mxu0 0
      %3831 = vmatprep.subr.bf16.mxu0 0
      %3832 = vmatpush1.bf16.msra.mxu0 0
      %3833 = vmatprep.subr.bf16.mxu0 0
      %3834 = vmatpush1.bf16.msra.mxu0 0
      %3835 = vmatprep.subr.bf16.mxu0 0
      %3836 = vmatpush1.bf16.msra.mxu0 0
      %3837 = vmatprep.subr.bf16.mxu0 0
      %3838 = vmatpush1.bf16.msra.mxu0 0
      %3839 = vmatprep.subr.bf16.mxu0 0
      %3840 = vmatpush1.bf16.msra.mxu0 0
      %3841 = vmatprep.subr.bf16.mxu0 %v3212
      %3842 = vmatpush1.bf16.msra.mxu0 %v3209
      %3843 = vmatprep.subr.bf16.mxu0 %v3049
      %3844 = vmatpush1.bf16.msra.mxu0 %v3048
      %3845 = vmatprep.subr.bf16.mxu0 0
      %3846 = vmatpush2.bf16.msra.mxu0 0
      %3847 = vmatprep.subr.bf16.mxu0 0
      %3848 = vmatpush2.bf16.msra.mxu0 0
      %3849 = vmatprep.subr.bf16.mxu0 0
      %3850 = vmatpush2.bf16.msra.mxu0 0
      %3851 = vmatprep.subr.bf16.mxu0 0
      %3852 = vmatpush2.bf16.msra.mxu0 0
      %3853 = vmatprep.subr.bf16.mxu0 0
      %3854 = vmatpush2.bf16.msra.mxu0 0
      %3855 = vmatprep.subr.bf16.mxu0 0
      %3856 = vmatpush2.bf16.msra.mxu0 0
      %3857 = vmatprep.subr.bf16.mxu0 0
      %3858 = vmatpush2.bf16.msra.mxu0 0
      %3859 = vmatprep.subr.bf16.mxu0 0
      %3860 = vmatpush2.bf16.msra.mxu0 0
      %3861 = vmatprep.mubr.bf16.mxu0 0
      %3862 = vmatmul.mubr.bf16.gmra.mxu0 %v3116
      %v3863 = vpop.f32.mrf.mxu0
      %v3864 = vadd.f32 0.0, %v3863
      %v3865 = vpop.f32.mrf.mxu0
      %v3866 = vadd.f32 0.0, %v3865
      %v3867 = vpop.f32.mrf.mxu0
      %v3868 = vpop.f32.mrf.mxu0
      %3869 = vdwg.mxu0
      %v3918 = vunpack.c.l.b16 %v2175
      %v3919 = vunpack.c.h.b16 %v2175
      %v3920 = vunpack.c.l.b16 %v2176
      %v3921 = vunpack.c.h.b16 %v2176
      %v3922 = vunpack.c.l.b16 %v2177
      %v3923 = vunpack.c.h.b16 %v2177
      %v3924 = vunpack.c.l.b16 %v2178
      %v3925 = vunpack.c.h.b16 %v2178
      %v3926 = vunpack.c.l.b16 %v2179
      %v3927 = vunpack.c.h.b16 %v2179
      %v3928 = vunpack.c.l.b16 %v2180
      %v3929 = vunpack.c.h.b16 %v2180
      %v3930 = vunpack.c.l.b16 %v2181
      %v3931 = vunpack.c.h.b16 %v2181
      %v3932 = vunpack.c.l.b16 %v2182
      %v3933 = vunpack.c.h.b16 %v2182
      %v3934 = vunpack.c.l.b16 %v2183
      %v3935 = vunpack.c.h.b16 %v2183
      %v3936 = vunpack.c.l.b16 %v2184
      %v3937 = vunpack.c.h.b16 %v2184
      %v3938 = vunpack.c.l.b16 %v2185
      %v3939 = vunpack.c.h.b16 %v2185
      %v3940 = vunpack.c.l.b16 %v2186
      %v3941 = vunpack.c.h.b16 %v2186
      %v3942 = vunpack.c.l.b16 %v2187
      %v3943 = vunpack.c.h.b16 %v2187
      %v3944 = vunpack.c.l.b16 %v2188
      %v3945 = vunpack.c.h.b16 %v2188
      %v3946 = vunpack.c.l.b16 %v2189
      %v3947 = vunpack.c.h.b16 %v2189
      %v3948 = vunpack.c.l.b16 %v2190
      %v3949 = vunpack.c.h.b16 %v2190
      %v3950 = vunpack.c.l.b16 %v2191
      %v3951 = vunpack.c.h.b16 %v2191
      %v3952 = vunpack.c.l.b16 %v2192
      %v3953 = vunpack.c.h.b16 %v2192
      %v3954 = vunpack.c.l.b16 %v2193
      %v3955 = vunpack.c.h.b16 %v2193
      %v3956 = vunpack.c.l.b16 %v2194
      %v3957 = vunpack.c.h.b16 %v2194
      %v3958 = vunpack.c.l.b16 %v2195
      %v3959 = vunpack.c.h.b16 %v2195
      %v3960 = vunpack.c.l.b16 %v2196
      %v3961 = vunpack.c.h.b16 %v2196
      %v3962 = vunpack.c.l.b16 %v2197
      %v3963 = vunpack.c.h.b16 %v2197
      %v3964 = vunpack.c.l.b16 %v2198
      %v3965 = vunpack.c.h.b16 %v2198
      %v3966 = vunpack.c.l.b16 %v2199
      %v3967 = vunpack.c.h.b16 %v2199
      %v3968 = vunpack.c.l.b16 %v2200
      %v3969 = vunpack.c.h.b16 %v2200
      %v3970 = vunpack.c.l.b16 %v2201
      %v3971 = vunpack.c.h.b16 %v2201
      %v3972 = vunpack.c.l.b16 %v2202
      %v3973 = vunpack.c.h.b16 %v2202
      %v3974 = vunpack.c.l.b16 %v2203
      %v3975 = vunpack.c.h.b16 %v2203
      %v3976 = vunpack.c.l.b16 %v2204
      %v3977 = vunpack.c.h.b16 %v2204
      %v3978 = vunpack.c.l.b16 %v2205
      %v3979 = vunpack.c.h.b16 %v2205
      %v3980 = vunpack.c.l.b16 %v2206
      %v3981 = vunpack.c.h.b16 %v2206
      %v3982 = vunpack.c.l.b16 %v2207
      %v3983 = vunpack.c.h.b16 %v2207
      %v3984 = vunpack.c.l.b16 %v2208
      %v3985 = vunpack.c.h.b16 %v2208
      %v3986 = vunpack.c.l.b16 %v2209
      %v3987 = vunpack.c.h.b16 %v2209
      %v3988 = vunpack.c.l.b16 %v2210
      %v3989 = vunpack.c.h.b16 %v2210
      %v3990 = vunpack.c.l.b16 %v2211
      %v3991 = vunpack.c.h.b16 %v2211
      %v3992 = vunpack.c.l.b16 %v2212
      %v3993 = vunpack.c.h.b16 %v2212
      %v3994 = vunpack.c.l.b16 %v2213
      %v3995 = vunpack.c.h.b16 %v2213
      %v3996 = vunpack.c.l.b16 %v2214
      %v3997 = vunpack.c.h.b16 %v2214
      %v3998 = vunpack.c.l.b16 %v2215
      %v3999 = vunpack.c.h.b16 %v2215
      %v4000 = vunpack.c.l.b16 %v2216
      %v4001 = vunpack.c.h.b16 %v2216
      %v4002 = vunpack.c.l.b16 %v2217
      %v4003 = vunpack.c.h.b16 %v2217
      %v4004 = vunpack.c.l.b16 %v2218
      %v4005 = vunpack.c.h.b16 %v2218
      %v4006 = vunpack.c.l.b16 %v2219
      %v4007 = vunpack.c.h.b16 %v2219
      %v4008 = vunpack.c.l.b16 %v2220
      %v4009 = vunpack.c.h.b16 %v2220
      %v4010 = vunpack.c.l.b16 %v2221
      %v4011 = vunpack.c.h.b16 %v2221
      %v4012 = vunpack.c.l.b16 %v2222
      %v4013 = vunpack.c.h.b16 %v2222
      %v4014 = vpack.c.b16 %v3950, %v3918
      %v4015 = vpack.c.b16 %v3951, %v3919
      %v4016 = vpack.c.b16 %v3952, %v3920
      %v4017 = vpack.c.b16 %v3953, %v3921
      %v4018 = vpack.c.b16 %v3954, %v3922
      %v4019 = vpack.c.b16 %v3955, %v3923
      %v4020 = vpack.c.b16 %v3956, %v3924
      %v4021 = vpack.c.b16 %v3957, %v3925
      %v4022 = vpack.c.b16 %v3958, %v3926
      %v4023 = vpack.c.b16 %v3959, %v3927
      %v4024 = vpack.c.b16 %v3960, %v3928
      %v4025 = vpack.c.b16 %v3961, %v3929
      %v4026 = vpack.c.b16 %v3962, %v3930
      %v4027 = vpack.c.b16 %v3963, %v3931
      %v4028 = vpack.c.b16 %v3964, %v3932
      %v4029 = vpack.c.b16 %v3965, %v3933
      %v4030 = vpack.c.b16 %v3966, %v3934
      %v4031 = vpack.c.b16 %v3967, %v3935
      %v4032 = vpack.c.b16 %v3968, %v3936
      %v4033 = vpack.c.b16 %v3969, %v3937
      %v4034 = vpack.c.b16 %v3970, %v3938
      %v4035 = vpack.c.b16 %v3971, %v3939
      %v4036 = vpack.c.b16 %v3972, %v3940
      %v4037 = vpack.c.b16 %v3973, %v3941
      %v4038 = vpack.c.b16 %v3974, %v3942
      %v4039 = vpack.c.b16 %v3975, %v3943
      %v4040 = vpack.c.b16 %v3976, %v3944
      %v4041 = vpack.c.b16 %v3977, %v3945
      %v4042 = vpack.c.b16 %v3978, %v3946
      %v4043 = vpack.c.b16 %v3979, %v3947
      %v4044 = vpack.c.b16 %v3980, %v3948
      %v4045 = vpack.c.b16 %v3981, %v3949
      %v4046 = vpack.c.b16 %v3982, %v3982
      %v4047 = vpack.c.b16 %v3983, %v3983
      %v4048 = vpack.c.b16 %v3984, %v3984
      %v4049 = vpack.c.b16 %v3985, %v3985
      %v4050 = vpack.c.b16 %v3986, %v3986
      %v4051 = vpack.c.b16 %v3987, %v3987
      %v4052 = vpack.c.b16 %v3988, %v3988
      %v4053 = vpack.c.b16 %v3989, %v3989
      %v4054 = vpack.c.b16 %v3990, %v3990
      %v4055 = vpack.c.b16 %v3991, %v3991
      %v4056 = vpack.c.b16 %v3992, %v3992
      %v4057 = vpack.c.b16 %v3993, %v3993
      %v4058 = vpack.c.b16 %v3994, %v3994
      %v4059 = vpack.c.b16 %v3995, %v3995
      %v4060 = vpack.c.b16 %v3996, %v3996
      %v4061 = vpack.c.b16 %v3997, %v3997
      %v4062 = vpack.c.b16 %v3998, %v3998
      %v4063 = vpack.c.b16 %v3999, %v3999
      %v4064 = vpack.c.b16 %v4000, %v4000
      %v4065 = vpack.c.b16 %v4001, %v4001
      %v4066 = vpack.c.b16 %v4002, %v4002
      %v4067 = vpack.c.b16 %v4003, %v4003
      %v4068 = vpack.c.b16 %v4004, %v4004
      %v4069 = vpack.c.b16 %v4005, %v4005
      %v4070 = vpack.c.b16 %v4006, %v4006
      %v4071 = vpack.c.b16 %v4007, %v4007
      %v4072 = vpack.c.b16 %v4008, %v4008
      %v4073 = vpack.c.b16 %v4009, %v4009
      %v4074 = vpack.c.b16 %v4010, %v4010
      %v4075 = vpack.c.b16 %v4011, %v4011
      %v4076 = vpack.c.b16 %v4012, %v4012
      %v4077 = vpack.c.b16 %v4013, %v4013
      %v4111 = vsel %vm3114, %v2174, 0
      %v4114 = vsel %vm2168, %v4046, 0
      %v4117 = vsel %vm2168, %v4047, 0
      %v4120 = vsel %vm2168, %v4048, 0
      %v4123 = vsel %vm2168, %v4049, 0
      %v4126 = vsel %vm2168, %v4050, 0
      %v4129 = vsel %vm2168, %v4051, 0
      %v4132 = vsel %vm2168, %v4052, 0
      %v4135 = vsel %vm2168, %v4053, 0
      %v4138 = vsel %vm2168, %v4054, 0
      %v4141 = vsel %vm2168, %v4055, 0
      %v4144 = vsel %vm2168, %v4056, 0
      %v4147 = vsel %vm2168, %v4057, 0
      %v4150 = vsel %vm2168, %v4058, 0
      %v4153 = vsel %vm2168, %v4059, 0
      %v4156 = vsel %vm2168, %v4060, 0
      %v4159 = vsel %vm2168, %v4061, 0
      %v4162 = vsel %vm2168, %v4062, 0
      %v4165 = vsel %vm2168, %v4063, 0
      %v4168 = vsel %vm2168, %v4064, 0
      %v4171 = vsel %vm2168, %v4065, 0
      %v4174 = vsel %vm2168, %v4066, 0
      %v4177 = vsel %vm2168, %v4067, 0
      %v4180 = vsel %vm2168, %v4068, 0
      %v4183 = vsel %vm2168, %v4069, 0
      %v4186 = vsel %vm2168, %v4070, 0
      %v4189 = vsel %vm2168, %v4071, 0
      %v4192 = vsel %vm2168, %v4072, 0
      %v4195 = vsel %vm2168, %v4073, 0
      %v4198 = vsel %vm2168, %v4074, 0
      %v4201 = vsel %vm2168, %v4075, 0
      %v4204 = vsel %vm2168, %v4076, 0
      %v4207 = vsel %vm2168, %v4077, 0
      %4209 = vmatprep.subr.bf16.mxu0 0
      %4210 = vmatpush1.bf16.msra.mxu0 0
      %4211 = vmatprep.subr.bf16.mxu0 0
      %4212 = vmatpush1.bf16.msra.mxu0 0
      %4213 = vmatprep.subr.bf16.mxu0 0
      %4214 = vmatpush1.bf16.msra.mxu0 0
      %4215 = vmatprep.subr.bf16.mxu0 0
      %4216 = vmatpush1.bf16.msra.mxu0 0
      %4217 = vmatprep.subr.bf16.mxu0 0
      %4218 = vmatpush1.bf16.msra.mxu0 0
      %4219 = vmatprep.subr.bf16.mxu0 0
      %4220 = vmatpush1.bf16.msra.mxu0 0
      %4221 = vmatprep.subr.bf16.mxu0 %v4117
      %4222 = vmatpush1.bf16.msra.mxu0 %v4114
      %4223 = vmatprep.subr.bf16.mxu0 %v4015
      %4224 = vmatpush1.bf16.msra.mxu0 %v4014
      %4225 = vmatprep.subr.bf16.mxu0 0
      %4226 = vmatpush2.bf16.msra.mxu0 0
      %4227 = vmatprep.subr.bf16.mxu0 0
      %4228 = vmatpush2.bf16.msra.mxu0 0
      %4229 = vmatprep.subr.bf16.mxu0 0
      %4230 = vmatpush2.bf16.msra.mxu0 0
      %4231 = vmatprep.subr.bf16.mxu0 0
      %4232 = vmatpush2.bf16.msra.mxu0 0
      %4233 = vmatprep.subr.bf16.mxu0 0
      %4234 = vmatpush2.bf16.msra.mxu0 0
      %4235 = vmatprep.subr.bf16.mxu0 0
      %4236 = vmatpush2.bf16.msra.mxu0 0
      %4237 = vmatprep.subr.bf16.mxu0 0
      %4238 = vmatpush2.bf16.msra.mxu0 0
      %4239 = vmatprep.subr.bf16.mxu0 0
      %4240 = vmatpush2.bf16.msra.mxu0 0
      %4241 = vmatprep.mubr.bf16.mxu0 0
      %4242 = vmatmul.mubr.bf16.gmra.mxu0 %v4111
      %v4243 = vpop.f32.mrf.mxu0
      %v4244 = vadd.f32 %v3249, %v4243
      %v4245 = vpop.f32.mrf.mxu0
      %v4246 = vadd.f32 %v3251, %v4245
      %v4247 = vpop.f32.mrf.mxu0
      %v4248 = vpop.f32.mrf.mxu0
      %4249 = vdwg.mxu0
      %4250 = vmatprep.subr.bf16.mxu0 0
      %4251 = vmatpush1.bf16.msra.mxu0 0
      %4252 = vmatprep.subr.bf16.mxu0 0
      %4253 = vmatpush1.bf16.msra.mxu0 0
      %4254 = vmatprep.subr.bf16.mxu0 0
      %4255 = vmatpush1.bf16.msra.mxu0 0
      %4256 = vmatprep.subr.bf16.mxu0 0
      %4257 = vmatpush1.bf16.msra.mxu0 0
      %4258 = vmatprep.subr.bf16.mxu0 0
      %4259 = vmatpush1.bf16.msra.mxu0 0
      %4260 = vmatprep.subr.bf16.mxu0 0
      %4261 = vmatpush1.bf16.msra.mxu0 0
      %4262 = vmatprep.subr.bf16.mxu0 %v4123
      %4263 = vmatpush1.bf16.msra.mxu0 %v4120
      %4264 = vmatprep.subr.bf16.mxu0 %v4017
      %4265 = vmatpush1.bf16.msra.mxu0 %v4016
      %4266 = vmatprep.subr.bf16.mxu0 0
      %4267 = vmatpush2.bf16.msra.mxu0 0
      %4268 = vmatprep.subr.bf16.mxu0 0
      %4269 = vmatpush2.bf16.msra.mxu0 0
      %4270 = vmatprep.subr.bf16.mxu0 0
      %4271 = vmatpush2.bf16.msra.mxu0 0
      %4272 = vmatprep.subr.bf16.mxu0 0
      %4273 = vmatpush2.bf16.msra.mxu0 0
      %4274 = vmatprep.subr.bf16.mxu0 0
      %4275 = vmatpush2.bf16.msra.mxu0 0
      %4276 = vmatprep.subr.bf16.mxu0 0
      %4277 = vmatpush2.bf16.msra.mxu0 0
      %4278 = vmatprep.subr.bf16.mxu0 0
      %4279 = vmatpush2.bf16.msra.mxu0 0
      %4280 = vmatprep.subr.bf16.mxu0 0
      %4281 = vmatpush2.bf16.msra.mxu0 0
      %4282 = vmatprep.mubr.bf16.mxu0 0
      %4283 = vmatmul.mubr.bf16.gmra.mxu0 %v4111
      %v4284 = vpop.f32.mrf.mxu0
      %v4285 = vadd.f32 %v3290, %v4284
      %v4286 = vpop.f32.mrf.mxu0
      %v4287 = vadd.f32 %v3292, %v4286
      %v4288 = vpop.f32.mrf.mxu0
      %v4289 = vpop.f32.mrf.mxu0
      %4290 = vdwg.mxu0
      %4291 = vmatprep.subr.bf16.mxu0 0
      %4292 = vmatpush1.bf16.msra.mxu0 0
      %4293 = vmatprep.subr.bf16.mxu0 0
      %4294 = vmatpush1.bf16.msra.mxu0 0
      %4295 = vmatprep.subr.bf16.mxu0 0
      %4296 = vmatpush1.bf16.msra.mxu0 0
      %4297 = vmatprep.subr.bf16.mxu0 0
      %4298 = vmatpush1.bf16.msra.mxu0 0
      %4299 = vmatprep.subr.bf16.mxu0 0
      %4300 = vmatpush1.bf16.msra.mxu0 0
      %4301 = vmatprep.subr.bf16.mxu0 0
      %4302 = vmatpush1.bf16.msra.mxu0 0
      %4303 = vmatprep.subr.bf16.mxu0 %v4129
      %4304 = vmatpush1.bf16.msra.mxu0 %v4126
      %4305 = vmatprep.subr.bf16.mxu0 %v4019
      %4306 = vmatpush1.bf16.msra.mxu0 %v4018
      %4307 = vmatprep.subr.bf16.mxu0 0
      %4308 = vmatpush2.bf16.msra.mxu0 0
      %4309 = vmatprep.subr.bf16.mxu0 0
      %4310 = vmatpush2.bf16.msra.mxu0 0
      %4311 = vmatprep.subr.bf16.mxu0 0
      %4312 = vmatpush2.bf16.msra.mxu0 0
      %4313 = vmatprep.subr.bf16.mxu0 0
      %4314 = vmatpush2.bf16.msra.mxu0 0
      %4315 = vmatprep.subr.bf16.mxu0 0
      %4316 = vmatpush2.bf16.msra.mxu0 0
      %4317 = vmatprep.subr.bf16.mxu0 0
      %4318 = vmatpush2.bf16.msra.mxu0 0
      %4319 = vmatprep.subr.bf16.mxu0 0
      %4320 = vmatpush2.bf16.msra.mxu0 0
      %4321 = vmatprep.subr.bf16.mxu0 0
      %4322 = vmatpush2.bf16.msra.mxu0 0
      %4323 = vmatprep.mubr.bf16.mxu0 0
      %4324 = vmatmul.mubr.bf16.gmra.mxu0 %v4111
      %v4325 = vpop.f32.mrf.mxu0
      %v4326 = vadd.f32 %v3331, %v4325
      %v4327 = vpop.f32.mrf.mxu0
      %v4328 = vadd.f32 %v3333, %v4327
      %v4329 = vpop.f32.mrf.mxu0
      %v4330 = vpop.f32.mrf.mxu0
      %4331 = vdwg.mxu0
      %4332 = vmatprep.subr.bf16.mxu0 0
      %4333 = vmatpush1.bf16.msra.mxu0 0
      %4334 = vmatprep.subr.bf16.mxu0 0
      %4335 = vmatpush1.bf16.msra.mxu0 0
      %4336 = vmatprep.subr.bf16.mxu0 0
      %4337 = vmatpush1.bf16.msra.mxu0 0
      %4338 = vmatprep.subr.bf16.mxu0 0
      %4339 = vmatpush1.bf16.msra.mxu0 0
      %4340 = vmatprep.subr.bf16.mxu0 0
      %4341 = vmatpush1.bf16.msra.mxu0 0
      %4342 = vmatprep.subr.bf16.mxu0 0
      %4343 = vmatpush1.bf16.msra.mxu0 0
      %4344 = vmatprep.subr.bf16.mxu0 %v4135
      %4345 = vmatpush1.bf16.msra.mxu0 %v4132
      %4346 = vmatprep.subr.bf16.mxu0 %v4021
      %4347 = vmatpush1.bf16.msra.mxu0 %v4020
      %4348 = vmatprep.subr.bf16.mxu0 0
      %4349 = vmatpush2.bf16.msra.mxu0 0
      %4350 = vmatprep.subr.bf16.mxu0 0
      %4351 = vmatpush2.bf16.msra.mxu0 0
      %4352 = vmatprep.subr.bf16.mxu0 0
      %4353 = vmatpush2.bf16.msra.mxu0 0
      %4354 = vmatprep.subr.bf16.mxu0 0
      %4355 = vmatpush2.bf16.msra.mxu0 0
      %4356 = vmatprep.subr.bf16.mxu0 0
      %4357 = vmatpush2.bf16.msra.mxu0 0
      %4358 = vmatprep.subr.bf16.mxu0 0
      %4359 = vmatpush2.bf16.msra.mxu0 0
      %4360 = vmatprep.subr.bf16.mxu0 0
      %4361 = vmatpush2.bf16.msra.mxu0 0
      %4362 = vmatprep.subr.bf16.mxu0 0
      %4363 = vmatpush2.bf16.msra.mxu0 0
      %4364 = vmatprep.mubr.bf16.mxu0 0
      %4365 = vmatmul.mubr.bf16.gmra.mxu0 %v4111
      %v4366 = vpop.f32.mrf.mxu0
      %v4367 = vadd.f32 %v3372, %v4366
      %v4368 = vpop.f32.mrf.mxu0
      %v4369 = vadd.f32 %v3374, %v4368
      %v4370 = vpop.f32.mrf.mxu0
      %v4371 = vpop.f32.mrf.mxu0
      %4372 = vdwg.mxu0
      %4373 = vmatprep.subr.bf16.mxu0 0
      %4374 = vmatpush1.bf16.msra.mxu0 0
      %4375 = vmatprep.subr.bf16.mxu0 0
      %4376 = vmatpush1.bf16.msra.mxu0 0
      %4377 = vmatprep.subr.bf16.mxu0 0
      %4378 = vmatpush1.bf16.msra.mxu0 0
      %4379 = vmatprep.subr.bf16.mxu0 0
      %4380 = vmatpush1.bf16.msra.mxu0 0
      %4381 = vmatprep.subr.bf16.mxu0 0
      %4382 = vmatpush1.bf16.msra.mxu0 0
      %4383 = vmatprep.subr.bf16.mxu0 0
      %4384 = vmatpush1.bf16.msra.mxu0 0
      %4385 = vmatprep.subr.bf16.mxu0 %v4141
      %4386 = vmatpush1.bf16.msra.mxu0 %v4138
      %4387 = vmatprep.subr.bf16.mxu0 %v4023
      %4388 = vmatpush1.bf16.msra.mxu0 %v4022
      %4389 = vmatprep.subr.bf16.mxu0 0
      %4390 = vmatpush2.bf16.msra.mxu0 0
      %4391 = vmatprep.subr.bf16.mxu0 0
      %4392 = vmatpush2.bf16.msra.mxu0 0
      %4393 = vmatprep.subr.bf16.mxu0 0
      %4394 = vmatpush2.bf16.msra.mxu0 0
      %4395 = vmatprep.subr.bf16.mxu0 0
      %4396 = vmatpush2.bf16.msra.mxu0 0
      %4397 = vmatprep.subr.bf16.mxu0 0
      %4398 = vmatpush2.bf16.msra.mxu0 0
      %4399 = vmatprep.subr.bf16.mxu0 0
      %4400 = vmatpush2.bf16.msra.mxu0 0
      %4401 = vmatprep.subr.bf16.mxu0 0
      %4402 = vmatpush2.bf16.msra.mxu0 0
      %4403 = vmatprep.subr.bf16.mxu0 0
      %4404 = vmatpush2.bf16.msra.mxu0 0
      %4405 = vmatprep.mubr.bf16.mxu0 0
      %4406 = vmatmul.mubr.bf16.gmra.mxu0 %v4111
      %v4407 = vpop.f32.mrf.mxu0
      %v4408 = vadd.f32 %v3413, %v4407
      %v4409 = vpop.f32.mrf.mxu0
      %v4410 = vadd.f32 %v3415, %v4409
      %v4411 = vpop.f32.mrf.mxu0
      %v4412 = vpop.f32.mrf.mxu0
      %4413 = vdwg.mxu0
      %4414 = vmatprep.subr.bf16.mxu0 0
      %4415 = vmatpush1.bf16.msra.mxu0 0
      %4416 = vmatprep.subr.bf16.mxu0 0
      %4417 = vmatpush1.bf16.msra.mxu0 0
      %4418 = vmatprep.subr.bf16.mxu0 0
      %4419 = vmatpush1.bf16.msra.mxu0 0
      %4420 = vmatprep.subr.bf16.mxu0 0
      %4421 = vmatpush1.bf16.msra.mxu0 0
      %4422 = vmatprep.subr.bf16.mxu0 0
      %4423 = vmatpush1.bf16.msra.mxu0 0
      %4424 = vmatprep.subr.bf16.mxu0 0
      %4425 = vmatpush1.bf16.msra.mxu0 0
      %4426 = vmatprep.subr.bf16.mxu0 %v4147
      %4427 = vmatpush1.bf16.msra.mxu0 %v4144
      %4428 = vmatprep.subr.bf16.mxu0 %v4025
      %4429 = vmatpush1.bf16.msra.mxu0 %v4024
      %4430 = vmatprep.subr.bf16.mxu0 0
      %4431 = vmatpush2.bf16.msra.mxu0 0
      %4432 = vmatprep.subr.bf16.mxu0 0
      %4433 = vmatpush2.bf16.msra.mxu0 0
      %4434 = vmatprep.subr.bf16.mxu0 0
      %4435 = vmatpush2.bf16.msra.mxu0 0
      %4436 = vmatprep.subr.bf16.mxu0 0
      %4437 = vmatpush2.bf16.msra.mxu0 0
      %4438 = vmatprep.subr.bf16.mxu0 0
      %4439 = vmatpush2.bf16.msra.mxu0 0
      %4440 = vmatprep.subr.bf16.mxu0 0
      %4441 = vmatpush2.bf16.msra.mxu0 0
      %4442 = vmatprep.subr.bf16.mxu0 0
      %4443 = vmatpush2.bf16.msra.mxu0 0
      %4444 = vmatprep.subr.bf16.mxu0 0
      %4445 = vmatpush2.bf16.msra.mxu0 0
      %4446 = vmatprep.mubr.bf16.mxu0 0
      %4447 = vmatmul.mubr.bf16.gmra.mxu0 %v4111
      %v4448 = vpop.f32.mrf.mxu0
      %v4449 = vadd.f32 %v3454, %v4448
      %v4450 = vpop.f32.mrf.mxu0
      %v4451 = vadd.f32 %v3456, %v4450
      %v4452 = vpop.f32.mrf.mxu0
      %v4453 = vpop.f32.mrf.mxu0
      %4454 = vdwg.mxu0
      %4455 = vmatprep.subr.bf16.mxu0 0
      %4456 = vmatpush1.bf16.msra.mxu0 0
      %4457 = vmatprep.subr.bf16.mxu0 0
      %4458 = vmatpush1.bf16.msra.mxu0 0
      %4459 = vmatprep.subr.bf16.mxu0 0
      %4460 = vmatpush1.bf16.msra.mxu0 0
      %4461 = vmatprep.subr.bf16.mxu0 0
      %4462 = vmatpush1.bf16.msra.mxu0 0
      %4463 = vmatprep.subr.bf16.mxu0 0
      %4464 = vmatpush1.bf16.msra.mxu0 0
      %4465 = vmatprep.subr.bf16.mxu0 0
      %4466 = vmatpush1.bf16.msra.mxu0 0
      %4467 = vmatprep.subr.bf16.mxu0 %v4153
      %4468 = vmatpush1.bf16.msra.mxu0 %v4150
      %4469 = vmatprep.subr.bf16.mxu0 %v4027
      %4470 = vmatpush1.bf16.msra.mxu0 %v4026
      %4471 = vmatprep.subr.bf16.mxu0 0
      %4472 = vmatpush2.bf16.msra.mxu0 0
      %4473 = vmatprep.subr.bf16.mxu0 0
      %4474 = vmatpush2.bf16.msra.mxu0 0
      %4475 = vmatprep.subr.bf16.mxu0 0
      %4476 = vmatpush2.bf16.msra.mxu0 0
      %4477 = vmatprep.subr.bf16.mxu0 0
      %4478 = vmatpush2.bf16.msra.mxu0 0
      %4479 = vmatprep.subr.bf16.mxu0 0
      %4480 = vmatpush2.bf16.msra.mxu0 0
      %4481 = vmatprep.subr.bf16.mxu0 0
      %4482 = vmatpush2.bf16.msra.mxu0 0
      %4483 = vmatprep.subr.bf16.mxu0 0
      %4484 = vmatpush2.bf16.msra.mxu0 0
      %4485 = vmatprep.subr.bf16.mxu0 0
      %4486 = vmatpush2.bf16.msra.mxu0 0
      %4487 = vmatprep.mubr.bf16.mxu0 0
      %4488 = vmatmul.mubr.bf16.gmra.mxu0 %v4111
      %v4489 = vpop.f32.mrf.mxu0
      %v4490 = vadd.f32 %v3495, %v4489
      %v4491 = vpop.f32.mrf.mxu0
      %v4492 = vadd.f32 %v3497, %v4491
      %v4493 = vpop.f32.mrf.mxu0
      %v4494 = vpop.f32.mrf.mxu0
      %4495 = vdwg.mxu0
      %4496 = vmatprep.subr.bf16.mxu0 0
      %4497 = vmatpush1.bf16.msra.mxu0 0
      %4498 = vmatprep.subr.bf16.mxu0 0
      %4499 = vmatpush1.bf16.msra.mxu0 0
      %4500 = vmatprep.subr.bf16.mxu0 0
      %4501 = vmatpush1.bf16.msra.mxu0 0
      %4502 = vmatprep.subr.bf16.mxu0 0
      %4503 = vmatpush1.bf16.msra.mxu0 0
      %4504 = vmatprep.subr.bf16.mxu0 0
      %4505 = vmatpush1.bf16.msra.mxu0 0
      %4506 = vmatprep.subr.bf16.mxu0 0
      %4507 = vmatpush1.bf16.msra.mxu0 0
      %4508 = vmatprep.subr.bf16.mxu0 %v4159
      %4509 = vmatpush1.bf16.msra.mxu0 %v4156
      %4510 = vmatprep.subr.bf16.mxu0 %v4029
      %4511 = vmatpush1.bf16.msra.mxu0 %v4028
      %4512 = vmatprep.subr.bf16.mxu0 0
      %4513 = vmatpush2.bf16.msra.mxu0 0
      %4514 = vmatprep.subr.bf16.mxu0 0
      %4515 = vmatpush2.bf16.msra.mxu0 0
      %4516 = vmatprep.subr.bf16.mxu0 0
      %4517 = vmatpush2.bf16.msra.mxu0 0
      %4518 = vmatprep.subr.bf16.mxu0 0
      %4519 = vmatpush2.bf16.msra.mxu0 0
      %4520 = vmatprep.subr.bf16.mxu0 0
      %4521 = vmatpush2.bf16.msra.mxu0 0
      %4522 = vmatprep.subr.bf16.mxu0 0
      %4523 = vmatpush2.bf16.msra.mxu0 0
      %4524 = vmatprep.subr.bf16.mxu0 0
      %4525 = vmatpush2.bf16.msra.mxu0 0
      %4526 = vmatprep.subr.bf16.mxu0 0
      %4527 = vmatpush2.bf16.msra.mxu0 0
      %4528 = vmatprep.mubr.bf16.mxu0 0
      %4529 = vmatmul.mubr.bf16.gmra.mxu0 %v4111
      %v4530 = vpop.f32.mrf.mxu0
      %v4531 = vadd.f32 %v3536, %v4530
      %v4532 = vpop.f32.mrf.mxu0
      %v4533 = vadd.f32 %v3538, %v4532
      %v4534 = vpop.f32.mrf.mxu0
      %v4535 = vpop.f32.mrf.mxu0
      %4536 = vdwg.mxu0
      %4537 = vmatprep.subr.bf16.mxu0 0
      %4538 = vmatpush1.bf16.msra.mxu0 0
      %4539 = vmatprep.subr.bf16.mxu0 0
      %4540 = vmatpush1.bf16.msra.mxu0 0
      %4541 = vmatprep.subr.bf16.mxu0 0
      %4542 = vmatpush1.bf16.msra.mxu0 0
      %4543 = vmatprep.subr.bf16.mxu0 0
      %4544 = vmatpush1.bf16.msra.mxu0 0
      %4545 = vmatprep.subr.bf16.mxu0 0
      %4546 = vmatpush1.bf16.msra.mxu0 0
      %4547 = vmatprep.subr.bf16.mxu0 0
      %4548 = vmatpush1.bf16.msra.mxu0 0
      %4549 = vmatprep.subr.bf16.mxu0 %v4165
      %4550 = vmatpush1.bf16.msra.mxu0 %v4162
      %4551 = vmatprep.subr.bf16.mxu0 %v4031
      %4552 = vmatpush1.bf16.msra.mxu0 %v4030
      %4553 = vmatprep.subr.bf16.mxu0 0
      %4554 = vmatpush2.bf16.msra.mxu0 0
      %4555 = vmatprep.subr.bf16.mxu0 0
      %4556 = vmatpush2.bf16.msra.mxu0 0
      %4557 = vmatprep.subr.bf16.mxu0 0
      %4558 = vmatpush2.bf16.msra.mxu0 0
      %4559 = vmatprep.subr.bf16.mxu0 0
      %4560 = vmatpush2.bf16.msra.mxu0 0
      %4561 = vmatprep.subr.bf16.mxu0 0
      %4562 = vmatpush2.bf16.msra.mxu0 0
      %4563 = vmatprep.subr.bf16.mxu0 0
      %4564 = vmatpush2.bf16.msra.mxu0 0
      %4565 = vmatprep.subr.bf16.mxu0 0
      %4566 = vmatpush2.bf16.msra.mxu0 0
      %4567 = vmatprep.subr.bf16.mxu0 0
      %4568 = vmatpush2.bf16.msra.mxu0 0
      %4569 = vmatprep.mubr.bf16.mxu0 0
      %4570 = vmatmul.mubr.bf16.gmra.mxu0 %v4111
      %v4571 = vpop.f32.mrf.mxu0
      %v4572 = vadd.f32 %v3577, %v4571
      %v4573 = vpop.f32.mrf.mxu0
      %v4574 = vadd.f32 %v3579, %v4573
      %v4575 = vpop.f32.mrf.mxu0
      %v4576 = vpop.f32.mrf.mxu0
      %4577 = vdwg.mxu0
      %4578 = vmatprep.subr.bf16.mxu0 0
      %4579 = vmatpush1.bf16.msra.mxu0 0
      %4580 = vmatprep.subr.bf16.mxu0 0
      %4581 = vmatpush1.bf16.msra.mxu0 0
      %4582 = vmatprep.subr.bf16.mxu0 0
      %4583 = vmatpush1.bf16.msra.mxu0 0
      %4584 = vmatprep.subr.bf16.mxu0 0
      %4585 = vmatpush1.bf16.msra.mxu0 0
      %4586 = vmatprep.subr.bf16.mxu0 0
      %4587 = vmatpush1.bf16.msra.mxu0 0
      %4588 = vmatprep.subr.bf16.mxu0 0
      %4589 = vmatpush1.bf16.msra.mxu0 0
      %4590 = vmatprep.subr.bf16.mxu0 %v4171
      %4591 = vmatpush1.bf16.msra.mxu0 %v4168
      %4592 = vmatprep.subr.bf16.mxu0 %v4033
      %4593 = vmatpush1.bf16.msra.mxu0 %v4032
      %4594 = vmatprep.subr.bf16.mxu0 0
      %4595 = vmatpush2.bf16.msra.mxu0 0
      %4596 = vmatprep.subr.bf16.mxu0 0
      %4597 = vmatpush2.bf16.msra.mxu0 0
      %4598 = vmatprep.subr.bf16.mxu0 0
      %4599 = vmatpush2.bf16.msra.mxu0 0
      %4600 = vmatprep.subr.bf16.mxu0 0
      %4601 = vmatpush2.bf16.msra.mxu0 0
      %4602 = vmatprep.subr.bf16.mxu0 0
      %4603 = vmatpush2.bf16.msra.mxu0 0
      %4604 = vmatprep.subr.bf16.mxu0 0
      %4605 = vmatpush2.bf16.msra.mxu0 0
      %4606 = vmatprep.subr.bf16.mxu0 0
      %4607 = vmatpush2.bf16.msra.mxu0 0
      %4608 = vmatprep.subr.bf16.mxu0 0
      %4609 = vmatpush2.bf16.msra.mxu0 0
      %4610 = vmatprep.mubr.bf16.mxu0 0
      %4611 = vmatmul.mubr.bf16.gmra.mxu0 %v4111
      %v4612 = vpop.f32.mrf.mxu0
      %v4613 = vadd.f32 %v3618, %v4612
      %v4614 = vpop.f32.mrf.mxu0
      %v4615 = vadd.f32 %v3620, %v4614
      %v4616 = vpop.f32.mrf.mxu0
      %v4617 = vpop.f32.mrf.mxu0
      %4618 = vdwg.mxu0
      %4619 = vmatprep.subr.bf16.mxu0 0
      %4620 = vmatpush1.bf16.msra.mxu0 0
      %4621 = vmatprep.subr.bf16.mxu0 0
      %4622 = vmatpush1.bf16.msra.mxu0 0
      %4623 = vmatprep.subr.bf16.mxu0 0
      %4624 = vmatpush1.bf16.msra.mxu0 0
      %4625 = vmatprep.subr.bf16.mxu0 0
      %4626 = vmatpush1.bf16.msra.mxu0 0
      %4627 = vmatprep.subr.bf16.mxu0 0
      %4628 = vmatpush1.bf16.msra.mxu0 0
      %4629 = vmatprep.subr.bf16.mxu0 0
      %4630 = vmatpush1.bf16.msra.mxu0 0
      %4631 = vmatprep.subr.bf16.mxu0 %v4177
      %4632 = vmatpush1.bf16.msra.mxu0 %v4174
      %4633 = vmatprep.subr.bf16.mxu0 %v4035
      %4634 = vmatpush1.bf16.msra.mxu0 %v4034
      %4635 = vmatprep.subr.bf16.mxu0 0
      %4636 = vmatpush2.bf16.msra.mxu0 0
      %4637 = vmatprep.subr.bf16.mxu0 0
      %4638 = vmatpush2.bf16.msra.mxu0 0
      %4639 = vmatprep.subr.bf16.mxu0 0
      %4640 = vmatpush2.bf16.msra.mxu0 0
      %4641 = vmatprep.subr.bf16.mxu0 0
      %4642 = vmatpush2.bf16.msra.mxu0 0
      %4643 = vmatprep.subr.bf16.mxu0 0
      %4644 = vmatpush2.bf16.msra.mxu0 0
      %4645 = vmatprep.subr.bf16.mxu0 0
      %4646 = vmatpush2.bf16.msra.mxu0 0
      %4647 = vmatprep.subr.bf16.mxu0 0
      %4648 = vmatpush2.bf16.msra.mxu0 0
      %4649 = vmatprep.subr.bf16.mxu0 0
      %4650 = vmatpush2.bf16.msra.mxu0 0
      %4651 = vmatprep.mubr.bf16.mxu0 0
      %4652 = vmatmul.mubr.bf16.gmra.mxu0 %v4111
      %v4653 = vpop.f32.mrf.mxu0
      %v4654 = vadd.f32 %v3659, %v4653
      %v4655 = vpop.f32.mrf.mxu0
      %v4656 = vadd.f32 %v3661, %v4655
      %v4657 = vpop.f32.mrf.mxu0
      %v4658 = vpop.f32.mrf.mxu0
      %4659 = vdwg.mxu0
      %4660 = vmatprep.subr.bf16.mxu0 0
      %4661 = vmatpush1.bf16.msra.mxu0 0
      %4662 = vmatprep.subr.bf16.mxu0 0
      %4663 = vmatpush1.bf16.msra.mxu0 0
      %4664 = vmatprep.subr.bf16.mxu0 0
      %4665 = vmatpush1.bf16.msra.mxu0 0
      %4666 = vmatprep.subr.bf16.mxu0 0
      %4667 = vmatpush1.bf16.msra.mxu0 0
      %4668 = vmatprep.subr.bf16.mxu0 0
      %4669 = vmatpush1.bf16.msra.mxu0 0
      %4670 = vmatprep.subr.bf16.mxu0 0
      %4671 = vmatpush1.bf16.msra.mxu0 0
      %4672 = vmatprep.subr.bf16.mxu0 %v4183
      %4673 = vmatpush1.bf16.msra.mxu0 %v4180
      %4674 = vmatprep.subr.bf16.mxu0 %v4037
      %4675 = vmatpush1.bf16.msra.mxu0 %v4036
      %4676 = vmatprep.subr.bf16.mxu0 0
      %4677 = vmatpush2.bf16.msra.mxu0 0
      %4678 = vmatprep.subr.bf16.mxu0 0
      %4679 = vmatpush2.bf16.msra.mxu0 0
      %4680 = vmatprep.subr.bf16.mxu0 0
      %4681 = vmatpush2.bf16.msra.mxu0 0
      %4682 = vmatprep.subr.bf16.mxu0 0
      %4683 = vmatpush2.bf16.msra.mxu0 0
      %4684 = vmatprep.subr.bf16.mxu0 0
      %4685 = vmatpush2.bf16.msra.mxu0 0
      %4686 = vmatprep.subr.bf16.mxu0 0
      %4687 = vmatpush2.bf16.msra.mxu0 0
      %4688 = vmatprep.subr.bf16.mxu0 0
      %4689 = vmatpush2.bf16.msra.mxu0 0
      %4690 = vmatprep.subr.bf16.mxu0 0
      %4691 = vmatpush2.bf16.msra.mxu0 0
      %4692 = vmatprep.mubr.bf16.mxu0 0
      %4693 = vmatmul.mubr.bf16.gmra.mxu0 %v4111
      %v4694 = vpop.f32.mrf.mxu0
      %v4695 = vadd.f32 %v3700, %v4694
      %v4696 = vpop.f32.mrf.mxu0
      %v4697 = vadd.f32 %v3702, %v4696
      %v4698 = vpop.f32.mrf.mxu0
      %v4699 = vpop.f32.mrf.mxu0
      %4700 = vdwg.mxu0
      %4701 = vmatprep.subr.bf16.mxu0 0
      %4702 = vmatpush1.bf16.msra.mxu0 0
      %4703 = vmatprep.subr.bf16.mxu0 0
      %4704 = vmatpush1.bf16.msra.mxu0 0
      %4705 = vmatprep.subr.bf16.mxu0 0
      %4706 = vmatpush1.bf16.msra.mxu0 0
      %4707 = vmatprep.subr.bf16.mxu0 0
      %4708 = vmatpush1.bf16.msra.mxu0 0
      %4709 = vmatprep.subr.bf16.mxu0 0
      %4710 = vmatpush1.bf16.msra.mxu0 0
      %4711 = vmatprep.subr.bf16.mxu0 0
      %4712 = vmatpush1.bf16.msra.mxu0 0
      %4713 = vmatprep.subr.bf16.mxu0 %v4189
      %4714 = vmatpush1.bf16.msra.mxu0 %v4186
      %4715 = vmatprep.subr.bf16.mxu0 %v4039
      %4716 = vmatpush1.bf16.msra.mxu0 %v4038
      %4717 = vmatprep.subr.bf16.mxu0 0
      %4718 = vmatpush2.bf16.msra.mxu0 0
      %4719 = vmatprep.subr.bf16.mxu0 0
      %4720 = vmatpush2.bf16.msra.mxu0 0
      %4721 = vmatprep.subr.bf16.mxu0 0
      %4722 = vmatpush2.bf16.msra.mxu0 0
      %4723 = vmatprep.subr.bf16.mxu0 0
      %4724 = vmatpush2.bf16.msra.mxu0 0
      %4725 = vmatprep.subr.bf16.mxu0 0
      %4726 = vmatpush2.bf16.msra.mxu0 0
      %4727 = vmatprep.subr.bf16.mxu0 0
      %4728 = vmatpush2.bf16.msra.mxu0 0
      %4729 = vmatprep.subr.bf16.mxu0 0
      %4730 = vmatpush2.bf16.msra.mxu0 0
      %4731 = vmatprep.subr.bf16.mxu0 0
      %4732 = vmatpush2.bf16.msra.mxu0 0
      %4733 = vmatprep.mubr.bf16.mxu0 0
      %4734 = vmatmul.mubr.bf16.gmra.mxu0 %v4111
      %v4735 = vpop.f32.mrf.mxu0
      %v4736 = vadd.f32 %v3741, %v4735
      %v4737 = vpop.f32.mrf.mxu0
      %v4738 = vadd.f32 %v3743, %v4737
      %v4739 = vpop.f32.mrf.mxu0
      %v4740 = vpop.f32.mrf.mxu0
      %4741 = vdwg.mxu0
      %4742 = vmatprep.subr.bf16.mxu0 0
      %4743 = vmatpush1.bf16.msra.mxu0 0
      %4744 = vmatprep.subr.bf16.mxu0 0
      %4745 = vmatpush1.bf16.msra.mxu0 0
      %4746 = vmatprep.subr.bf16.mxu0 0
      %4747 = vmatpush1.bf16.msra.mxu0 0
      %4748 = vmatprep.subr.bf16.mxu0 0
      %4749 = vmatpush1.bf16.msra.mxu0 0
      %4750 = vmatprep.subr.bf16.mxu0 0
      %4751 = vmatpush1.bf16.msra.mxu0 0
      %4752 = vmatprep.subr.bf16.mxu0 0
      %4753 = vmatpush1.bf16.msra.mxu0 0
      %4754 = vmatprep.subr.bf16.mxu0 %v4195
      %4755 = vmatpush1.bf16.msra.mxu0 %v4192
      %4756 = vmatprep.subr.bf16.mxu0 %v4041
      %4757 = vmatpush1.bf16.msra.mxu0 %v4040
      %4758 = vmatprep.subr.bf16.mxu0 0
      %4759 = vmatpush2.bf16.msra.mxu0 0
      %4760 = vmatprep.subr.bf16.mxu0 0
      %4761 = vmatpush2.bf16.msra.mxu0 0
      %4762 = vmatprep.subr.bf16.mxu0 0
      %4763 = vmatpush2.bf16.msra.mxu0 0
      %4764 = vmatprep.subr.bf16.mxu0 0
      %4765 = vmatpush2.bf16.msra.mxu0 0
      %4766 = vmatprep.subr.bf16.mxu0 0
      %4767 = vmatpush2.bf16.msra.mxu0 0
      %4768 = vmatprep.subr.bf16.mxu0 0
      %4769 = vmatpush2.bf16.msra.mxu0 0
      %4770 = vmatprep.subr.bf16.mxu0 0
      %4771 = vmatpush2.bf16.msra.mxu0 0
      %4772 = vmatprep.subr.bf16.mxu0 0
      %4773 = vmatpush2.bf16.msra.mxu0 0
      %4774 = vmatprep.mubr.bf16.mxu0 0
      %4775 = vmatmul.mubr.bf16.gmra.mxu0 %v4111
      %v4776 = vpop.f32.mrf.mxu0
      %v4777 = vadd.f32 %v3782, %v4776
      %v4778 = vpop.f32.mrf.mxu0
      %v4779 = vadd.f32 %v3784, %v4778
      %v4780 = vpop.f32.mrf.mxu0
      %v4781 = vpop.f32.mrf.mxu0
      %4782 = vdwg.mxu0
      %4783 = vmatprep.subr.bf16.mxu0 0
      %4784 = vmatpush1.bf16.msra.mxu0 0
      %4785 = vmatprep.subr.bf16.mxu0 0
      %4786 = vmatpush1.bf16.msra.mxu0 0
      %4787 = vmatprep.subr.bf16.mxu0 0
      %4788 = vmatpush1.bf16.msra.mxu0 0
      %4789 = vmatprep.subr.bf16.mxu0 0
      %4790 = vmatpush1.bf16.msra.mxu0 0
      %4791 = vmatprep.subr.bf16.mxu0 0
      %4792 = vmatpush1.bf16.msra.mxu0 0
      %4793 = vmatprep.subr.bf16.mxu0 0
      %4794 = vmatpush1.bf16.msra.mxu0 0
      %4795 = vmatprep.subr.bf16.mxu0 %v4201
      %4796 = vmatpush1.bf16.msra.mxu0 %v4198
      %4797 = vmatprep.subr.bf16.mxu0 %v4043
      %4798 = vmatpush1.bf16.msra.mxu0 %v4042
      %4799 = vmatprep.subr.bf16.mxu0 0
      %4800 = vmatpush2.bf16.msra.mxu0 0
      %4801 = vmatprep.subr.bf16.mxu0 0
      %4802 = vmatpush2.bf16.msra.mxu0 0
      %4803 = vmatprep.subr.bf16.mxu0 0
      %4804 = vmatpush2.bf16.msra.mxu0 0
      %4805 = vmatprep.subr.bf16.mxu0 0
      %4806 = vmatpush2.bf16.msra.mxu0 0
      %4807 = vmatprep.subr.bf16.mxu0 0
      %4808 = vmatpush2.bf16.msra.mxu0 0
      %4809 = vmatprep.subr.bf16.mxu0 0
      %4810 = vmatpush2.bf16.msra.mxu0 0
      %4811 = vmatprep.subr.bf16.mxu0 0
      %4812 = vmatpush2.bf16.msra.mxu0 0
      %4813 = vmatprep.subr.bf16.mxu0 0
      %4814 = vmatpush2.bf16.msra.mxu0 0
      %4815 = vmatprep.mubr.bf16.mxu0 0
      %4816 = vmatmul.mubr.bf16.gmra.mxu0 %v4111
      %v4817 = vpop.f32.mrf.mxu0
      %v4818 = vadd.f32 %v3823, %v4817
      %v4819 = vpop.f32.mrf.mxu0
      %v4820 = vadd.f32 %v3825, %v4819
      %v4821 = vpop.f32.mrf.mxu0
      %v4822 = vpop.f32.mrf.mxu0
      %4823 = vdwg.mxu0
      %4824 = vmatprep.subr.bf16.mxu0 0
      %4825 = vmatpush1.bf16.msra.mxu0 0
      %4826 = vmatprep.subr.bf16.mxu0 0
      %4827 = vmatpush1.bf16.msra.mxu0 0
      %4828 = vmatprep.subr.bf16.mxu0 0
      %4829 = vmatpush1.bf16.msra.mxu0 0
      %4830 = vmatprep.subr.bf16.mxu0 0
      %4831 = vmatpush1.bf16.msra.mxu0 0
      %4832 = vmatprep.subr.bf16.mxu0 0
      %4833 = vmatpush1.bf16.msra.mxu0 0
      %4834 = vmatprep.subr.bf16.mxu0 0
      %4835 = vmatpush1.bf16.msra.mxu0 0
      %4836 = vmatprep.subr.bf16.mxu0 %v4207
      %4837 = vmatpush1.bf16.msra.mxu0 %v4204
      %4838 = vmatprep.subr.bf16.mxu0 %v4045
      %4839 = vmatpush1.bf16.msra.mxu0 %v4044
      %4840 = vmatprep.subr.bf16.mxu0 0
      %4841 = vmatpush2.bf16.msra.mxu0 0
      %4842 = vmatprep.subr.bf16.mxu0 0
      %4843 = vmatpush2.bf16.msra.mxu0 0
      %4844 = vmatprep.subr.bf16.mxu0 0
      %4845 = vmatpush2.bf16.msra.mxu0 0
      %4846 = vmatprep.subr.bf16.mxu0 0
      %4847 = vmatpush2.bf16.msra.mxu0 0
      %4848 = vmatprep.subr.bf16.mxu0 0
      %4849 = vmatpush2.bf16.msra.mxu0 0
      %4850 = vmatprep.subr.bf16.mxu0 0
      %4851 = vmatpush2.bf16.msra.mxu0 0
      %4852 = vmatprep.subr.bf16.mxu0 0
      %4853 = vmatpush2.bf16.msra.mxu0 0
      %4854 = vmatprep.subr.bf16.mxu0 0
      %4855 = vmatpush2.bf16.msra.mxu0 0
      %4856 = vmatprep.mubr.bf16.mxu0 0
      %4857 = vmatmul.mubr.bf16.gmra.mxu0 %v4111
      %v4858 = vpop.f32.mrf.mxu0
      %v4859 = vadd.f32 %v3864, %v4858
      %v4860 = vpop.f32.mrf.mxu0
      %v4861 = vadd.f32 %v3866, %v4860
      %v4862 = vpop.f32.mrf.mxu0
      %v4863 = vpop.f32.mrf.mxu0
      %4864 = vdwg.mxu0
      %v4865 = vsel %vm1217, %v1170, %v1220
      %v4866 = vsel %vm1217, %v1172, %v1222
      %v4867 = vsel %vm1217, %v1174, %v1224
      %v4868 = vsel %vm1217, %v1176, %v1226
      %v4869 = vsel %vm1217, %v1178, %v1228
      %v4870 = vsel %vm1217, %v1180, %v1230
      %v4871 = vsel %vm1217, %v1182, %v1232
      %v4872 = vsel %vm1217, %v1184, %v1234
      %v4873 = vsel %vm1217, %v1186, %v1236
      %v4874 = vsel %vm1217, %v1188, %v1238
      %v4875 = vsel %vm1217, %v1190, %v1240
      %v4876 = vsel %vm1217, %v1192, %v1242
      %v4877 = vsel %vm1217, %v1194, %v1244
      %v4878 = vsel %vm1217, %v1196, %v1246
      %v4879 = vsel %vm1217, %v1198, %v1248
      %v4880 = vsel %vm1217, %v1200, %v1216
      %4897 = vst [vmem:[#allocation2 + $0x80] sm:$0xff] %v4865
      %4898 = vst [vmem:[#allocation2 + $0x88] sm:$0xff] %v4866
      %4899 = vst [vmem:[#allocation2 + $0x90] sm:$0xff] %v4867
      %4900 = vst [vmem:[#allocation2 + $0x98] sm:$0xff] %v4868
      %4901 = vst [vmem:[#allocation2 + $0xa0] sm:$0xff] %v4869
      %4902 = vst [vmem:[#allocation2 + $0xa8] sm:$0xff] %v4870
      %4903 = vst [vmem:[#allocation2 + $0xb0] sm:$0xff] %v4871
      %4904 = vst [vmem:[#allocation2 + $0xb8] sm:$0xff] %v4872
      %4905 = vst [vmem:[#allocation2 + $0xc0] sm:$0xff] %v4873
      %4906 = vst [vmem:[#allocation2 + $0xc8] sm:$0xff] %v4874
      %4907 = vst [vmem:[#allocation2 + $0xd0] sm:$0xff] %v4875
      %4908 = vst [vmem:[#allocation2 + $0xd8] sm:$0xff] %v4876
      %4909 = vst [vmem:[#allocation2 + $0xe0] sm:$0xff] %v4877
      %4910 = vst [vmem:[#allocation2 + $0xe8] sm:$0xff] %v4878
      %4911 = vst [vmem:[#allocation2 + $0xf0] sm:$0xff] %v4879
      %vm4912 = vcmask 523268
      %vm4913 = vmor %vm4912, %vm2168
      %4914 = vst.msk [vmem:[#allocation2 + $0xf8] sm:$0xff] %vm4913, %v4880
      %4915 = vst.msk [vmem:[#allocation2 + $0xfc] sm:$0xf] %vm1266, 0
      %v4916 = vld [vmem:[#allocation2 + $0x80] sm:$0xff]
      %v4917 = vld [vmem:[#allocation2 + $0x88] sm:$0xff]
      %v4918 = vld [vmem:[#allocation2 + $0x90] sm:$0xff]
      %v4919 = vld [vmem:[#allocation2 + $0x98] sm:$0xff]
      %v4920 = vld [vmem:[#allocation2 + $0xa0] sm:$0xff]
      %v4921 = vld [vmem:[#allocation2 + $0xa8] sm:$0xff]
      %v4922 = vld [vmem:[#allocation2 + $0xb0] sm:$0xff]
      %v4923 = vld [vmem:[#allocation2 + $0xb8] sm:$0xff]
      %v4924 = vld [vmem:[#allocation2 + $0xc0] sm:$0xff]
      %v4925 = vld [vmem:[#allocation2 + $0xc8] sm:$0xff]
      %v4926 = vld [vmem:[#allocation2 + $0xd0] sm:$0xff]
      %v4927 = vld [vmem:[#allocation2 + $0xd8] sm:$0xff]
      %v4928 = vld [vmem:[#allocation2 + $0xe0] sm:$0xff]
      %v4929 = vld [vmem:[#allocation2 + $0xe8] sm:$0xff]
      %v4930 = vld [vmem:[#allocation2 + $0xf0] sm:$0xff]
      %v4931 = vld [vmem:[#allocation2 + $0xf8] sm:$0xff]
      %v4932 = vunpack.c.l.bf16 %v4916
      %v4933 = vunpack.c.h.bf16 %v4916
      %v4934 = vunpack.c.l.bf16 %v4917
      %v4935 = vunpack.c.h.bf16 %v4917
      %v4936 = vunpack.c.l.bf16 %v4918
      %v4937 = vunpack.c.h.bf16 %v4918
      %v4938 = vunpack.c.l.bf16 %v4919
      %v4939 = vunpack.c.h.bf16 %v4919
      %v4940 = vunpack.c.l.bf16 %v4920
      %v4941 = vunpack.c.h.bf16 %v4920
      %v4942 = vunpack.c.l.bf16 %v4921
      %v4943 = vunpack.c.h.bf16 %v4921
      %v4944 = vunpack.c.l.bf16 %v4922
      %v4945 = vunpack.c.h.bf16 %v4922
      %v4946 = vunpack.c.l.bf16 %v4923
      %v4947 = vunpack.c.h.bf16 %v4923
      %v4948 = vunpack.c.l.bf16 %v4924
      %v4949 = vunpack.c.h.bf16 %v4924
      %v4950 = vunpack.c.l.bf16 %v4925
      %v4951 = vunpack.c.h.bf16 %v4925
      %v4952 = vunpack.c.l.bf16 %v4926
      %v4953 = vunpack.c.h.bf16 %v4926
      %v4954 = vunpack.c.l.bf16 %v4927
      %v4955 = vunpack.c.h.bf16 %v4927
      %v4956 = vunpack.c.l.bf16 %v4928
      %v4957 = vunpack.c.h.bf16 %v4928
      %v4958 = vunpack.c.l.bf16 %v4929
      %v4959 = vunpack.c.h.bf16 %v4929
      %v4960 = vunpack.c.l.bf16 %v4930
      %v4961 = vunpack.c.h.bf16 %v4930
      %v4962 = vunpack.c.l.bf16 %v4931
      %v4963 = vunpack.c.h.bf16 %v4931
      %4964 = vst.msk [vmem:[#allocation2] sm:$0xf] %vm1333, 0
      %v4965 = vmul.f32 %v4932, %v1432
      %v4966 = vmul.f32 %v4933, %v1433
      %v4967 = vmul.f32 %v4934, %v1434
      %v4968 = vmul.f32 %v4935, %v1435
      %v4969 = vmul.f32 %v4936, %v1436
      %v4970 = vmul.f32 %v4937, %v1437
      %v4971 = vmul.f32 %v4938, %v1438
      %v4972 = vmul.f32 %v4939, %v1439
      %v4973 = vmul.f32 %v4940, %v1440
      %v4974 = vmul.f32 %v4941, %v1441
      %v4975 = vmul.f32 %v4942, %v1442
      %v4976 = vmul.f32 %v4943, %v1443
      %v4977 = vmul.f32 %v4944, %v1444
      %v4978 = vmul.f32 %v4945, %v1445
      %v4979 = vmul.f32 %v4946, %v1446
      %v4980 = vmul.f32 %v4947, %v1447
      %v4981 = vmul.f32 %v4948, %v1448
      %v4982 = vmul.f32 %v4949, %v1449
      %v4983 = vmul.f32 %v4950, %v1450
      %v4984 = vmul.f32 %v4951, %v1451
      %v4985 = vmul.f32 %v4952, %v1452
      %v4986 = vmul.f32 %v4953, %v1453
      %v4987 = vmul.f32 %v4954, %v1454
      %v4988 = vmul.f32 %v4955, %v1455
      %v4989 = vmul.f32 %v4956, %v1456
      %v4990 = vmul.f32 %v4957, %v1457
      %v4991 = vmul.f32 %v4958, %v1458
      %v4992 = vmul.f32 %v4959, %v1459
      %v4993 = vmul.f32 %v4960, %v1460
      %v4994 = vmul.f32 %v4961, %v1461
      %v4995 = vmul.f32 %v4962, %v1462
      %v4996 = vmul.f32 %v4963, %v1430
      %v4997 = vpack.c.bf16 %v4965, %v4965
      %v4998 = vpack.c.bf16 %v4966, %v4966
      %v4999 = vpack.c.bf16 %v4967, %v4967
      %v5000 = vpack.c.bf16 %v4968, %v4968
      %v5001 = vpack.c.bf16 %v4969, %v4969
      %v5002 = vpack.c.bf16 %v4970, %v4970
      %v5003 = vpack.c.bf16 %v4971, %v4971
      %v5004 = vpack.c.bf16 %v4972, %v4972
      %v5005 = vpack.c.bf16 %v4973, %v4973
      %v5006 = vpack.c.bf16 %v4974, %v4974
      %v5007 = vpack.c.bf16 %v4975, %v4975
      %v5008 = vpack.c.bf16 %v4976, %v4976
      %v5009 = vpack.c.bf16 %v4977, %v4977
      %v5010 = vpack.c.bf16 %v4978, %v4978
      %v5011 = vpack.c.bf16 %v4979, %v4979
      %v5012 = vpack.c.bf16 %v4980, %v4980
      %v5013 = vpack.c.bf16 %v4981, %v4981
      %v5014 = vpack.c.bf16 %v4982, %v4982
      %v5015 = vpack.c.bf16 %v4983, %v4983
      %v5016 = vpack.c.bf16 %v4984, %v4984
      %v5017 = vpack.c.bf16 %v4985, %v4985
      %v5018 = vpack.c.bf16 %v4986, %v4986
      %v5019 = vpack.c.bf16 %v4987, %v4987
      %v5020 = vpack.c.bf16 %v4988, %v4988
      %v5021 = vpack.c.bf16 %v4989, %v4989
      %v5022 = vpack.c.bf16 %v4990, %v4990
      %v5023 = vpack.c.bf16 %v4991, %v4991
      %v5024 = vpack.c.bf16 %v4992, %v4992
      %v5025 = vpack.c.bf16 %v4993, %v4993
      %v5026 = vpack.c.bf16 %v4994, %v4994
      %v5027 = vpack.c.bf16 %v4995, %v4995
      %v5028 = vpack.c.bf16 %v4996, %v4996
      %v5061 = vunpack.c.l.b16 %v4997
      %v5062 = vunpack.c.l.b16 %v4998
      %v5063 = vunpack.c.l.b16 %v4999
      %v5064 = vunpack.c.l.b16 %v5000
      %v5065 = vunpack.c.l.b16 %v5001
      %v5066 = vunpack.c.l.b16 %v5002
      %v5067 = vunpack.c.l.b16 %v5003
      %v5068 = vunpack.c.l.b16 %v5004
      %v5069 = vunpack.c.l.b16 %v5005
      %v5070 = vunpack.c.l.b16 %v5006
      %v5071 = vunpack.c.l.b16 %v5007
      %v5072 = vunpack.c.l.b16 %v5008
      %v5073 = vunpack.c.l.b16 %v5009
      %v5074 = vunpack.c.l.b16 %v5010
      %v5075 = vunpack.c.l.b16 %v5011
      %v5076 = vunpack.c.l.b16 %v5012
      %v5077 = vunpack.c.l.b16 %v5013
      %v5078 = vunpack.c.l.b16 %v5014
      %v5079 = vunpack.c.l.b16 %v5015
      %v5080 = vunpack.c.l.b16 %v5016
      %v5081 = vunpack.c.l.b16 %v5017
      %v5082 = vunpack.c.l.b16 %v5018
      %v5083 = vunpack.c.l.b16 %v5019
      %v5084 = vunpack.c.l.b16 %v5020
      %v5085 = vunpack.c.l.b16 %v5021
      %v5086 = vunpack.c.l.b16 %v5022
      %v5087 = vunpack.c.l.b16 %v5023
      %v5088 = vunpack.c.l.b16 %v5024
      %v5089 = vunpack.c.l.b16 %v5025
      %v5090 = vunpack.c.l.b16 %v5026
      %v5091 = vunpack.c.l.b16 %v5027
      %v5092 = vunpack.c.l.b16 %v5028
      %v5093 = vpack.c.b16 %v5062, %v5061
      %v5094 = vpack.c.b16 %v5064, %v5063
      %v5095 = vpack.c.b16 %v5066, %v5065
      %v5096 = vpack.c.b16 %v5068, %v5067
      %v5097 = vpack.c.b16 %v5070, %v5069
      %v5098 = vpack.c.b16 %v5072, %v5071
      %v5099 = vpack.c.b16 %v5074, %v5073
      %v5100 = vpack.c.b16 %v5076, %v5075
      %v5101 = vpack.c.b16 %v5078, %v5077
      %v5102 = vpack.c.b16 %v5080, %v5079
      %v5103 = vpack.c.b16 %v5082, %v5081
      %v5104 = vpack.c.b16 %v5084, %v5083
      %v5105 = vpack.c.b16 %v5086, %v5085
      %v5106 = vpack.c.b16 %v5088, %v5087
      %v5107 = vpack.c.b16 %v5090, %v5089
      %v5108 = vpack.c.b16 %v5092, %v5091
      %5109 = vrot.lane.b32.xlu0 %v5093, 1
      %v5110 = vpop.permute.xlu0 %5109
      %5111 = vrot.lane.b32.xlu0 %v5094, 1
      %v5112 = vpop.permute.xlu0 %5111
      %5113 = vrot.lane.b32.xlu0 %v5095, 1
      %v5114 = vpop.permute.xlu0 %5113
      %5115 = vrot.lane.b32.xlu0 %v5096, 1
      %v5116 = vpop.permute.xlu0 %5115
      %5117 = vrot.lane.b32.xlu0 %v5097, 1
      %v5118 = vpop.permute.xlu0 %5117
      %5119 = vrot.lane.b32.xlu0 %v5098, 1
      %v5120 = vpop.permute.xlu0 %5119
      %5121 = vrot.lane.b32.xlu0 %v5099, 1
      %v5122 = vpop.permute.xlu0 %5121
      %5123 = vrot.lane.b32.xlu0 %v5100, 1
      %v5124 = vpop.permute.xlu0 %5123
      %5125 = vrot.lane.b32.xlu0 %v5101, 1
      %v5126 = vpop.permute.xlu0 %5125
      %5127 = vrot.lane.b32.xlu0 %v5102, 1
      %v5128 = vpop.permute.xlu0 %5127
      %5129 = vrot.lane.b32.xlu0 %v5103, 1
      %v5130 = vpop.permute.xlu0 %5129
      %5131 = vrot.lane.b32.xlu0 %v5104, 1
      %v5132 = vpop.permute.xlu0 %5131
      %5133 = vrot.lane.b32.xlu0 %v5105, 1
      %v5134 = vpop.permute.xlu0 %5133
      %5135 = vrot.lane.b32.xlu0 %v5106, 1
      %v5136 = vpop.permute.xlu0 %5135
      %5137 = vrot.lane.b32.xlu0 %v5107, 1
      %v5138 = vpop.permute.xlu0 %5137
      %5139 = vrot.lane.b32.xlu0 %v5108, 1
      %v5140 = vpop.permute.xlu0 %5139
      %v5141 = vrot.slane %v5110, 4
      %v5142 = vrot.slane %v5112, 4
      %v5143 = vrot.slane %v5114, 4
      %v5144 = vrot.slane %v5116, 4
      %v5145 = vrot.slane %v5118, 4
      %v5146 = vrot.slane %v5120, 4
      %v5147 = vrot.slane %v5122, 4
      %v5148 = vrot.slane %v5124, 4
      %v5149 = vrot.slane %v5126, 4
      %v5150 = vrot.slane %v5128, 4
      %v5151 = vrot.slane %v5130, 4
      %v5152 = vrot.slane %v5132, 4
      %v5153 = vrot.slane %v5134, 4
      %v5154 = vrot.slane %v5136, 4
      %v5155 = vrot.slane %v5138, 4
      %v5156 = vrot.slane %v5140, 4
      %v5157 = vsel %vm1687, %v5141, %v5110
      %v5158 = vsel %vm1219, %v5141, %v5142
      %v5159 = vsel %vm1687, %v5158, %v5112
      %v5160 = vsel %vm1219, %v5142, %v5143
      %v5161 = vsel %vm1687, %v5160, %v5114
      %v5162 = vsel %vm1219, %v5143, %v5144
      %v5163 = vsel %vm1687, %v5162, %v5116
      %v5164 = vsel %vm1219, %v5144, %v5145
      %v5165 = vsel %vm1687, %v5164, %v5118
      %v5166 = vsel %vm1219, %v5145, %v5146
      %v5167 = vsel %vm1687, %v5166, %v5120
      %v5168 = vsel %vm1219, %v5146, %v5147
      %v5169 = vsel %vm1687, %v5168, %v5122
      %v5170 = vsel %vm1219, %v5147, %v5148
      %v5171 = vsel %vm1687, %v5170, %v5124
      %v5172 = vsel %vm1219, %v5148, %v5149
      %v5173 = vsel %vm1687, %v5172, %v5126
      %v5174 = vsel %vm1219, %v5149, %v5150
      %v5175 = vsel %vm1687, %v5174, %v5128
      %v5176 = vsel %vm1219, %v5150, %v5151
      %v5177 = vsel %vm1687, %v5176, %v5130
      %v5178 = vsel %vm1219, %v5151, %v5152
      %v5179 = vsel %vm1687, %v5178, %v5132
      %v5180 = vsel %vm1219, %v5152, %v5153
      %v5181 = vsel %vm1687, %v5180, %v5134
      %v5182 = vsel %vm1219, %v5153, %v5154
      %v5183 = vsel %vm1687, %v5182, %v5136
      %v5184 = vsel %vm1219, %v5154, %v5155
      %v5185 = vsel %vm1687, %v5184, %v5138
      %v5186 = vsel %vm1219, %v5155, %v5156
      %v5187 = vsel %vm1687, %v5186, %v5140
      %5204 = vst.msk [vmem:[#allocation2] sm:$0xff] %vm1736, %v5157
      %5205 = vst [vmem:[#allocation2 + $0x8] sm:$0xff] %v5159
      %5206 = vst [vmem:[#allocation2 + $0x10] sm:$0xff] %v5161
      %5207 = vst [vmem:[#allocation2 + $0x18] sm:$0xff] %v5163
      %5208 = vst [vmem:[#allocation2 + $0x20] sm:$0xff] %v5165
      %5209 = vst [vmem:[#allocation2 + $0x28] sm:$0xff] %v5167
      %5210 = vst [vmem:[#allocation2 + $0x30] sm:$0xff] %v5169
      %5211 = vst [vmem:[#allocation2 + $0x38] sm:$0xff] %v5171
      %5212 = vst [vmem:[#allocation2 + $0x40] sm:$0xff] %v5173
      %5213 = vst [vmem:[#allocation2 + $0x48] sm:$0xff] %v5175
      %5214 = vst [vmem:[#allocation2 + $0x50] sm:$0xff] %v5177
      %5215 = vst [vmem:[#allocation2 + $0x58] sm:$0xff] %v5179
      %5216 = vst [vmem:[#allocation2 + $0x60] sm:$0xff] %v5181
      %5217 = vst [vmem:[#allocation2 + $0x68] sm:$0xff] %v5183
      %5218 = vst [vmem:[#allocation2 + $0x70] sm:$0xff] %v5185
      %5219 = vst [vmem:[#allocation2 + $0x78] sm:$0xff] %v5187
      %v5220 = vmul.f32 %v4932, %v1786
      %v5221 = vmul.f32 %v4933, %v1850
      %v5222 = vmul.f32 %v4934, %v1851
      %v5223 = vmul.f32 %v4935, %v1852
      %v5224 = vmul.f32 %v4936, %v1853
      %v5225 = vmul.f32 %v4937, %v1854
      %v5226 = vmul.f32 %v4938, %v1855
      %v5227 = vmul.f32 %v4939, %v1856
      %v5228 = vmul.f32 %v4940, %v1857
      %v5229 = vmul.f32 %v4941, %v1858
      %v5230 = vmul.f32 %v4942, %v1859
      %v5231 = vmul.f32 %v4943, %v1860
      %v5232 = vmul.f32 %v4944, %v1861
      %v5233 = vmul.f32 %v4945, %v1862
      %v5234 = vmul.f32 %v4946, %v1863
      %v5235 = vmul.f32 %v4947, %v1864
      %v5236 = vmul.f32 %v4948, %v1865
      %v5237 = vmul.f32 %v4949, %v1866
      %v5238 = vmul.f32 %v4950, %v1867
      %v5239 = vmul.f32 %v4951, %v1868
      %v5240 = vmul.f32 %v4952, %v1869
      %v5241 = vmul.f32 %v4953, %v1870
      %v5242 = vmul.f32 %v4954, %v1871
      %v5243 = vmul.f32 %v4955, %v1872
      %v5244 = vmul.f32 %v4956, %v1873
      %v5245 = vmul.f32 %v4957, %v1874
      %v5246 = vmul.f32 %v4958, %v1875
      %v5247 = vmul.f32 %v4959, %v1876
      %v5248 = vmul.f32 %v4960, %v1877
      %v5249 = vmul.f32 %v4961, %v1878
      %v5250 = vmul.f32 %v4962, %v1879
      %v5251 = vmul.f32 %v4963, %v1880
      %v5252 = vpack.c.bf16 %v5220, %v5220
      %v5253 = vpack.c.bf16 %v5221, %v5221
      %v5254 = vpack.c.bf16 %v5222, %v5222
      %v5255 = vpack.c.bf16 %v5223, %v5223
      %v5256 = vpack.c.bf16 %v5224, %v5224
      %v5257 = vpack.c.bf16 %v5225, %v5225
      %v5258 = vpack.c.bf16 %v5226, %v5226
      %v5259 = vpack.c.bf16 %v5227, %v5227
      %v5260 = vpack.c.bf16 %v5228, %v5228
      %v5261 = vpack.c.bf16 %v5229, %v5229
      %v5262 = vpack.c.bf16 %v5230, %v5230
      %v5263 = vpack.c.bf16 %v5231, %v5231
      %v5264 = vpack.c.bf16 %v5232, %v5232
      %v5265 = vpack.c.bf16 %v5233, %v5233
      %v5266 = vpack.c.bf16 %v5234, %v5234
      %v5267 = vpack.c.bf16 %v5235, %v5235
      %v5268 = vpack.c.bf16 %v5236, %v5236
      %v5269 = vpack.c.bf16 %v5237, %v5237
      %v5270 = vpack.c.bf16 %v5238, %v5238
      %v5271 = vpack.c.bf16 %v5239, %v5239
      %v5272 = vpack.c.bf16 %v5240, %v5240
      %v5273 = vpack.c.bf16 %v5241, %v5241
      %v5274 = vpack.c.bf16 %v5242, %v5242
      %v5275 = vpack.c.bf16 %v5243, %v5243
      %v5276 = vpack.c.bf16 %v5244, %v5244
      %v5277 = vpack.c.bf16 %v5245, %v5245
      %v5278 = vpack.c.bf16 %v5246, %v5246
      %v5279 = vpack.c.bf16 %v5247, %v5247
      %v5280 = vpack.c.bf16 %v5248, %v5248
      %v5281 = vpack.c.bf16 %v5249, %v5249
      %v5282 = vpack.c.bf16 %v5250, %v5250
      %v5283 = vpack.c.bf16 %v5251, %v5251
      %v5316 = vunpack.c.l.b16 %v5252
      %v5317 = vunpack.c.l.b16 %v5253
      %v5318 = vunpack.c.l.b16 %v5254
      %v5319 = vunpack.c.l.b16 %v5255
      %v5320 = vunpack.c.l.b16 %v5256
      %v5321 = vunpack.c.l.b16 %v5257
      %v5322 = vunpack.c.l.b16 %v5258
      %v5323 = vunpack.c.l.b16 %v5259
      %v5324 = vunpack.c.l.b16 %v5260
      %v5325 = vunpack.c.l.b16 %v5261
      %v5326 = vunpack.c.l.b16 %v5262
      %v5327 = vunpack.c.l.b16 %v5263
      %v5328 = vunpack.c.l.b16 %v5264
      %v5329 = vunpack.c.l.b16 %v5265
      %v5330 = vunpack.c.l.b16 %v5266
      %v5331 = vunpack.c.l.b16 %v5267
      %v5332 = vunpack.c.l.b16 %v5268
      %v5333 = vunpack.c.l.b16 %v5269
      %v5334 = vunpack.c.l.b16 %v5270
      %v5335 = vunpack.c.l.b16 %v5271
      %v5336 = vunpack.c.l.b16 %v5272
      %v5337 = vunpack.c.l.b16 %v5273
      %v5338 = vunpack.c.l.b16 %v5274
      %v5339 = vunpack.c.l.b16 %v5275
      %v5340 = vunpack.c.l.b16 %v5276
      %v5341 = vunpack.c.l.b16 %v5277
      %v5342 = vunpack.c.l.b16 %v5278
      %v5343 = vunpack.c.l.b16 %v5279
      %v5344 = vunpack.c.l.b16 %v5280
      %v5345 = vunpack.c.l.b16 %v5281
      %v5346 = vunpack.c.l.b16 %v5282
      %v5347 = vunpack.c.l.b16 %v5283
      %v5348 = vpack.c.b16 %v5317, %v5316
      %v5349 = vpack.c.b16 %v5319, %v5318
      %v5350 = vpack.c.b16 %v5321, %v5320
      %v5351 = vpack.c.b16 %v5323, %v5322
      %v5352 = vpack.c.b16 %v5325, %v5324
      %v5353 = vpack.c.b16 %v5327, %v5326
      %v5354 = vpack.c.b16 %v5329, %v5328
      %v5355 = vpack.c.b16 %v5331, %v5330
      %v5356 = vpack.c.b16 %v5333, %v5332
      %v5357 = vpack.c.b16 %v5335, %v5334
      %v5358 = vpack.c.b16 %v5337, %v5336
      %v5359 = vpack.c.b16 %v5339, %v5338
      %v5360 = vpack.c.b16 %v5341, %v5340
      %v5361 = vpack.c.b16 %v5343, %v5342
      %v5362 = vpack.c.b16 %v5345, %v5344
      %v5363 = vpack.c.b16 %v5347, %v5346
      %5364 = vrot.lane.b32.xlu0 %v5348, 127
      %v5365 = vpop.permute.xlu0 %5364
      %5366 = vrot.lane.b32.xlu0 %v5349, 127
      %v5367 = vpop.permute.xlu0 %5366
      %5368 = vrot.lane.b32.xlu0 %v5350, 127
      %v5369 = vpop.permute.xlu0 %5368
      %5370 = vrot.lane.b32.xlu0 %v5351, 127
      %v5371 = vpop.permute.xlu0 %5370
      %5372 = vrot.lane.b32.xlu0 %v5352, 127
      %v5373 = vpop.permute.xlu0 %5372
      %5374 = vrot.lane.b32.xlu0 %v5353, 127
      %v5375 = vpop.permute.xlu0 %5374
      %5376 = vrot.lane.b32.xlu0 %v5354, 127
      %v5377 = vpop.permute.xlu0 %5376
      %5378 = vrot.lane.b32.xlu0 %v5355, 127
      %v5379 = vpop.permute.xlu0 %5378
      %5380 = vrot.lane.b32.xlu0 %v5356, 127
      %v5381 = vpop.permute.xlu0 %5380
      %5382 = vrot.lane.b32.xlu0 %v5357, 127
      %v5383 = vpop.permute.xlu0 %5382
      %5384 = vrot.lane.b32.xlu0 %v5358, 127
      %v5385 = vpop.permute.xlu0 %5384
      %5386 = vrot.lane.b32.xlu0 %v5359, 127
      %v5387 = vpop.permute.xlu0 %5386
      %5388 = vrot.lane.b32.xlu0 %v5360, 127
      %v5389 = vpop.permute.xlu0 %5388
      %5390 = vrot.lane.b32.xlu0 %v5361, 127
      %v5391 = vpop.permute.xlu0 %5390
      %5392 = vrot.lane.b32.xlu0 %v5362, 127
      %v5393 = vpop.permute.xlu0 %5392
      %5394 = vrot.lane.b32.xlu0 %v5363, 127
      %v5395 = vpop.permute.xlu0 %5394
      %v5396 = vrot.slane %v5365, 4
      %v5397 = vrot.slane %v5367, 4
      %v5398 = vrot.slane %v5369, 4
      %v5399 = vrot.slane %v5371, 4
      %v5400 = vrot.slane %v5373, 4
      %v5401 = vrot.slane %v5375, 4
      %v5402 = vrot.slane %v5377, 4
      %v5403 = vrot.slane %v5379, 4
      %v5404 = vrot.slane %v5381, 4
      %v5405 = vrot.slane %v5383, 4
      %v5406 = vrot.slane %v5385, 4
      %v5407 = vrot.slane %v5387, 4
      %v5408 = vrot.slane %v5389, 4
      %v5409 = vrot.slane %v5391, 4
      %v5410 = vrot.slane %v5393, 4
      %v5411 = vrot.slane %v5395, 4
      %v5412 = vsel %vm1219, %v5396, %v5397
      %v5413 = vsel %vm2106, %v5365, %v5412
      %v5414 = vsel %vm1219, %v5397, %v5398
      %v5415 = vsel %vm2106, %v5367, %v5414
      %v5416 = vsel %vm1219, %v5398, %v5399
      %v5417 = vsel %vm2106, %v5369, %v5416
      %v5418 = vsel %vm1219, %v5399, %v5400
      %v5419 = vsel %vm2106, %v5371, %v5418
      %v5420 = vsel %vm1219, %v5400, %v5401
      %v5421 = vsel %vm2106, %v5373, %v5420
      %v5422 = vsel %vm1219, %v5401, %v5402
      %v5423 = vsel %vm2106, %v5375, %v5422
      %v5424 = vsel %vm1219, %v5402, %v5403
      %v5425 = vsel %vm2106, %v5377, %v5424
      %v5426 = vsel %vm1219, %v5403, %v5404
      %v5427 = vsel %vm2106, %v5379, %v5426
      %v5428 = vsel %vm1219, %v5404, %v5405
      %v5429 = vsel %vm2106, %v5381, %v5428
      %v5430 = vsel %vm1219, %v5405, %v5406
      %v5431 = vsel %vm2106, %v5383, %v5430
      %v5432 = vsel %vm1219, %v5406, %v5407
      %v5433 = vsel %vm2106, %v5385, %v5432
      %v5434 = vsel %vm1219, %v5407, %v5408
      %v5435 = vsel %vm2106, %v5387, %v5434
      %v5436 = vsel %vm1219, %v5408, %v5409
      %v5437 = vsel %vm2106, %v5389, %v5436
      %v5438 = vsel %vm1219, %v5409, %v5410
      %v5439 = vsel %vm2106, %v5391, %v5438
      %v5440 = vsel %vm1219, %v5410, %v5411
      %v5441 = vsel %vm2106, %v5393, %v5440
      %v5442 = vsel %vm2106, %v5395, %v5411
      %5459 = vst [vmem:[#allocation2 + $0x100] sm:$0xff] %v5413
      %5460 = vst [vmem:[#allocation2 + $0x108] sm:$0xff] %v5415
      %5461 = vst [vmem:[#allocation2 + $0x110] sm:$0xff] %v5417
      %5462 = vst [vmem:[#allocation2 + $0x118] sm:$0xff] %v5419
      %5463 = vst [vmem:[#allocation2 + $0x120] sm:$0xff] %v5421
      %5464 = vst [vmem:[#allocation2 + $0x128] sm:$0xff] %v5423
      %5465 = vst [vmem:[#allocation2 + $0x130] sm:$0xff] %v5425
      %5466 = vst [vmem:[#allocation2 + $0x138] sm:$0xff] %v5427
      %5467 = vst [vmem:[#allocation2 + $0x140] sm:$0xff] %v5429
      %5468 = vst [vmem:[#allocation2 + $0x148] sm:$0xff] %v5431
      %5469 = vst [vmem:[#allocation2 + $0x150] sm:$0xff] %v5433
      %5470 = vst [vmem:[#allocation2 + $0x158] sm:$0xff] %v5435
      %5471 = vst [vmem:[#allocation2 + $0x160] sm:$0xff] %v5437
      %5472 = vst [vmem:[#allocation2 + $0x168] sm:$0xff] %v5439
      %5473 = vst [vmem:[#allocation2 + $0x170] sm:$0xff] %v5441
      %5474 = vst.msk [vmem:[#allocation2 + $0x178] sm:$0xff] %vm2170, %v5442
      %5475 = vst.msk [vmem:[#allocation2 + $0x17c] sm:$0xf] %vm2172, 0
      %v5476 = vld [vmem:[%s3] sm:$0x3]
      %v5477 = vld [vmem:[#allocation2] sm:$0xff]
      %v5478 = vld [vmem:[#allocation2 + $0x8] sm:$0xff]
      %v5479 = vld [vmem:[#allocation2 + $0x10] sm:$0xff]
      %v5480 = vld [vmem:[#allocation2 + $0x18] sm:$0xff]
      %v5481 = vld [vmem:[#allocation2 + $0x20] sm:$0xff]
      %v5482 = vld [vmem:[#allocation2 + $0x28] sm:$0xff]
      %v5483 = vld [vmem:[#allocation2 + $0x30] sm:$0xff]
      %v5484 = vld [vmem:[#allocation2 + $0x38] sm:$0xff]
      %v5485 = vld [vmem:[#allocation2 + $0x40] sm:$0xff]
      %v5486 = vld [vmem:[#allocation2 + $0x48] sm:$0xff]
      %v5487 = vld [vmem:[#allocation2 + $0x50] sm:$0xff]
      %v5488 = vld [vmem:[#allocation2 + $0x58] sm:$0xff]
      %v5489 = vld [vmem:[#allocation2 + $0x60] sm:$0xff]
      %v5490 = vld [vmem:[#allocation2 + $0x68] sm:$0xff]
      %v5491 = vld [vmem:[#allocation2 + $0x70] sm:$0xff]
      %v5492 = vld [vmem:[#allocation2 + $0x78] sm:$0xff]
      %v5493 = vld [vmem:[#allocation2 + $0x80] sm:$0xff]
      %v5494 = vld [vmem:[#allocation2 + $0x88] sm:$0xff]
      %v5495 = vld [vmem:[#allocation2 + $0x90] sm:$0xff]
      %v5496 = vld [vmem:[#allocation2 + $0x98] sm:$0xff]
      %v5497 = vld [vmem:[#allocation2 + $0xa0] sm:$0xff]
      %v5498 = vld [vmem:[#allocation2 + $0xa8] sm:$0xff]
      %v5499 = vld [vmem:[#allocation2 + $0xb0] sm:$0xff]
      %v5500 = vld [vmem:[#allocation2 + $0xb8] sm:$0xff]
      %v5501 = vld [vmem:[#allocation2 + $0xc0] sm:$0xff]
      %v5502 = vld [vmem:[#allocation2 + $0xc8] sm:$0xff]
      %v5503 = vld [vmem:[#allocation2 + $0xd0] sm:$0xff]
      %v5504 = vld [vmem:[#allocation2 + $0xd8] sm:$0xff]
      %v5505 = vld [vmem:[#allocation2 + $0xe0] sm:$0xff]
      %v5506 = vld [vmem:[#allocation2 + $0xe8] sm:$0xff]
      %v5507 = vld [vmem:[#allocation2 + $0xf0] sm:$0xff]
      %v5508 = vld [vmem:[#allocation2 + $0xf8] sm:$0xff]
      %v5509 = vld [vmem:[#allocation2 + $0x100] sm:$0xff]
      %v5510 = vld [vmem:[#allocation2 + $0x108] sm:$0xff]
      %v5511 = vld [vmem:[#allocation2 + $0x110] sm:$0xff]
      %v5512 = vld [vmem:[#allocation2 + $0x118] sm:$0xff]
      %v5513 = vld [vmem:[#allocation2 + $0x120] sm:$0xff]
      %v5514 = vld [vmem:[#allocation2 + $0x128] sm:$0xff]
      %v5515 = vld [vmem:[#allocation2 + $0x130] sm:$0xff]
      %v5516 = vld [vmem:[#allocation2 + $0x138] sm:$0xff]
      %v5517 = vld [vmem:[#allocation2 + $0x140] sm:$0xff]
      %v5518 = vld [vmem:[#allocation2 + $0x148] sm:$0xff]
      %v5519 = vld [vmem:[#allocation2 + $0x150] sm:$0xff]
      %v5520 = vld [vmem:[#allocation2 + $0x158] sm:$0xff]
      %v5521 = vld [vmem:[#allocation2 + $0x160] sm:$0xff]
      %v5522 = vld [vmem:[#allocation2 + $0x168] sm:$0xff]
      %v5523 = vld [vmem:[#allocation2 + $0x170] sm:$0xff]
      %v5524 = vld [vmem:[#allocation2 + $0x178] sm:$0xff]
      %v5527 = vunpack.c.l.s4 1983009808
      %v5528 = vunpack.c.0.s8 %v5527
      %v5529 = vlaneseq
      %v5530 = vshrl.u32 %v5529, 7
      %v5531 = vsub.s32 %v5528, %v5530
      %v5532 = vrot.slane %v5476, %v5531
      %5533 = vrot.lane.b32.xlu0 %v5532, 80
      %v5534 = vpop.permute.xlu0 %5533
      %v5583 = vunpack.c.l.b16 %v5477
      %v5584 = vunpack.c.h.b16 %v5477
      %v5585 = vunpack.c.l.b16 %v5478
      %v5586 = vunpack.c.h.b16 %v5478
      %v5587 = vunpack.c.l.b16 %v5479
      %v5588 = vunpack.c.h.b16 %v5479
      %v5589 = vunpack.c.l.b16 %v5480
      %v5590 = vunpack.c.h.b16 %v5480
      %v5591 = vunpack.c.l.b16 %v5481
      %v5592 = vunpack.c.h.b16 %v5481
      %v5593 = vunpack.c.l.b16 %v5482
      %v5594 = vunpack.c.h.b16 %v5482
      %v5595 = vunpack.c.l.b16 %v5483
      %v5596 = vunpack.c.h.b16 %v5483
      %v5597 = vunpack.c.l.b16 %v5484
      %v5598 = vunpack.c.h.b16 %v5484
      %v5599 = vunpack.c.l.b16 %v5485
      %v5600 = vunpack.c.h.b16 %v5485
      %v5601 = vunpack.c.l.b16 %v5486
      %v5602 = vunpack.c.h.b16 %v5486
      %v5603 = vunpack.c.l.b16 %v5487
      %v5604 = vunpack.c.h.b16 %v5487
      %v5605 = vunpack.c.l.b16 %v5488
      %v5606 = vunpack.c.h.b16 %v5488
      %v5607 = vunpack.c.l.b16 %v5489
      %v5608 = vunpack.c.h.b16 %v5489
      %v5609 = vunpack.c.l.b16 %v5490
      %v5610 = vunpack.c.h.b16 %v5490
      %v5611 = vunpack.c.l.b16 %v5491
      %v5612 = vunpack.c.h.b16 %v5491
      %v5613 = vunpack.c.l.b16 %v5492
      %v5614 = vunpack.c.h.b16 %v5492
      %v5615 = vunpack.c.l.b16 %v5493
      %v5616 = vunpack.c.h.b16 %v5493
      %v5617 = vunpack.c.l.b16 %v5494
      %v5618 = vunpack.c.h.b16 %v5494
      %v5619 = vunpack.c.l.b16 %v5495
      %v5620 = vunpack.c.h.b16 %v5495
      %v5621 = vunpack.c.l.b16 %v5496
      %v5622 = vunpack.c.h.b16 %v5496
      %v5623 = vunpack.c.l.b16 %v5497
      %v5624 = vunpack.c.h.b16 %v5497
      %v5625 = vunpack.c.l.b16 %v5498
      %v5626 = vunpack.c.h.b16 %v5498
      %v5627 = vunpack.c.l.b16 %v5499
      %v5628 = vunpack.c.h.b16 %v5499
      %v5629 = vunpack.c.l.b16 %v5500
      %v5630 = vunpack.c.h.b16 %v5500
      %v5631 = vunpack.c.l.b16 %v5501
      %v5632 = vunpack.c.h.b16 %v5501
      %v5633 = vunpack.c.l.b16 %v5502
      %v5634 = vunpack.c.h.b16 %v5502
      %v5635 = vunpack.c.l.b16 %v5503
      %v5636 = vunpack.c.h.b16 %v5503
      %v5637 = vunpack.c.l.b16 %v5504
      %v5638 = vunpack.c.h.b16 %v5504
      %v5639 = vunpack.c.l.b16 %v5505
      %v5640 = vunpack.c.h.b16 %v5505
      %v5641 = vunpack.c.l.b16 %v5506
      %v5642 = vunpack.c.h.b16 %v5506
      %v5643 = vunpack.c.l.b16 %v5507
      %v5644 = vunpack.c.h.b16 %v5507
      %v5645 = vunpack.c.l.b16 %v5508
      %v5646 = vunpack.c.h.b16 %v5508
      %v5647 = vunpack.c.l.b16 %v5509
      %v5648 = vunpack.c.h.b16 %v5509
      %v5649 = vunpack.c.l.b16 %v5510
      %v5650 = vunpack.c.h.b16 %v5510
      %v5651 = vunpack.c.l.b16 %v5511
      %v5652 = vunpack.c.h.b16 %v5511
      %v5653 = vunpack.c.l.b16 %v5512
      %v5654 = vunpack.c.h.b16 %v5512
      %v5655 = vunpack.c.l.b16 %v5513
      %v5656 = vunpack.c.h.b16 %v5513
      %v5657 = vunpack.c.l.b16 %v5514
      %v5658 = vunpack.c.h.b16 %v5514
      %v5659 = vunpack.c.l.b16 %v5515
      %v5660 = vunpack.c.h.b16 %v5515
      %v5661 = vunpack.c.l.b16 %v5516
      %v5662 = vunpack.c.h.b16 %v5516
      %v5663 = vunpack.c.l.b16 %v5517
      %v5664 = vunpack.c.h.b16 %v5517
      %v5665 = vunpack.c.l.b16 %v5518
      %v5666 = vunpack.c.h.b16 %v5518
      %v5667 = vunpack.c.l.b16 %v5519
      %v5668 = vunpack.c.h.b16 %v5519
      %v5669 = vunpack.c.l.b16 %v5520
      %v5670 = vunpack.c.h.b16 %v5520
      %v5671 = vunpack.c.l.b16 %v5521
      %v5672 = vunpack.c.h.b16 %v5521
      %v5673 = vunpack.c.l.b16 %v5522
      %v5674 = vunpack.c.h.b16 %v5522
      %v5675 = vunpack.c.l.b16 %v5523
      %v5676 = vunpack.c.h.b16 %v5523
      %v5677 = vunpack.c.l.b16 %v5524
      %v5678 = vunpack.c.h.b16 %v5524
      %v5679 = vpack.c.b16 %v5615, %v5583
      %v5680 = vpack.c.b16 %v5616, %v5584
      %v5681 = vpack.c.b16 %v5617, %v5585
      %v5682 = vpack.c.b16 %v5618, %v5586
      %v5683 = vpack.c.b16 %v5619, %v5587
      %v5684 = vpack.c.b16 %v5620, %v5588
      %v5685 = vpack.c.b16 %v5621, %v5589
      %v5686 = vpack.c.b16 %v5622, %v5590
      %v5687 = vpack.c.b16 %v5623, %v5591
      %v5688 = vpack.c.b16 %v5624, %v5592
      %v5689 = vpack.c.b16 %v5625, %v5593
      %v5690 = vpack.c.b16 %v5626, %v5594
      %v5691 = vpack.c.b16 %v5627, %v5595
      %v5692 = vpack.c.b16 %v5628, %v5596
      %v5693 = vpack.c.b16 %v5629, %v5597
      %v5694 = vpack.c.b16 %v5630, %v5598
      %v5695 = vpack.c.b16 %v5631, %v5599
      %v5696 = vpack.c.b16 %v5632, %v5600
      %v5697 = vpack.c.b16 %v5633, %v5601
      %v5698 = vpack.c.b16 %v5634, %v5602
      %v5699 = vpack.c.b16 %v5635, %v5603
      %v5700 = vpack.c.b16 %v5636, %v5604
      %v5701 = vpack.c.b16 %v5637, %v5605
      %v5702 = vpack.c.b16 %v5638, %v5606
      %v5703 = vpack.c.b16 %v5639, %v5607
      %v5704 = vpack.c.b16 %v5640, %v5608
      %v5705 = vpack.c.b16 %v5641, %v5609
      %v5706 = vpack.c.b16 %v5642, %v5610
      %v5707 = vpack.c.b16 %v5643, %v5611
      %v5708 = vpack.c.b16 %v5644, %v5612
      %v5709 = vpack.c.b16 %v5645, %v5613
      %v5710 = vpack.c.b16 %v5646, %v5614
      %v5711 = vpack.c.b16 %v5647, %v5647
      %v5712 = vpack.c.b16 %v5648, %v5648
      %v5713 = vpack.c.b16 %v5649, %v5649
      %v5714 = vpack.c.b16 %v5650, %v5650
      %v5715 = vpack.c.b16 %v5651, %v5651
      %v5716 = vpack.c.b16 %v5652, %v5652
      %v5717 = vpack.c.b16 %v5653, %v5653
      %v5718 = vpack.c.b16 %v5654, %v5654
      %v5719 = vpack.c.b16 %v5655, %v5655
      %v5720 = vpack.c.b16 %v5656, %v5656
      %v5721 = vpack.c.b16 %v5657, %v5657
      %v5722 = vpack.c.b16 %v5658, %v5658
      %v5723 = vpack.c.b16 %v5659, %v5659
      %v5724 = vpack.c.b16 %v5660, %v5660
      %v5725 = vpack.c.b16 %v5661, %v5661
      %v5726 = vpack.c.b16 %v5662, %v5662
      %v5727 = vpack.c.b16 %v5663, %v5663
      %v5728 = vpack.c.b16 %v5664, %v5664
      %v5729 = vpack.c.b16 %v5665, %v5665
      %v5730 = vpack.c.b16 %v5666, %v5666
      %v5731 = vpack.c.b16 %v5667, %v5667
      %v5732 = vpack.c.b16 %v5668, %v5668
      %v5733 = vpack.c.b16 %v5669, %v5669
      %v5734 = vpack.c.b16 %v5670, %v5670
      %v5735 = vpack.c.b16 %v5671, %v5671
      %v5736 = vpack.c.b16 %v5672, %v5672
      %v5737 = vpack.c.b16 %v5673, %v5673
      %v5738 = vpack.c.b16 %v5674, %v5674
      %v5739 = vpack.c.b16 %v5675, %v5675
      %v5740 = vpack.c.b16 %v5676, %v5676
      %v5741 = vpack.c.b16 %v5677, %v5677
      %v5742 = vpack.c.b16 %v5678, %v5678
      %v5776 = vsel %vm3114, %v5534, 0
      %v5779 = vsel %vm2168, %v5711, 0
      %v5782 = vsel %vm2168, %v5712, 0
      %v5785 = vsel %vm2168, %v5713, 0
      %v5788 = vsel %vm2168, %v5714, 0
      %v5791 = vsel %vm2168, %v5715, 0
      %v5794 = vsel %vm2168, %v5716, 0
      %v5797 = vsel %vm2168, %v5717, 0
      %v5800 = vsel %vm2168, %v5718, 0
      %v5803 = vsel %vm2168, %v5719, 0
      %v5806 = vsel %vm2168, %v5720, 0
      %v5809 = vsel %vm2168, %v5721, 0
      %v5812 = vsel %vm2168, %v5722, 0
      %v5815 = vsel %vm2168, %v5723, 0
      %v5818 = vsel %vm2168, %v5724, 0
      %v5821 = vsel %vm2168, %v5725, 0
      %v5824 = vsel %vm2168, %v5726, 0
      %v5827 = vsel %vm2168, %v5727, 0
      %v5830 = vsel %vm2168, %v5728, 0
      %v5833 = vsel %vm2168, %v5729, 0
      %v5836 = vsel %vm2168, %v5730, 0
      %v5839 = vsel %vm2168, %v5731, 0
      %v5842 = vsel %vm2168, %v5732, 0
      %v5845 = vsel %vm2168, %v5733, 0
      %v5848 = vsel %vm2168, %v5734, 0
      %v5851 = vsel %vm2168, %v5735, 0
      %v5854 = vsel %vm2168, %v5736, 0
      %v5857 = vsel %vm2168, %v5737, 0
      %v5860 = vsel %vm2168, %v5738, 0
      %v5863 = vsel %vm2168, %v5739, 0
      %v5866 = vsel %vm2168, %v5740, 0
      %v5869 = vsel %vm2168, %v5741, 0
      %v5872 = vsel %vm2168, %v5742, 0
      %5874 = vmatprep.subr.bf16.mxu0 0
      %5875 = vmatpush1.bf16.msra.mxu0 0
      %5876 = vmatprep.subr.bf16.mxu0 0
      %5877 = vmatpush1.bf16.msra.mxu0 0
      %5878 = vmatprep.subr.bf16.mxu0 0
      %5879 = vmatpush1.bf16.msra.mxu0 0
      %5880 = vmatprep.subr.bf16.mxu0 0
      %5881 = vmatpush1.bf16.msra.mxu0 0
      %5882 = vmatprep.subr.bf16.mxu0 0
      %5883 = vmatpush1.bf16.msra.mxu0 0
      %5884 = vmatprep.subr.bf16.mxu0 0
      %5885 = vmatpush1.bf16.msra.mxu0 0
      %5886 = vmatprep.subr.bf16.mxu0 %v5782
      %5887 = vmatpush1.bf16.msra.mxu0 %v5779
      %5888 = vmatprep.subr.bf16.mxu0 %v5680
      %5889 = vmatpush1.bf16.msra.mxu0 %v5679
      %5890 = vmatprep.subr.bf16.mxu0 0
      %5891 = vmatpush2.bf16.msra.mxu0 0
      %5892 = vmatprep.subr.bf16.mxu0 0
      %5893 = vmatpush2.bf16.msra.mxu0 0
      %5894 = vmatprep.subr.bf16.mxu0 0
      %5895 = vmatpush2.bf16.msra.mxu0 0
      %5896 = vmatprep.subr.bf16.mxu0 0
      %5897 = vmatpush2.bf16.msra.mxu0 0
      %5898 = vmatprep.subr.bf16.mxu0 0
      %5899 = vmatpush2.bf16.msra.mxu0 0
      %5900 = vmatprep.subr.bf16.mxu0 0
      %5901 = vmatpush2.bf16.msra.mxu0 0
      %5902 = vmatprep.subr.bf16.mxu0 0
      %5903 = vmatpush2.bf16.msra.mxu0 0
      %5904 = vmatprep.subr.bf16.mxu0 0
      %5905 = vmatpush2.bf16.msra.mxu0 0
      %5906 = vmatprep.mubr.bf16.mxu0 0
      %5907 = vmatmul.mubr.bf16.gmra.mxu0 %v5776
      %v5908 = vpop.f32.mrf.mxu0
      %v5909 = vadd.f32 0.0, %v5908
      %v5910 = vpop.f32.mrf.mxu0
      %v5911 = vadd.f32 0.0, %v5910
      %v5912 = vpop.f32.mrf.mxu0
      %v5913 = vpop.f32.mrf.mxu0
      %5914 = vdwg.mxu0
      %5915 = vmatprep.subr.bf16.mxu0 0
      %5916 = vmatpush1.bf16.msra.mxu0 0
      %5917 = vmatprep.subr.bf16.mxu0 0
      %5918 = vmatpush1.bf16.msra.mxu0 0
      %5919 = vmatprep.subr.bf16.mxu0 0
      %5920 = vmatpush1.bf16.msra.mxu0 0
      %5921 = vmatprep.subr.bf16.mxu0 0
      %5922 = vmatpush1.bf16.msra.mxu0 0
      %5923 = vmatprep.subr.bf16.mxu0 0
      %5924 = vmatpush1.bf16.msra.mxu0 0
      %5925 = vmatprep.subr.bf16.mxu0 0
      %5926 = vmatpush1.bf16.msra.mxu0 0
      %5927 = vmatprep.subr.bf16.mxu0 %v5788
      %5928 = vmatpush1.bf16.msra.mxu0 %v5785
      %5929 = vmatprep.subr.bf16.mxu0 %v5682
      %5930 = vmatpush1.bf16.msra.mxu0 %v5681
      %5931 = vmatprep.subr.bf16.mxu0 0
      %5932 = vmatpush2.bf16.msra.mxu0 0
      %5933 = vmatprep.subr.bf16.mxu0 0
      %5934 = vmatpush2.bf16.msra.mxu0 0
      %5935 = vmatprep.subr.bf16.mxu0 0
      %5936 = vmatpush2.bf16.msra.mxu0 0
      %5937 = vmatprep.subr.bf16.mxu0 0
      %5938 = vmatpush2.bf16.msra.mxu0 0
      %5939 = vmatprep.subr.bf16.mxu0 0
      %5940 = vmatpush2.bf16.msra.mxu0 0
      %5941 = vmatprep.subr.bf16.mxu0 0
      %5942 = vmatpush2.bf16.msra.mxu0 0
      %5943 = vmatprep.subr.bf16.mxu0 0
      %5944 = vmatpush2.bf16.msra.mxu0 0
      %5945 = vmatprep.subr.bf16.mxu0 0
      %5946 = vmatpush2.bf16.msra.mxu0 0
      %5947 = vmatprep.mubr.bf16.mxu0 0
      %5948 = vmatmul.mubr.bf16.gmra.mxu0 %v5776
      %v5949 = vpop.f32.mrf.mxu0
      %v5950 = vadd.f32 0.0, %v5949
      %v5951 = vpop.f32.mrf.mxu0
      %v5952 = vadd.f32 0.0, %v5951
      %v5953 = vpop.f32.mrf.mxu0
      %v5954 = vpop.f32.mrf.mxu0
      %5955 = vdwg.mxu0
      %5956 = vmatprep.subr.bf16.mxu0 0
      %5957 = vmatpush1.bf16.msra.mxu0 0
      %5958 = vmatprep.subr.bf16.mxu0 0
      %5959 = vmatpush1.bf16.msra.mxu0 0
      %5960 = vmatprep.subr.bf16.mxu0 0
      %5961 = vmatpush1.bf16.msra.mxu0 0
      %5962 = vmatprep.subr.bf16.mxu0 0
      %5963 = vmatpush1.bf16.msra.mxu0 0
      %5964 = vmatprep.subr.bf16.mxu0 0
      %5965 = vmatpush1.bf16.msra.mxu0 0
      %5966 = vmatprep.subr.bf16.mxu0 0
      %5967 = vmatpush1.bf16.msra.mxu0 0
      %5968 = vmatprep.subr.bf16.mxu0 %v5794
      %5969 = vmatpush1.bf16.msra.mxu0 %v5791
      %5970 = vmatprep.subr.bf16.mxu0 %v5684
      %5971 = vmatpush1.bf16.msra.mxu0 %v5683
      %5972 = vmatprep.subr.bf16.mxu0 0
      %5973 = vmatpush2.bf16.msra.mxu0 0
      %5974 = vmatprep.subr.bf16.mxu0 0
      %5975 = vmatpush2.bf16.msra.mxu0 0
      %5976 = vmatprep.subr.bf16.mxu0 0
      %5977 = vmatpush2.bf16.msra.mxu0 0
      %5978 = vmatprep.subr.bf16.mxu0 0
      %5979 = vmatpush2.bf16.msra.mxu0 0
      %5980 = vmatprep.subr.bf16.mxu0 0
      %5981 = vmatpush2.bf16.msra.mxu0 0
      %5982 = vmatprep.subr.bf16.mxu0 0
      %5983 = vmatpush2.bf16.msra.mxu0 0
      %5984 = vmatprep.subr.bf16.mxu0 0
      %5985 = vmatpush2.bf16.msra.mxu0 0
      %5986 = vmatprep.subr.bf16.mxu0 0
      %5987 = vmatpush2.bf16.msra.mxu0 0
      %5988 = vmatprep.mubr.bf16.mxu0 0
      %5989 = vmatmul.mubr.bf16.gmra.mxu0 %v5776
      %v5990 = vpop.f32.mrf.mxu0
      %v5991 = vadd.f32 0.0, %v5990
      %v5992 = vpop.f32.mrf.mxu0
      %v5993 = vadd.f32 0.0, %v5992
      %v5994 = vpop.f32.mrf.mxu0
      %v5995 = vpop.f32.mrf.mxu0
      %5996 = vdwg.mxu0
      %5997 = vmatprep.subr.bf16.mxu0 0
      %5998 = vmatpush1.bf16.msra.mxu0 0
      %5999 = vmatprep.subr.bf16.mxu0 0
      %6000 = vmatpush1.bf16.msra.mxu0 0
      %6001 = vmatprep.subr.bf16.mxu0 0
      %6002 = vmatpush1.bf16.msra.mxu0 0
      %6003 = vmatprep.subr.bf16.mxu0 0
      %6004 = vmatpush1.bf16.msra.mxu0 0
      %6005 = vmatprep.subr.bf16.mxu0 0
      %6006 = vmatpush1.bf16.msra.mxu0 0
      %6007 = vmatprep.subr.bf16.mxu0 0
      %6008 = vmatpush1.bf16.msra.mxu0 0
      %6009 = vmatprep.subr.bf16.mxu0 %v5800
      %6010 = vmatpush1.bf16.msra.mxu0 %v5797
      %6011 = vmatprep.subr.bf16.mxu0 %v5686
      %6012 = vmatpush1.bf16.msra.mxu0 %v5685
      %6013 = vmatprep.subr.bf16.mxu0 0
      %6014 = vmatpush2.bf16.msra.mxu0 0
      %6015 = vmatprep.subr.bf16.mxu0 0
      %6016 = vmatpush2.bf16.msra.mxu0 0
      %6017 = vmatprep.subr.bf16.mxu0 0
      %6018 = vmatpush2.bf16.msra.mxu0 0
      %6019 = vmatprep.subr.bf16.mxu0 0
      %6020 = vmatpush2.bf16.msra.mxu0 0
      %6021 = vmatprep.subr.bf16.mxu0 0
      %6022 = vmatpush2.bf16.msra.mxu0 0
      %6023 = vmatprep.subr.bf16.mxu0 0
      %6024 = vmatpush2.bf16.msra.mxu0 0
      %6025 = vmatprep.subr.bf16.mxu0 0
      %6026 = vmatpush2.bf16.msra.mxu0 0
      %6027 = vmatprep.subr.bf16.mxu0 0
      %6028 = vmatpush2.bf16.msra.mxu0 0
      %6029 = vmatprep.mubr.bf16.mxu0 0
      %6030 = vmatmul.mubr.bf16.gmra.mxu0 %v5776
      %v6031 = vpop.f32.mrf.mxu0
      %v6032 = vadd.f32 0.0, %v6031
      %v6033 = vpop.f32.mrf.mxu0
      %v6034 = vadd.f32 0.0, %v6033
      %v6035 = vpop.f32.mrf.mxu0
      %v6036 = vpop.f32.mrf.mxu0
      %6037 = vdwg.mxu0
      %6038 = vmatprep.subr.bf16.mxu0 0
      %6039 = vmatpush1.bf16.msra.mxu0 0
      %6040 = vmatprep.subr.bf16.mxu0 0
      %6041 = vmatpush1.bf16.msra.mxu0 0
      %6042 = vmatprep.subr.bf16.mxu0 0
      %6043 = vmatpush1.bf16.msra.mxu0 0
      %6044 = vmatprep.subr.bf16.mxu0 0
      %6045 = vmatpush1.bf16.msra.mxu0 0
      %6046 = vmatprep.subr.bf16.mxu0 0
      %6047 = vmatpush1.bf16.msra.mxu0 0
      %6048 = vmatprep.subr.bf16.mxu0 0
      %6049 = vmatpush1.bf16.msra.mxu0 0
      %6050 = vmatprep.subr.bf16.mxu0 %v5806
      %6051 = vmatpush1.bf16.msra.mxu0 %v5803
      %6052 = vmatprep.subr.bf16.mxu0 %v5688
      %6053 = vmatpush1.bf16.msra.mxu0 %v5687
      %6054 = vmatprep.subr.bf16.mxu0 0
      %6055 = vmatpush2.bf16.msra.mxu0 0
      %6056 = vmatprep.subr.bf16.mxu0 0
      %6057 = vmatpush2.bf16.msra.mxu0 0
      %6058 = vmatprep.subr.bf16.mxu0 0
      %6059 = vmatpush2.bf16.msra.mxu0 0
      %6060 = vmatprep.subr.bf16.mxu0 0
      %6061 = vmatpush2.bf16.msra.mxu0 0
      %6062 = vmatprep.subr.bf16.mxu0 0
      %6063 = vmatpush2.bf16.msra.mxu0 0
      %6064 = vmatprep.subr.bf16.mxu0 0
      %6065 = vmatpush2.bf16.msra.mxu0 0
      %6066 = vmatprep.subr.bf16.mxu0 0
      %6067 = vmatpush2.bf16.msra.mxu0 0
      %6068 = vmatprep.subr.bf16.mxu0 0
      %6069 = vmatpush2.bf16.msra.mxu0 0
      %6070 = vmatprep.mubr.bf16.mxu0 0
      %6071 = vmatmul.mubr.bf16.gmra.mxu0 %v5776
      %v6072 = vpop.f32.mrf.mxu0
      %v6073 = vadd.f32 0.0, %v6072
      %v6074 = vpop.f32.mrf.mxu0
      %v6075 = vadd.f32 0.0, %v6074
      %v6076 = vpop.f32.mrf.mxu0
      %v6077 = vpop.f32.mrf.mxu0
      %6078 = vdwg.mxu0
      %6079 = vmatprep.subr.bf16.mxu0 0
      %6080 = vmatpush1.bf16.msra.mxu0 0
      %6081 = vmatprep.subr.bf16.mxu0 0
      %6082 = vmatpush1.bf16.msra.mxu0 0
      %6083 = vmatprep.subr.bf16.mxu0 0
      %6084 = vmatpush1.bf16.msra.mxu0 0
      %6085 = vmatprep.subr.bf16.mxu0 0
      %6086 = vmatpush1.bf16.msra.mxu0 0
      %6087 = vmatprep.subr.bf16.mxu0 0
      %6088 = vmatpush1.bf16.msra.mxu0 0
      %6089 = vmatprep.subr.bf16.mxu0 0
      %6090 = vmatpush1.bf16.msra.mxu0 0
      %6091 = vmatprep.subr.bf16.mxu0 %v5812
      %6092 = vmatpush1.bf16.msra.mxu0 %v5809
      %6093 = vmatprep.subr.bf16.mxu0 %v5690
      %6094 = vmatpush1.bf16.msra.mxu0 %v5689
      %6095 = vmatprep.subr.bf16.mxu0 0
      %6096 = vmatpush2.bf16.msra.mxu0 0
      %6097 = vmatprep.subr.bf16.mxu0 0
      %6098 = vmatpush2.bf16.msra.mxu0 0
      %6099 = vmatprep.subr.bf16.mxu0 0
      %6100 = vmatpush2.bf16.msra.mxu0 0
      %6101 = vmatprep.subr.bf16.mxu0 0
      %6102 = vmatpush2.bf16.msra.mxu0 0
      %6103 = vmatprep.subr.bf16.mxu0 0
      %6104 = vmatpush2.bf16.msra.mxu0 0
      %6105 = vmatprep.subr.bf16.mxu0 0
      %6106 = vmatpush2.bf16.msra.mxu0 0
      %6107 = vmatprep.subr.bf16.mxu0 0
      %6108 = vmatpush2.bf16.msra.mxu0 0
      %6109 = vmatprep.subr.bf16.mxu0 0
      %6110 = vmatpush2.bf16.msra.mxu0 0
      %6111 = vmatprep.mubr.bf16.mxu0 0
      %6112 = vmatmul.mubr.bf16.gmra.mxu0 %v5776
      %v6113 = vpop.f32.mrf.mxu0
      %v6114 = vadd.f32 0.0, %v6113
      %v6115 = vpop.f32.mrf.mxu0
      %v6116 = vadd.f32 0.0, %v6115
      %v6117 = vpop.f32.mrf.mxu0
      %v6118 = vpop.f32.mrf.mxu0
      %6119 = vdwg.mxu0
      %6120 = vmatprep.subr.bf16.mxu0 0
      %6121 = vmatpush1.bf16.msra.mxu0 0
      %6122 = vmatprep.subr.bf16.mxu0 0
      %6123 = vmatpush1.bf16.msra.mxu0 0
      %6124 = vmatprep.subr.bf16.mxu0 0
      %6125 = vmatpush1.bf16.msra.mxu0 0
      %6126 = vmatprep.subr.bf16.mxu0 0
      %6127 = vmatpush1.bf16.msra.mxu0 0
      %6128 = vmatprep.subr.bf16.mxu0 0
      %6129 = vmatpush1.bf16.msra.mxu0 0
      %6130 = vmatprep.subr.bf16.mxu0 0
      %6131 = vmatpush1.bf16.msra.mxu0 0
      %6132 = vmatprep.subr.bf16.mxu0 %v5818
      %6133 = vmatpush1.bf16.msra.mxu0 %v5815
      %6134 = vmatprep.subr.bf16.mxu0 %v5692
      %6135 = vmatpush1.bf16.msra.mxu0 %v5691
      %6136 = vmatprep.subr.bf16.mxu0 0
      %6137 = vmatpush2.bf16.msra.mxu0 0
      %6138 = vmatprep.subr.bf16.mxu0 0
      %6139 = vmatpush2.bf16.msra.mxu0 0
      %6140 = vmatprep.subr.bf16.mxu0 0
      %6141 = vmatpush2.bf16.msra.mxu0 0
      %6142 = vmatprep.subr.bf16.mxu0 0
      %6143 = vmatpush2.bf16.msra.mxu0 0
      %6144 = vmatprep.subr.bf16.mxu0 0
      %6145 = vmatpush2.bf16.msra.mxu0 0
      %6146 = vmatprep.subr.bf16.mxu0 0
      %6147 = vmatpush2.bf16.msra.mxu0 0
      %6148 = vmatprep.subr.bf16.mxu0 0
      %6149 = vmatpush2.bf16.msra.mxu0 0
      %6150 = vmatprep.subr.bf16.mxu0 0
      %6151 = vmatpush2.bf16.msra.mxu0 0
      %6152 = vmatprep.mubr.bf16.mxu0 0
      %6153 = vmatmul.mubr.bf16.gmra.mxu0 %v5776
      %v6154 = vpop.f32.mrf.mxu0
      %v6155 = vadd.f32 0.0, %v6154
      %v6156 = vpop.f32.mrf.mxu0
      %v6157 = vadd.f32 0.0, %v6156
      %v6158 = vpop.f32.mrf.mxu0
      %v6159 = vpop.f32.mrf.mxu0
      %6160 = vdwg.mxu0
      %6161 = vmatprep.subr.bf16.mxu0 0
      %6162 = vmatpush1.bf16.msra.mxu0 0
      %6163 = vmatprep.subr.bf16.mxu0 0
      %6164 = vmatpush1.bf16.msra.mxu0 0
      %6165 = vmatprep.subr.bf16.mxu0 0
      %6166 = vmatpush1.bf16.msra.mxu0 0
      %6167 = vmatprep.subr.bf16.mxu0 0
      %6168 = vmatpush1.bf16.msra.mxu0 0
      %6169 = vmatprep.subr.bf16.mxu0 0
      %6170 = vmatpush1.bf16.msra.mxu0 0
      %6171 = vmatprep.subr.bf16.mxu0 0
      %6172 = vmatpush1.bf16.msra.mxu0 0
      %6173 = vmatprep.subr.bf16.mxu0 %v5824
      %6174 = vmatpush1.bf16.msra.mxu0 %v5821
      %6175 = vmatprep.subr.bf16.mxu0 %v5694
      %6176 = vmatpush1.bf16.msra.mxu0 %v5693
      %6177 = vmatprep.subr.bf16.mxu0 0
      %6178 = vmatpush2.bf16.msra.mxu0 0
      %6179 = vmatprep.subr.bf16.mxu0 0
      %6180 = vmatpush2.bf16.msra.mxu0 0
      %6181 = vmatprep.subr.bf16.mxu0 0
      %6182 = vmatpush2.bf16.msra.mxu0 0
      %6183 = vmatprep.subr.bf16.mxu0 0
      %6184 = vmatpush2.bf16.msra.mxu0 0
      %6185 = vmatprep.subr.bf16.mxu0 0
      %6186 = vmatpush2.bf16.msra.mxu0 0
      %6187 = vmatprep.subr.bf16.mxu0 0
      %6188 = vmatpush2.bf16.msra.mxu0 0
      %6189 = vmatprep.subr.bf16.mxu0 0
      %6190 = vmatpush2.bf16.msra.mxu0 0
      %6191 = vmatprep.subr.bf16.mxu0 0
      %6192 = vmatpush2.bf16.msra.mxu0 0
      %6193 = vmatprep.mubr.bf16.mxu0 0
      %6194 = vmatmul.mubr.bf16.gmra.mxu0 %v5776
      %v6195 = vpop.f32.mrf.mxu0
      %v6196 = vadd.f32 0.0, %v6195
      %v6197 = vpop.f32.mrf.mxu0
      %v6198 = vadd.f32 0.0, %v6197
      %v6199 = vpop.f32.mrf.mxu0
      %v6200 = vpop.f32.mrf.mxu0
      %6201 = vdwg.mxu0
      %6202 = vmatprep.subr.bf16.mxu0 0
      %6203 = vmatpush1.bf16.msra.mxu0 0
      %6204 = vmatprep.subr.bf16.mxu0 0
      %6205 = vmatpush1.bf16.msra.mxu0 0
      %6206 = vmatprep.subr.bf16.mxu0 0
      %6207 = vmatpush1.bf16.msra.mxu0 0
      %6208 = vmatprep.subr.bf16.mxu0 0
      %6209 = vmatpush1.bf16.msra.mxu0 0
      %6210 = vmatprep.subr.bf16.mxu0 0
      %6211 = vmatpush1.bf16.msra.mxu0 0
      %6212 = vmatprep.subr.bf16.mxu0 0
      %6213 = vmatpush1.bf16.msra.mxu0 0
      %6214 = vmatprep.subr.bf16.mxu0 %v5830
      %6215 = vmatpush1.bf16.msra.mxu0 %v5827
      %6216 = vmatprep.subr.bf16.mxu0 %v5696
      %6217 = vmatpush1.bf16.msra.mxu0 %v5695
      %6218 = vmatprep.subr.bf16.mxu0 0
      %6219 = vmatpush2.bf16.msra.mxu0 0
      %6220 = vmatprep.subr.bf16.mxu0 0
      %6221 = vmatpush2.bf16.msra.mxu0 0
      %6222 = vmatprep.subr.bf16.mxu0 0
      %6223 = vmatpush2.bf16.msra.mxu0 0
      %6224 = vmatprep.subr.bf16.mxu0 0
      %6225 = vmatpush2.bf16.msra.mxu0 0
      %6226 = vmatprep.subr.bf16.mxu0 0
      %6227 = vmatpush2.bf16.msra.mxu0 0
      %6228 = vmatprep.subr.bf16.mxu0 0
      %6229 = vmatpush2.bf16.msra.mxu0 0
      %6230 = vmatprep.subr.bf16.mxu0 0
      %6231 = vmatpush2.bf16.msra.mxu0 0
      %6232 = vmatprep.subr.bf16.mxu0 0
      %6233 = vmatpush2.bf16.msra.mxu0 0
      %6234 = vmatprep.mubr.bf16.mxu0 0
      %6235 = vmatmul.mubr.bf16.gmra.mxu0 %v5776
      %v6236 = vpop.f32.mrf.mxu0
      %v6237 = vadd.f32 0.0, %v6236
      %v6238 = vpop.f32.mrf.mxu0
      %v6239 = vadd.f32 0.0, %v6238
      %v6240 = vpop.f32.mrf.mxu0
      %v6241 = vpop.f32.mrf.mxu0
      %6242 = vdwg.mxu0
      %6243 = vmatprep.subr.bf16.mxu0 0
      %6244 = vmatpush1.bf16.msra.mxu0 0
      %6245 = vmatprep.subr.bf16.mxu0 0
      %6246 = vmatpush1.bf16.msra.mxu0 0
      %6247 = vmatprep.subr.bf16.mxu0 0
      %6248 = vmatpush1.bf16.msra.mxu0 0
      %6249 = vmatprep.subr.bf16.mxu0 0
      %6250 = vmatpush1.bf16.msra.mxu0 0
      %6251 = vmatprep.subr.bf16.mxu0 0
      %6252 = vmatpush1.bf16.msra.mxu0 0
      %6253 = vmatprep.subr.bf16.mxu0 0
      %6254 = vmatpush1.bf16.msra.mxu0 0
      %6255 = vmatprep.subr.bf16.mxu0 %v5836
      %6256 = vmatpush1.bf16.msra.mxu0 %v5833
      %6257 = vmatprep.subr.bf16.mxu0 %v5698
      %6258 = vmatpush1.bf16.msra.mxu0 %v5697
      %6259 = vmatprep.subr.bf16.mxu0 0
      %6260 = vmatpush2.bf16.msra.mxu0 0
      %6261 = vmatprep.subr.bf16.mxu0 0
      %6262 = vmatpush2.bf16.msra.mxu0 0
      %6263 = vmatprep.subr.bf16.mxu0 0
      %6264 = vmatpush2.bf16.msra.mxu0 0
      %6265 = vmatprep.subr.bf16.mxu0 0
      %6266 = vmatpush2.bf16.msra.mxu0 0
      %6267 = vmatprep.subr.bf16.mxu0 0
      %6268 = vmatpush2.bf16.msra.mxu0 0
      %6269 = vmatprep.subr.bf16.mxu0 0
      %6270 = vmatpush2.bf16.msra.mxu0 0
      %6271 = vmatprep.subr.bf16.mxu0 0
      %6272 = vmatpush2.bf16.msra.mxu0 0
      %6273 = vmatprep.subr.bf16.mxu0 0
      %6274 = vmatpush2.bf16.msra.mxu0 0
      %6275 = vmatprep.mubr.bf16.mxu0 0
      %6276 = vmatmul.mubr.bf16.gmra.mxu0 %v5776
      %v6277 = vpop.f32.mrf.mxu0
      %v6278 = vadd.f32 0.0, %v6277
      %v6279 = vpop.f32.mrf.mxu0
      %v6280 = vadd.f32 0.0, %v6279
      %v6281 = vpop.f32.mrf.mxu0
      %v6282 = vpop.f32.mrf.mxu0
      %6283 = vdwg.mxu0
      %6284 = vmatprep.subr.bf16.mxu0 0
      %6285 = vmatpush1.bf16.msra.mxu0 0
      %6286 = vmatprep.subr.bf16.mxu0 0
      %6287 = vmatpush1.bf16.msra.mxu0 0
      %6288 = vmatprep.subr.bf16.mxu0 0
      %6289 = vmatpush1.bf16.msra.mxu0 0
      %6290 = vmatprep.subr.bf16.mxu0 0
      %6291 = vmatpush1.bf16.msra.mxu0 0
      %6292 = vmatprep.subr.bf16.mxu0 0
      %6293 = vmatpush1.bf16.msra.mxu0 0
      %6294 = vmatprep.subr.bf16.mxu0 0
      %6295 = vmatpush1.bf16.msra.mxu0 0
      %6296 = vmatprep.subr.bf16.mxu0 %v5842
      %6297 = vmatpush1.bf16.msra.mxu0 %v5839
      %6298 = vmatprep.subr.bf16.mxu0 %v5700
      %6299 = vmatpush1.bf16.msra.mxu0 %v5699
      %6300 = vmatprep.subr.bf16.mxu0 0
      %6301 = vmatpush2.bf16.msra.mxu0 0
      %6302 = vmatprep.subr.bf16.mxu0 0
      %6303 = vmatpush2.bf16.msra.mxu0 0
      %6304 = vmatprep.subr.bf16.mxu0 0
      %6305 = vmatpush2.bf16.msra.mxu0 0
      %6306 = vmatprep.subr.bf16.mxu0 0
      %6307 = vmatpush2.bf16.msra.mxu0 0
      %6308 = vmatprep.subr.bf16.mxu0 0
      %6309 = vmatpush2.bf16.msra.mxu0 0
      %6310 = vmatprep.subr.bf16.mxu0 0
      %6311 = vmatpush2.bf16.msra.mxu0 0
      %6312 = vmatprep.subr.bf16.mxu0 0
      %6313 = vmatpush2.bf16.msra.mxu0 0
      %6314 = vmatprep.subr.bf16.mxu0 0
      %6315 = vmatpush2.bf16.msra.mxu0 0
      %6316 = vmatprep.mubr.bf16.mxu0 0
      %6317 = vmatmul.mubr.bf16.gmra.mxu0 %v5776
      %v6318 = vpop.f32.mrf.mxu0
      %v6319 = vadd.f32 0.0, %v6318
      %v6320 = vpop.f32.mrf.mxu0
      %v6321 = vadd.f32 0.0, %v6320
      %v6322 = vpop.f32.mrf.mxu0
      %v6323 = vpop.f32.mrf.mxu0
      %6324 = vdwg.mxu0
      %6325 = vmatprep.subr.bf16.mxu0 0
      %6326 = vmatpush1.bf16.msra.mxu0 0
      %6327 = vmatprep.subr.bf16.mxu0 0
      %6328 = vmatpush1.bf16.msra.mxu0 0
      %6329 = vmatprep.subr.bf16.mxu0 0
      %6330 = vmatpush1.bf16.msra.mxu0 0
      %6331 = vmatprep.subr.bf16.mxu0 0
      %6332 = vmatpush1.bf16.msra.mxu0 0
      %6333 = vmatprep.subr.bf16.mxu0 0
      %6334 = vmatpush1.bf16.msra.mxu0 0
      %6335 = vmatprep.subr.bf16.mxu0 0
      %6336 = vmatpush1.bf16.msra.mxu0 0
      %6337 = vmatprep.subr.bf16.mxu0 %v5848
      %6338 = vmatpush1.bf16.msra.mxu0 %v5845
      %6339 = vmatprep.subr.bf16.mxu0 %v5702
      %6340 = vmatpush1.bf16.msra.mxu0 %v5701
      %6341 = vmatprep.subr.bf16.mxu0 0
      %6342 = vmatpush2.bf16.msra.mxu0 0
      %6343 = vmatprep.subr.bf16.mxu0 0
      %6344 = vmatpush2.bf16.msra.mxu0 0
      %6345 = vmatprep.subr.bf16.mxu0 0
      %6346 = vmatpush2.bf16.msra.mxu0 0
      %6347 = vmatprep.subr.bf16.mxu0 0
      %6348 = vmatpush2.bf16.msra.mxu0 0
      %6349 = vmatprep.subr.bf16.mxu0 0
      %6350 = vmatpush2.bf16.msra.mxu0 0
      %6351 = vmatprep.subr.bf16.mxu0 0
      %6352 = vmatpush2.bf16.msra.mxu0 0
      %6353 = vmatprep.subr.bf16.mxu0 0
      %6354 = vmatpush2.bf16.msra.mxu0 0
      %6355 = vmatprep.subr.bf16.mxu0 0
      %6356 = vmatpush2.bf16.msra.mxu0 0
      %6357 = vmatprep.mubr.bf16.mxu0 0
      %6358 = vmatmul.mubr.bf16.gmra.mxu0 %v5776
      %v6359 = vpop.f32.mrf.mxu0
      %v6360 = vadd.f32 0.0, %v6359
      %v6361 = vpop.f32.mrf.mxu0
      %v6362 = vadd.f32 0.0, %v6361
      %v6363 = vpop.f32.mrf.mxu0
      %v6364 = vpop.f32.mrf.mxu0
      %6365 = vdwg.mxu0
      %6366 = vmatprep.subr.bf16.mxu0 0
      %6367 = vmatpush1.bf16.msra.mxu0 0
      %6368 = vmatprep.subr.bf16.mxu0 0
      %6369 = vmatpush1.bf16.msra.mxu0 0
      %6370 = vmatprep.subr.bf16.mxu0 0
      %6371 = vmatpush1.bf16.msra.mxu0 0
      %6372 = vmatprep.subr.bf16.mxu0 0
      %6373 = vmatpush1.bf16.msra.mxu0 0
      %6374 = vmatprep.subr.bf16.mxu0 0
      %6375 = vmatpush1.bf16.msra.mxu0 0
      %6376 = vmatprep.subr.bf16.mxu0 0
      %6377 = vmatpush1.bf16.msra.mxu0 0
      %6378 = vmatprep.subr.bf16.mxu0 %v5854
      %6379 = vmatpush1.bf16.msra.mxu0 %v5851
      %6380 = vmatprep.subr.bf16.mxu0 %v5704
      %6381 = vmatpush1.bf16.msra.mxu0 %v5703
      %6382 = vmatprep.subr.bf16.mxu0 0
      %6383 = vmatpush2.bf16.msra.mxu0 0
      %6384 = vmatprep.subr.bf16.mxu0 0
      %6385 = vmatpush2.bf16.msra.mxu0 0
      %6386 = vmatprep.subr.bf16.mxu0 0
      %6387 = vmatpush2.bf16.msra.mxu0 0
      %6388 = vmatprep.subr.bf16.mxu0 0
      %6389 = vmatpush2.bf16.msra.mxu0 0
      %6390 = vmatprep.subr.bf16.mxu0 0
      %6391 = vmatpush2.bf16.msra.mxu0 0
      %6392 = vmatprep.subr.bf16.mxu0 0
      %6393 = vmatpush2.bf16.msra.mxu0 0
      %6394 = vmatprep.subr.bf16.mxu0 0
      %6395 = vmatpush2.bf16.msra.mxu0 0
      %6396 = vmatprep.subr.bf16.mxu0 0
      %6397 = vmatpush2.bf16.msra.mxu0 0
      %6398 = vmatprep.mubr.bf16.mxu0 0
      %6399 = vmatmul.mubr.bf16.gmra.mxu0 %v5776
      %v6400 = vpop.f32.mrf.mxu0
      %v6401 = vadd.f32 0.0, %v6400
      %v6402 = vpop.f32.mrf.mxu0
      %v6403 = vadd.f32 0.0, %v6402
      %v6404 = vpop.f32.mrf.mxu0
      %v6405 = vpop.f32.mrf.mxu0
      %6406 = vdwg.mxu0
      %6407 = vmatprep.subr.bf16.mxu0 0
      %6408 = vmatpush1.bf16.msra.mxu0 0
      %6409 = vmatprep.subr.bf16.mxu0 0
      %6410 = vmatpush1.bf16.msra.mxu0 0
      %6411 = vmatprep.subr.bf16.mxu0 0
      %6412 = vmatpush1.bf16.msra.mxu0 0
      %6413 = vmatprep.subr.bf16.mxu0 0
      %6414 = vmatpush1.bf16.msra.mxu0 0
      %6415 = vmatprep.subr.bf16.mxu0 0
      %6416 = vmatpush1.bf16.msra.mxu0 0
      %6417 = vmatprep.subr.bf16.mxu0 0
      %6418 = vmatpush1.bf16.msra.mxu0 0
      %6419 = vmatprep.subr.bf16.mxu0 %v5860
      %6420 = vmatpush1.bf16.msra.mxu0 %v5857
      %6421 = vmatprep.subr.bf16.mxu0 %v5706
      %6422 = vmatpush1.bf16.msra.mxu0 %v5705
      %6423 = vmatprep.subr.bf16.mxu0 0
      %6424 = vmatpush2.bf16.msra.mxu0 0
      %6425 = vmatprep.subr.bf16.mxu0 0
      %6426 = vmatpush2.bf16.msra.mxu0 0
      %6427 = vmatprep.subr.bf16.mxu0 0
      %6428 = vmatpush2.bf16.msra.mxu0 0
      %6429 = vmatprep.subr.bf16.mxu0 0
      %6430 = vmatpush2.bf16.msra.mxu0 0
      %6431 = vmatprep.subr.bf16.mxu0 0
      %6432 = vmatpush2.bf16.msra.mxu0 0
      %6433 = vmatprep.subr.bf16.mxu0 0
      %6434 = vmatpush2.bf16.msra.mxu0 0
      %6435 = vmatprep.subr.bf16.mxu0 0
      %6436 = vmatpush2.bf16.msra.mxu0 0
      %6437 = vmatprep.subr.bf16.mxu0 0
      %6438 = vmatpush2.bf16.msra.mxu0 0
      %6439 = vmatprep.mubr.bf16.mxu0 0
      %6440 = vmatmul.mubr.bf16.gmra.mxu0 %v5776
      %v6441 = vpop.f32.mrf.mxu0
      %v6442 = vadd.f32 0.0, %v6441
      %v6443 = vpop.f32.mrf.mxu0
      %v6444 = vadd.f32 0.0, %v6443
      %v6445 = vpop.f32.mrf.mxu0
      %v6446 = vpop.f32.mrf.mxu0
      %6447 = vdwg.mxu0
      %6448 = vmatprep.subr.bf16.mxu0 0
      %6449 = vmatpush1.bf16.msra.mxu0 0
      %6450 = vmatprep.subr.bf16.mxu0 0
      %6451 = vmatpush1.bf16.msra.mxu0 0
      %6452 = vmatprep.subr.bf16.mxu0 0
      %6453 = vmatpush1.bf16.msra.mxu0 0
      %6454 = vmatprep.subr.bf16.mxu0 0
      %6455 = vmatpush1.bf16.msra.mxu0 0
      %6456 = vmatprep.subr.bf16.mxu0 0
      %6457 = vmatpush1.bf16.msra.mxu0 0
      %6458 = vmatprep.subr.bf16.mxu0 0
      %6459 = vmatpush1.bf16.msra.mxu0 0
      %6460 = vmatprep.subr.bf16.mxu0 %v5866
      %6461 = vmatpush1.bf16.msra.mxu0 %v5863
      %6462 = vmatprep.subr.bf16.mxu0 %v5708
      %6463 = vmatpush1.bf16.msra.mxu0 %v5707
      %6464 = vmatprep.subr.bf16.mxu0 0
      %6465 = vmatpush2.bf16.msra.mxu0 0
      %6466 = vmatprep.subr.bf16.mxu0 0
      %6467 = vmatpush2.bf16.msra.mxu0 0
      %6468 = vmatprep.subr.bf16.mxu0 0
      %6469 = vmatpush2.bf16.msra.mxu0 0
      %6470 = vmatprep.subr.bf16.mxu0 0
      %6471 = vmatpush2.bf16.msra.mxu0 0
      %6472 = vmatprep.subr.bf16.mxu0 0
      %6473 = vmatpush2.bf16.msra.mxu0 0
      %6474 = vmatprep.subr.bf16.mxu0 0
      %6475 = vmatpush2.bf16.msra.mxu0 0
      %6476 = vmatprep.subr.bf16.mxu0 0
      %6477 = vmatpush2.bf16.msra.mxu0 0
      %6478 = vmatprep.subr.bf16.mxu0 0
      %6479 = vmatpush2.bf16.msra.mxu0 0
      %6480 = vmatprep.mubr.bf16.mxu0 0
      %6481 = vmatmul.mubr.bf16.gmra.mxu0 %v5776
      %v6482 = vpop.f32.mrf.mxu0
      %v6483 = vadd.f32 0.0, %v6482
      %v6484 = vpop.f32.mrf.mxu0
      %v6485 = vadd.f32 0.0, %v6484
      %v6486 = vpop.f32.mrf.mxu0
      %v6487 = vpop.f32.mrf.mxu0
      %6488 = vdwg.mxu0
      %6489 = vmatprep.subr.bf16.mxu0 0
      %6490 = vmatpush1.bf16.msra.mxu0 0
      %6491 = vmatprep.subr.bf16.mxu0 0
      %6492 = vmatpush1.bf16.msra.mxu0 0
      %6493 = vmatprep.subr.bf16.mxu0 0
      %6494 = vmatpush1.bf16.msra.mxu0 0
      %6495 = vmatprep.subr.bf16.mxu0 0
      %6496 = vmatpush1.bf16.msra.mxu0 0
      %6497 = vmatprep.subr.bf16.mxu0 0
      %6498 = vmatpush1.bf16.msra.mxu0 0
      %6499 = vmatprep.subr.bf16.mxu0 0
      %6500 = vmatpush1.bf16.msra.mxu0 0
      %6501 = vmatprep.subr.bf16.mxu0 %v5872
      %6502 = vmatpush1.bf16.msra.mxu0 %v5869
      %6503 = vmatprep.subr.bf16.mxu0 %v5710
      %6504 = vmatpush1.bf16.msra.mxu0 %v5709
      %6505 = vmatprep.subr.bf16.mxu0 0
      %6506 = vmatpush2.bf16.msra.mxu0 0
      %6507 = vmatprep.subr.bf16.mxu0 0
      %6508 = vmatpush2.bf16.msra.mxu0 0
      %6509 = vmatprep.subr.bf16.mxu0 0
      %6510 = vmatpush2.bf16.msra.mxu0 0
      %6511 = vmatprep.subr.bf16.mxu0 0
      %6512 = vmatpush2.bf16.msra.mxu0 0
      %6513 = vmatprep.subr.bf16.mxu0 0
      %6514 = vmatpush2.bf16.msra.mxu0 0
      %6515 = vmatprep.subr.bf16.mxu0 0
      %6516 = vmatpush2.bf16.msra.mxu0 0
      %6517 = vmatprep.subr.bf16.mxu0 0
      %6518 = vmatpush2.bf16.msra.mxu0 0
      %6519 = vmatprep.subr.bf16.mxu0 0
      %6520 = vmatpush2.bf16.msra.mxu0 0
      %6521 = vmatprep.mubr.bf16.mxu0 0
      %6522 = vmatmul.mubr.bf16.gmra.mxu0 %v5776
      %v6523 = vpop.f32.mrf.mxu0
      %v6524 = vadd.f32 0.0, %v6523
      %v6525 = vpop.f32.mrf.mxu0
      %v6526 = vadd.f32 0.0, %v6525
      %v6527 = vpop.f32.mrf.mxu0
      %v6528 = vpop.f32.mrf.mxu0
      %6529 = vdwg.mxu0
      %v6530 = vadd.f32 %v4244, %v5909
      %v6531 = vadd.f32 %v4246, %v5911
      %v6532 = vadd.f32 %v4285, %v5950
      %v6533 = vadd.f32 %v4287, %v5952
      %v6534 = vadd.f32 %v4326, %v5991
      %v6535 = vadd.f32 %v4328, %v5993
      %v6536 = vadd.f32 %v4367, %v6032
      %v6537 = vadd.f32 %v4369, %v6034
      %v6538 = vadd.f32 %v4408, %v6073
      %v6539 = vadd.f32 %v4410, %v6075
      %v6540 = vadd.f32 %v4449, %v6114
      %v6541 = vadd.f32 %v4451, %v6116
      %v6542 = vadd.f32 %v4490, %v6155
      %v6543 = vadd.f32 %v4492, %v6157
      %v6544 = vadd.f32 %v4531, %v6196
      %v6545 = vadd.f32 %v4533, %v6198
      %v6546 = vadd.f32 %v4572, %v6237
      %v6547 = vadd.f32 %v4574, %v6239
      %v6548 = vadd.f32 %v4613, %v6278
      %v6549 = vadd.f32 %v4615, %v6280
      %v6550 = vadd.f32 %v4654, %v6319
      %v6551 = vadd.f32 %v4656, %v6321
      %v6552 = vadd.f32 %v4695, %v6360
      %v6553 = vadd.f32 %v4697, %v6362
      %v6554 = vadd.f32 %v4736, %v6401
      %v6555 = vadd.f32 %v4738, %v6403
      %v6556 = vadd.f32 %v4777, %v6442
      %v6557 = vadd.f32 %v4779, %v6444
      %v6558 = vadd.f32 %v4818, %v6483
      %v6559 = vadd.f32 %v4820, %v6485
      %v6560 = vadd.f32 %v4859, %v6524
      %v6561 = vadd.f32 %v4861, %v6526
      %v6562 = vld [vmem:[%s4] sm:$0x7]
      %6564 = vset.pattern.permute.xlu0 0
      %6565 = vperm.xlu0 %6564, %v6562
      %v6566 = vpop.permute.xlu0 %6565
      %v6568 = vadd.f32 %v6530, %v6566
      %v6569 = vadd.f32 %v6531, %v6566
      %v6570 = vadd.f32 %v6532, %v6566
      %v6571 = vadd.f32 %v6533, %v6566
      %v6572 = vadd.f32 %v6534, %v6566
      %v6573 = vadd.f32 %v6535, %v6566
      %v6574 = vadd.f32 %v6536, %v6566
      %v6575 = vadd.f32 %v6537, %v6566
      %v6576 = vadd.f32 %v6538, %v6566
      %v6577 = vadd.f32 %v6539, %v6566
      %v6578 = vadd.f32 %v6540, %v6566
      %v6579 = vadd.f32 %v6541, %v6566
      %v6580 = vadd.f32 %v6542, %v6566
      %v6581 = vadd.f32 %v6543, %v6566
      %v6582 = vadd.f32 %v6544, %v6566
      %v6583 = vadd.f32 %v6545, %v6566
      %v6584 = vadd.f32 %v6546, %v6566
      %v6585 = vadd.f32 %v6547, %v6566
      %v6586 = vadd.f32 %v6548, %v6566
      %v6587 = vadd.f32 %v6549, %v6566
      %v6588 = vadd.f32 %v6550, %v6566
      %v6589 = vadd.f32 %v6551, %v6566
      %v6590 = vadd.f32 %v6552, %v6566
      %v6591 = vadd.f32 %v6553, %v6566
      %v6592 = vadd.f32 %v6554, %v6566
      %v6593 = vadd.f32 %v6555, %v6566
      %v6594 = vadd.f32 %v6556, %v6566
      %v6595 = vadd.f32 %v6557, %v6566
      %v6596 = vadd.f32 %v6558, %v6566
      %v6597 = vadd.f32 %v6559, %v6566
      %v6598 = vadd.f32 %v6560, %v6566
      %v6599 = vadd.f32 %v6561, %v6566
      %v6600 = vtanh.pop %v6568
      %v6601 = vtanh.pop %v6569
      %v6602 = vtanh.pop %v6570
      %v6603 = vtanh.pop %v6571
      %v6604 = vtanh.pop %v6572
      %v6605 = vtanh.pop %v6573
      %v6606 = vtanh.pop %v6574
      %v6607 = vtanh.pop %v6575
      %v6608 = vtanh.pop %v6576
      %v6609 = vtanh.pop %v6577
      %v6610 = vtanh.pop %v6578
      %v6611 = vtanh.pop %v6579
      %v6612 = vtanh.pop %v6580
      %v6613 = vtanh.pop %v6581
      %v6614 = vtanh.pop %v6582
      %v6615 = vtanh.pop %v6583
      %v6616 = vtanh.pop %v6584
      %v6617 = vtanh.pop %v6585
      %v6618 = vtanh.pop %v6586
      %v6619 = vtanh.pop %v6587
      %v6620 = vtanh.pop %v6588
      %v6621 = vtanh.pop %v6589
      %v6622 = vtanh.pop %v6590
      %v6623 = vtanh.pop %v6591
      %v6624 = vtanh.pop %v6592
      %v6625 = vtanh.pop %v6593
      %v6626 = vtanh.pop %v6594
      %v6627 = vtanh.pop %v6595
      %v6628 = vtanh.pop %v6596
      %v6629 = vtanh.pop %v6597
      %v6630 = vtanh.pop %v6598
      %v6631 = vtanh.pop %v6599
      %v6664 = vcombine.low %v6600, %v6601
      %v6665 = vcombine.low %v6602, %v6603
      %v6666 = vcombine.low %v6604, %v6605
      %v6667 = vcombine.low %v6606, %v6607
      %v6668 = vcombine.low %v6608, %v6609
      %v6669 = vcombine.low %v6610, %v6611
      %v6670 = vcombine.low %v6612, %v6613
      %v6671 = vcombine.low %v6614, %v6615
      %v6672 = vcombine.low %v6616, %v6617
      %v6673 = vcombine.low %v6618, %v6619
      %v6674 = vcombine.low %v6620, %v6621
      %v6675 = vcombine.low %v6622, %v6623
      %v6676 = vcombine.low %v6624, %v6625
      %v6677 = vcombine.low %v6626, %v6627
      %v6678 = vcombine.low %v6628, %v6629
      %v6679 = vcombine.low %v6630, %v6631
      %6696 = vst [vmem:[%s224] sm:$0x77] %v6664
      %6697 = vst [vmem:[%s224 + $0x8] sm:$0x77] %v6665
      %6698 = vst [vmem:[%s224 + $0x10] sm:$0x77] %v6666
      %6699 = vst [vmem:[%s224 + $0x18] sm:$0x77] %v6667
      %6700 = vst [vmem:[%s224 + $0x20] sm:$0x77] %v6668
      %6701 = vst [vmem:[%s224 + $0x28] sm:$0x77] %v6669
      %6702 = vst [vmem:[%s224 + $0x30] sm:$0x77] %v6670
      %6703 = vst [vmem:[%s224 + $0x38] sm:$0x77] %v6671
      %6704 = vst [vmem:[%s224 + $0x40] sm:$0x77] %v6672
      %6705 = vst [vmem:[%s224 + $0x48] sm:$0x77] %v6673
      %6706 = vst [vmem:[%s224 + $0x50] sm:$0x77] %v6674
      %6707 = vst [vmem:[%s224 + $0x58] sm:$0x77] %v6675
      %6708 = vst [vmem:[%s224 + $0x60] sm:$0x77] %v6676
      %6709 = vst [vmem:[%s224 + $0x68] sm:$0x77] %v6677
      %6710 = vst [vmem:[%s224 + $0x70] sm:$0x77] %v6678
      %6711 = vst [vmem:[%s224 + $0x78] sm:$0x77] %v6679
      %p6712 = scmp.lt.s32.totalorder %s16, 1
      %s6713 = scalar_select %p6712, %s16, 1
      %s6714 = smul.addr %s6713, 32
      %s6715 = smul.addr %s6714, 4
      %s6716 = scalar_lea.vmem %s5, %s6715
      // Predicated region
      $region41: #{decoder_forward.5} parent=39 // pred_check
        %p6717 = pneg %p144
      $region42: #{decoder_forward.5} parent=39 // pred_check_branch
        %6719 = sbr.rel (%p6717) target = $region44
      $region43: #{decoder_forward.5} parent=39 // pred_region
        _
      $region44: #{decoder_forward.5} parent=39 // pred_fallthru
        _
    $region40: #{decoder_forward.5} parent=5 // pred_fallthru
      _
    %p6720 = scmp.le.s32.totalorder 2, %s11
    // Predicated region
    $region45: #{decoder_forward.5} parent=5 // pred_check
      %p6721 = pneg %p6720
    $region46: #{decoder_forward.5} parent=5 // pred_check_branch
      %6723 = sbr.rel (%p6721) target = $region48
    $region47: #{decoder_forward.5} parent=5 // pred_region
      %s6724 = ssub.s32 %s11, 2
      // Predicated region
      $region49: #{decoder_forward.5} parent=47 // pred_check
        %p6725 = pneg %p150
      $region50: #{decoder_forward.5} parent=47 // pred_check_branch
        %6727 = sbr.rel (%p6725) target = $region52
      $region51: #{decoder_forward.5} parent=47 // pred_region
        %p6728 = scmp.lt.s32.totalorder %s17, 1
        %s6729 = scalar_select %p6728, %s17, 1
        %s6730 = smul.addr %s6729, 32
        %s6731 = smul.addr %s6730, 4
        %s6732 = scalar_lea.vmem %s5, %s6731
      $region52: #{decoder_forward.5} parent=47 // pred_fallthru
        _
    $region48: #{decoder_forward.5} parent=5 // pred_fallthru
      _
  $region6: #{decoder_forward.5} parent=0 // loop_footer
    %s15 = sadd.s32 1, %s11
  $region7: #{decoder_forward.5} parent=0 // loop_footer_branch
    %10 = sbr.rel target = $region3
  $region8: #{decoder_forward.5} parent=0 // loop_exit
    _

</llo_original>
